<compile_context>
chip_gen: v6e
topology: v6e:2x2x1
jax: 0.10.0
libtpu: 0.0.40
codegen_flags: <defaults>
</compile_context>

<pallas_src>
import functools

import jax
import jax.numpy as jnp
from jax import lax
from jax.experimental import pallas as pl
from jax.experimental.pallas import tpu as pltpu


PAD = 9                                   # halo required by the 7x7 dilation-3 conv

# rows inside the packed "vecs" slab (must match build_kernel_params)
_R_WK1, _R_BK1, _R_BK3, _R_BK5, _R_BK7, _R_BSQ, _R_BF = range(7)
_R_K5 = 7                                 # 25 rows: depthwise 5x5 tap weights
_R_K7 = 32                                # 49 rows: depthwise 7x7 tap weights


def _psum(terms):
    """Balanced pairwise sum of a python list of arrays (better ILP than a chain)."""
    while len(terms) > 1:
        nxt = [terms[i] + terms[i + 1] for i in range(0, len(terms) - 1, 2)]
        if len(terms) % 2:
            nxt.append(terms[-1])
        terms = nxt
    return terms[0]


# ----------------------------------------------------------------------------
# Kernel: one batch element per grid step, folded (H, W*C) layout.
# ----------------------------------------------------------------------------
def _gci_kernel(x_ref,                    # (1, H, W*C)   unpadded folded input
                vecs_ref,                 # (81, W*C)     tiled per-channel weights/biases
                m256_ref,                 # (3*(W+2)*C + 4*W*C + W*C, W*C) matmul weights
                mci_ref,                  # (7, 2*(W+6), 4*W)  banded CI weights
                bci_ref,                  # (1, 4*W)
                e_ref,                    # (4*W, 4*W*C)  0/1 gate-broadcast matrix
                o_ref,                    # (1, H, W*C)
                xpad_ref,                 # VMEM scratch (H+18, (W+18)*C)
                attp_ref,                 # VMEM scratch (H+6, 2*(W+6))
                *, H, W, C):
    f32 = jnp.float32
    WC = W * C
    KB = (W + 2) * C                      # K of one banded 3x3 row-matmul
    OFF_SQ = 3 * KB                       # row offset of fused squeeze weight in m256
    OFF_F = OFF_SQ + 4 * WC               # row offset of final 1x1 weight in m256
    C4 = C // 4
    Wp6 = W + 6

    # ---- zero-padded folded input (halo 9) in VMEM scratch -------------------
    xc = x_ref[0]                                           # (H, W*C)
    xpad_ref[...] = jnp.zeros((H + 2 * PAD, (W + 2 * PAD) * C), f32)
    xpad_ref[PAD:PAD + H, PAD * C:PAD * C + WC] = xc

    def row(k):                                             # (1, W*C) slab row
        return vecs_ref[k:k + 1, :]

    # ---- f1: depthwise 1x1 (per-channel scale + bias), full-lane VPU ----------
    f1 = xc * row(_R_WK1) + row(_R_BK1)

    # ---- f2: dense 3x3, pad 1  ->  3 banded MXU matmuls -----------------------
    f2_parts = []
    for kh in range(3):
        xv = xpad_ref[PAD - 1 + kh:PAD - 1 + kh + H,
                      (PAD - 1) * C:(PAD - 1) * C + KB]     # (H, (W+2)*C)
        f2_parts.append(jnp.dot(xv, m256_ref[kh * KB:(kh + 1) * KB, :],
                                preferred_element_type=f32))
    f2 = _psum(f2_parts) + row(_R_BK3)

    # ---- depthwise dilated convs: fully unrolled full-lane FMAs ---------------
    def dw_conv(n_tap, row_base, stride, off, bias_row):
        parts = []
        for i in range(n_tap):
            r0 = off + stride * i
            acc = None
            for j in range(n_tap):
                c0 = (off + stride * j) * C
                t = xpad_ref[r0:r0 + H, c0:c0 + WC] * row(row_base + n_tap * i + j)
                acc = t if acc is None else acc + t
            parts.append(acc)
        return _psum(parts) + row(bias_row)

    f3 = dw_conv(5, _R_K5, 2, PAD - 4, _R_BK5)              # 5x5, dilation 2, pad 4
    f4 = dw_conv(7, _R_K7, 3, PAD - 9, _R_BK7)              # 7x7, dilation 3, pad 9

    # ---- four 1x1 squeezes fused into one MXU matmul (layout [branch][co][w]) -
    fcat = jnp.concatenate([f1, f2, f3, f4], axis=1)        # (H, 4*W*C)
    sq = jnp.dot(fcat, m256_ref[OFF_SQ:OFF_SQ + 4 * WC, :],
                 preferred_element_type=f32) + row(_R_BSQ)  # (H, 4*C4*W)

    br = [sq[:, k * C4 * W:(k + 1) * C4 * W] for k in range(4)]
    t = _psum(br)
    m = jnp.maximum(jnp.maximum(br[0], br[1]), jnp.maximum(br[2], br[3]))
    avg = _psum([t[:, k * W:(k + 1) * W] for k in range(C4)]) * (1.0 / (4 * C4))
    mx = functools.reduce(jnp.maximum, [m[:, k * W:(k + 1) * W] for k in range(C4)])

    # ---- Channel_Integration 7x7 (2->4ch, pad 3): 7 banded MXU matmuls --------
    attp_ref[...] = jnp.zeros((H + 6, 2 * Wp6), f32)
    attp_ref[3:3 + H, 3:3 + W] = avg
    attp_ref[3:3 + H, Wp6 + 3:Wp6 + 3 + W] = mx
    s = _psum([jnp.dot(attp_ref[kh:kh + H, :], mci_ref[kh],
                       preferred_element_type=f32) for kh in range(7)])
    sig = 1.0 / (1.0 + jnp.exp(-(s + bci_ref[...])))        # (H, 4*W)

    # ---- broadcast gates over channels via MXU, fuse, final 1x1, gate by x ----
    sig_exp = jnp.dot(sig, e_ref[...], preferred_element_type=f32)   # (H, 4*W*C)
    gated = fcat * sig_exp
    attn = _psum([gated[:, k * WC:(k + 1) * WC] for k in range(4)])
    final = jnp.dot(attn, m256_ref[OFF_F:OFF_F + WC, :],
                    preferred_element_type=f32) + row(_R_BF)
    o_ref[0] = xc * final


# ----------------------------------------------------------------------------
# Wrapper (NCHW in / NCHW out like the PyTorch module)
# ----------------------------------------------------------------------------
def get_contextual_information_pallas(x_nchw, P):
    N, C, H, W = x_nchw.shape
    assert C == 16, "module only type-checks for dim == 16"
    WC = W * C
    x_f = jnp.transpose(x_nchw, (0, 2, 3, 1)).reshape(N, H, WC).astype(jnp.float32)

    out = pl.pallas_call(
        functools.partial(_gci_kernel, H=H, W=W, C=C),
        out_shape=jax.ShapeDtypeStruct((N, H, WC), jnp.float32),
        grid=(N,),
        in_specs=[
            pl.BlockSpec((1, H, WC), lambda b: (b, 0, 0)),
            pl.BlockSpec(P["vecs"].shape, lambda b: (0, 0)),
            pl.BlockSpec(P["m256"].shape, lambda b: (0, 0)),
            pl.BlockSpec(P["mci"].shape, lambda b: (0, 0, 0)),
            pl.BlockSpec(P["bci"].shape, lambda b: (0, 0)),
            pl.BlockSpec(P["emat"].shape, lambda b: (0, 0)),
        ],
        out_specs=pl.BlockSpec((1, H, WC), lambda b: (b, 0, 0)),
        scratch_shapes=[
            pltpu.VMEM((H + 2 * PAD, (W + 2 * PAD) * C), jnp.float32),
            pltpu.VMEM((H + 6, 2 * (W + 6)), jnp.float32),
        ],
        compiler_params=pltpu.CompilerParams(
            dimension_semantics=("parallel",)),
    )(x_f, P["vecs"], P["m256"], P["mci"], P["bci"], P["emat"])

    return jnp.transpose(out.reshape(N, H, W, C), (0, 3, 1, 2))


# ----------------------------------------------------------------------------
# Pack PyTorch-layout parameters into the kernel's slabs (done once, eagerly).
# ----------------------------------------------------------------------------
def build_kernel_params(tp, W):
    f32 = jnp.float32
    C = tp["bk1"].shape[0]
    C4 = C // 4
    WC = W * C

    tile_w = lambda v: jnp.tile(v.astype(f32), W)           # (C,) -> (W*C,), idx w*C+c

    # ---- vector slab (81, W*C): tiled per-channel weights / biases -----------
    wk1_t = tile_w(tp["wk1"][:, 0, 0, 0])
    bk1_t = tile_w(tp["bk1"])
    bk3_t = tile_w(tp["bk3"])
    bk5_t = tile_w(tp["bk5"])
    bk7_t = tile_w(tp["bk7"])
    bsq = jnp.concatenate([jnp.repeat(tp[f"b{i}"].astype(f32), W) for i in (1, 2, 3, 4)])
    bf_t = tile_w(tp["bf"])
    wk5_rows = jnp.tile(jnp.transpose(tp["wk5"][:, 0], (1, 2, 0)).reshape(25, C), (1, W))
    wk7_rows = jnp.tile(jnp.transpose(tp["wk7"][:, 0], (1, 2, 0)).reshape(49, C), (1, W))
    vecs = jnp.concatenate(
        [jnp.stack([wk1_t, bk1_t, bk3_t, bk5_t, bk7_t, bsq, bf_t]),
         wk5_rows, wk7_rows], axis=0).astype(f32)            # (81, W*C)

    # ---- banded 3x3 weights: (3*(W+2)*C, W*C) ---------------------------------
    w3t = jnp.transpose(tp["wk3"], (2, 3, 1, 0)).astype(f32)   # (kh, kw, ci, co)
    KB = (W + 2) * C
    M3 = jnp.zeros((3, W + 2, C, W, C), f32)                   # (kh, wq, ci, w, co)
    for kw in range(3):
        band = jnp.eye(W + 2, W, k=-kw, dtype=f32)             # [wq == w + kw]
        M3 = M3 + band[None, :, None, :, None] * w3t[:, kw][:, None, :, None, :]
    M3 = M3.reshape(3 * KB, WC)

    # ---- fused squeeze weight: (4*W*C, 4*C4*W), output layout [branch][co][w] -
    Wb = jnp.stack([jnp.transpose(tp[f"w{i}"][:, :, 0, 0].astype(f32), (1, 0))
                    for i in (1, 2, 3, 4)])                    # (branch, ci, co)
    eyeB = jnp.eye(4, dtype=f32)
    eyeW = jnp.eye(W, dtype=f32)
    Wsq = (eyeB[:, None, None, :, None, None]
           * eyeW[None, :, None, None, None, :]
           * Wb[:, None, :, None, :, None])                    # (b, w, ci, b', co, w')
    Wsq = Wsq.reshape(4 * WC, 4 * C4 * W)

    # ---- final 1x1 conv: block-diagonal (W*C, W*C) ----------------------------
    Wfm = jnp.transpose(tp["wf"][:, :, 0, 0].astype(f32), (1, 0))      # (ci, co)
    WfBD = (eyeW[:, None, :, None] * Wfm[None, :, None, :]).reshape(WC, WC)

    m256 = jnp.concatenate([M3, Wsq, WfBD], axis=0)            # (3*KB + 4*WC + WC, WC)

    # ---- Channel_Integration banded weight: (7, 2*(W+6), 4*W) -----------------
    wcit = jnp.transpose(tp["wci"], (2, 3, 1, 0)).astype(f32)  # (kh, kw, cin, co)
    Wp6 = W + 6
    Mc = jnp.zeros((7, 2, Wp6, 4, W), f32)                     # (kh, cin, u, co, w)
    for kw in range(7):
        band = jnp.eye(Wp6, W, k=-kw, dtype=f32)               # [u == w + kw]
        Mc = Mc + band[None, None, :, None, :] * wcit[:, kw][:, :, None, :, None]
    Mci = Mc.reshape(7, 2 * Wp6, 4 * W)

    bci_t = jnp.repeat(tp["bci"].astype(f32), W).reshape(1, 4 * W)

    # ---- gate-broadcast expansion matrix (4*W, 4*W*C), 0/1 --------------------
    E = (jnp.eye(4, dtype=f32)[:, None, :, None, None]
         * eyeW[None, :, None, :, None]
         * jnp.ones((1, 1, 1, 1, C), f32)).reshape(4 * W, 4 * WC)

    return dict(vecs=vecs, m256=m256, mci=Mci, bci=bci_t, emat=E)


# ----------------------------------------------------------------------------
# Deterministic parameter init (PyTorch OIHW layout)
# ----------------------------------------------------------------------------
def init_torch_params(key, dim=16):
    ks = jax.random.split(key, 20)
    w = lambda k, shape: jax.random.normal(k, shape, jnp.float32) * 0.1
    return dict(
        wk1=w(ks[0], (dim, 1, 1, 1)),      bk1=w(ks[1], (dim,)),
        wk3=w(ks[2], (dim, dim, 3, 3)),    bk3=w(ks[3], (dim,)),
        wk5=w(ks[4], (dim, 1, 5, 5)),      bk5=w(ks[5], (dim,)),
        wk7=w(ks[6], (dim, 1, 7, 7)),      bk7=w(ks[7], (dim,)),
        w1=w(ks[8], (dim // 4, dim, 1, 1)),  b1=w(ks[9], (dim // 4,)),
        w2=w(ks[10], (dim // 4, dim, 1, 1)), b2=w(ks[11], (dim // 4,)),
        w3=w(ks[12], (dim // 4, dim, 1, 1)), b3=w(ks[13], (dim // 4,)),
        w4=w(ks[14], (dim // 4, dim, 1, 1)), b4=w(ks[15], (dim // 4,)),
        wci=w(ks[16], (4, 2, 7, 7)),       bci=w(ks[17], (4,)),
        wf=w(ks[18], (dim, 16, 1, 1)),     bf=w(ks[19], (dim,)),
    )


# ----------------------------------------------------------------------------
# Pure-JAX reference (mirrors the PyTorch forward, NCHW, f32-accurate)
# ----------------------------------------------------------------------------
def _conv2d_ref(x, w, b, padding=0, dilation=1, groups=1):
    y = lax.conv_general_dilated(
        x, w, window_strides=(1, 1),
        padding=[(padding, padding), (padding, padding)],
        rhs_dilation=(dilation, dilation),
        dimension_numbers=("NCHW", "OIHW", "NCHW"),
        feature_group_count=groups,
        precision=lax.Precision.HIGHEST)
    return y + b.reshape(1, -1, 1, 1)


def reference_forward(x, tp):
    C = x.shape[1]
    f1 = _conv2d_ref(x, tp["wk1"], tp["bk1"], groups=C)
    f2 = _conv2d_ref(x, tp["wk3"], tp["bk3"], padding=1)
    f3 = _conv2d_ref(x, tp["wk5"], tp["bk5"], padding=4, dilation=2, groups=C)
    f4 = _conv2d_ref(x, tp["wk7"], tp["bk7"], padding=9, dilation=3, groups=C)
    f1s = _conv2d_ref(f1, tp["w1"], tp["b1"])
    f2s = _conv2d_ref(f2, tp["w2"], tp["b2"])
    f3s = _conv2d_ref(f3, tp["w3"], tp["b3"])
    f4s = _conv2d_ref(f4, tp["w4"], tp["b4"])
    ci = jnp.concatenate([f1s, f2s, f3s, f4s], axis=1)
    avg = jnp.mean(ci, axis=1, keepdims=True)
    mx = jnp.max(ci, axis=1, keepdims=True)
    atten = jnp.concatenate([avg, mx], axis=1)
    sig = jax.nn.sigmoid(_conv2d_ref(atten, tp["wci"], tp["bci"], padding=3))
    attn = (f1 * sig[:, 0:1] + f2 * sig[:, 1:2]
            + f3 * sig[:, 2:3] + f4 * sig[:, 3:4])
    attn = _conv2d_ref(attn, tp["wf"], tp["bf"])
    return x * attn


# ----------------------------------------------------------------------------
if __name__ == "__main__":
    dim, N, H, W = 16, 2, 16, 16              # module forces dim == 16
    key = jax.random.PRNGKey(0)
    kx, kp = jax.random.split(key)

    x = jax.random.normal(kx, (N, dim, H, W), jnp.float32)   # NCHW like PyTorch
    torch_params = init_torch_params(kp, dim)
    packed = build_kernel_params(torch_params, W=W)

    fwd = jax.jit(get_contextual_information_pallas)
    out = jax.block_until_ready(fwd(x, packed))

    ref = reference_forward(x, torch_params)
    assert out.shape == (N, dim, H, W)
    err = float(jnp.max(jnp.abs(out - ref)))
    assert err < 5e-3, f"kernel/reference mismatch: max abs err = {err}"

    print("KERNEL_OK")
</pallas_src>

<mosaic_0001>
module attributes {stable_mosaic.version = 11 : i64} {
  func.func @_gci_kernel(%arg0: i32, %arg1: memref<1x16x256xf32, #tpu.memory_space<vmem>>, %arg2: memref<81x256xf32, #tpu.memory_space<vmem>>, %arg3: memref<2144x256xf32, #tpu.memory_space<vmem>>, %arg4: memref<7x44x64xf32, #tpu.memory_space<vmem>>, %arg5: memref<1x64xf32, #tpu.memory_space<vmem>>, %arg6: memref<64x1024xf32, #tpu.memory_space<vmem>>, %arg7: memref<1x16x256xf32, #tpu.memory_space<vmem>>, %arg8: memref<34x544xf32, #tpu.memory_space<vmem>>, %arg9: memref<22x44xf32, #tpu.memory_space<vmem>>) attributes {dimension_semantics = [#tpu.dimension_semantics<parallel>], iteration_bounds = array<i64: 2>, scalar_prefetch = 0 : i64, scratch_operands = 2 : i64, tpu.core_type = #tpu.core_type<tc>, window_params = [{transform_indices = @transform_0, window_bounds = array<i64: 1, 16, 256>}, {pipeline_mode = #tpu.pipeline_mode<synchronous>, transform_indices = @transform_1, window_bounds = array<i64: 81, 256>}, {pipeline_mode = #tpu.pipeline_mode<synchronous>, transform_indices = @transform_2, window_bounds = array<i64: 2144, 256>}, {pipeline_mode = #tpu.pipeline_mode<synchronous>, transform_indices = @transform_3, window_bounds = array<i64: 7, 44, 64>}, {pipeline_mode = #tpu.pipeline_mode<synchronous>, transform_indices = @transform_4, window_bounds = array<i64: 1, 64>}, {pipeline_mode = #tpu.pipeline_mode<synchronous>, transform_indices = @transform_5, window_bounds = array<i64: 64, 1024>}, {transform_indices = @transform_6, window_bounds = array<i64: 1, 16, 256>}]} {
    %c0 = arith.constant 0 : index
    %c0_0 = arith.constant 0 : index
    %c0_1 = arith.constant 0 : index
    %0 = vector.load %arg1[%c0, %c0_0, %c0_1] : memref<1x16x256xf32, #tpu.memory_space<vmem>>, vector<1x16x256xf32>
    %1 = vector.shape_cast %0 : vector<1x16x256xf32> to vector<16x256xf32>
    %cst = arith.constant 0.000000e+00 : f32
    %2 = vector.broadcast %cst : f32 to vector<34x544xf32>
    %c0_2 = arith.constant 0 : index
    %c0_3 = arith.constant 0 : index
    %3 = vector.load %arg8[%c0_2, %c0_3] : memref<34x544xf32, #tpu.memory_space<vmem>>, vector<34x544xf32>
    tpu.vector_store %arg8[%c0_2, %c0_3], %2 {strides = array<i32>} : memref<34x544xf32, #tpu.memory_space<vmem>>, vector<34x544xf32>,
    %c9 = arith.constant 9 : index
    %c144 = arith.constant 144 : index
    %4 = vector.load %arg8[%c9, %c144] : memref<34x544xf32, #tpu.memory_space<vmem>>, vector<16x256xf32>
    tpu.vector_store %arg8[%c9, %c144], %1 {strides = array<i32>} : memref<34x544xf32, #tpu.memory_space<vmem>>, vector<16x256xf32>,
    %c0_4 = arith.constant 0 : index
    %c0_5 = arith.constant 0 : index
    %5 = vector.load %arg2[%c0_4, %c0_5] : memref<81x256xf32, #tpu.memory_space<vmem>>, vector<1x256xf32>
    %6 = vector.broadcast %5 : vector<1x256xf32> to vector<16x256xf32>
    %7 = arith.mulf %1, %6 : vector<16x256xf32>
    %c1 = arith.constant 1 : index
    %c0_6 = arith.constant 0 : index
    %8 = vector.load %arg2[%c1, %c0_6] : memref<81x256xf32, #tpu.memory_space<vmem>>, vector<1x256xf32>
    %9 = vector.broadcast %8 : vector<1x256xf32> to vector<16x256xf32>
    %10 = arith.addf %7, %9 : vector<16x256xf32>
    %c8 = arith.constant 8 : index
    %c128 = arith.constant 128 : index
    %11 = vector.load %arg8[%c8, %c128] : memref<34x544xf32, #tpu.memory_space<vmem>>, vector<16x288xf32>
    %c0_7 = arith.constant 0 : index
    %c0_8 = arith.constant 0 : index
    %12 = vector.load %arg3[%c0_7, %c0_8] : memref<2144x256xf32, #tpu.memory_space<vmem>>, vector<288x256xf32>
    %cst_9 = arith.constant dense<0.000000e+00> : vector<16x256xf32>
    %13 = tpu.matmul %11, %12, %cst_9 {dimension_numbers = #tpu.dot_dimension_numbers<[1], [0], [0], [1], [0, 0, 1, 1], [], []>} : vector<16x288xf32>, vector<288x256xf32>, vector<16x256xf32> -> vector<16x256xf32>
    %c9_10 = arith.constant 9 : index
    %c128_11 = arith.constant 128 : index
    %14 = vector.load %arg8[%c9_10, %c128_11] : memref<34x544xf32, #tpu.memory_space<vmem>>, vector<16x288xf32>
    %c288 = arith.constant 288 : index
    %c0_12 = arith.constant 0 : index
    %15 = vector.load %arg3[%c288, %c0_12] : memref<2144x256xf32, #tpu.memory_space<vmem>>, vector<288x256xf32>
    %cst_13 = arith.constant dense<0.000000e+00> : vector<16x256xf32>
    %16 = tpu.matmul %14, %15, %cst_13 {dimension_numbers = #tpu.dot_dimension_numbers<[1], [0], [0], [1], [0, 0, 1, 1], [], []>} : vector<16x288xf32>, vector<288x256xf32>, vector<16x256xf32> -> vector<16x256xf32>
    %c10 = arith.constant 10 : index
    %c128_14 = arith.constant 128 : index
    %17 = vector.load %arg8[%c10, %c128_14] : memref<34x544xf32, #tpu.memory_space<vmem>>, vector<16x288xf32>
    %c576 = arith.constant 576 : index
    %c0_15 = arith.constant 0 : index
    %18 = vector.load %arg3[%c576, %c0_15] : memref<2144x256xf32, #tpu.memory_space<vmem>>, vector<288x256xf32>
    %cst_16 = arith.constant dense<0.000000e+00> : vector<16x256xf32>
    %19 = tpu.matmul %17, %18, %cst_16 {dimension_numbers = #tpu.dot_dimension_numbers<[1], [0], [0], [1], [0, 0, 1, 1], [], []>} : vector<16x288xf32>, vector<288x256xf32>, vector<16x256xf32> -> vector<16x256xf32>
    %20 = arith.addf %13, %16 : vector<16x256xf32>
    %21 = arith.addf %20, %19 : vector<16x256xf32>
    %c2 = arith.constant 2 : index
    %c0_17 = arith.constant 0 : index
    %22 = vector.load %arg2[%c2, %c0_17] : memref<81x256xf32, #tpu.memory_space<vmem>>, vector<1x256xf32>
    %23 = vector.broadcast %22 : vector<1x256xf32> to vector<16x256xf32>
    %24 = arith.addf %21, %23 : vector<16x256xf32>
    %c5 = arith.constant 5 : index
    %c80 = arith.constant 80 : index
    %25 = vector.load %arg8[%c5, %c80] : memref<34x544xf32, #tpu.memory_space<vmem>>, vector<16x256xf32>
    %c7 = arith.constant 7 : index
    %c0_18 = arith.constant 0 : index
    %26 = vector.load %arg2[%c7, %c0_18] : memref<81x256xf32, #tpu.memory_space<vmem>>, vector<1x256xf32>
    %27 = vector.broadcast %26 : vector<1x256xf32> to vector<16x256xf32>
    %28 = arith.mulf %25, %27 : vector<16x256xf32>
    %c5_19 = arith.constant 5 : index
    %c112 = arith.constant 112 : index
    %29 = vector.load %arg8[%c5_19, %c112] : memref<34x544xf32, #tpu.memory_space<vmem>>, vector<16x256xf32>
    %c8_20 = arith.constant 8 : index
    %c0_21 = arith.constant 0 : index
    %30 = vector.load %arg2[%c8_20, %c0_21] : memref<81x256xf32, #tpu.memory_space<vmem>>, vector<1x256xf32>
    %31 = vector.broadcast %30 : vector<1x256xf32> to vector<16x256xf32>
    %32 = arith.mulf %29, %31 : vector<16x256xf32>
    %33 = arith.addf %28, %32 : vector<16x256xf32>
    %c5_22 = arith.constant 5 : index
    %c144_23 = arith.constant 144 : index
    %34 = vector.load %arg8[%c5_22, %c144_23] : memref<34x544xf32, #tpu.memory_space<vmem>>, vector<16x256xf32>
    %c9_24 = arith.constant 9 : index
    %c0_25 = arith.constant 0 : index
    %35 = vector.load %arg2[%c9_24, %c0_25] : memref<81x256xf32, #tpu.memory_space<vmem>>, vector<1x256xf32>
    %36 = vector.broadcast %35 : vector<1x256xf32> to vector<16x256xf32>
    %37 = arith.mulf %34, %36 : vector<16x256xf32>
    %38 = arith.addf %33, %37 : vector<16x256xf32>
    %c5_26 = arith.constant 5 : index
    %c176 = arith.constant 176 : index
    %39 = vector.load %arg8[%c5_26, %c176] : memref<34x544xf32, #tpu.memory_space<vmem>>, vector<16x256xf32>
    %c10_27 = arith.constant 10 : index
    %c0_28 = arith.constant 0 : index
    %40 = vector.load %arg2[%c10_27, %c0_28] : memref<81x256xf32, #tpu.memory_space<vmem>>, vector<1x256xf32>
    %41 = vector.broadcast %40 : vector<1x256xf32> to vector<16x256xf32>
    %42 = arith.mulf %39, %41 : vector<16x256xf32>
    %43 = arith.addf %38, %42 : vector<16x256xf32>
    %c5_29 = arith.constant 5 : index
    %c208 = arith.constant 208 : index
    %44 = vector.load %arg8[%c5_29, %c208] : memref<34x544xf32, #tpu.memory_space<vmem>>, vector<16x256xf32>
    %c11 = arith.constant 11 : index
    %c0_30 = arith.constant 0 : index
    %45 = vector.load %arg2[%c11, %c0_30] : memref<81x256xf32, #tpu.memory_space<vmem>>, vector<1x256xf32>
    %46 = vector.broadcast %45 : vector<1x256xf32> to vector<16x256xf32>
    %47 = arith.mulf %44, %46 : vector<16x256xf32>
    %48 = arith.addf %43, %47 : vector<16x256xf32>
    %c7_31 = arith.constant 7 : index
    %c80_32 = arith.constant 80 : index
    %49 = vector.load %arg8[%c7_31, %c80_32] : memref<34x544xf32, #tpu.memory_space<vmem>>, vector<16x256xf32>
    %c12 = arith.constant 12 : index
    %c0_33 = arith.constant 0 : index
    %50 = vector.load %arg2[%c12, %c0_33] : memref<81x256xf32, #tpu.memory_space<vmem>>, vector<1x256xf32>
    %51 = vector.broadcast %50 : vector<1x256xf32> to vector<16x256xf32>
    %52 = arith.mulf %49, %51 : vector<16x256xf32>
    %c7_34 = arith.constant 7 : index
    %c112_35 = arith.constant 112 : index
    %53 = vector.load %arg8[%c7_34, %c112_35] : memref<34x544xf32, #tpu.memory_space<vmem>>, vector<16x256xf32>
    %c13 = arith.constant 13 : index
    %c0_36 = arith.constant 0 : index
    %54 = vector.load %arg2[%c13, %c0_36] : memref<81x256xf32, #tpu.memory_space<vmem>>, vector<1x256xf32>
    %55 = vector.broadcast %54 : vector<1x256xf32> to vector<16x256xf32>
    %56 = arith.mulf %53, %55 : vector<16x256xf32>
    %57 = arith.addf %52, %56 : vector<16x256xf32>
    %c7_37 = arith.constant 7 : index
    %c144_38 = arith.constant 144 : index
    %58 = vector.load %arg8[%c7_37, %c144_38] : memref<34x544xf32, #tpu.memory_space<vmem>>, vector<16x256xf32>
    %c14 = arith.constant 14 : index
    %c0_39 = arith.constant 0 : index
    %59 = vector.load %arg2[%c14, %c0_39] : memref<81x256xf32, #tpu.memory_space<vmem>>, vector<1x256xf32>
    %60 = vector.broadcast %59 : vector<1x256xf32> to vector<16x256xf32>
    %61 = arith.mulf %58, %60 : vector<16x256xf32>
    %62 = arith.addf %57, %61 : vector<16x256xf32>
    %c7_40 = arith.constant 7 : index
    %c176_41 = arith.constant 176 : index
    %63 = vector.load %arg8[%c7_40, %c176_41] : memref<34x544xf32, #tpu.memory_space<vmem>>, vector<16x256xf32>
    %c15 = arith.constant 15 : index
    %c0_42 = arith.constant 0 : index
    %64 = vector.load %arg2[%c15, %c0_42] : memref<81x256xf32, #tpu.memory_space<vmem>>, vector<1x256xf32>
    %65 = vector.broadcast %64 : vector<1x256xf32> to vector<16x256xf32>
    %66 = arith.mulf %63, %65 : vector<16x256xf32>
    %67 = arith.addf %62, %66 : vector<16x256xf32>
    %c7_43 = arith.constant 7 : index
    %c208_44 = arith.constant 208 : index
    %68 = vector.load %arg8[%c7_43, %c208_44] : memref<34x544xf32, #tpu.memory_space<vmem>>, vector<16x256xf32>
    %c16 = arith.constant 16 : index
    %c0_45 = arith.constant 0 : index
    %69 = vector.load %arg2[%c16, %c0_45] : memref<81x256xf32, #tpu.memory_space<vmem>>, vector<1x256xf32>
    %70 = vector.broadcast %69 : vector<1x256xf32> to vector<16x256xf32>
    %71 = arith.mulf %68, %70 : vector<16x256xf32>
    %72 = arith.addf %67, %71 : vector<16x256xf32>
    %c9_46 = arith.constant 9 : index
    %c80_47 = arith.constant 80 : index
    %73 = vector.load %arg8[%c9_46, %c80_47] : memref<34x544xf32, #tpu.memory_space<vmem>>, vector<16x256xf32>
    %c17 = arith.constant 17 : index
    %c0_48 = arith.constant 0 : index
    %74 = vector.load %arg2[%c17, %c0_48] : memref<81x256xf32, #tpu.memory_space<vmem>>, vector<1x256xf32>
    %75 = vector.broadcast %74 : vector<1x256xf32> to vector<16x256xf32>
    %76 = arith.mulf %73, %75 : vector<16x256xf32>
    %c9_49 = arith.constant 9 : index
    %c112_50 = arith.constant 112 : index
    %77 = vector.load %arg8[%c9_49, %c112_50] : memref<34x544xf32, #tpu.memory_space<vmem>>, vector<16x256xf32>
    %c18 = arith.constant 18 : index
    %c0_51 = arith.constant 0 : index
    %78 = vector.load %arg2[%c18, %c0_51] : memref<81x256xf32, #tpu.memory_space<vmem>>, vector<1x256xf32>
    %79 = vector.broadcast %78 : vector<1x256xf32> to vector<16x256xf32>
    %80 = arith.mulf %77, %79 : vector<16x256xf32>
    %81 = arith.addf %76, %80 : vector<16x256xf32>
    %c9_52 = arith.constant 9 : index
    %c144_53 = arith.constant 144 : index
    %82 = vector.load %arg8[%c9_52, %c144_53] : memref<34x544xf32, #tpu.memory_space<vmem>>, vector<16x256xf32>
    %c19 = arith.constant 19 : index
    %c0_54 = arith.constant 0 : index
    %83 = vector.load %arg2[%c19, %c0_54] : memref<81x256xf32, #tpu.memory_space<vmem>>, vector<1x256xf32>
    %84 = vector.broadcast %83 : vector<1x256xf32> to vector<16x256xf32>
    %85 = arith.mulf %82, %84 : vector<16x256xf32>
    %86 = arith.addf %81, %85 : vector<16x256xf32>
    %c9_55 = arith.constant 9 : index
    %c176_56 = arith.constant 176 : index
    %87 = vector.load %arg8[%c9_55, %c176_56] : memref<34x544xf32, #tpu.memory_space<vmem>>, vector<16x256xf32>
    %c20 = arith.constant 20 : index
    %c0_57 = arith.constant 0 : index
    %88 = vector.load %arg2[%c20, %c0_57] : memref<81x256xf32, #tpu.memory_space<vmem>>, vector<1x256xf32>
    %89 = vector.broadcast %88 : vector<1x256xf32> to vector<16x256xf32>
    %90 = arith.mulf %87, %89 : vector<16x256xf32>
    %91 = arith.addf %86, %90 : vector<16x256xf32>
    %c9_58 = arith.constant 9 : index
    %c208_59 = arith.constant 208 : index
    %92 = vector.load %arg8[%c9_58, %c208_59] : memref<34x544xf32, #tpu.memory_space<vmem>>, vector<16x256xf32>
    %c21 = arith.constant 21 : index
    %c0_60 = arith.constant 0 : index
    %93 = vector.load %arg2[%c21, %c0_60] : memref<81x256xf32, #tpu.memory_space<vmem>>, vector<1x256xf32>
    %94 = vector.broadcast %93 : vector<1x256xf32> to vector<16x256xf32>
    %95 = arith.mulf %92, %94 : vector<16x256xf32>
    %96 = arith.addf %91, %95 : vector<16x256xf32>
    %c11_61 = arith.constant 11 : index
    %c80_62 = arith.constant 80 : index
    %97 = vector.load %arg8[%c11_61, %c80_62] : memref<34x544xf32, #tpu.memory_space<vmem>>, vector<16x256xf32>
    %c22 = arith.constant 22 : index
    %c0_63 = arith.constant 0 : index
    %98 = vector.load %arg2[%c22, %c0_63] : memref<81x256xf32, #tpu.memory_space<vmem>>, vector<1x256xf32>
    %99 = vector.broadcast %98 : vector<1x256xf32> to vector<16x256xf32>
    %100 = arith.mulf %97, %99 : vector<16x256xf32>
    %c11_64 = arith.constant 11 : index
    %c112_65 = arith.constant 112 : index
    %101 = vector.load %arg8[%c11_64, %c112_65] : memref<34x544xf32, #tpu.memory_space<vmem>>, vector<16x256xf32>
    %c23 = arith.constant 23 : index
    %c0_66 = arith.constant 0 : index
    %102 = vector.load %arg2[%c23, %c0_66] : memref<81x256xf32, #tpu.memory_space<vmem>>, vector<1x256xf32>
    %103 = vector.broadcast %102 : vector<1x256xf32> to vector<16x256xf32>
    %104 = arith.mulf %101, %103 : vector<16x256xf32>
    %105 = arith.addf %100, %104 : vector<16x256xf32>
    %c11_67 = arith.constant 11 : index
    %c144_68 = arith.constant 144 : index
    %106 = vector.load %arg8[%c11_67, %c144_68] : memref<34x544xf32, #tpu.memory_space<vmem>>, vector<16x256xf32>
    %c24 = arith.constant 24 : index
    %c0_69 = arith.constant 0 : index
    %107 = vector.load %arg2[%c24, %c0_69] : memref<81x256xf32, #tpu.memory_space<vmem>>, vector<1x256xf32>
    %108 = vector.broadcast %107 : vector<1x256xf32> to vector<16x256xf32>
    %109 = arith.mulf %106, %108 : vector<16x256xf32>
    %110 = arith.addf %105, %109 : vector<16x256xf32>
    %c11_70 = arith.constant 11 : index
    %c176_71 = arith.constant 176 : index
    %111 = vector.load %arg8[%c11_70, %c176_71] : memref<34x544xf32, #tpu.memory_space<vmem>>, vector<16x256xf32>
    %c25 = arith.constant 25 : index
    %c0_72 = arith.constant 0 : index
    %112 = vector.load %arg2[%c25, %c0_72] : memref<81x256xf32, #tpu.memory_space<vmem>>, vector<1x256xf32>
    %113 = vector.broadcast %112 : vector<1x256xf32> to vector<16x256xf32>
    %114 = arith.mulf %111, %113 : vector<16x256xf32>
    %115 = arith.addf %110, %114 : vector<16x256xf32>
    %c11_73 = arith.constant 11 : index
    %c208_74 = arith.constant 208 : index
    %116 = vector.load %arg8[%c11_73, %c208_74] : memref<34x544xf32, #tpu.memory_space<vmem>>, vector<16x256xf32>
    %c26 = arith.constant 26 : index
    %c0_75 = arith.constant 0 : index
    %117 = vector.load %arg2[%c26, %c0_75] : memref<81x256xf32, #tpu.memory_space<vmem>>, vector<1x256xf32>
    %118 = vector.broadcast %117 : vector<1x256xf32> to vector<16x256xf32>
    %119 = arith.mulf %116, %118 : vector<16x256xf32>
    %120 = arith.addf %115, %119 : vector<16x256xf32>
    %c13_76 = arith.constant 13 : index
    %c80_77 = arith.constant 80 : index
    %121 = vector.load %arg8[%c13_76, %c80_77] : memref<34x544xf32, #tpu.memory_space<vmem>>, vector<16x256xf32>
    %c27 = arith.constant 27 : index
    %c0_78 = arith.constant 0 : index
    %122 = vector.load %arg2[%c27, %c0_78] : memref<81x256xf32, #tpu.memory_space<vmem>>, vector<1x256xf32>
    %123 = vector.broadcast %122 : vector<1x256xf32> to vector<16x256xf32>
    %124 = arith.mulf %121, %123 : vector<16x256xf32>
    %c13_79 = arith.constant 13 : index
    %c112_80 = arith.constant 112 : index
    %125 = vector.load %arg8[%c13_79, %c112_80] : memref<34x544xf32, #tpu.memory_space<vmem>>, vector<16x256xf32>
    %c28 = arith.constant 28 : index
    %c0_81 = arith.constant 0 : index
    %126 = vector.load %arg2[%c28, %c0_81] : memref<81x256xf32, #tpu.memory_space<vmem>>, vector<1x256xf32>
    %127 = vector.broadcast %126 : vector<1x256xf32> to vector<16x256xf32>
    %128 = arith.mulf %125, %127 : vector<16x256xf32>
    %129 = arith.addf %124, %128 : vector<16x256xf32>
    %c13_82 = arith.constant 13 : index
    %c144_83 = arith.constant 144 : index
    %130 = vector.load %arg8[%c13_82, %c144_83] : memref<34x544xf32, #tpu.memory_space<vmem>>, vector<16x256xf32>
    %c29 = arith.constant 29 : index
    %c0_84 = arith.constant 0 : index
    %131 = vector.load %arg2[%c29, %c0_84] : memref<81x256xf32, #tpu.memory_space<vmem>>, vector<1x256xf32>
    %132 = vector.broadcast %131 : vector<1x256xf32> to vector<16x256xf32>
    %133 = arith.mulf %130, %132 : vector<16x256xf32>
    %134 = arith.addf %129, %133 : vector<16x256xf32>
    %c13_85 = arith.constant 13 : index
    %c176_86 = arith.constant 176 : index
    %135 = vector.load %arg8[%c13_85, %c176_86] : memref<34x544xf32, #tpu.memory_space<vmem>>, vector<16x256xf32>
    %c30 = arith.constant 30 : index
    %c0_87 = arith.constant 0 : index
    %136 = vector.load %arg2[%c30, %c0_87] : memref<81x256xf32, #tpu.memory_space<vmem>>, vector<1x256xf32>
    %137 = vector.broadcast %136 : vector<1x256xf32> to vector<16x256xf32>
    %138 = arith.mulf %135, %137 : vector<16x256xf32>
    %139 = arith.addf %134, %138 : vector<16x256xf32>
    %c13_88 = arith.constant 13 : index
    %c208_89 = arith.constant 208 : index
    %140 = vector.load %arg8[%c13_88, %c208_89] : memref<34x544xf32, #tpu.memory_space<vmem>>, vector<16x256xf32>
    %c31 = arith.constant 31 : index
    %c0_90 = arith.constant 0 : index
    %141 = vector.load %arg2[%c31, %c0_90] : memref<81x256xf32, #tpu.memory_space<vmem>>, vector<1x256xf32>
    %142 = vector.broadcast %141 : vector<1x256xf32> to vector<16x256xf32>
    %143 = arith.mulf %140, %142 : vector<16x256xf32>
    %144 = arith.addf %139, %143 : vector<16x256xf32>
    %145 = arith.addf %48, %72 : vector<16x256xf32>
    %146 = arith.addf %96, %120 : vector<16x256xf32>
    %147 = arith.addf %145, %146 : vector<16x256xf32>
    %148 = arith.addf %147, %144 : vector<16x256xf32>
    %c3 = arith.constant 3 : index
    %c0_91 = arith.constant 0 : index
    %149 = vector.load %arg2[%c3, %c0_91] : memref<81x256xf32, #tpu.memory_space<vmem>>, vector<1x256xf32>
    %150 = vector.broadcast %149 : vector<1x256xf32> to vector<16x256xf32>
    %151 = arith.addf %148, %150 : vector<16x256xf32>
    %c0_92 = arith.constant 0 : index
    %c0_93 = arith.constant 0 : index
    %152 = vector.load %arg8[%c0_92, %c0_93] : memref<34x544xf32, #tpu.memory_space<vmem>>, vector<16x256xf32>
    %c32 = arith.constant 32 : index
    %c0_94 = arith.constant 0 : index
    %153 = vector.load %arg2[%c32, %c0_94] : memref<81x256xf32, #tpu.memory_space<vmem>>, vector<1x256xf32>
    %154 = vector.broadcast %153 : vector<1x256xf32> to vector<16x256xf32>
    %155 = arith.mulf %152, %154 : vector<16x256xf32>
    %c0_95 = arith.constant 0 : index
    %c48 = arith.constant 48 : index
    %156 = vector.load %arg8[%c0_95, %c48] : memref<34x544xf32, #tpu.memory_space<vmem>>, vector<16x256xf32>
    %c33 = arith.constant 33 : index
    %c0_96 = arith.constant 0 : index
    %157 = vector.load %arg2[%c33, %c0_96] : memref<81x256xf32, #tpu.memory_space<vmem>>, vector<1x256xf32>
    %158 = vector.broadcast %157 : vector<1x256xf32> to vector<16x256xf32>
    %159 = arith.mulf %156, %158 : vector<16x256xf32>
    %160 = arith.addf %155, %159 : vector<16x256xf32>
    %c0_97 = arith.constant 0 : index
    %c96 = arith.constant 96 : index
    %161 = vector.load %arg8[%c0_97, %c96] : memref<34x544xf32, #tpu.memory_space<vmem>>, vector<16x256xf32>
    %c34 = arith.constant 34 : index
    %c0_98 = arith.constant 0 : index
    %162 = vector.load %arg2[%c34, %c0_98] : memref<81x256xf32, #tpu.memory_space<vmem>>, vector<1x256xf32>
    %163 = vector.broadcast %162 : vector<1x256xf32> to vector<16x256xf32>
    %164 = arith.mulf %161, %163 : vector<16x256xf32>
    %165 = arith.addf %160, %164 : vector<16x256xf32>
    %c0_99 = arith.constant 0 : index
    %c144_100 = arith.constant 144 : index
    %166 = vector.load %arg8[%c0_99, %c144_100] : memref<34x544xf32, #tpu.memory_space<vmem>>, vector<16x256xf32>
    %c35 = arith.constant 35 : index
    %c0_101 = arith.constant 0 : index
    %167 = vector.load %arg2[%c35, %c0_101] : memref<81x256xf32, #tpu.memory_space<vmem>>, vector<1x256xf32>
    %168 = vector.broadcast %167 : vector<1x256xf32> to vector<16x256xf32>
    %169 = arith.mulf %166, %168 : vector<16x256xf32>
    %170 = arith.addf %165, %169 : vector<16x256xf32>
    %c0_102 = arith.constant 0 : index
    %c192 = arith.constant 192 : index
    %171 = vector.load %arg8[%c0_102, %c192] : memref<34x544xf32, #tpu.memory_space<vmem>>, vector<16x256xf32>
    %c36 = arith.constant 36 : index
    %c0_103 = arith.constant 0 : index
    %172 = vector.load %arg2[%c36, %c0_103] : memref<81x256xf32, #tpu.memory_space<vmem>>, vector<1x256xf32>
    %173 = vector.broadcast %172 : vector<1x256xf32> to vector<16x256xf32>
    %174 = arith.mulf %171, %173 : vector<16x256xf32>
    %175 = arith.addf %170, %174 : vector<16x256xf32>
    %c0_104 = arith.constant 0 : index
    %c240 = arith.constant 240 : index
    %176 = vector.load %arg8[%c0_104, %c240] : memref<34x544xf32, #tpu.memory_space<vmem>>, vector<16x256xf32>
    %c37 = arith.constant 37 : index
    %c0_105 = arith.constant 0 : index
    %177 = vector.load %arg2[%c37, %c0_105] : memref<81x256xf32, #tpu.memory_space<vmem>>, vector<1x256xf32>
    %178 = vector.broadcast %177 : vector<1x256xf32> to vector<16x256xf32>
    %179 = arith.mulf %176, %178 : vector<16x256xf32>
    %180 = arith.addf %175, %179 : vector<16x256xf32>
    %c0_106 = arith.constant 0 : index
    %c288_107 = arith.constant 288 : index
    %181 = vector.load %arg8[%c0_106, %c288_107] : memref<34x544xf32, #tpu.memory_space<vmem>>, vector<16x256xf32>
    %c38 = arith.constant 38 : index
    %c0_108 = arith.constant 0 : index
    %182 = vector.load %arg2[%c38, %c0_108] : memref<81x256xf32, #tpu.memory_space<vmem>>, vector<1x256xf32>
    %183 = vector.broadcast %182 : vector<1x256xf32> to vector<16x256xf32>
    %184 = arith.mulf %181, %183 : vector<16x256xf32>
    %185 = arith.addf %180, %184 : vector<16x256xf32>
    %c3_109 = arith.constant 3 : index
    %c0_110 = arith.constant 0 : index
    %186 = vector.load %arg8[%c3_109, %c0_110] : memref<34x544xf32, #tpu.memory_space<vmem>>, vector<16x256xf32>
    %c39 = arith.constant 39 : index
    %c0_111 = arith.constant 0 : index
    %187 = vector.load %arg2[%c39, %c0_111] : memref<81x256xf32, #tpu.memory_space<vmem>>, vector<1x256xf32>
    %188 = vector.broadcast %187 : vector<1x256xf32> to vector<16x256xf32>
    %189 = arith.mulf %186, %188 : vector<16x256xf32>
    %c3_112 = arith.constant 3 : index
    %c48_113 = arith.constant 48 : index
    %190 = vector.load %arg8[%c3_112, %c48_113] : memref<34x544xf32, #tpu.memory_space<vmem>>, vector<16x256xf32>
    %c40 = arith.constant 40 : index
    %c0_114 = arith.constant 0 : index
    %191 = vector.load %arg2[%c40, %c0_114] : memref<81x256xf32, #tpu.memory_space<vmem>>, vector<1x256xf32>
    %192 = vector.broadcast %191 : vector<1x256xf32> to vector<16x256xf32>
    %193 = arith.mulf %190, %192 : vector<16x256xf32>
    %194 = arith.addf %189, %193 : vector<16x256xf32>
    %c3_115 = arith.constant 3 : index
    %c96_116 = arith.constant 96 : index
    %195 = vector.load %arg8[%c3_115, %c96_116] : memref<34x544xf32, #tpu.memory_space<vmem>>, vector<16x256xf32>
    %c41 = arith.constant 41 : index
    %c0_117 = arith.constant 0 : index
    %196 = vector.load %arg2[%c41, %c0_117] : memref<81x256xf32, #tpu.memory_space<vmem>>, vector<1x256xf32>
    %197 = vector.broadcast %196 : vector<1x256xf32> to vector<16x256xf32>
    %198 = arith.mulf %195, %197 : vector<16x256xf32>
    %199 = arith.addf %194, %198 : vector<16x256xf32>
    %c3_118 = arith.constant 3 : index
    %c144_119 = arith.constant 144 : index
    %200 = vector.load %arg8[%c3_118, %c144_119] : memref<34x544xf32, #tpu.memory_space<vmem>>, vector<16x256xf32>
    %c42 = arith.constant 42 : index
    %c0_120 = arith.constant 0 : index
    %201 = vector.load %arg2[%c42, %c0_120] : memref<81x256xf32, #tpu.memory_space<vmem>>, vector<1x256xf32>
    %202 = vector.broadcast %201 : vector<1x256xf32> to vector<16x256xf32>
    %203 = arith.mulf %200, %202 : vector<16x256xf32>
    %204 = arith.addf %199, %203 : vector<16x256xf32>
    %c3_121 = arith.constant 3 : index
    %c192_122 = arith.constant 192 : index
    %205 = vector.load %arg8[%c3_121, %c192_122] : memref<34x544xf32, #tpu.memory_space<vmem>>, vector<16x256xf32>
    %c43 = arith.constant 43 : index
    %c0_123 = arith.constant 0 : index
    %206 = vector.load %arg2[%c43, %c0_123] : memref<81x256xf32, #tpu.memory_space<vmem>>, vector<1x256xf32>
    %207 = vector.broadcast %206 : vector<1x256xf32> to vector<16x256xf32>
    %208 = arith.mulf %205, %207 : vector<16x256xf32>
    %209 = arith.addf %204, %208 : vector<16x256xf32>
    %c3_124 = arith.constant 3 : index
    %c240_125 = arith.constant 240 : index
    %210 = vector.load %arg8[%c3_124, %c240_125] : memref<34x544xf32, #tpu.memory_space<vmem>>, vector<16x256xf32>
    %c44 = arith.constant 44 : index
    %c0_126 = arith.constant 0 : index
    %211 = vector.load %arg2[%c44, %c0_126] : memref<81x256xf32, #tpu.memory_space<vmem>>, vector<1x256xf32>
    %212 = vector.broadcast %211 : vector<1x256xf32> to vector<16x256xf32>
    %213 = arith.mulf %210, %212 : vector<16x256xf32>
    %214 = arith.addf %209, %213 : vector<16x256xf32>
    %c3_127 = arith.constant 3 : index
    %c288_128 = arith.constant 288 : index
    %215 = vector.load %arg8[%c3_127, %c288_128] : memref<34x544xf32, #tpu.memory_space<vmem>>, vector<16x256xf32>
    %c45 = arith.constant 45 : index
    %c0_129 = arith.constant 0 : index
    %216 = vector.load %arg2[%c45, %c0_129] : memref<81x256xf32, #tpu.memory_space<vmem>>, vector<1x256xf32>
    %217 = vector.broadcast %216 : vector<1x256xf32> to vector<16x256xf32>
    %218 = arith.mulf %215, %217 : vector<16x256xf32>
    %219 = arith.addf %214, %218 : vector<16x256xf32>
    %c6 = arith.constant 6 : index
    %c0_130 = arith.constant 0 : index
    %220 = vector.load %arg8[%c6, %c0_130] : memref<34x544xf32, #tpu.memory_space<vmem>>, vector<16x256xf32>
    %c46 = arith.constant 46 : index
    %c0_131 = arith.constant 0 : index
    %221 = vector.load %arg2[%c46, %c0_131] : memref<81x256xf32, #tpu.memory_space<vmem>>, vector<1x256xf32>
    %222 = vector.broadcast %221 : vector<1x256xf32> to vector<16x256xf32>
    %223 = arith.mulf %220, %222 : vector<16x256xf32>
    %c6_132 = arith.constant 6 : index
    %c48_133 = arith.constant 48 : index
    %224 = vector.load %arg8[%c6_132, %c48_133] : memref<34x544xf32, #tpu.memory_space<vmem>>, vector<16x256xf32>
    %c47 = arith.constant 47 : index
    %c0_134 = arith.constant 0 : index
    %225 = vector.load %arg2[%c47, %c0_134] : memref<81x256xf32, #tpu.memory_space<vmem>>, vector<1x256xf32>
    %226 = vector.broadcast %225 : vector<1x256xf32> to vector<16x256xf32>
    %227 = arith.mulf %224, %226 : vector<16x256xf32>
    %228 = arith.addf %223, %227 : vector<16x256xf32>
    %c6_135 = arith.constant 6 : index
    %c96_136 = arith.constant 96 : index
    %229 = vector.load %arg8[%c6_135, %c96_136] : memref<34x544xf32, #tpu.memory_space<vmem>>, vector<16x256xf32>
    %c48_137 = arith.constant 48 : index
    %c0_138 = arith.constant 0 : index
    %230 = vector.load %arg2[%c48_137, %c0_138] : memref<81x256xf32, #tpu.memory_space<vmem>>, vector<1x256xf32>
    %231 = vector.broadcast %230 : vector<1x256xf32> to vector<16x256xf32>
    %232 = arith.mulf %229, %231 : vector<16x256xf32>
    %233 = arith.addf %228, %232 : vector<16x256xf32>
    %c6_139 = arith.constant 6 : index
    %c144_140 = arith.constant 144 : index
    %234 = vector.load %arg8[%c6_139, %c144_140] : memref<34x544xf32, #tpu.memory_space<vmem>>, vector<16x256xf32>
    %c49 = arith.constant 49 : index
    %c0_141 = arith.constant 0 : index
    %235 = vector.load %arg2[%c49, %c0_141] : memref<81x256xf32, #tpu.memory_space<vmem>>, vector<1x256xf32>
    %236 = vector.broadcast %235 : vector<1x256xf32> to vector<16x256xf32>
    %237 = arith.mulf %234, %236 : vector<16x256xf32>
    %238 = arith.addf %233, %237 : vector<16x256xf32>
    %c6_142 = arith.constant 6 : index
    %c192_143 = arith.constant 192 : index
    %239 = vector.load %arg8[%c6_142, %c192_143] : memref<34x544xf32, #tpu.memory_space<vmem>>, vector<16x256xf32>
    %c50 = arith.constant 50 : index
    %c0_144 = arith.constant 0 : index
    %240 = vector.load %arg2[%c50, %c0_144] : memref<81x256xf32, #tpu.memory_space<vmem>>, vector<1x256xf32>
    %241 = vector.broadcast %240 : vector<1x256xf32> to vector<16x256xf32>
    %242 = arith.mulf %239, %241 : vector<16x256xf32>
    %243 = arith.addf %238, %242 : vector<16x256xf32>
    %c6_145 = arith.constant 6 : index
    %c240_146 = arith.constant 240 : index
    %244 = vector.load %arg8[%c6_145, %c240_146] : memref<34x544xf32, #tpu.memory_space<vmem>>, vector<16x256xf32>
    %c51 = arith.constant 51 : index
    %c0_147 = arith.constant 0 : index
    %245 = vector.load %arg2[%c51, %c0_147] : memref<81x256xf32, #tpu.memory_space<vmem>>, vector<1x256xf32>
    %246 = vector.broadcast %245 : vector<1x256xf32> to vector<16x256xf32>
    %247 = arith.mulf %244, %246 : vector<16x256xf32>
    %248 = arith.addf %243, %247 : vector<16x256xf32>
    %c6_148 = arith.constant 6 : index
    %c288_149 = arith.constant 288 : index
    %249 = vector.load %arg8[%c6_148, %c288_149] : memref<34x544xf32, #tpu.memory_space<vmem>>, vector<16x256xf32>
    %c52 = arith.constant 52 : index
    %c0_150 = arith.constant 0 : index
    %250 = vector.load %arg2[%c52, %c0_150] : memref<81x256xf32, #tpu.memory_space<vmem>>, vector<1x256xf32>
    %251 = vector.broadcast %250 : vector<1x256xf32> to vector<16x256xf32>
    %252 = arith.mulf %249, %251 : vector<16x256xf32>
    %253 = arith.addf %248, %252 : vector<16x256xf32>
    %c9_151 = arith.constant 9 : index
    %c0_152 = arith.constant 0 : index
    %254 = vector.load %arg8[%c9_151, %c0_152] : memref<34x544xf32, #tpu.memory_space<vmem>>, vector<16x256xf32>
    %c53 = arith.constant 53 : index
    %c0_153 = arith.constant 0 : index
    %255 = vector.load %arg2[%c53, %c0_153] : memref<81x256xf32, #tpu.memory_space<vmem>>, vector<1x256xf32>
    %256 = vector.broadcast %255 : vector<1x256xf32> to vector<16x256xf32>
    %257 = arith.mulf %254, %256 : vector<16x256xf32>
    %c9_154 = arith.constant 9 : index
    %c48_155 = arith.constant 48 : index
    %258 = vector.load %arg8[%c9_154, %c48_155] : memref<34x544xf32, #tpu.memory_space<vmem>>, vector<16x256xf32>
    %c54 = arith.constant 54 : index
    %c0_156 = arith.constant 0 : index
    %259 = vector.load %arg2[%c54, %c0_156] : memref<81x256xf32, #tpu.memory_space<vmem>>, vector<1x256xf32>
    %260 = vector.broadcast %259 : vector<1x256xf32> to vector<16x256xf32>
    %261 = arith.mulf %258, %260 : vector<16x256xf32>
    %262 = arith.addf %257, %261 : vector<16x256xf32>
    %c9_157 = arith.constant 9 : index
    %c96_158 = arith.constant 96 : index
    %263 = vector.load %arg8[%c9_157, %c96_158] : memref<34x544xf32, #tpu.memory_space<vmem>>, vector<16x256xf32>
    %c55 = arith.constant 55 : index
    %c0_159 = arith.constant 0 : index
    %264 = vector.load %arg2[%c55, %c0_159] : memref<81x256xf32, #tpu.memory_space<vmem>>, vector<1x256xf32>
    %265 = vector.broadcast %264 : vector<1x256xf32> to vector<16x256xf32>
    %266 = arith.mulf %263, %265 : vector<16x256xf32>
    %267 = arith.addf %262, %266 : vector<16x256xf32>
    %c9_160 = arith.constant 9 : index
    %c144_161 = arith.constant 144 : index
    %268 = vector.load %arg8[%c9_160, %c144_161] : memref<34x544xf32, #tpu.memory_space<vmem>>, vector<16x256xf32>
    %c56 = arith.constant 56 : index
    %c0_162 = arith.constant 0 : index
    %269 = vector.load %arg2[%c56, %c0_162] : memref<81x256xf32, #tpu.memory_space<vmem>>, vector<1x256xf32>
    %270 = vector.broadcast %269 : vector<1x256xf32> to vector<16x256xf32>
    %271 = arith.mulf %268, %270 : vector<16x256xf32>
    %272 = arith.addf %267, %271 : vector<16x256xf32>
    %c9_163 = arith.constant 9 : index
    %c192_164 = arith.constant 192 : index
    %273 = vector.load %arg8[%c9_163, %c192_164] : memref<34x544xf32, #tpu.memory_space<vmem>>, vector<16x256xf32>
    %c57 = arith.constant 57 : index
    %c0_165 = arith.constant 0 : index
    %274 = vector.load %arg2[%c57, %c0_165] : memref<81x256xf32, #tpu.memory_space<vmem>>, vector<1x256xf32>
    %275 = vector.broadcast %274 : vector<1x256xf32> to vector<16x256xf32>
    %276 = arith.mulf %273, %275 : vector<16x256xf32>
    %277 = arith.addf %272, %276 : vector<16x256xf32>
    %c9_166 = arith.constant 9 : index
    %c240_167 = arith.constant 240 : index
    %278 = vector.load %arg8[%c9_166, %c240_167] : memref<34x544xf32, #tpu.memory_space<vmem>>, vector<16x256xf32>
    %c58 = arith.constant 58 : index
    %c0_168 = arith.constant 0 : index
    %279 = vector.load %arg2[%c58, %c0_168] : memref<81x256xf32, #tpu.memory_space<vmem>>, vector<1x256xf32>
    %280 = vector.broadcast %279 : vector<1x256xf32> to vector<16x256xf32>
    %281 = arith.mulf %278, %280 : vector<16x256xf32>
    %282 = arith.addf %277, %281 : vector<16x256xf32>
    %c9_169 = arith.constant 9 : index
    %c288_170 = arith.constant 288 : index
    %283 = vector.load %arg8[%c9_169, %c288_170] : memref<34x544xf32, #tpu.memory_space<vmem>>, vector<16x256xf32>
    %c59 = arith.constant 59 : index
    %c0_171 = arith.constant 0 : index
    %284 = vector.load %arg2[%c59, %c0_171] : memref<81x256xf32, #tpu.memory_space<vmem>>, vector<1x256xf32>
    %285 = vector.broadcast %284 : vector<1x256xf32> to vector<16x256xf32>
    %286 = arith.mulf %283, %285 : vector<16x256xf32>
    %287 = arith.addf %282, %286 : vector<16x256xf32>
    %c12_172 = arith.constant 12 : index
    %c0_173 = arith.constant 0 : index
    %288 = vector.load %arg8[%c12_172, %c0_173] : memref<34x544xf32, #tpu.memory_space<vmem>>, vector<16x256xf32>
    %c60 = arith.constant 60 : index
    %c0_174 = arith.constant 0 : index
    %289 = vector.load %arg2[%c60, %c0_174] : memref<81x256xf32, #tpu.memory_space<vmem>>, vector<1x256xf32>
    %290 = vector.broadcast %289 : vector<1x256xf32> to vector<16x256xf32>
    %291 = arith.mulf %288, %290 : vector<16x256xf32>
    %c12_175 = arith.constant 12 : index
    %c48_176 = arith.constant 48 : index
    %292 = vector.load %arg8[%c12_175, %c48_176] : memref<34x544xf32, #tpu.memory_space<vmem>>, vector<16x256xf32>
    %c61 = arith.constant 61 : index
    %c0_177 = arith.constant 0 : index
    %293 = vector.load %arg2[%c61, %c0_177] : memref<81x256xf32, #tpu.memory_space<vmem>>, vector<1x256xf32>
    %294 = vector.broadcast %293 : vector<1x256xf32> to vector<16x256xf32>
    %295 = arith.mulf %292, %294 : vector<16x256xf32>
    %296 = arith.addf %291, %295 : vector<16x256xf32>
    %c12_178 = arith.constant 12 : index
    %c96_179 = arith.constant 96 : index
    %297 = vector.load %arg8[%c12_178, %c96_179] : memref<34x544xf32, #tpu.memory_space<vmem>>, vector<16x256xf32>
    %c62 = arith.constant 62 : index
    %c0_180 = arith.constant 0 : index
    %298 = vector.load %arg2[%c62, %c0_180] : memref<81x256xf32, #tpu.memory_space<vmem>>, vector<1x256xf32>
    %299 = vector.broadcast %298 : vector<1x256xf32> to vector<16x256xf32>
    %300 = arith.mulf %297, %299 : vector<16x256xf32>
    %301 = arith.addf %296, %300 : vector<16x256xf32>
    %c12_181 = arith.constant 12 : index
    %c144_182 = arith.constant 144 : index
    %302 = vector.load %arg8[%c12_181, %c144_182] : memref<34x544xf32, #tpu.memory_space<vmem>>, vector<16x256xf32>
    %c63 = arith.constant 63 : index
    %c0_183 = arith.constant 0 : index
    %303 = vector.load %arg2[%c63, %c0_183] : memref<81x256xf32, #tpu.memory_space<vmem>>, vector<1x256xf32>
    %304 = vector.broadcast %303 : vector<1x256xf32> to vector<16x256xf32>
    %305 = arith.mulf %302, %304 : vector<16x256xf32>
    %306 = arith.addf %301, %305 : vector<16x256xf32>
    %c12_184 = arith.constant 12 : index
    %c192_185 = arith.constant 192 : index
    %307 = vector.load %arg8[%c12_184, %c192_185] : memref<34x544xf32, #tpu.memory_space<vmem>>, vector<16x256xf32>
    %c64 = arith.constant 64 : index
    %c0_186 = arith.constant 0 : index
    %308 = vector.load %arg2[%c64, %c0_186] : memref<81x256xf32, #tpu.memory_space<vmem>>, vector<1x256xf32>
    %309 = vector.broadcast %308 : vector<1x256xf32> to vector<16x256xf32>
    %310 = arith.mulf %307, %309 : vector<16x256xf32>
    %311 = arith.addf %306, %310 : vector<16x256xf32>
    %c12_187 = arith.constant 12 : index
    %c240_188 = arith.constant 240 : index
    %312 = vector.load %arg8[%c12_187, %c240_188] : memref<34x544xf32, #tpu.memory_space<vmem>>, vector<16x256xf32>
    %c65 = arith.constant 65 : index
    %c0_189 = arith.constant 0 : index
    %313 = vector.load %arg2[%c65, %c0_189] : memref<81x256xf32, #tpu.memory_space<vmem>>, vector<1x256xf32>
    %314 = vector.broadcast %313 : vector<1x256xf32> to vector<16x256xf32>
    %315 = arith.mulf %312, %314 : vector<16x256xf32>
    %316 = arith.addf %311, %315 : vector<16x256xf32>
    %c12_190 = arith.constant 12 : index
    %c288_191 = arith.constant 288 : index
    %317 = vector.load %arg8[%c12_190, %c288_191] : memref<34x544xf32, #tpu.memory_space<vmem>>, vector<16x256xf32>
    %c66 = arith.constant 66 : index
    %c0_192 = arith.constant 0 : index
    %318 = vector.load %arg2[%c66, %c0_192] : memref<81x256xf32, #tpu.memory_space<vmem>>, vector<1x256xf32>
    %319 = vector.broadcast %318 : vector<1x256xf32> to vector<16x256xf32>
    %320 = arith.mulf %317, %319 : vector<16x256xf32>
    %321 = arith.addf %316, %320 : vector<16x256xf32>
    %c15_193 = arith.constant 15 : index
    %c0_194 = arith.constant 0 : index
    %322 = vector.load %arg8[%c15_193, %c0_194] : memref<34x544xf32, #tpu.memory_space<vmem>>, vector<16x256xf32>
    %c67 = arith.constant 67 : index
    %c0_195 = arith.constant 0 : index
    %323 = vector.load %arg2[%c67, %c0_195] : memref<81x256xf32, #tpu.memory_space<vmem>>, vector<1x256xf32>
    %324 = vector.broadcast %323 : vector<1x256xf32> to vector<16x256xf32>
    %325 = arith.mulf %322, %324 : vector<16x256xf32>
    %c15_196 = arith.constant 15 : index
    %c48_197 = arith.constant 48 : index
    %326 = vector.load %arg8[%c15_196, %c48_197] : memref<34x544xf32, #tpu.memory_space<vmem>>, vector<16x256xf32>
    %c68 = arith.constant 68 : index
    %c0_198 = arith.constant 0 : index
    %327 = vector.load %arg2[%c68, %c0_198] : memref<81x256xf32, #tpu.memory_space<vmem>>, vector<1x256xf32>
    %328 = vector.broadcast %327 : vector<1x256xf32> to vector<16x256xf32>
    %329 = arith.mulf %326, %328 : vector<16x256xf32>
    %330 = arith.addf %325, %329 : vector<16x256xf32>
    %c15_199 = arith.constant 15 : index
    %c96_200 = arith.constant 96 : index
    %331 = vector.load %arg8[%c15_199, %c96_200] : memref<34x544xf32, #tpu.memory_space<vmem>>, vector<16x256xf32>
    %c69 = arith.constant 69 : index
    %c0_201 = arith.constant 0 : index
    %332 = vector.load %arg2[%c69, %c0_201] : memref<81x256xf32, #tpu.memory_space<vmem>>, vector<1x256xf32>
    %333 = vector.broadcast %332 : vector<1x256xf32> to vector<16x256xf32>
    %334 = arith.mulf %331, %333 : vector<16x256xf32>
    %335 = arith.addf %330, %334 : vector<16x256xf32>
    %c15_202 = arith.constant 15 : index
    %c144_203 = arith.constant 144 : index
    %336 = vector.load %arg8[%c15_202, %c144_203] : memref<34x544xf32, #tpu.memory_space<vmem>>, vector<16x256xf32>
    %c70 = arith.constant 70 : index
    %c0_204 = arith.constant 0 : index
    %337 = vector.load %arg2[%c70, %c0_204] : memref<81x256xf32, #tpu.memory_space<vmem>>, vector<1x256xf32>
    %338 = vector.broadcast %337 : vector<1x256xf32> to vector<16x256xf32>
    %339 = arith.mulf %336, %338 : vector<16x256xf32>
    %340 = arith.addf %335, %339 : vector<16x256xf32>
    %c15_205 = arith.constant 15 : index
    %c192_206 = arith.constant 192 : index
    %341 = vector.load %arg8[%c15_205, %c192_206] : memref<34x544xf32, #tpu.memory_space<vmem>>, vector<16x256xf32>
    %c71 = arith.constant 71 : index
    %c0_207 = arith.constant 0 : index
    %342 = vector.load %arg2[%c71, %c0_207] : memref<81x256xf32, #tpu.memory_space<vmem>>, vector<1x256xf32>
    %343 = vector.broadcast %342 : vector<1x256xf32> to vector<16x256xf32>
    %344 = arith.mulf %341, %343 : vector<16x256xf32>
    %345 = arith.addf %340, %344 : vector<16x256xf32>
    %c15_208 = arith.constant 15 : index
    %c240_209 = arith.constant 240 : index
    %346 = vector.load %arg8[%c15_208, %c240_209] : memref<34x544xf32, #tpu.memory_space<vmem>>, vector<16x256xf32>
    %c72 = arith.constant 72 : index
    %c0_210 = arith.constant 0 : index
    %347 = vector.load %arg2[%c72, %c0_210] : memref<81x256xf32, #tpu.memory_space<vmem>>, vector<1x256xf32>
    %348 = vector.broadcast %347 : vector<1x256xf32> to vector<16x256xf32>
    %349 = arith.mulf %346, %348 : vector<16x256xf32>
    %350 = arith.addf %345, %349 : vector<16x256xf32>
    %c15_211 = arith.constant 15 : index
    %c288_212 = arith.constant 288 : index
    %351 = vector.load %arg8[%c15_211, %c288_212] : memref<34x544xf32, #tpu.memory_space<vmem>>, vector<16x256xf32>
    %c73 = arith.constant 73 : index
    %c0_213 = arith.constant 0 : index
    %352 = vector.load %arg2[%c73, %c0_213] : memref<81x256xf32, #tpu.memory_space<vmem>>, vector<1x256xf32>
    %353 = vector.broadcast %352 : vector<1x256xf32> to vector<16x256xf32>
    %354 = arith.mulf %351, %353 : vector<16x256xf32>
    %355 = arith.addf %350, %354 : vector<16x256xf32>
    %c18_214 = arith.constant 18 : index
    %c0_215 = arith.constant 0 : index
    %356 = vector.load %arg8[%c18_214, %c0_215] : memref<34x544xf32, #tpu.memory_space<vmem>>, vector<16x256xf32>
    %c74 = arith.constant 74 : index
    %c0_216 = arith.constant 0 : index
    %357 = vector.load %arg2[%c74, %c0_216] : memref<81x256xf32, #tpu.memory_space<vmem>>, vector<1x256xf32>
    %358 = vector.broadcast %357 : vector<1x256xf32> to vector<16x256xf32>
    %359 = arith.mulf %356, %358 : vector<16x256xf32>
    %c18_217 = arith.constant 18 : index
    %c48_218 = arith.constant 48 : index
    %360 = vector.load %arg8[%c18_217, %c48_218] : memref<34x544xf32, #tpu.memory_space<vmem>>, vector<16x256xf32>
    %c75 = arith.constant 75 : index
    %c0_219 = arith.constant 0 : index
    %361 = vector.load %arg2[%c75, %c0_219] : memref<81x256xf32, #tpu.memory_space<vmem>>, vector<1x256xf32>
    %362 = vector.broadcast %361 : vector<1x256xf32> to vector<16x256xf32>
    %363 = arith.mulf %360, %362 : vector<16x256xf32>
    %364 = arith.addf %359, %363 : vector<16x256xf32>
    %c18_220 = arith.constant 18 : index
    %c96_221 = arith.constant 96 : index
    %365 = vector.load %arg8[%c18_220, %c96_221] : memref<34x544xf32, #tpu.memory_space<vmem>>, vector<16x256xf32>
    %c76 = arith.constant 76 : index
    %c0_222 = arith.constant 0 : index
    %366 = vector.load %arg2[%c76, %c0_222] : memref<81x256xf32, #tpu.memory_space<vmem>>, vector<1x256xf32>
    %367 = vector.broadcast %366 : vector<1x256xf32> to vector<16x256xf32>
    %368 = arith.mulf %365, %367 : vector<16x256xf32>
    %369 = arith.addf %364, %368 : vector<16x256xf32>
    %c18_223 = arith.constant 18 : index
    %c144_224 = arith.constant 144 : index
    %370 = vector.load %arg8[%c18_223, %c144_224] : memref<34x544xf32, #tpu.memory_space<vmem>>, vector<16x256xf32>
    %c77 = arith.constant 77 : index
    %c0_225 = arith.constant 0 : index
    %371 = vector.load %arg2[%c77, %c0_225] : memref<81x256xf32, #tpu.memory_space<vmem>>, vector<1x256xf32>
    %372 = vector.broadcast %371 : vector<1x256xf32> to vector<16x256xf32>
    %373 = arith.mulf %370, %372 : vector<16x256xf32>
    %374 = arith.addf %369, %373 : vector<16x256xf32>
    %c18_226 = arith.constant 18 : index
    %c192_227 = arith.constant 192 : index
    %375 = vector.load %arg8[%c18_226, %c192_227] : memref<34x544xf32, #tpu.memory_space<vmem>>, vector<16x256xf32>
    %c78 = arith.constant 78 : index
    %c0_228 = arith.constant 0 : index
    %376 = vector.load %arg2[%c78, %c0_228] : memref<81x256xf32, #tpu.memory_space<vmem>>, vector<1x256xf32>
    %377 = vector.broadcast %376 : vector<1x256xf32> to vector<16x256xf32>
    %378 = arith.mulf %375, %377 : vector<16x256xf32>
    %379 = arith.addf %374, %378 : vector<16x256xf32>
    %c18_229 = arith.constant 18 : index
    %c240_230 = arith.constant 240 : index
    %380 = vector.load %arg8[%c18_229, %c240_230] : memref<34x544xf32, #tpu.memory_space<vmem>>, vector<16x256xf32>
    %c79 = arith.constant 79 : index
    %c0_231 = arith.constant 0 : index
    %381 = vector.load %arg2[%c79, %c0_231] : memref<81x256xf32, #tpu.memory_space<vmem>>, vector<1x256xf32>
    %382 = vector.broadcast %381 : vector<1x256xf32> to vector<16x256xf32>
    %383 = arith.mulf %380, %382 : vector<16x256xf32>
    %384 = arith.addf %379, %383 : vector<16x256xf32>
    %c18_232 = arith.constant 18 : index
    %c288_233 = arith.constant 288 : index
    %385 = vector.load %arg8[%c18_232, %c288_233] : memref<34x544xf32, #tpu.memory_space<vmem>>, vector<16x256xf32>
    %c80_234 = arith.constant 80 : index
    %c0_235 = arith.constant 0 : index
    %386 = vector.load %arg2[%c80_234, %c0_235] : memref<81x256xf32, #tpu.memory_space<vmem>>, vector<1x256xf32>
    %387 = vector.broadcast %386 : vector<1x256xf32> to vector<16x256xf32>
    %388 = arith.mulf %385, %387 : vector<16x256xf32>
    %389 = arith.addf %384, %388 : vector<16x256xf32>
    %390 = arith.addf %185, %219 : vector<16x256xf32>
    %391 = arith.addf %253, %287 : vector<16x256xf32>
    %392 = arith.addf %321, %355 : vector<16x256xf32>
    %393 = arith.addf %390, %391 : vector<16x256xf32>
    %394 = arith.addf %392, %389 : vector<16x256xf32>
    %395 = arith.addf %393, %394 : vector<16x256xf32>
    %c4 = arith.constant 4 : index
    %c0_236 = arith.constant 0 : index
    %396 = vector.load %arg2[%c4, %c0_236] : memref<81x256xf32, #tpu.memory_space<vmem>>, vector<1x256xf32>
    %397 = vector.broadcast %396 : vector<1x256xf32> to vector<16x256xf32>
    %398 = arith.addf %395, %397 : vector<16x256xf32>
    %399 = tpu.concatenate %10, %24, %151, %398 in 1 : vector<16x256xf32>, vector<16x256xf32>, vector<16x256xf32>, vector<16x256xf32> -> vector<16x1024xf32>
    %c864 = arith.constant 864 : index
    %c0_237 = arith.constant 0 : index
    %400 = vector.load %arg3[%c864, %c0_237] : memref<2144x256xf32, #tpu.memory_space<vmem>>, vector<1024x256xf32>
    %cst_238 = arith.constant dense<0.000000e+00> : vector<16x256xf32>
    %401 = tpu.matmul %399, %400, %cst_238 {dimension_numbers = #tpu.dot_dimension_numbers<[1], [0], [0], [1], [0, 0, 1, 1], [], []>} : vector<16x1024xf32>, vector<1024x256xf32>, vector<16x256xf32> -> vector<16x256xf32>
    %c5_239 = arith.constant 5 : index
    %c0_240 = arith.constant 0 : index
    %402 = vector.load %arg2[%c5_239, %c0_240] : memref<81x256xf32, #tpu.memory_space<vmem>>, vector<1x256xf32>
    %403 = vector.broadcast %402 : vector<1x256xf32> to vector<16x256xf32>
    %404 = arith.addf %401, %403 : vector<16x256xf32>
    %405 = vector.extract_strided_slice %404 {offsets = [0, 0], sizes = [16, 64], strides = [1, 1]} : vector<16x256xf32> to vector<16x64xf32>
    %406 = vector.extract_strided_slice %404 {offsets = [0, 64], sizes = [16, 64], strides = [1, 1]} : vector<16x256xf32> to vector<16x64xf32>
    %407 = vector.extract_strided_slice %404 {offsets = [0, 128], sizes = [16, 64], strides = [1, 1]} : vector<16x256xf32> to vector<16x64xf32>
    %408 = vector.extract_strided_slice %404 {offsets = [0, 192], sizes = [16, 64], strides = [1, 1]} : vector<16x256xf32> to vector<16x64xf32>
    %409 = arith.addf %405, %406 : vector<16x64xf32>
    %410 = arith.addf %407, %408 : vector<16x64xf32>
    %411 = arith.addf %409, %410 : vector<16x64xf32>
    %412 = arith.maximumf %405, %406 : vector<16x64xf32>
    %413 = arith.maximumf %407, %408 : vector<16x64xf32>
    %414 = arith.maximumf %412, %413 : vector<16x64xf32>
    %415 = vector.extract_strided_slice %411 {offsets = [0, 0], sizes = [16, 16], strides = [1, 1]} : vector<16x64xf32> to vector<16x16xf32>
    %416 = vector.extract_strided_slice %411 {offsets = [0, 16], sizes = [16, 16], strides = [1, 1]} : vector<16x64xf32> to vector<16x16xf32>
    %417 = vector.extract_strided_slice %411 {offsets = [0, 32], sizes = [16, 16], strides = [1, 1]} : vector<16x64xf32> to vector<16x16xf32>
    %418 = vector.extract_strided_slice %411 {offsets = [0, 48], sizes = [16, 16], strides = [1, 1]} : vector<16x64xf32> to vector<16x16xf32>
    %419 = arith.addf %415, %416 : vector<16x16xf32>
    %420 = arith.addf %417, %418 : vector<16x16xf32>
    %421 = arith.addf %419, %420 : vector<16x16xf32>
    %cst_241 = arith.constant 6.250000e-02 : f32
    %422 = vector.broadcast %cst_241 : f32 to vector<16x16xf32>
    %423 = arith.mulf %421, %422 : vector<16x16xf32>
    %424 = vector.extract_strided_slice %414 {offsets = [0, 0], sizes = [16, 16], strides = [1, 1]} : vector<16x64xf32> to vector<16x16xf32>
    %425 = vector.extract_strided_slice %414 {offsets = [0, 16], sizes = [16, 16], strides = [1, 1]} : vector<16x64xf32> to vector<16x16xf32>
    %426 = vector.extract_strided_slice %414 {offsets = [0, 32], sizes = [16, 16], strides = [1, 1]} : vector<16x64xf32> to vector<16x16xf32>
    %427 = vector.extract_strided_slice %414 {offsets = [0, 48], sizes = [16, 16], strides = [1, 1]} : vector<16x64xf32> to vector<16x16xf32>
    %428 = arith.maximumf %424, %425 : vector<16x16xf32>
    %429 = arith.maximumf %428, %426 : vector<16x16xf32>
    %430 = arith.maximumf %429, %427 : vector<16x16xf32>
    %cst_242 = arith.constant 0.000000e+00 : f32
    %431 = vector.broadcast %cst_242 : f32 to vector<22x44xf32>
    %c0_243 = arith.constant 0 : index
    %c0_244 = arith.constant 0 : index
    %432 = vector.load %arg9[%c0_243, %c0_244] : memref<22x44xf32, #tpu.memory_space<vmem>>, vector<22x44xf32>
    tpu.vector_store %arg9[%c0_243, %c0_244], %431 {strides = array<i32>} : memref<22x44xf32, #tpu.memory_space<vmem>>, vector<22x44xf32>,
    %c3_245 = arith.constant 3 : index
    %c3_246 = arith.constant 3 : index
    %433 = vector.load %arg9[%c3_245, %c3_246] : memref<22x44xf32, #tpu.memory_space<vmem>>, vector<16x16xf32>
    tpu.vector_store %arg9[%c3_245, %c3_246], %423 {strides = array<i32>} : memref<22x44xf32, #tpu.memory_space<vmem>>, vector<16x16xf32>,
    %c3_247 = arith.constant 3 : index
    %c25_248 = arith.constant 25 : index
    %434 = vector.load %arg9[%c3_247, %c25_248] : memref<22x44xf32, #tpu.memory_space<vmem>>, vector<16x16xf32>
    tpu.vector_store %arg9[%c3_247, %c25_248], %430 {strides = array<i32>} : memref<22x44xf32, #tpu.memory_space<vmem>>, vector<16x16xf32>,
    %c0_249 = arith.constant 0 : index
    %c0_250 = arith.constant 0 : index
    %435 = vector.load %arg9[%c0_249, %c0_250] : memref<22x44xf32, #tpu.memory_space<vmem>>, vector<16x44xf32>
    %c0_251 = arith.constant 0 : index
    %c0_252 = arith.constant 0 : index
    %c0_253 = arith.constant 0 : index
    %436 = vector.load %arg4[%c0_251, %c0_252, %c0_253] : memref<7x44x64xf32, #tpu.memory_space<vmem>>, vector<1x44x64xf32>
    %437 = vector.shape_cast %436 : vector<1x44x64xf32> to vector<44x64xf32>
    %cst_254 = arith.constant dense<0.000000e+00> : vector<16x64xf32>
    %438 = tpu.matmul %435, %437, %cst_254 {dimension_numbers = #tpu.dot_dimension_numbers<[1], [0], [0], [1], [0, 0, 1, 1], [], []>} : vector<16x44xf32>, vector<44x64xf32>, vector<16x64xf32> -> vector<16x64xf32>
    %c1_255 = arith.constant 1 : index
    %c0_256 = arith.constant 0 : index
    %439 = vector.load %arg9[%c1_255, %c0_256] : memref<22x44xf32, #tpu.memory_space<vmem>>, vector<16x44xf32>
    %c1_257 = arith.constant 1 : index
    %c0_258 = arith.constant 0 : index
    %c0_259 = arith.constant 0 : index
    %440 = vector.load %arg4[%c1_257, %c0_258, %c0_259] : memref<7x44x64xf32, #tpu.memory_space<vmem>>, vector<1x44x64xf32>
    %441 = vector.shape_cast %440 : vector<1x44x64xf32> to vector<44x64xf32>
    %cst_260 = arith.constant dense<0.000000e+00> : vector<16x64xf32>
    %442 = tpu.matmul %439, %441, %cst_260 {dimension_numbers = #tpu.dot_dimension_numbers<[1], [0], [0], [1], [0, 0, 1, 1], [], []>} : vector<16x44xf32>, vector<44x64xf32>, vector<16x64xf32> -> vector<16x64xf32>
    %c2_261 = arith.constant 2 : index
    %c0_262 = arith.constant 0 : index
    %443 = vector.load %arg9[%c2_261, %c0_262] : memref<22x44xf32, #tpu.memory_space<vmem>>, vector<16x44xf32>
    %c2_263 = arith.constant 2 : index
    %c0_264 = arith.constant 0 : index
    %c0_265 = arith.constant 0 : index
    %444 = vector.load %arg4[%c2_263, %c0_264, %c0_265] : memref<7x44x64xf32, #tpu.memory_space<vmem>>, vector<1x44x64xf32>
    %445 = vector.shape_cast %444 : vector<1x44x64xf32> to vector<44x64xf32>
    %cst_266 = arith.constant dense<0.000000e+00> : vector<16x64xf32>
    %446 = tpu.matmul %443, %445, %cst_266 {dimension_numbers = #tpu.dot_dimension_numbers<[1], [0], [0], [1], [0, 0, 1, 1], [], []>} : vector<16x44xf32>, vector<44x64xf32>, vector<16x64xf32> -> vector<16x64xf32>
    %c3_267 = arith.constant 3 : index
    %c0_268 = arith.constant 0 : index
    %447 = vector.load %arg9[%c3_267, %c0_268] : memref<22x44xf32, #tpu.memory_space<vmem>>, vector<16x44xf32>
    %c3_269 = arith.constant 3 : index
    %c0_270 = arith.constant 0 : index
    %c0_271 = arith.constant 0 : index
    %448 = vector.load %arg4[%c3_269, %c0_270, %c0_271] : memref<7x44x64xf32, #tpu.memory_space<vmem>>, vector<1x44x64xf32>
    %449 = vector.shape_cast %448 : vector<1x44x64xf32> to vector<44x64xf32>
    %cst_272 = arith.constant dense<0.000000e+00> : vector<16x64xf32>
    %450 = tpu.matmul %447, %449, %cst_272 {dimension_numbers = #tpu.dot_dimension_numbers<[1], [0], [0], [1], [0, 0, 1, 1], [], []>} : vector<16x44xf32>, vector<44x64xf32>, vector<16x64xf32> -> vector<16x64xf32>
    %c4_273 = arith.constant 4 : index
    %c0_274 = arith.constant 0 : index
    %451 = vector.load %arg9[%c4_273, %c0_274] : memref<22x44xf32, #tpu.memory_space<vmem>>, vector<16x44xf32>
    %c4_275 = arith.constant 4 : index
    %c0_276 = arith.constant 0 : index
    %c0_277 = arith.constant 0 : index
    %452 = vector.load %arg4[%c4_275, %c0_276, %c0_277] : memref<7x44x64xf32, #tpu.memory_space<vmem>>, vector<1x44x64xf32>
    %453 = vector.shape_cast %452 : vector<1x44x64xf32> to vector<44x64xf32>
    %cst_278 = arith.constant dense<0.000000e+00> : vector<16x64xf32>
    %454 = tpu.matmul %451, %453, %cst_278 {dimension_numbers = #tpu.dot_dimension_numbers<[1], [0], [0], [1], [0, 0, 1, 1], [], []>} : vector<16x44xf32>, vector<44x64xf32>, vector<16x64xf32> -> vector<16x64xf32>
    %c5_279 = arith.constant 5 : index
    %c0_280 = arith.constant 0 : index
    %455 = vector.load %arg9[%c5_279, %c0_280] : memref<22x44xf32, #tpu.memory_space<vmem>>, vector<16x44xf32>
    %c5_281 = arith.constant 5 : index
    %c0_282 = arith.constant 0 : index
    %c0_283 = arith.constant 0 : index
    %456 = vector.load %arg4[%c5_281, %c0_282, %c0_283] : memref<7x44x64xf32, #tpu.memory_space<vmem>>, vector<1x44x64xf32>
    %457 = vector.shape_cast %456 : vector<1x44x64xf32> to vector<44x64xf32>
    %cst_284 = arith.constant dense<0.000000e+00> : vector<16x64xf32>
    %458 = tpu.matmul %455, %457, %cst_284 {dimension_numbers = #tpu.dot_dimension_numbers<[1], [0], [0], [1], [0, 0, 1, 1], [], []>} : vector<16x44xf32>, vector<44x64xf32>, vector<16x64xf32> -> vector<16x64xf32>
    %c6_285 = arith.constant 6 : index
    %c0_286 = arith.constant 0 : index
    %459 = vector.load %arg9[%c6_285, %c0_286] : memref<22x44xf32, #tpu.memory_space<vmem>>, vector<16x44xf32>
    %c6_287 = arith.constant 6 : index
    %c0_288 = arith.constant 0 : index
    %c0_289 = arith.constant 0 : index
    %460 = vector.load %arg4[%c6_287, %c0_288, %c0_289] : memref<7x44x64xf32, #tpu.memory_space<vmem>>, vector<1x44x64xf32>
    %461 = vector.shape_cast %460 : vector<1x44x64xf32> to vector<44x64xf32>
    %cst_290 = arith.constant dense<0.000000e+00> : vector<16x64xf32>
    %462 = tpu.matmul %459, %461, %cst_290 {dimension_numbers = #tpu.dot_dimension_numbers<[1], [0], [0], [1], [0, 0, 1, 1], [], []>} : vector<16x44xf32>, vector<44x64xf32>, vector<16x64xf32> -> vector<16x64xf32>
    %463 = arith.addf %438, %442 : vector<16x64xf32>
    %464 = arith.addf %446, %450 : vector<16x64xf32>
    %465 = arith.addf %454, %458 : vector<16x64xf32>
    %466 = arith.addf %463, %464 : vector<16x64xf32>
    %467 = arith.addf %465, %462 : vector<16x64xf32>
    %468 = arith.addf %466, %467 : vector<16x64xf32>
    %c0_291 = arith.constant 0 : index
    %c0_292 = arith.constant 0 : index
    %469 = vector.load %arg5[%c0_291, %c0_292] : memref<1x64xf32, #tpu.memory_space<vmem>>, vector<1x64xf32>
    %470 = vector.broadcast %469 : vector<1x64xf32> to vector<16x64xf32>
    %471 = arith.addf %468, %470 : vector<16x64xf32>
    %cst_293 = arith.constant 0.000000e+00 : f32
    %472 = vector.broadcast %cst_293 : f32 to vector<16x64xf32>
    %473 = arith.subf %472, %471 : vector<16x64xf32>
    %474 = math.exp %473 : vector<16x64xf32>
    %cst_294 = arith.constant 1.000000e+00 : f32
    %475 = vector.broadcast %cst_294 : f32 to vector<16x64xf32>
    %476 = arith.addf %475, %474 : vector<16x64xf32>
    %cst_295 = arith.constant 1.000000e+00 : f32
    %477 = vector.broadcast %cst_295 : f32 to vector<16x64xf32>
    %478 = arith.divf %477, %476 : vector<16x64xf32>
    %c0_296 = arith.constant 0 : index
    %c0_297 = arith.constant 0 : index
    %479 = vector.load %arg6[%c0_296, %c0_297] : memref<64x1024xf32, #tpu.memory_space<vmem>>, vector<64x1024xf32>
    %cst_298 = arith.constant dense<0.000000e+00> : vector<16x1024xf32>
    %480 = tpu.matmul %478, %479, %cst_298 {dimension_numbers = #tpu.dot_dimension_numbers<[1], [0], [0], [1], [0, 0, 1, 1], [], []>} : vector<16x64xf32>, vector<64x1024xf32>, vector<16x1024xf32> -> vector<16x1024xf32>
    %481 = arith.mulf %399, %480 : vector<16x1024xf32>
    %482 = vector.extract_strided_slice %481 {offsets = [0, 0], sizes = [16, 256], strides = [1, 1]} : vector<16x1024xf32> to vector<16x256xf32>
    %483 = vector.extract_strided_slice %481 {offsets = [0, 256], sizes = [16, 256], strides = [1, 1]} : vector<16x1024xf32> to vector<16x256xf32>
    %484 = vector.extract_strided_slice %481 {offsets = [0, 512], sizes = [16, 256], strides = [1, 1]} : vector<16x1024xf32> to vector<16x256xf32>
    %485 = vector.extract_strided_slice %481 {offsets = [0, 768], sizes = [16, 256], strides = [1, 1]} : vector<16x1024xf32> to vector<16x256xf32>
    %486 = arith.addf %482, %483 : vector<16x256xf32>
    %487 = arith.addf %484, %485 : vector<16x256xf32>
    %488 = arith.addf %486, %487 : vector<16x256xf32>
    %c1888 = arith.constant 1888 : index
    %c0_299 = arith.constant 0 : index
    %489 = vector.load %arg3[%c1888, %c0_299] : memref<2144x256xf32, #tpu.memory_space<vmem>>, vector<256x256xf32>
    %cst_300 = arith.constant dense<0.000000e+00> : vector<16x256xf32>
    %490 = tpu.matmul %488, %489, %cst_300 {dimension_numbers = #tpu.dot_dimension_numbers<[1], [0], [0], [1], [0, 0, 1, 1], [], []>} : vector<16x256xf32>, vector<256x256xf32>, vector<16x256xf32> -> vector<16x256xf32>
    %c6_301 = arith.constant 6 : index
    %c0_302 = arith.constant 0 : index
    %491 = vector.load %arg2[%c6_301, %c0_302] : memref<81x256xf32, #tpu.memory_space<vmem>>, vector<1x256xf32>
    %492 = vector.broadcast %491 : vector<1x256xf32> to vector<16x256xf32>
    %493 = arith.addf %490, %492 : vector<16x256xf32>
    %494 = arith.mulf %1, %493 : vector<16x256xf32>
    %c0_303 = arith.constant 0 : index
    %c0_304 = arith.constant 0 : index
    %c0_305 = arith.constant 0 : index
    %495 = vector.load %arg7[%c0_303, %c0_304, %c0_305] : memref<1x16x256xf32, #tpu.memory_space<vmem>>, vector<1x16x256xf32>
    %496 = vector.shape_cast %495 : vector<1x16x256xf32> to vector<16x256xf32>
    %497 = vector.shape_cast %494 : vector<16x256xf32> to vector<1x16x256xf32>
    tpu.vector_store %arg7[%c0_303, %c0_304, %c0_305], %497 {strides = array<i32>} : memref<1x16x256xf32, #tpu.memory_space<vmem>>, vector<1x16x256xf32>,
    return
  }
  func.func @transform_0(%arg0: i32) -> (i32, i32, i32) {
    %c0_i32 = arith.constant 0 : i32
    %c0_i32_0 = arith.constant 0 : i32
    %c0_i32_1 = arith.constant 0 : i32
    return %arg0, %c0_i32, %c0_i32_0 : i32, i32, i32
  }
  func.func @transform_1(%arg0: i32) -> (i32, i32) {
    %c0_i32 = arith.constant 0 : i32
    %c0_i32_0 = arith.constant 0 : i32
    %c0_i32_1 = arith.constant 0 : i32
    return %c0_i32, %c0_i32_0 : i32, i32
  }
  func.func @transform_2(%arg0: i32) -> (i32, i32) {
    %c0_i32 = arith.constant 0 : i32
    %c0_i32_0 = arith.constant 0 : i32
    %c0_i32_1 = arith.constant 0 : i32
    return %c0_i32, %c0_i32_0 : i32, i32
  }
  func.func @transform_3(%arg0: i32) -> (i32, i32, i32) {
    %c0_i32 = arith.constant 0 : i32
    %c0_i32_0 = arith.constant 0 : i32
    %c0_i32_1 = arith.constant 0 : i32
    %c0_i32_2 = arith.constant 0 : i32
    return %c0_i32, %c0_i32_0, %c0_i32_1 : i32, i32, i32
  }
  func.func @transform_4(%arg0: i32) -> (i32, i32) {
    %c0_i32 = arith.constant 0 : i32
    %c0_i32_0 = arith.constant 0 : i32
    %c0_i32_1 = arith.constant 0 : i32
    return %c0_i32, %c0_i32_0 : i32, i32
  }
  func.func @transform_5(%arg0: i32) -> (i32, i32) {
    %c0_i32 = arith.constant 0 : i32
    %c0_i32_0 = arith.constant 0 : i32
    %c0_i32_1 = arith.constant 0 : i32
    return %c0_i32, %c0_i32_0 : i32, i32
  }
  func.func @transform_6(%arg0: i32) -> (i32, i32, i32) {
    %c0_i32 = arith.constant 0 : i32
    %c0_i32_0 = arith.constant 0 : i32
    %c0_i32_1 = arith.constant 0 : i32
    return %arg0, %c0_i32, %c0_i32_0 : i32, i32, i32
  }
}

</mosaic_0001>

<llo_original>
// kernel: get_contextual_information_pallas.1
$region0: #{get_contextual_information_pallas.1}
  #allocation0 [shape = 'u32[]', space=smem, size = 0x4, offset = 0x4, fixed_abs, tag = 'smem constant byte address 0x4 - core index']
  #allocation1 [shape = 'u32[144,128]{1,0:T(1,128)}', space=vmem, size = 0x12000, scoped, tag = 'internal scratch']
  #allocation2 [shape = 'f32[34,544]{1,0:T(8,128)}', space=vmem, size = 0x19000, scoped, tag = 'scratch operand']
  #allocation3 [shape = 'f32[22,44]{1,0:T(8,128)}', space=vmem, size = 0x3000, scoped, tag = 'scratch operand']
  %s0 = inlined_call_operand.vmem [shape: f32[2,16,256], index: 0, kind: input, shape index: {}]
  %s1 = inlined_call_operand.hbm [shape: f32[81,256], index: 1, kind: input, shape index: {}]
  %s2 = inlined_call_operand.hbm [shape: f32[2144,256], index: 2, kind: input, shape index: {}]
  %s3 = inlined_call_operand.hbm [shape: f32[7,44,64], index: 3, kind: input, shape index: {}]
  %s4 = inlined_call_operand.hbm [shape: f32[1,64], index: 4, kind: input, shape index: {}]
  %s5 = inlined_call_operand.hbm [shape: f32[64,1024], index: 5, kind: input, shape index: {}]
  %s6 = inlined_call_operand.vmem [shape: f32[2,16,256], index: 6, kind: output, shape index: {}]
  %s7 = sld [smem:[#allocation0]]
  $region77: #{get_contextual_information_pallas.1} parent=0
    _
  %s9 = ssub.s32 1, %s7
  %s10 = scalar_select 0, %s9, %s7
  $region1: #{get_contextual_information_pallas.1} parent=0
    #allocation4 [shape = 'u8[90112]{0}', space=vmem, size = 0x16000, scoped, tag = 'input window, operand 1, single buffered']
    #allocation5 [shape = 's32[2]{0}', space=sflag, size = 0x8, scoped, tag = 'scoped memory for get_contextual_information_pallas.1']
    #allocation6 [shape = 'u8[2195456]{0}', space=vmem, size = 0x218000, scoped, tag = 'input window, operand 2, single buffered']
    #allocation7 [shape = 's32[1]{0}', space=sflag, size = 0x4, scoped, tag = 'scoped memory for get_contextual_information_pallas.1']
    #allocation8 [shape = 'u8[172032]{0}', space=vmem, size = 0x2a000, scoped, tag = 'input window, operand 3, single buffered']
    #allocation9 [shape = 'u8[512]{0}', space=vmem, size = 0x400, scoped, tag = 'input window, operand 4, single buffered']
    #allocation10 [shape = 's32[1]{0}', space=sflag, size = 0x4, scoped, tag = 'scoped memory for get_contextual_information_pallas.1']
    #allocation11 [shape = 'u8[262144]{0}', space=vmem, size = 0x40000, scoped, tag = 'input window, operand 5, single buffered']
    %11 = vsyncpa [#allocation5], 0
    %12 = vsyncpa [#allocation7], 0
    %13 = vsyncpa [#allocation10], 0
    loop: start=0, step=1, limit=4
    $region2: #{get_contextual_information_pallas.1} parent=1 // loop_pre_header
      _
    $region3: #{get_contextual_information_pallas.1} parent=1 // loop_header
      %s15 = sphi 0, %s19
      %p16 = scmp.ge.s32.totalorder %s15, 4
      %s25 = sphi 0, %s27
      %s28 = sphi 0, %s25
      %s29 = sphi 0, %s28
      %s45 = sphi 0, %s29
      %s49 = sphi 0, %s49
      %s51 = sphi 0, %s49
      %s52 = sphi 0, %s51
      %s66 = sphi 0, %s52
      %s70 = sphi 0, %s70
      %s72 = sphi 0, %s70
      %s73 = sphi 0, %s72
      %s87 = sphi 0, %s73
      %s91 = sphi 0, %s91
      %s93 = sphi 0, %s91
      %s94 = sphi 0, %s93
      %s108 = sphi 0, %s94
      %s112 = sphi 0, %s112
      %s114 = sphi 0, %s112
      %s115 = sphi 0, %s114
      %s129 = sphi 0, %s115
      %s133 = sphi 0, %s133
      %s135 = sphi 0, %s133
      %s136 = sphi 0, %s135
      %s150 = sphi 0, %s136
      %s156 = sphi 0, %s158
      %s159 = sphi 0, %s156
      %s160 = sphi 0, %s159
      %s176 = sphi 0, %s160
    $region4: #{get_contextual_information_pallas.1} parent=1 // loop_header_branch
      %18 = sbr.rel (%p16) target = $region8
    $region5: #{get_contextual_information_pallas.1} parent=1 // loop_body
      %s20 = ssub.s32 %s15, 1
      %s21 = ssub.s32 %s15, 2
      %s22 = sadd.s32 %s15, 1
      %s23 = ssub.s32 %s15, %s22
      %p24 = scmp.eq.s32.totalorder %s23, 0
      %s26 = sadd.s32 %s25, 1
      %s27 = scalar_select %p24, %s25, %s26
      %p30 = pneg %p24
      %p31 = scmp.eq.s32.totalorder %s15, 1
      %p32 = por %p30, %p31
      %p33 = scmp.ne.s32.totalorder %s25, %s28
      %p34 = scmp.eq.s32.totalorder %s15, 0
      %p35 = por %p33, %p34
      %p36 = scmp.ne.s32.totalorder %s25, %s28
      %p37 = scmp.eq.s32.totalorder %s20, 1
      %p38 = por %p36, %p37
      %p39 = scmp.ne.s32.totalorder %s28, %s29
      %p40 = scmp.eq.s32.totalorder %s20, 0
      %p41 = por %p39, %p40
      %p42 = scmp.ne.s32.totalorder %s28, %s29
      %p43 = scmp.eq.s32.totalorder %s21, 1
      %p44 = por %p42, %p43
      %p46 = scmp.ne.s32.totalorder %s29, %s45
      %p47 = scmp.eq.s32.totalorder %s21, 0
      %p48 = por %p46, %p47
      %s50 = sadd.s32 %s49, 1
      %p53 = scmp.eq.s32.totalorder %s15, 1
      %p54 = scmp.ne.s32.totalorder %s49, %s51
      %p55 = scmp.eq.s32.totalorder %s15, 0
      %p56 = por %p54, %p55
      %p57 = scmp.ne.s32.totalorder %s49, %s51
      %p58 = scmp.eq.s32.totalorder %s20, 1
      %p59 = por %p57, %p58
      %p60 = scmp.ne.s32.totalorder %s51, %s52
      %p61 = scmp.eq.s32.totalorder %s20, 0
      %p62 = por %p60, %p61
      %p63 = scmp.ne.s32.totalorder %s51, %s52
      %p64 = scmp.eq.s32.totalorder %s21, 1
      %p65 = por %p63, %p64
      %p67 = scmp.ne.s32.totalorder %s52, %s66
      %p68 = scmp.eq.s32.totalorder %s21, 0
      %p69 = por %p67, %p68
      %s71 = sadd.s32 %s70, 1
      %p74 = scmp.eq.s32.totalorder %s15, 1
      %p75 = scmp.ne.s32.totalorder %s70, %s72
      %p76 = scmp.eq.s32.totalorder %s15, 0
      %p77 = por %p75, %p76
      %p78 = scmp.ne.s32.totalorder %s70, %s72
      %p79 = scmp.eq.s32.totalorder %s20, 1
      %p80 = por %p78, %p79
      %p81 = scmp.ne.s32.totalorder %s72, %s73
      %p82 = scmp.eq.s32.totalorder %s20, 0
      %p83 = por %p81, %p82
      %p84 = scmp.ne.s32.totalorder %s72, %s73
      %p85 = scmp.eq.s32.totalorder %s21, 1
      %p86 = por %p84, %p85
      %p88 = scmp.ne.s32.totalorder %s73, %s87
      %p89 = scmp.eq.s32.totalorder %s21, 0
      %p90 = por %p88, %p89
      %s92 = sadd.s32 %s91, 1
      %p95 = scmp.eq.s32.totalorder %s15, 1
      %p96 = scmp.ne.s32.totalorder %s91, %s93
      %p97 = scmp.eq.s32.totalorder %s15, 0
      %p98 = por %p96, %p97
      %p99 = scmp.ne.s32.totalorder %s91, %s93
      %p100 = scmp.eq.s32.totalorder %s20, 1
      %p101 = por %p99, %p100
      %p102 = scmp.ne.s32.totalorder %s93, %s94
      %p103 = scmp.eq.s32.totalorder %s20, 0
      %p104 = por %p102, %p103
      %p105 = scmp.ne.s32.totalorder %s93, %s94
      %p106 = scmp.eq.s32.totalorder %s21, 1
      %p107 = por %p105, %p106
      %p109 = scmp.ne.s32.totalorder %s94, %s108
      %p110 = scmp.eq.s32.totalorder %s21, 0
      %p111 = por %p109, %p110
      %s113 = sadd.s32 %s112, 1
      %p116 = scmp.eq.s32.totalorder %s15, 1
      %p117 = scmp.ne.s32.totalorder %s112, %s114
      %p118 = scmp.eq.s32.totalorder %s15, 0
      %p119 = por %p117, %p118
      %p120 = scmp.ne.s32.totalorder %s112, %s114
      %p121 = scmp.eq.s32.totalorder %s20, 1
      %p122 = por %p120, %p121
      %p123 = scmp.ne.s32.totalorder %s114, %s115
      %p124 = scmp.eq.s32.totalorder %s20, 0
      %p125 = por %p123, %p124
      %p126 = scmp.ne.s32.totalorder %s114, %s115
      %p127 = scmp.eq.s32.totalorder %s21, 1
      %p128 = por %p126, %p127
      %p130 = scmp.ne.s32.totalorder %s115, %s129
      %p131 = scmp.eq.s32.totalorder %s21, 0
      %p132 = por %p130, %p131
      %s134 = sadd.s32 %s133, 1
      %p137 = scmp.eq.s32.totalorder %s15, 1
      %p138 = scmp.ne.s32.totalorder %s133, %s135
      %p139 = scmp.eq.s32.totalorder %s15, 0
      %p140 = por %p138, %p139
      %p141 = scmp.ne.s32.totalorder %s133, %s135
      %p142 = scmp.eq.s32.totalorder %s20, 1
      %p143 = por %p141, %p142
      %p144 = scmp.ne.s32.totalorder %s135, %s136
      %p145 = scmp.eq.s32.totalorder %s20, 0
      %p146 = por %p144, %p145
      %p147 = scmp.ne.s32.totalorder %s135, %s136
      %p148 = scmp.eq.s32.totalorder %s21, 1
      %p149 = por %p147, %p148
      %p151 = scmp.ne.s32.totalorder %s136, %s150
      %p152 = scmp.eq.s32.totalorder %s21, 0
      %p153 = por %p151, %p152
      %s154 = ssub.s32 %s15, %s22
      %p155 = scmp.eq.s32.totalorder %s154, 0
      %s157 = sadd.s32 %s156, 1
      %s158 = scalar_select %p155, %s156, %s157
      %p161 = pneg %p155
      %p162 = scmp.eq.s32.totalorder %s15, 1
      %p163 = por %p161, %p162
      %p164 = scmp.ne.s32.totalorder %s156, %s159
      %p165 = scmp.eq.s32.totalorder %s15, 0
      %p166 = por %p164, %p165
      %p167 = scmp.ne.s32.totalorder %s156, %s159
      %p168 = scmp.eq.s32.totalorder %s20, 1
      %p169 = por %p167, %p168
      %p170 = scmp.ne.s32.totalorder %s159, %s160
      %p171 = scmp.eq.s32.totalorder %s20, 0
      %p172 = por %p170, %p171
      %p173 = scmp.ne.s32.totalorder %s159, %s160
      %p174 = scmp.eq.s32.totalorder %s21, 1
      %p175 = por %p173, %p174
      %p177 = scmp.ne.s32.totalorder %s160, %s176
      %p178 = scmp.eq.s32.totalorder %s21, 0
      %p179 = por %p177, %p178
      %p180 = scmp.le.s32.totalorder 1, %s15
      %p181 = scmp.lt.s32.totalorder %s15, 3
      %p182 = pnand %p180, %p181
      %p183 = pneg %p182
      // Predicated region
      $region9: #{get_contextual_information_pallas.1} parent=5 // pred_check
        _
      $region10: #{get_contextual_information_pallas.1} parent=5 // pred_check_branch
        %185 = sbr.rel (%p182) target = $region12
      $region11: #{get_contextual_information_pallas.1} parent=5 // pred_region
        %s186 = ssub.s32 %s15, 1
        // Predicated region
        $region13: #{get_contextual_information_pallas.1} parent=11 // pred_check
          %p187 = pneg %p62
        $region14: #{get_contextual_information_pallas.1} parent=11 // pred_check_branch
          %189 = sbr.rel (%p187) target = $region16
        $region15: #{get_contextual_information_pallas.1} parent=11 // pred_region
          %s191 = ssub.s32 2816, 2816
          %192 = vsyncadd [#allocation5], %s191
          %s193 = sshll.u32 [#allocation4], 4
          %s194 = int_to_ptr.vmem [resolvable:$true] %s193
          %199 = dma.hbm_to_vmem [thread:$0]  %s1, 2816, %s194, [#allocation5], 256, 256, 16
        $region16: #{get_contextual_information_pallas.1} parent=11 // pred_fallthru
          _
        // Predicated region
        $region17: #{get_contextual_information_pallas.1} parent=11 // pred_check
          %p200 = pneg %p83
        $region18: #{get_contextual_information_pallas.1} parent=11 // pred_check_branch
          %202 = sbr.rel (%p200) target = $region20
        $region19: #{get_contextual_information_pallas.1} parent=11 // pred_region
          %s204 = ssub.s32 68608, 68608
          %205 = vsyncadd [#allocation7], %s204
          %s206 = sshll.u32 [#allocation6], 4
          %s207 = int_to_ptr.vmem [resolvable:$true] %s206
          %212 = dma.hbm_to_vmem [thread:$0]  %s2, 68608, %s207, [#allocation7], 256, 256, 16
        $region20: #{get_contextual_information_pallas.1} parent=11 // pred_fallthru
          _
        // Predicated region
        $region21: #{get_contextual_information_pallas.1} parent=11 // pred_check
          %p213 = pneg %p104
        $region22: #{get_contextual_information_pallas.1} parent=11 // pred_check_branch
          %215 = sbr.rel (%p213) target = $region24
        $region23: #{get_contextual_information_pallas.1} parent=11 // pred_region
          %s217 = ssub.s32 5376, 5376
          %218 = vsyncadd [#allocation7], %s217
          %s219 = sshll.u32 [#allocation8], 4
          %s220 = int_to_ptr.vmem [resolvable:$true] %s219
          %225 = dma.hbm_to_vmem [thread:$0]  %s3, 5376, %s220, [#allocation7], 128, 128, 8
        $region24: #{get_contextual_information_pallas.1} parent=11 // pred_fallthru
          _
        // Predicated region
        $region25: #{get_contextual_information_pallas.1} parent=11 // pred_check
          %p226 = pneg %p125
        $region26: #{get_contextual_information_pallas.1} parent=11 // pred_check_branch
          %228 = sbr.rel (%p226) target = $region28
        $region27: #{get_contextual_information_pallas.1} parent=11 // pred_region
          %s230 = ssub.s32 16, 16
          %231 = vsyncadd [#allocation10], %s230
          %s233 = sshll.u32 [#allocation9], 4
          %s234 = int_to_ptr.vmem [resolvable:$true] %s233
          %236 = dma.hbm_to_vmem [thread:$0]  %s4, 16, %s234, [#allocation10]
        $region28: #{get_contextual_information_pallas.1} parent=11 // pred_fallthru
          _
        // Predicated region
        $region29: #{get_contextual_information_pallas.1} parent=11 // pred_check
          %p237 = pneg %p146
        $region30: #{get_contextual_information_pallas.1} parent=11 // pred_check_branch
          %239 = sbr.rel (%p237) target = $region32
        $region31: #{get_contextual_information_pallas.1} parent=11 // pred_region
          %s241 = ssub.s32 8192, 8192
          %242 = vsyncadd [#allocation10], %s241
          %s243 = sshll.u32 [#allocation11], 4
          %s244 = int_to_ptr.vmem [resolvable:$true] %s243
          %249 = dma.hbm_to_vmem [thread:$0]  %s5, 8192, %s244, [#allocation10], 1024, 1024, 64
        $region32: #{get_contextual_information_pallas.1} parent=11 // pred_fallthru
          _
      $region12: #{get_contextual_information_pallas.1} parent=5 // pred_fallthru
        _
      %p250 = scmp.lt.s32.totalorder %s15, 2
      // Predicated region
      $region33: #{get_contextual_information_pallas.1} parent=5 // pred_check
        %p251 = pneg %p250
      $region34: #{get_contextual_information_pallas.1} parent=5 // pred_check_branch
        %253 = sbr.rel (%p251) target = $region36
      $region35: #{get_contextual_information_pallas.1} parent=5 // pred_region
        // Predicated region
        $region37: #{get_contextual_information_pallas.1} parent=35 // pred_check
          %p254 = pneg %p35
        $region38: #{get_contextual_information_pallas.1} parent=35 // pred_check_branch
          %256 = sbr.rel (%p254) target = $region40
        $region39: #{get_contextual_information_pallas.1} parent=35 // pred_region
          %p257 = scmp.lt.s32.totalorder %s15, 1
          %s258 = scalar_select %p257, %s15, 1
          %s259 = smul.addr %s258, 4
          %s260 = smul.addr %s259, 8
          %s261 = scalar_lea.vmem %s0, %s260
        $region40: #{get_contextual_information_pallas.1} parent=35 // pred_fallthru
          _
      $region36: #{get_contextual_information_pallas.1} parent=5 // pred_fallthru
        _
      %p262 = scmp.le.s32.totalorder 1, %s15
      %p263 = scmp.lt.s32.totalorder %s15, 3
      %p264 = pnand %p262, %p263
      %p265 = pneg %p264
      // Predicated region
      $region41: #{get_contextual_information_pallas.1} parent=5 // pred_check
        _
      $region42: #{get_contextual_information_pallas.1} parent=5 // pred_check_branch
        %267 = sbr.rel (%p264) target = $region44
      $region43: #{get_contextual_information_pallas.1} parent=5 // pred_region
        %s268 = ssub.s32 %s15, 1
        // Predicated region
        $region45: #{get_contextual_information_pallas.1} parent=43 // pred_check
          %p269 = pneg %p62
        $region46: #{get_contextual_information_pallas.1} parent=43 // pred_check_branch
          %271 = sbr.rel (%p269) target = $region48
        $region47: #{get_contextual_information_pallas.1} parent=43 // pred_region
          %272 = dma.done [#allocation5], 2816
        $region48: #{get_contextual_information_pallas.1} parent=43 // pred_fallthru
          _
        // Predicated region
        $region49: #{get_contextual_information_pallas.1} parent=43 // pred_check
          %p273 = pneg %p83
        $region50: #{get_contextual_information_pallas.1} parent=43 // pred_check_branch
          %275 = sbr.rel (%p273) target = $region52
        $region51: #{get_contextual_information_pallas.1} parent=43 // pred_region
          %276 = dma.done [#allocation7], 68608
        $region52: #{get_contextual_information_pallas.1} parent=43 // pred_fallthru
          _
        // Predicated region
        $region53: #{get_contextual_information_pallas.1} parent=43 // pred_check
          %p277 = pneg %p104
        $region54: #{get_contextual_information_pallas.1} parent=43 // pred_check_branch
          %279 = sbr.rel (%p277) target = $region56
        $region55: #{get_contextual_information_pallas.1} parent=43 // pred_region
          %280 = dma.done [#allocation7], 5376
        $region56: #{get_contextual_information_pallas.1} parent=43 // pred_fallthru
          _
        // Predicated region
        $region57: #{get_contextual_information_pallas.1} parent=43 // pred_check
          %p281 = pneg %p125
        $region58: #{get_contextual_information_pallas.1} parent=43 // pred_check_branch
          %283 = sbr.rel (%p281) target = $region60
        $region59: #{get_contextual_information_pallas.1} parent=43 // pred_region
          %284 = dma.done [#allocation10], 16
        $region60: #{get_contextual_information_pallas.1} parent=43 // pred_fallthru
          _
        // Predicated region
        $region61: #{get_contextual_information_pallas.1} parent=43 // pred_check
          %p285 = pneg %p146
        $region62: #{get_contextual_information_pallas.1} parent=43 // pred_check_branch
          %287 = sbr.rel (%p285) target = $region64
        $region63: #{get_contextual_information_pallas.1} parent=43 // pred_region
          %288 = dma.done [#allocation10], 8192
        $region64: #{get_contextual_information_pallas.1} parent=43 // pred_fallthru
          _
        %p289 = scmp.lt.s32.totalorder %s20, 1
        %s290 = scalar_select %p289, %s20, 1
        %s291 = smul.addr %s290, 4
        %s292 = smul.addr %s291, 8
        %s293 = scalar_lea.vmem %s0, %s292
        %p294 = pneg %p41
        %p295 = pneg %p38
        %p296 = pneg %p62
        %p297 = pneg %p59
        %p298 = pneg %p83
        %p299 = pneg %p80
        %p300 = pneg %p104
        %p301 = pneg %p101
        %p302 = pneg %p125
        %p303 = pneg %p122
        %p304 = pneg %p146
        %p305 = pneg %p143
        %p306 = pneg %p172
        %p307 = pneg %p169
        %p308 = scmp.lt.s32.totalorder %s20, 1
        %s309 = scalar_select %p308, %s20, 1
        %s310 = smul.addr %s309, 4
        %s311 = smul.addr %s310, 8
        %s312 = scalar_lea.vmem %s6, %s311
        %p313 = scmp.lt.s32.totalorder %s20, 1
        %s314 = scalar_select %p313, %s20, 1
        %s315 = smul.addr %s314, 4
        %s316 = smul.addr %s315, 8
        %s317 = scalar_lea.vmem %s0, %s316
        %p318 = scmp.lt.s32.totalorder %s20, 1
        %s319 = scalar_select %p318, %s20, 1
        %s320 = smul.addr %s319, 4
        %s321 = smul.addr %s320, 8
        %s322 = scalar_lea.vmem %s6, %s321
        %v323 = vld [vmem:[%s317] sm:$0xff]
        %v324 = vld [vmem:[%s317 + $0x8] sm:$0xff]
        %v325 = vld [vmem:[%s317 + $0x10] sm:$0xff]
        %v326 = vld [vmem:[%s317 + $0x18] sm:$0xff]
        %327 = vst [vmem:[#allocation2] sm:$0xff] 0.0
        %328 = vst [vmem:[#allocation2 + $0x8] sm:$0xff] 0.0
        %329 = vst [vmem:[#allocation2 + $0x10] sm:$0xff] 0.0
        %330 = vst [vmem:[#allocation2 + $0x18] sm:$0xff] 0.0
        %vm331 = vcmask 261120
        %332 = vst.msk [vmem:[#allocation2 + $0x20] sm:$0xff] %vm331, 0.0
        %333 = vst [vmem:[#allocation2 + $0x28] sm:$0xff] 0.0
        %334 = vst [vmem:[#allocation2 + $0x30] sm:$0xff] 0.0
        %335 = vst [vmem:[#allocation2 + $0x38] sm:$0xff] 0.0
        %336 = vst [vmem:[#allocation2 + $0x40] sm:$0xff] 0.0
        %337 = vst.msk [vmem:[#allocation2 + $0x48] sm:$0xff] %vm331, 0.0
        %338 = vst [vmem:[#allocation2 + $0x50] sm:$0xff] 0.0
        %339 = vst [vmem:[#allocation2 + $0x58] sm:$0xff] 0.0
        %340 = vst [vmem:[#allocation2 + $0x60] sm:$0xff] 0.0
        %341 = vst [vmem:[#allocation2 + $0x68] sm:$0xff] 0.0
        %342 = vst.msk [vmem:[#allocation2 + $0x70] sm:$0xff] %vm331, 0.0
        %343 = vst [vmem:[#allocation2 + $0x78] sm:$0xff] 0.0
        %344 = vst [vmem:[#allocation2 + $0x80] sm:$0xff] 0.0
        %345 = vst [vmem:[#allocation2 + $0x88] sm:$0xff] 0.0
        %346 = vst [vmem:[#allocation2 + $0x90] sm:$0xff] 0.0
        %347 = vst.msk [vmem:[#allocation2 + $0x98] sm:$0xff] %vm331, 0.0
        %348 = vst [vmem:[#allocation2 + $0xa0] sm:$0x3] 0.0
        %349 = vst [vmem:[#allocation2 + $0xa8] sm:$0x3] 0.0
        %350 = vst [vmem:[#allocation2 + $0xb0] sm:$0x3] 0.0
        %351 = vst [vmem:[#allocation2 + $0xb8] sm:$0x3] 0.0
        %vm352 = vcmask 254976
        %353 = vst.msk [vmem:[#allocation2 + $0xc0] sm:$0x3] %vm352, 0.0
        %vm358 = vcmask 1040384
        %v359 = vrot.slane %v323, 7
        %v360 = vrot.slane %v324, 7
        %v361 = vrot.slane %v325, 7
        %v362 = vsel %vm358, %v359, %v361
        %v363 = vrot.slane %v326, 7
        %v364 = vsel %vm358, %v360, %v363
        %365 = vrot.lane.b32.xlu0 %v359, 16
        %v366 = vpop.permute.xlu0 %365
        %367 = vrot.lane.b32.xlu0 %v360, 16
        %v368 = vpop.permute.xlu0 %367
        %369 = vrot.lane.b32.xlu0 %v362, 16
        %v370 = vpop.permute.xlu0 %369
        %371 = vrot.lane.b32.xlu0 %v364, 16
        %v372 = vpop.permute.xlu0 %371
        %373 = vrot.lane.b32.xlu0 %v361, 16
        %v374 = vpop.permute.xlu0 %373
        %375 = vrot.lane.b32.xlu0 %v363, 16
        %v376 = vpop.permute.xlu0 %375
        %vm377 = vcmask 130048
        %v378 = vsel %vm377, %v366, %v368
        %v379 = vsel %vm377, %v370, %v372
        %v380 = vsel %vm377, %v374, %v376
        %vm390 = vcmask 1047681
        %391 = vst.msk [vmem:[#allocation2 + $0x30] sm:$0xfe] %vm390, %v366
        %392 = vst [vmem:[#allocation2 + $0x38] sm:$0xfe] %v378
        %vm393 = vcmask 130049
        %394 = vst.msk [vmem:[#allocation2 + $0x40] sm:$0xfe] %vm393, %v368
        %vm395 = vcmask 1047680
        %396 = vst.msk [vmem:[#allocation2 + $0x58] sm:$0xff] %vm395, %v370
        %397 = vst [vmem:[#allocation2 + $0x60] sm:$0xff] %v379
        %398 = vst.msk [vmem:[#allocation2 + $0x68] sm:$0xff] %vm377, %v372
        %vm399 = vcmask 1040512
        %400 = vst.msk [vmem:[#allocation2 + $0x80] sm:$0x1] %vm399, %v374
        %401 = vst [vmem:[#allocation2 + $0x88] sm:$0x1] %v380
        %vm402 = vcmask 122880
        %403 = vst.msk [vmem:[#allocation2 + $0x90] sm:$0x1] %vm402, %v376
        %v404 = vld [vmem:[#allocation4] ss:$8 sm:$0x3]
        %v406 = vlaneseq
        %v407 = vshrl.u32 %v406, 7
        %v408 = vsub.s32 0, %v407
        %v409 = vrot.slane %v404, %v408
        %v410 = vlaneseq
        %v411 = vshrl.u32 %v410, 7
        %v412 = vsub.s32 1, %v411
        %v413 = vrot.slane %v404, %v412
        %v416 = vmul.f32 %v323, %v409
        %v417 = vmul.f32 %v324, %v413
        %v418 = vmul.f32 %v325, %v409
        %v419 = vmul.f32 %v326, %v413
        %s420 = scalar_lea.vmem [#allocation4], 1
        %v421 = vld [vmem:[%s420] ss:$8 sm:$0x3]
        %v423 = vlaneseq
        %v424 = vshrl.u32 %v423, 7
        %v425 = vsub.s32 0, %v424
        %v426 = vrot.slane %v421, %v425
        %v427 = vlaneseq
        %v428 = vshrl.u32 %v427, 7
        %v429 = vsub.s32 1, %v428
        %v430 = vrot.slane %v421, %v429
        %v433 = vadd.f32 %v416, %v426
        %v434 = vadd.f32 %v417, %v430
        %v435 = vadd.f32 %v418, %v426
        %v436 = vadd.f32 %v419, %v430
        %v437 = vld [vmem:[#allocation2 + $0x30] sm:$0xff]
        %v438 = vld [vmem:[#allocation2 + $0x38] sm:$0xff]
        %v439 = vld [vmem:[#allocation2 + $0x40] sm:$0xff]
        %v440 = vld [vmem:[#allocation2 + $0x58] sm:$0xff]
        %v441 = vld [vmem:[#allocation2 + $0x60] sm:$0xff]
        %v442 = vld [vmem:[#allocation2 + $0x68] sm:$0xff]
        %v443 = vld [vmem:[#allocation6] sm:$0xff]
        %v444 = vld [vmem:[#allocation6 + $0x8] sm:$0xff]
        %v445 = vld [vmem:[#allocation6 + $0x10] sm:$0xff]
        %v446 = vld [vmem:[#allocation6 + $0x18] sm:$0xff]
        %v447 = vld [vmem:[#allocation6 + $0x20] sm:$0xff]
        %v448 = vld [vmem:[#allocation6 + $0x28] sm:$0xff]
        %v449 = vld [vmem:[#allocation6 + $0x30] sm:$0xff]
        %v450 = vld [vmem:[#allocation6 + $0x38] sm:$0xff]
        %v451 = vld [vmem:[#allocation6 + $0x40] sm:$0xff]
        %v452 = vld [vmem:[#allocation6 + $0x48] sm:$0xff]
        %v453 = vld [vmem:[#allocation6 + $0x50] sm:$0xff]
        %v454 = vld [vmem:[#allocation6 + $0x58] sm:$0xff]
        %v455 = vld [vmem:[#allocation6 + $0x60] sm:$0xff]
        %v456 = vld [vmem:[#allocation6 + $0x68] sm:$0xff]
        %v457 = vld [vmem:[#allocation6 + $0x70] sm:$0xff]
        %v458 = vld [vmem:[#allocation6 + $0x78] sm:$0xff]
        %v459 = vld [vmem:[#allocation6 + $0x80] sm:$0xff]
        %v460 = vld [vmem:[#allocation6 + $0x88] sm:$0xff]
        %v461 = vld [vmem:[#allocation6 + $0x90] sm:$0xff]
        %v462 = vld [vmem:[#allocation6 + $0x98] sm:$0xff]
        %v463 = vld [vmem:[#allocation6 + $0xa0] sm:$0xff]
        %v464 = vld [vmem:[#allocation6 + $0xa8] sm:$0xff]
        %v465 = vld [vmem:[#allocation6 + $0xb0] sm:$0xff]
        %v466 = vld [vmem:[#allocation6 + $0xb8] sm:$0xff]
        %v467 = vld [vmem:[#allocation6 + $0xc0] sm:$0xff]
        %v468 = vld [vmem:[#allocation6 + $0xc8] sm:$0xff]
        %v469 = vld [vmem:[#allocation6 + $0xd0] sm:$0xff]
        %v470 = vld [vmem:[#allocation6 + $0xd8] sm:$0xff]
        %v471 = vld [vmem:[#allocation6 + $0xe0] sm:$0xff]
        %v472 = vld [vmem:[#allocation6 + $0xe8] sm:$0xff]
        %v473 = vld [vmem:[#allocation6 + $0xf0] sm:$0xff]
        %v474 = vld [vmem:[#allocation6 + $0xf8] sm:$0xff]
        %v475 = vld [vmem:[#allocation6 + $0x100] sm:$0xff]
        %v476 = vld [vmem:[#allocation6 + $0x108] sm:$0xff]
        %v477 = vld [vmem:[#allocation6 + $0x110] sm:$0xff]
        %v478 = vld [vmem:[#allocation6 + $0x118] sm:$0xff]
        %v479 = vld [vmem:[#allocation6 + $0x120] sm:$0xff]
        %v480 = vld [vmem:[#allocation6 + $0x128] sm:$0xff]
        %v481 = vld [vmem:[#allocation6 + $0x130] sm:$0xff]
        %v482 = vld [vmem:[#allocation6 + $0x138] sm:$0xff]
        %v483 = vld [vmem:[#allocation6 + $0x140] sm:$0xff]
        %v484 = vld [vmem:[#allocation6 + $0x148] sm:$0xff]
        %v485 = vld [vmem:[#allocation6 + $0x150] sm:$0xff]
        %v486 = vld [vmem:[#allocation6 + $0x158] sm:$0xff]
        %v487 = vld [vmem:[#allocation6 + $0x160] sm:$0xff]
        %v488 = vld [vmem:[#allocation6 + $0x168] sm:$0xff]
        %v489 = vld [vmem:[#allocation6 + $0x170] sm:$0xff]
        %v490 = vld [vmem:[#allocation6 + $0x178] sm:$0xff]
        %v491 = vld [vmem:[#allocation6 + $0x180] sm:$0xff]
        %v492 = vld [vmem:[#allocation6 + $0x188] sm:$0xff]
        %v493 = vld [vmem:[#allocation6 + $0x190] sm:$0xff]
        %v494 = vld [vmem:[#allocation6 + $0x198] sm:$0xff]
        %v495 = vld [vmem:[#allocation6 + $0x1a0] sm:$0xff]
        %v496 = vld [vmem:[#allocation6 + $0x1a8] sm:$0xff]
        %v497 = vld [vmem:[#allocation6 + $0x1b0] sm:$0xff]
        %v498 = vld [vmem:[#allocation6 + $0x1b8] sm:$0xff]
        %v499 = vld [vmem:[#allocation6 + $0x1c0] sm:$0xff]
        %v500 = vld [vmem:[#allocation6 + $0x1c8] sm:$0xff]
        %v501 = vld [vmem:[#allocation6 + $0x1d0] sm:$0xff]
        %v502 = vld [vmem:[#allocation6 + $0x1d8] sm:$0xff]
        %v503 = vld [vmem:[#allocation6 + $0x1e0] sm:$0xff]
        %v504 = vld [vmem:[#allocation6 + $0x1e8] sm:$0xff]
        %v505 = vld [vmem:[#allocation6 + $0x1f0] sm:$0xff]
        %v506 = vld [vmem:[#allocation6 + $0x1f8] sm:$0xff]
        %v507 = vld [vmem:[#allocation6 + $0x200] sm:$0xff]
        %v508 = vld [vmem:[#allocation6 + $0x208] sm:$0xff]
        %v509 = vld [vmem:[#allocation6 + $0x210] sm:$0xff]
        %v510 = vld [vmem:[#allocation6 + $0x218] sm:$0xff]
        %v511 = vld [vmem:[#allocation6 + $0x220] sm:$0xff]
        %v512 = vld [vmem:[#allocation6 + $0x228] sm:$0xff]
        %v513 = vld [vmem:[#allocation6 + $0x230] sm:$0xff]
        %v514 = vld [vmem:[#allocation6 + $0x238] sm:$0xff]
        %v515 = vld [vmem:[#allocation2 + $0x30] sm:$0xfe]
        %v516 = vld [vmem:[#allocation2 + $0x38] sm:$0xfe]
        %v517 = vld [vmem:[#allocation2 + $0x40] sm:$0xfe]
        %v518 = vld [vmem:[#allocation2 + $0x80] sm:$0x1]
        %v519 = vld [vmem:[#allocation2 + $0x88] sm:$0x1]
        %v520 = vld [vmem:[#allocation2 + $0x90] sm:$0x1]
        %v521 = vld [vmem:[#allocation6 + $0x240] sm:$0xff]
        %v522 = vld [vmem:[#allocation6 + $0x248] sm:$0xff]
        %v523 = vld [vmem:[#allocation6 + $0x250] sm:$0xff]
        %v524 = vld [vmem:[#allocation6 + $0x258] sm:$0xff]
        %v525 = vld [vmem:[#allocation6 + $0x260] sm:$0xff]
        %v526 = vld [vmem:[#allocation6 + $0x268] sm:$0xff]
        %v527 = vld [vmem:[#allocation6 + $0x270] sm:$0xff]
        %v528 = vld [vmem:[#allocation6 + $0x278] sm:$0xff]
        %v529 = vld [vmem:[#allocation6 + $0x280] sm:$0xff]
        %v530 = vld [vmem:[#allocation6 + $0x288] sm:$0xff]
        %v531 = vld [vmem:[#allocation6 + $0x290] sm:$0xff]
        %v532 = vld [vmem:[#allocation6 + $0x298] sm:$0xff]
        %v533 = vld [vmem:[#allocation6 + $0x2a0] sm:$0xff]
        %v534 = vld [vmem:[#allocation6 + $0x2a8] sm:$0xff]
        %v535 = vld [vmem:[#allocation6 + $0x2b0] sm:$0xff]
        %v536 = vld [vmem:[#allocation6 + $0x2b8] sm:$0xff]
        %v537 = vld [vmem:[#allocation6 + $0x2c0] sm:$0xff]
        %v538 = vld [vmem:[#allocation6 + $0x2c8] sm:$0xff]
        %v539 = vld [vmem:[#allocation6 + $0x2d0] sm:$0xff]
        %v540 = vld [vmem:[#allocation6 + $0x2d8] sm:$0xff]
        %v541 = vld [vmem:[#allocation6 + $0x2e0] sm:$0xff]
        %v542 = vld [vmem:[#allocation6 + $0x2e8] sm:$0xff]
        %v543 = vld [vmem:[#allocation6 + $0x2f0] sm:$0xff]
        %v544 = vld [vmem:[#allocation6 + $0x2f8] sm:$0xff]
        %v545 = vld [vmem:[#allocation6 + $0x300] sm:$0xff]
        %v546 = vld [vmem:[#allocation6 + $0x308] sm:$0xff]
        %v547 = vld [vmem:[#allocation6 + $0x310] sm:$0xff]
        %v548 = vld [vmem:[#allocation6 + $0x318] sm:$0xff]
        %v549 = vld [vmem:[#allocation6 + $0x320] sm:$0xff]
        %v550 = vld [vmem:[#allocation6 + $0x328] sm:$0xff]
        %v551 = vld [vmem:[#allocation6 + $0x330] sm:$0xff]
        %v552 = vld [vmem:[#allocation6 + $0x338] sm:$0xff]
        %v553 = vld [vmem:[#allocation6 + $0x340] sm:$0xff]
        %v554 = vld [vmem:[#allocation6 + $0x348] sm:$0xff]
        %v555 = vld [vmem:[#allocation6 + $0x350] sm:$0xff]
        %v556 = vld [vmem:[#allocation6 + $0x358] sm:$0xff]
        %v557 = vld [vmem:[#allocation6 + $0x360] sm:$0xff]
        %v558 = vld [vmem:[#allocation6 + $0x368] sm:$0xff]
        %v559 = vld [vmem:[#allocation6 + $0x370] sm:$0xff]
        %v560 = vld [vmem:[#allocation6 + $0x378] sm:$0xff]
        %v561 = vld [vmem:[#allocation6 + $0x380] sm:$0xff]
        %v562 = vld [vmem:[#allocation6 + $0x388] sm:$0xff]
        %v563 = vld [vmem:[#allocation6 + $0x390] sm:$0xff]
        %v564 = vld [vmem:[#allocation6 + $0x398] sm:$0xff]
        %v565 = vld [vmem:[#allocation6 + $0x3a0] sm:$0xff]
        %v566 = vld [vmem:[#allocation6 + $0x3a8] sm:$0xff]
        %v567 = vld [vmem:[#allocation6 + $0x3b0] sm:$0xff]
        %v568 = vld [vmem:[#allocation6 + $0x3b8] sm:$0xff]
        %v569 = vld [vmem:[#allocation6 + $0x3c0] sm:$0xff]
        %v570 = vld [vmem:[#allocation6 + $0x3c8] sm:$0xff]
        %v571 = vld [vmem:[#allocation6 + $0x3d0] sm:$0xff]
        %v572 = vld [vmem:[#allocation6 + $0x3d8] sm:$0xff]
        %v573 = vld [vmem:[#allocation6 + $0x3e0] sm:$0xff]
        %v574 = vld [vmem:[#allocation6 + $0x3e8] sm:$0xff]
        %v575 = vld [vmem:[#allocation6 + $0x3f0] sm:$0xff]
        %v576 = vld [vmem:[#allocation6 + $0x3f8] sm:$0xff]
        %v577 = vld [vmem:[#allocation6 + $0x400] sm:$0xff]
        %v578 = vld [vmem:[#allocation6 + $0x408] sm:$0xff]
        %v579 = vld [vmem:[#allocation6 + $0x410] sm:$0xff]
        %v580 = vld [vmem:[#allocation6 + $0x418] sm:$0xff]
        %v581 = vld [vmem:[#allocation6 + $0x420] sm:$0xff]
        %v582 = vld [vmem:[#allocation6 + $0x428] sm:$0xff]
        %v583 = vld [vmem:[#allocation6 + $0x430] sm:$0xff]
        %v584 = vld [vmem:[#allocation6 + $0x438] sm:$0xff]
        %v585 = vld [vmem:[#allocation6 + $0x440] sm:$0xff]
        %v586 = vld [vmem:[#allocation6 + $0x448] sm:$0xff]
        %v587 = vld [vmem:[#allocation6 + $0x450] sm:$0xff]
        %v588 = vld [vmem:[#allocation6 + $0x458] sm:$0xff]
        %v589 = vld [vmem:[#allocation6 + $0x460] sm:$0xff]
        %v590 = vld [vmem:[#allocation6 + $0x468] sm:$0xff]
        %v591 = vld [vmem:[#allocation6 + $0x470] sm:$0xff]
        %v592 = vld [vmem:[#allocation6 + $0x478] sm:$0xff]
        %vm602 = vcmask 1046528
        %v603 = vrot.slane %v515, 1
        %v604 = vrot.slane %v440, 1
        %v605 = vsel %vm602, %v603, %v604
        %v606 = vrot.slane %v516, 1
        %v607 = vrot.slane %v441, 1
        %v608 = vsel %vm602, %v606, %v607
        %v609 = vrot.slane %v517, 1
        %v610 = vrot.slane %v442, 1
        %v611 = vsel %vm602, %v609, %v610
        %v612 = vrot.slane %v518, 1
        %v613 = vsel %vm602, %v604, %v612
        %v614 = vrot.slane %v519, 1
        %v615 = vsel %vm602, %v607, %v614
        %v616 = vrot.slane %v520, 1
        %v617 = vsel %vm602, %v610, %v616
        %v622 = vsel %vm331, %v611, 0
        %v624 = vsel %vm331, %v617, 0
        %626 = vmatprep.subr.mxu0 %v552
        %627 = vmatpush1.msra.mxu0 %v551
        %628 = vmatprep.subr.mxu0 %v550
        %629 = vmatpush1.msra.mxu0 %v549
        %630 = vmatprep.subr.mxu0 %v548
        %631 = vmatpush1.msra.mxu0 %v547
        %632 = vmatprep.subr.mxu0 %v546
        %633 = vmatpush1.msra.mxu0 %v545
        %634 = vmatprep.subr.mxu0 %v544
        %635 = vmatpush1.msra.mxu0 %v543
        %636 = vmatprep.subr.mxu0 %v542
        %637 = vmatpush1.msra.mxu0 %v541
        %638 = vmatprep.subr.mxu0 %v540
        %639 = vmatpush1.msra.mxu0 %v539
        %640 = vmatprep.subr.mxu0 %v538
        %641 = vmatpush1.msra.mxu0 %v537
        %642 = vmatprep.subr.mxu0 %v536
        %643 = vmatpush1.msra.mxu0 %v535
        %644 = vmatprep.subr.mxu0 %v534
        %645 = vmatpush1.msra.mxu0 %v533
        %646 = vmatprep.subr.mxu0 %v532
        %647 = vmatpush1.msra.mxu0 %v531
        %648 = vmatprep.subr.mxu0 %v530
        %649 = vmatpush1.msra.mxu0 %v529
        %650 = vmatprep.subr.mxu0 %v528
        %651 = vmatpush1.msra.mxu0 %v527
        %652 = vmatprep.subr.mxu0 %v526
        %653 = vmatpush1.msra.mxu0 %v525
        %654 = vmatprep.subr.mxu0 %v524
        %655 = vmatpush1.msra.mxu0 %v523
        %656 = vmatprep.subr.mxu0 %v522
        %657 = vmatpush1.msra.mxu0 %v521
        %658 = vmatprep.subr.mxu0 %v584
        %659 = vmatpush2.msra.mxu0 %v583
        %660 = vmatprep.subr.mxu0 %v582
        %661 = vmatpush2.msra.mxu0 %v581
        %662 = vmatprep.subr.mxu0 %v580
        %663 = vmatpush2.msra.mxu0 %v579
        %664 = vmatprep.subr.mxu0 %v578
        %665 = vmatpush2.msra.mxu0 %v577
        %666 = vmatprep.subr.mxu0 %v576
        %667 = vmatpush2.msra.mxu0 %v575
        %668 = vmatprep.subr.mxu0 %v574
        %669 = vmatpush2.msra.mxu0 %v573
        %670 = vmatprep.subr.mxu0 %v572
        %671 = vmatpush2.msra.mxu0 %v571
        %672 = vmatprep.subr.mxu0 %v570
        %673 = vmatpush2.msra.mxu0 %v569
        %674 = vmatprep.subr.mxu0 %v568
        %675 = vmatpush2.msra.mxu0 %v567
        %676 = vmatprep.subr.mxu0 %v566
        %677 = vmatpush2.msra.mxu0 %v565
        %678 = vmatprep.subr.mxu0 %v564
        %679 = vmatpush2.msra.mxu0 %v563
        %680 = vmatprep.subr.mxu0 %v562
        %681 = vmatpush2.msra.mxu0 %v561
        %682 = vmatprep.subr.mxu0 %v560
        %683 = vmatpush2.msra.mxu0 %v559
        %684 = vmatprep.subr.mxu0 %v558
        %685 = vmatpush2.msra.mxu0 %v557
        %686 = vmatprep.subr.mxu0 %v556
        %687 = vmatpush2.msra.mxu0 %v555
        %688 = vmatprep.subr.mxu0 %v554
        %689 = vmatpush2.msra.mxu0 %v553
        %690 = vmatprep.mubr.f32.mxu0 %v608
        %691 = vmatmul.mubr.f32.gmra.mxu0 %v605
        %v692 = vpop.f32.mrf.mxu0
        %v693 = vadd.f32 0.0, %v692
        %v694 = vpop.f32.mrf.mxu0
        %v695 = vadd.f32 0.0, %v694
        %696 = vmatprep.mubr.f32.mxu0 %v615
        %697 = vmatmul.mubr.f32.gmra.mxu0 %v613
        %v698 = vpop.f32.mrf.mxu0
        %v699 = vadd.f32 0.0, %v698
        %v700 = vpop.f32.mrf.mxu0
        %v701 = vadd.f32 0.0, %v700
        %702 = vdwg.mxu0
        %703 = vmatprep.subr.mxu0 0.0
        %704 = vmatpush1.msra.mxu0 0.0
        %705 = vmatprep.subr.mxu0 0.0
        %706 = vmatpush1.msra.mxu0 0.0
        %707 = vmatprep.subr.mxu0 0.0
        %708 = vmatpush1.msra.mxu0 0.0
        %709 = vmatprep.subr.mxu0 0.0
        %710 = vmatpush1.msra.mxu0 0.0
        %711 = vmatprep.subr.mxu0 0.0
        %712 = vmatpush1.msra.mxu0 0.0
        %713 = vmatprep.subr.mxu0 0.0
        %714 = vmatpush1.msra.mxu0 0.0
        %715 = vmatprep.subr.mxu0 0.0
        %716 = vmatpush1.msra.mxu0 0.0
        %717 = vmatprep.subr.mxu0 0.0
        %718 = vmatpush1.msra.mxu0 0.0
        %719 = vmatprep.subr.mxu0 0.0
        %720 = vmatpush1.msra.mxu0 0.0
        %721 = vmatprep.subr.mxu0 0.0
        %722 = vmatpush1.msra.mxu0 0.0
        %723 = vmatprep.subr.mxu0 0.0
        %724 = vmatpush1.msra.mxu0 0.0
        %725 = vmatprep.subr.mxu0 0.0
        %726 = vmatpush1.msra.mxu0 0.0
        %727 = vmatprep.subr.mxu0 %v592
        %728 = vmatpush1.msra.mxu0 %v591
        %729 = vmatprep.subr.mxu0 %v590
        %730 = vmatpush1.msra.mxu0 %v589
        %731 = vmatprep.subr.mxu0 %v588
        %732 = vmatpush1.msra.mxu0 %v587
        %733 = vmatprep.subr.mxu0 %v586
        %734 = vmatpush1.msra.mxu0 %v585
        %735 = vmatprep.subr.mxu0 0.0
        %736 = vmatpush2.msra.mxu0 0.0
        %737 = vmatprep.subr.mxu0 0.0
        %738 = vmatpush2.msra.mxu0 0.0
        %739 = vmatprep.subr.mxu0 0.0
        %740 = vmatpush2.msra.mxu0 0.0
        %741 = vmatprep.subr.mxu0 0.0
        %742 = vmatpush2.msra.mxu0 0.0
        %743 = vmatprep.subr.mxu0 0.0
        %744 = vmatpush2.msra.mxu0 0.0
        %745 = vmatprep.subr.mxu0 0.0
        %746 = vmatpush2.msra.mxu0 0.0
        %747 = vmatprep.subr.mxu0 0.0
        %748 = vmatpush2.msra.mxu0 0.0
        %749 = vmatprep.subr.mxu0 0.0
        %750 = vmatpush2.msra.mxu0 0.0
        %751 = vmatprep.subr.mxu0 0.0
        %752 = vmatpush2.msra.mxu0 0.0
        %753 = vmatprep.subr.mxu0 0.0
        %754 = vmatpush2.msra.mxu0 0.0
        %755 = vmatprep.subr.mxu0 0.0
        %756 = vmatpush2.msra.mxu0 0.0
        %757 = vmatprep.subr.mxu0 0.0
        %758 = vmatpush2.msra.mxu0 0.0
        %759 = vmatprep.subr.mxu0 0.0
        %760 = vmatpush2.msra.mxu0 0.0
        %761 = vmatprep.subr.mxu0 0.0
        %762 = vmatpush2.msra.mxu0 0.0
        %763 = vmatprep.subr.mxu0 0.0
        %764 = vmatpush2.msra.mxu0 0.0
        %765 = vmatprep.subr.mxu0 0.0
        %766 = vmatpush2.msra.mxu0 0.0
        %767 = vmatprep.mubr.f32.mxu0 0.0
        %768 = vmatmul.mubr.f32.gmra.mxu0 %v622
        %v769 = vpop.f32.mrf.mxu0
        %v770 = vadd.f32 %v693, %v769
        %v771 = vpop.f32.mrf.mxu0
        %v772 = vadd.f32 %v695, %v771
        %773 = vmatprep.mubr.f32.mxu0 0.0
        %774 = vmatmul.mubr.f32.gmra.mxu0 %v624
        %v775 = vpop.f32.mrf.mxu0
        %v776 = vadd.f32 %v699, %v775
        %v777 = vpop.f32.mrf.mxu0
        %v778 = vadd.f32 %v701, %v777
        %779 = vdwg.mxu0
        %v780 = vld [vmem:[#allocation2 + $0x30] sm:$0xfc]
        %v781 = vld [vmem:[#allocation2 + $0x38] sm:$0xfc]
        %v782 = vld [vmem:[#allocation2 + $0x40] sm:$0xfc]
        %v783 = vld [vmem:[#allocation2 + $0x80] sm:$0x3]
        %v784 = vld [vmem:[#allocation2 + $0x88] sm:$0x3]
        %v785 = vld [vmem:[#allocation2 + $0x90] sm:$0x3]
        %v786 = vld [vmem:[#allocation6 + $0x480] sm:$0xff]
        %v787 = vld [vmem:[#allocation6 + $0x488] sm:$0xff]
        %v788 = vld [vmem:[#allocation6 + $0x490] sm:$0xff]
        %v789 = vld [vmem:[#allocation6 + $0x498] sm:$0xff]
        %v790 = vld [vmem:[#allocation6 + $0x4a0] sm:$0xff]
        %v791 = vld [vmem:[#allocation6 + $0x4a8] sm:$0xff]
        %v792 = vld [vmem:[#allocation6 + $0x4b0] sm:$0xff]
        %v793 = vld [vmem:[#allocation6 + $0x4b8] sm:$0xff]
        %v794 = vld [vmem:[#allocation6 + $0x4c0] sm:$0xff]
        %v795 = vld [vmem:[#allocation6 + $0x4c8] sm:$0xff]
        %v796 = vld [vmem:[#allocation6 + $0x4d0] sm:$0xff]
        %v797 = vld [vmem:[#allocation6 + $0x4d8] sm:$0xff]
        %v798 = vld [vmem:[#allocation6 + $0x4e0] sm:$0xff]
        %v799 = vld [vmem:[#allocation6 + $0x4e8] sm:$0xff]
        %v800 = vld [vmem:[#allocation6 + $0x4f0] sm:$0xff]
        %v801 = vld [vmem:[#allocation6 + $0x4f8] sm:$0xff]
        %v802 = vld [vmem:[#allocation6 + $0x500] sm:$0xff]
        %v803 = vld [vmem:[#allocation6 + $0x508] sm:$0xff]
        %v804 = vld [vmem:[#allocation6 + $0x510] sm:$0xff]
        %v805 = vld [vmem:[#allocation6 + $0x518] sm:$0xff]
        %v806 = vld [vmem:[#allocation6 + $0x520] sm:$0xff]
        %v807 = vld [vmem:[#allocation6 + $0x528] sm:$0xff]
        %v808 = vld [vmem:[#allocation6 + $0x530] sm:$0xff]
        %v809 = vld [vmem:[#allocation6 + $0x538] sm:$0xff]
        %v810 = vld [vmem:[#allocation6 + $0x540] sm:$0xff]
        %v811 = vld [vmem:[#allocation6 + $0x548] sm:$0xff]
        %v812 = vld [vmem:[#allocation6 + $0x550] sm:$0xff]
        %v813 = vld [vmem:[#allocation6 + $0x558] sm:$0xff]
        %v814 = vld [vmem:[#allocation6 + $0x560] sm:$0xff]
        %v815 = vld [vmem:[#allocation6 + $0x568] sm:$0xff]
        %v816 = vld [vmem:[#allocation6 + $0x570] sm:$0xff]
        %v817 = vld [vmem:[#allocation6 + $0x578] sm:$0xff]
        %v818 = vld [vmem:[#allocation6 + $0x580] sm:$0xff]
        %v819 = vld [vmem:[#allocation6 + $0x588] sm:$0xff]
        %v820 = vld [vmem:[#allocation6 + $0x590] sm:$0xff]
        %v821 = vld [vmem:[#allocation6 + $0x598] sm:$0xff]
        %v822 = vld [vmem:[#allocation6 + $0x5a0] sm:$0xff]
        %v823 = vld [vmem:[#allocation6 + $0x5a8] sm:$0xff]
        %v824 = vld [vmem:[#allocation6 + $0x5b0] sm:$0xff]
        %v825 = vld [vmem:[#allocation6 + $0x5b8] sm:$0xff]
        %v826 = vld [vmem:[#allocation6 + $0x5c0] sm:$0xff]
        %v827 = vld [vmem:[#allocation6 + $0x5c8] sm:$0xff]
        %v828 = vld [vmem:[#allocation6 + $0x5d0] sm:$0xff]
        %v829 = vld [vmem:[#allocation6 + $0x5d8] sm:$0xff]
        %v830 = vld [vmem:[#allocation6 + $0x5e0] sm:$0xff]
        %v831 = vld [vmem:[#allocation6 + $0x5e8] sm:$0xff]
        %v832 = vld [vmem:[#allocation6 + $0x5f0] sm:$0xff]
        %v833 = vld [vmem:[#allocation6 + $0x5f8] sm:$0xff]
        %v834 = vld [vmem:[#allocation6 + $0x600] sm:$0xff]
        %v835 = vld [vmem:[#allocation6 + $0x608] sm:$0xff]
        %v836 = vld [vmem:[#allocation6 + $0x610] sm:$0xff]
        %v837 = vld [vmem:[#allocation6 + $0x618] sm:$0xff]
        %v838 = vld [vmem:[#allocation6 + $0x620] sm:$0xff]
        %v839 = vld [vmem:[#allocation6 + $0x628] sm:$0xff]
        %v840 = vld [vmem:[#allocation6 + $0x630] sm:$0xff]
        %v841 = vld [vmem:[#allocation6 + $0x638] sm:$0xff]
        %v842 = vld [vmem:[#allocation6 + $0x640] sm:$0xff]
        %v843 = vld [vmem:[#allocation6 + $0x648] sm:$0xff]
        %v844 = vld [vmem:[#allocation6 + $0x650] sm:$0xff]
        %v845 = vld [vmem:[#allocation6 + $0x658] sm:$0xff]
        %v846 = vld [vmem:[#allocation6 + $0x660] sm:$0xff]
        %v847 = vld [vmem:[#allocation6 + $0x668] sm:$0xff]
        %v848 = vld [vmem:[#allocation6 + $0x670] sm:$0xff]
        %v849 = vld [vmem:[#allocation6 + $0x678] sm:$0xff]
        %v850 = vld [vmem:[#allocation6 + $0x680] sm:$0xff]
        %v851 = vld [vmem:[#allocation6 + $0x688] sm:$0xff]
        %v852 = vld [vmem:[#allocation6 + $0x690] sm:$0xff]
        %v853 = vld [vmem:[#allocation6 + $0x698] sm:$0xff]
        %v854 = vld [vmem:[#allocation6 + $0x6a0] sm:$0xff]
        %v855 = vld [vmem:[#allocation6 + $0x6a8] sm:$0xff]
        %v856 = vld [vmem:[#allocation6 + $0x6b0] sm:$0xff]
        %v857 = vld [vmem:[#allocation6 + $0x6b8] sm:$0xff]
        %vm864 = vcmask 1045504
        %v865 = vrot.slane %v780, 2
        %v866 = vrot.slane %v440, 2
        %v867 = vsel %vm864, %v865, %v866
        %v868 = vrot.slane %v781, 2
        %v869 = vrot.slane %v441, 2
        %v870 = vsel %vm864, %v868, %v869
        %v871 = vrot.slane %v782, 2
        %v872 = vrot.slane %v442, 2
        %v873 = vsel %vm864, %v871, %v872
        %v874 = vrot.slane %v783, 2
        %v875 = vsel %vm864, %v866, %v874
        %v876 = vrot.slane %v784, 2
        %v877 = vsel %vm864, %v869, %v876
        %v878 = vrot.slane %v785, 2
        %v879 = vsel %vm864, %v872, %v878
        %v884 = vsel %vm331, %v873, 0
        %v886 = vsel %vm331, %v879, 0
        %888 = vmatprep.subr.mxu0 %v817
        %889 = vmatpush1.msra.mxu0 %v816
        %890 = vmatprep.subr.mxu0 %v815
        %891 = vmatpush1.msra.mxu0 %v814
        %892 = vmatprep.subr.mxu0 %v813
        %893 = vmatpush1.msra.mxu0 %v812
        %894 = vmatprep.subr.mxu0 %v811
        %895 = vmatpush1.msra.mxu0 %v810
        %896 = vmatprep.subr.mxu0 %v809
        %897 = vmatpush1.msra.mxu0 %v808
        %898 = vmatprep.subr.mxu0 %v807
        %899 = vmatpush1.msra.mxu0 %v806
        %900 = vmatprep.subr.mxu0 %v805
        %901 = vmatpush1.msra.mxu0 %v804
        %902 = vmatprep.subr.mxu0 %v803
        %903 = vmatpush1.msra.mxu0 %v802
        %904 = vmatprep.subr.mxu0 %v801
        %905 = vmatpush1.msra.mxu0 %v800
        %906 = vmatprep.subr.mxu0 %v799
        %907 = vmatpush1.msra.mxu0 %v798
        %908 = vmatprep.subr.mxu0 %v797
        %909 = vmatpush1.msra.mxu0 %v796
        %910 = vmatprep.subr.mxu0 %v795
        %911 = vmatpush1.msra.mxu0 %v794
        %912 = vmatprep.subr.mxu0 %v793
        %913 = vmatpush1.msra.mxu0 %v792
        %914 = vmatprep.subr.mxu0 %v791
        %915 = vmatpush1.msra.mxu0 %v790
        %916 = vmatprep.subr.mxu0 %v789
        %917 = vmatpush1.msra.mxu0 %v788
        %918 = vmatprep.subr.mxu0 %v787
        %919 = vmatpush1.msra.mxu0 %v786
        %920 = vmatprep.subr.mxu0 %v849
        %921 = vmatpush2.msra.mxu0 %v848
        %922 = vmatprep.subr.mxu0 %v847
        %923 = vmatpush2.msra.mxu0 %v846
        %924 = vmatprep.subr.mxu0 %v845
        %925 = vmatpush2.msra.mxu0 %v844
        %926 = vmatprep.subr.mxu0 %v843
        %927 = vmatpush2.msra.mxu0 %v842
        %928 = vmatprep.subr.mxu0 %v841
        %929 = vmatpush2.msra.mxu0 %v840
        %930 = vmatprep.subr.mxu0 %v839
        %931 = vmatpush2.msra.mxu0 %v838
        %932 = vmatprep.subr.mxu0 %v837
        %933 = vmatpush2.msra.mxu0 %v836
        %934 = vmatprep.subr.mxu0 %v835
        %935 = vmatpush2.msra.mxu0 %v834
        %936 = vmatprep.subr.mxu0 %v833
        %937 = vmatpush2.msra.mxu0 %v832
        %938 = vmatprep.subr.mxu0 %v831
        %939 = vmatpush2.msra.mxu0 %v830
        %940 = vmatprep.subr.mxu0 %v829
        %941 = vmatpush2.msra.mxu0 %v828
        %942 = vmatprep.subr.mxu0 %v827
        %943 = vmatpush2.msra.mxu0 %v826
        %944 = vmatprep.subr.mxu0 %v825
        %945 = vmatpush2.msra.mxu0 %v824
        %946 = vmatprep.subr.mxu0 %v823
        %947 = vmatpush2.msra.mxu0 %v822
        %948 = vmatprep.subr.mxu0 %v821
        %949 = vmatpush2.msra.mxu0 %v820
        %950 = vmatprep.subr.mxu0 %v819
        %951 = vmatpush2.msra.mxu0 %v818
        %952 = vmatprep.mubr.f32.mxu0 %v870
        %953 = vmatmul.mubr.f32.gmra.mxu0 %v867
        %v954 = vpop.f32.mrf.mxu0
        %v955 = vadd.f32 0.0, %v954
        %v956 = vpop.f32.mrf.mxu0
        %v957 = vadd.f32 0.0, %v956
        %958 = vmatprep.mubr.f32.mxu0 %v877
        %959 = vmatmul.mubr.f32.gmra.mxu0 %v875
        %v960 = vpop.f32.mrf.mxu0
        %v961 = vadd.f32 0.0, %v960
        %v962 = vpop.f32.mrf.mxu0
        %v963 = vadd.f32 0.0, %v962
        %964 = vdwg.mxu0
        %965 = vmatprep.subr.mxu0 0.0
        %966 = vmatpush1.msra.mxu0 0.0
        %967 = vmatprep.subr.mxu0 0.0
        %968 = vmatpush1.msra.mxu0 0.0
        %969 = vmatprep.subr.mxu0 0.0
        %970 = vmatpush1.msra.mxu0 0.0
        %971 = vmatprep.subr.mxu0 0.0
        %972 = vmatpush1.msra.mxu0 0.0
        %973 = vmatprep.subr.mxu0 0.0
        %974 = vmatpush1.msra.mxu0 0.0
        %975 = vmatprep.subr.mxu0 0.0
        %976 = vmatpush1.msra.mxu0 0.0
        %977 = vmatprep.subr.mxu0 0.0
        %978 = vmatpush1.msra.mxu0 0.0
        %979 = vmatprep.subr.mxu0 0.0
        %980 = vmatpush1.msra.mxu0 0.0
        %981 = vmatprep.subr.mxu0 0.0
        %982 = vmatpush1.msra.mxu0 0.0
        %983 = vmatprep.subr.mxu0 0.0
        %984 = vmatpush1.msra.mxu0 0.0
        %985 = vmatprep.subr.mxu0 0.0
        %986 = vmatpush1.msra.mxu0 0.0
        %987 = vmatprep.subr.mxu0 0.0
        %988 = vmatpush1.msra.mxu0 0.0
        %989 = vmatprep.subr.mxu0 %v857
        %990 = vmatpush1.msra.mxu0 %v856
        %991 = vmatprep.subr.mxu0 %v855
        %992 = vmatpush1.msra.mxu0 %v854
        %993 = vmatprep.subr.mxu0 %v853
        %994 = vmatpush1.msra.mxu0 %v852
        %995 = vmatprep.subr.mxu0 %v851
        %996 = vmatpush1.msra.mxu0 %v850
        %997 = vmatprep.subr.mxu0 0.0
        %998 = vmatpush2.msra.mxu0 0.0
        %999 = vmatprep.subr.mxu0 0.0
        %1000 = vmatpush2.msra.mxu0 0.0
        %1001 = vmatprep.subr.mxu0 0.0
        %1002 = vmatpush2.msra.mxu0 0.0
        %1003 = vmatprep.subr.mxu0 0.0
        %1004 = vmatpush2.msra.mxu0 0.0
        %1005 = vmatprep.subr.mxu0 0.0
        %1006 = vmatpush2.msra.mxu0 0.0
        %1007 = vmatprep.subr.mxu0 0.0
        %1008 = vmatpush2.msra.mxu0 0.0
        %1009 = vmatprep.subr.mxu0 0.0
        %1010 = vmatpush2.msra.mxu0 0.0
        %1011 = vmatprep.subr.mxu0 0.0
        %1012 = vmatpush2.msra.mxu0 0.0
        %1013 = vmatprep.subr.mxu0 0.0
        %1014 = vmatpush2.msra.mxu0 0.0
        %1015 = vmatprep.subr.mxu0 0.0
        %1016 = vmatpush2.msra.mxu0 0.0
        %1017 = vmatprep.subr.mxu0 0.0
        %1018 = vmatpush2.msra.mxu0 0.0
        %1019 = vmatprep.subr.mxu0 0.0
        %1020 = vmatpush2.msra.mxu0 0.0
        %1021 = vmatprep.subr.mxu0 0.0
        %1022 = vmatpush2.msra.mxu0 0.0
        %1023 = vmatprep.subr.mxu0 0.0
        %1024 = vmatpush2.msra.mxu0 0.0
        %1025 = vmatprep.subr.mxu0 0.0
        %1026 = vmatpush2.msra.mxu0 0.0
        %1027 = vmatprep.subr.mxu0 0.0
        %1028 = vmatpush2.msra.mxu0 0.0
        %1029 = vmatprep.mubr.f32.mxu0 0.0
        %1030 = vmatmul.mubr.f32.gmra.mxu0 %v884
        %v1031 = vpop.f32.mrf.mxu0
        %v1032 = vadd.f32 %v955, %v1031
        %v1033 = vpop.f32.mrf.mxu0
        %v1034 = vadd.f32 %v957, %v1033
        %1035 = vmatprep.mubr.f32.mxu0 0.0
        %1036 = vmatmul.mubr.f32.gmra.mxu0 %v886
        %v1037 = vpop.f32.mrf.mxu0
        %v1038 = vadd.f32 %v961, %v1037
        %v1039 = vpop.f32.mrf.mxu0
        %v1040 = vadd.f32 %v963, %v1039
        %1041 = vdwg.mxu0
        %v1043 = vsel %vm331, %v439, 0
        %v1045 = vsel %vm331, %v442, 0
        %1047 = vmatprep.subr.mxu0 %v474
        %1048 = vmatpush1.msra.mxu0 %v473
        %1049 = vmatprep.subr.mxu0 %v472
        %1050 = vmatpush1.msra.mxu0 %v471
        %1051 = vmatprep.subr.mxu0 %v470
        %1052 = vmatpush1.msra.mxu0 %v469
        %1053 = vmatprep.subr.mxu0 %v468
        %1054 = vmatpush1.msra.mxu0 %v467
        %1055 = vmatprep.subr.mxu0 %v466
        %1056 = vmatpush1.msra.mxu0 %v465
        %1057 = vmatprep.subr.mxu0 %v464
        %1058 = vmatpush1.msra.mxu0 %v463
        %1059 = vmatprep.subr.mxu0 %v462
        %1060 = vmatpush1.msra.mxu0 %v461
        %1061 = vmatprep.subr.mxu0 %v460
        %1062 = vmatpush1.msra.mxu0 %v459
        %1063 = vmatprep.subr.mxu0 %v458
        %1064 = vmatpush1.msra.mxu0 %v457
        %1065 = vmatprep.subr.mxu0 %v456
        %1066 = vmatpush1.msra.mxu0 %v455
        %1067 = vmatprep.subr.mxu0 %v454
        %1068 = vmatpush1.msra.mxu0 %v453
        %1069 = vmatprep.subr.mxu0 %v452
        %1070 = vmatpush1.msra.mxu0 %v451
        %1071 = vmatprep.subr.mxu0 %v450
        %1072 = vmatpush1.msra.mxu0 %v449
        %1073 = vmatprep.subr.mxu0 %v448
        %1074 = vmatpush1.msra.mxu0 %v447
        %1075 = vmatprep.subr.mxu0 %v446
        %1076 = vmatpush1.msra.mxu0 %v445
        %1077 = vmatprep.subr.mxu0 %v444
        %1078 = vmatpush1.msra.mxu0 %v443
        %1079 = vmatprep.subr.mxu0 %v506
        %1080 = vmatpush2.msra.mxu0 %v505
        %1081 = vmatprep.subr.mxu0 %v504
        %1082 = vmatpush2.msra.mxu0 %v503
        %1083 = vmatprep.subr.mxu0 %v502
        %1084 = vmatpush2.msra.mxu0 %v501
        %1085 = vmatprep.subr.mxu0 %v500
        %1086 = vmatpush2.msra.mxu0 %v499
        %1087 = vmatprep.subr.mxu0 %v498
        %1088 = vmatpush2.msra.mxu0 %v497
        %1089 = vmatprep.subr.mxu0 %v496
        %1090 = vmatpush2.msra.mxu0 %v495
        %1091 = vmatprep.subr.mxu0 %v494
        %1092 = vmatpush2.msra.mxu0 %v493
        %1093 = vmatprep.subr.mxu0 %v492
        %1094 = vmatpush2.msra.mxu0 %v491
        %1095 = vmatprep.subr.mxu0 %v490
        %1096 = vmatpush2.msra.mxu0 %v489
        %1097 = vmatprep.subr.mxu0 %v488
        %1098 = vmatpush2.msra.mxu0 %v487
        %1099 = vmatprep.subr.mxu0 %v486
        %1100 = vmatpush2.msra.mxu0 %v485
        %1101 = vmatprep.subr.mxu0 %v484
        %1102 = vmatpush2.msra.mxu0 %v483
        %1103 = vmatprep.subr.mxu0 %v482
        %1104 = vmatpush2.msra.mxu0 %v481
        %1105 = vmatprep.subr.mxu0 %v480
        %1106 = vmatpush2.msra.mxu0 %v479
        %1107 = vmatprep.subr.mxu0 %v478
        %1108 = vmatpush2.msra.mxu0 %v477
        %1109 = vmatprep.subr.mxu0 %v476
        %1110 = vmatpush2.msra.mxu0 %v475
        %1111 = vmatprep.mubr.f32.mxu0 %v438
        %1112 = vmatmul.mubr.f32.gmra.mxu0 %v437
        %v1113 = vpop.f32.mrf.mxu0
        %v1114 = vadd.f32 %v770, %v1113
        %v1115 = vpop.f32.mrf.mxu0
        %v1116 = vadd.f32 %v772, %v1115
        %1117 = vmatprep.mubr.f32.mxu0 %v441
        %1118 = vmatmul.mubr.f32.gmra.mxu0 %v440
        %v1119 = vpop.f32.mrf.mxu0
        %v1120 = vadd.f32 %v776, %v1119
        %v1121 = vpop.f32.mrf.mxu0
        %v1122 = vadd.f32 %v778, %v1121
        %1123 = vdwg.mxu0
        %1124 = vmatprep.subr.mxu0 0.0
        %1125 = vmatpush1.msra.mxu0 0.0
        %1126 = vmatprep.subr.mxu0 0.0
        %1127 = vmatpush1.msra.mxu0 0.0
        %1128 = vmatprep.subr.mxu0 0.0
        %1129 = vmatpush1.msra.mxu0 0.0
        %1130 = vmatprep.subr.mxu0 0.0
        %1131 = vmatpush1.msra.mxu0 0.0
        %1132 = vmatprep.subr.mxu0 0.0
        %1133 = vmatpush1.msra.mxu0 0.0
        %1134 = vmatprep.subr.mxu0 0.0
        %1135 = vmatpush1.msra.mxu0 0.0
        %1136 = vmatprep.subr.mxu0 0.0
        %1137 = vmatpush1.msra.mxu0 0.0
        %1138 = vmatprep.subr.mxu0 0.0
        %1139 = vmatpush1.msra.mxu0 0.0
        %1140 = vmatprep.subr.mxu0 0.0
        %1141 = vmatpush1.msra.mxu0 0.0
        %1142 = vmatprep.subr.mxu0 0.0
        %1143 = vmatpush1.msra.mxu0 0.0
        %1144 = vmatprep.subr.mxu0 0.0
        %1145 = vmatpush1.msra.mxu0 0.0
        %1146 = vmatprep.subr.mxu0 0.0
        %1147 = vmatpush1.msra.mxu0 0.0
        %1148 = vmatprep.subr.mxu0 %v514
        %1149 = vmatpush1.msra.mxu0 %v513
        %1150 = vmatprep.subr.mxu0 %v512
        %1151 = vmatpush1.msra.mxu0 %v511
        %1152 = vmatprep.subr.mxu0 %v510
        %1153 = vmatpush1.msra.mxu0 %v509
        %1154 = vmatprep.subr.mxu0 %v508
        %1155 = vmatpush1.msra.mxu0 %v507
        %1156 = vmatprep.subr.mxu0 0.0
        %1157 = vmatpush2.msra.mxu0 0.0
        %1158 = vmatprep.subr.mxu0 0.0
        %1159 = vmatpush2.msra.mxu0 0.0
        %1160 = vmatprep.subr.mxu0 0.0
        %1161 = vmatpush2.msra.mxu0 0.0
        %1162 = vmatprep.subr.mxu0 0.0
        %1163 = vmatpush2.msra.mxu0 0.0
        %1164 = vmatprep.subr.mxu0 0.0
        %1165 = vmatpush2.msra.mxu0 0.0
        %1166 = vmatprep.subr.mxu0 0.0
        %1167 = vmatpush2.msra.mxu0 0.0
        %1168 = vmatprep.subr.mxu0 0.0
        %1169 = vmatpush2.msra.mxu0 0.0
        %1170 = vmatprep.subr.mxu0 0.0
        %1171 = vmatpush2.msra.mxu0 0.0
        %1172 = vmatprep.subr.mxu0 0.0
        %1173 = vmatpush2.msra.mxu0 0.0
        %1174 = vmatprep.subr.mxu0 0.0
        %1175 = vmatpush2.msra.mxu0 0.0
        %1176 = vmatprep.subr.mxu0 0.0
        %1177 = vmatpush2.msra.mxu0 0.0
        %1178 = vmatprep.subr.mxu0 0.0
        %1179 = vmatpush2.msra.mxu0 0.0
        %1180 = vmatprep.subr.mxu0 0.0
        %1181 = vmatpush2.msra.mxu0 0.0
        %1182 = vmatprep.subr.mxu0 0.0
        %1183 = vmatpush2.msra.mxu0 0.0
        %1184 = vmatprep.subr.mxu0 0.0
        %1185 = vmatpush2.msra.mxu0 0.0
        %1186 = vmatprep.subr.mxu0 0.0
        %1187 = vmatpush2.msra.mxu0 0.0
        %1188 = vmatprep.mubr.f32.mxu0 0.0
        %1189 = vmatmul.mubr.f32.gmra.mxu0 %v1043
        %v1190 = vpop.f32.mrf.mxu0
        %v1191 = vadd.f32 %v1114, %v1190
        %v1192 = vpop.f32.mrf.mxu0
        %v1193 = vadd.f32 %v1116, %v1192
        %1194 = vmatprep.mubr.f32.mxu0 0.0
        %1195 = vmatmul.mubr.f32.gmra.mxu0 %v1045
        %v1196 = vpop.f32.mrf.mxu0
        %v1197 = vadd.f32 %v1120, %v1196
        %v1198 = vpop.f32.mrf.mxu0
        %v1199 = vadd.f32 %v1122, %v1198
        %1200 = vdwg.mxu0
        %v1201 = vadd.f32 %v1191, %v1032
        %v1202 = vadd.f32 %v1193, %v1034
        %v1203 = vadd.f32 %v1197, %v1038
        %v1204 = vadd.f32 %v1199, %v1040
        %s1205 = scalar_lea.vmem [#allocation4], 2
        %v1206 = vld [vmem:[%s1205] ss:$8 sm:$0x3]
        %v1208 = vlaneseq
        %v1209 = vshrl.u32 %v1208, 7
        %v1210 = vsub.s32 0, %v1209
        %v1211 = vrot.slane %v1206, %v1210
        %v1212 = vlaneseq
        %v1213 = vshrl.u32 %v1212, 7
        %v1214 = vsub.s32 1, %v1213
        %v1215 = vrot.slane %v1206, %v1214
        %v1218 = vadd.f32 %v1201, %v1211
        %v1219 = vadd.f32 %v1202, %v1215
        %v1220 = vadd.f32 %v1203, %v1211
        %v1221 = vadd.f32 %v1204, %v1215
        %v1222 = vld [vmem:[#allocation2] sm:$0xe0]
        %v1223 = vld [vmem:[#allocation2 + $0x8] sm:$0xe0]
        %v1224 = vld [vmem:[#allocation2 + $0x10] sm:$0xe0]
        %v1225 = vld [vmem:[#allocation2 + $0x28] sm:$0xff]
        %v1226 = vld [vmem:[#allocation2 + $0x30] sm:$0xff]
        %v1227 = vld [vmem:[#allocation2 + $0x38] sm:$0xff]
        %v1228 = vld [vmem:[#allocation2 + $0x50] sm:$0x1f]
        %v1229 = vld [vmem:[#allocation2 + $0x58] sm:$0x1f]
        %v1230 = vld [vmem:[#allocation2 + $0x60] sm:$0x1f]
        %s1231 = scalar_lea.vmem [#allocation4], 7
        %v1232 = vld [vmem:[%s1231] ss:$8 sm:$0x3]
        %v1234 = vlaneseq
        %v1235 = vshrl.u32 %v1234, 7
        %v1236 = vsub.s32 0, %v1235
        %v1237 = vrot.slane %v1232, %v1236
        %v1238 = vlaneseq
        %v1239 = vshrl.u32 %v1238, 7
        %v1240 = vsub.s32 1, %v1239
        %v1241 = vrot.slane %v1232, %v1240
        %1242 = vrot.lane.b32.xlu0 %v1237, 80
        %v1243 = vpop.permute.xlu0 %1242
        %1244 = vrot.lane.b32.xlu0 %v1241, 80
        %v1245 = vpop.permute.xlu0 %1244
        %vm1246 = vcmask 654336
        %v1247 = vsel %vm1246, %v1243, %v1245
        %v1251 = vmul.f32 %v1222, %v1243
        %v1252 = vmul.f32 %v1223, %v1247
        %v1253 = vmul.f32 %v1224, %v1245
        %v1254 = vmul.f32 %v1225, %v1243
        %v1255 = vmul.f32 %v1226, %v1247
        %v1256 = vmul.f32 %v1227, %v1245
        %v1257 = vmul.f32 %v1228, %v1243
        %v1258 = vmul.f32 %v1229, %v1247
        %v1259 = vmul.f32 %v1230, %v1245
        %s1260 = scalar_lea.vmem [#allocation4], 16
        %v1261 = vld [vmem:[%s1260] ss:$8 sm:$0x3]
        %v1263 = vlaneseq
        %v1264 = vshrl.u32 %v1263, 7
        %v1265 = vsub.s32 0, %v1264
        %v1266 = vrot.slane %v1261, %v1265
        %v1267 = vlaneseq
        %v1268 = vshrl.u32 %v1267, 7
        %v1269 = vsub.s32 1, %v1268
        %v1270 = vrot.slane %v1261, %v1269
        %1271 = vrot.lane.b32.xlu0 %v1266, 112
        %v1272 = vpop.permute.xlu0 %1271
        %1273 = vrot.lane.b32.xlu0 %v1270, 112
        %v1274 = vpop.permute.xlu0 %1273
        %vm1275 = vcmask 916480
        %v1276 = vsel %vm1275, %v1272, %v1274
        %v1280 = vmul.f32 %v1222, %v1272
        %v1281 = vmul.f32 %v1223, %v1276
        %v1282 = vmul.f32 %v1224, %v1274
        %v1283 = vmul.f32 %v1225, %v1272
        %v1284 = vmul.f32 %v1226, %v1276
        %v1285 = vmul.f32 %v1227, %v1274
        %v1286 = vmul.f32 %v1228, %v1272
        %v1287 = vmul.f32 %v1229, %v1276
        %v1288 = vmul.f32 %v1230, %v1274
        %1298 = vrot.lane.b32.xlu0 %v1280, 96
        %v1299 = vpop.permute.xlu0 %1298
        %1300 = vrot.lane.b32.xlu0 %v1281, 96
        %v1301 = vpop.permute.xlu0 %1300
        %1302 = vrot.lane.b32.xlu0 %v1282, 96
        %v1303 = vpop.permute.xlu0 %1302
        %1304 = vrot.lane.b32.xlu0 %v1283, 96
        %v1305 = vpop.permute.xlu0 %1304
        %1306 = vrot.lane.b32.xlu0 %v1284, 96
        %v1307 = vpop.permute.xlu0 %1306
        %1308 = vrot.lane.b32.xlu0 %v1285, 96
        %v1309 = vpop.permute.xlu0 %1308
        %1310 = vrot.lane.b32.xlu0 %v1286, 96
        %v1311 = vpop.permute.xlu0 %1310
        %1312 = vrot.lane.b32.xlu0 %v1287, 96
        %v1313 = vpop.permute.xlu0 %1312
        %1314 = vrot.lane.b32.xlu0 %v1288, 96
        %v1315 = vpop.permute.xlu0 %1314
        %vm1316 = vcmask 785408
        %v1317 = vsel %vm1316, %v1299, %v1301
        %v1318 = vsel %vm1316, %v1301, %v1303
        %v1319 = vsel %vm1316, %v1305, %v1307
        %v1320 = vsel %vm1316, %v1307, %v1309
        %v1321 = vsel %vm1316, %v1311, %v1313
        %v1322 = vsel %vm1316, %v1313, %v1315
        %v1332 = vadd.f32 %v1251, %v1317
        %v1333 = vadd.f32 %v1252, %v1318
        %v1334 = vadd.f32 %v1253, %v1303
        %v1335 = vadd.f32 %v1254, %v1319
        %v1336 = vadd.f32 %v1255, %v1320
        %v1337 = vadd.f32 %v1256, %v1309
        %v1338 = vadd.f32 %v1257, %v1321
        %v1339 = vadd.f32 %v1258, %v1322
        %v1340 = vadd.f32 %v1259, %v1315
        %v1341 = vld [vmem:[#allocation2 + $0x18] sm:$0xe0]
        %v1342 = vld [vmem:[#allocation2 + $0x68] sm:$0x1f]
        %s1343 = scalar_lea.vmem [#allocation4], 17
        %v1344 = vld [vmem:[%s1343] ss:$8 sm:$0x3]
        %v1346 = vlaneseq
        %v1347 = vshrl.u32 %v1346, 7
        %v1348 = vsub.s32 0, %v1347
        %v1349 = vrot.slane %v1344, %v1348
        %v1350 = vlaneseq
        %v1351 = vshrl.u32 %v1350, 7
        %v1352 = vsub.s32 1, %v1351
        %v1353 = vrot.slane %v1344, %v1352
        %1354 = vrot.lane.b32.xlu0 %v1349, 16
        %v1355 = vpop.permute.xlu0 %1354
        %1356 = vrot.lane.b32.xlu0 %v1353, 16
        %v1357 = vpop.permute.xlu0 %1356
        %v1358 = vsel %vm377, %v1355, %v1357
        %v1362 = vmul.f32 %v1223, %v1355
        %v1363 = vmul.f32 %v1224, %v1358
        %v1364 = vmul.f32 %v1341, %v1357
        %v1365 = vmul.f32 %v437, %v1355
        %v1366 = vmul.f32 %v438, %v1358
        %v1367 = vmul.f32 %v439, %v1357
        %v1368 = vmul.f32 %v1229, %v1355
        %v1369 = vmul.f32 %v1230, %v1358
        %v1370 = vmul.f32 %v1342, %v1357
        %1380 = vrot.lane.b32.xlu0 %v1362, 64
        %v1381 = vpop.permute.xlu0 %1380
        %1382 = vrot.lane.b32.xlu0 %v1363, 64
        %v1383 = vpop.permute.xlu0 %1382
        %1384 = vrot.lane.b32.xlu0 %v1364, 64
        %v1385 = vpop.permute.xlu0 %1384
        %1386 = vrot.lane.b32.xlu0 %v1365, 64
        %v1387 = vpop.permute.xlu0 %1386
        %1388 = vrot.lane.b32.xlu0 %v1366, 64
        %v1389 = vpop.permute.xlu0 %1388
        %1390 = vrot.lane.b32.xlu0 %v1367, 64
        %v1391 = vpop.permute.xlu0 %1390
        %1392 = vrot.lane.b32.xlu0 %v1368, 64
        %v1393 = vpop.permute.xlu0 %1392
        %1394 = vrot.lane.b32.xlu0 %v1369, 64
        %v1395 = vpop.permute.xlu0 %1394
        %1396 = vrot.lane.b32.xlu0 %v1370, 64
        %v1397 = vpop.permute.xlu0 %1396
        %vm1398 = vcmask 523264
        %v1399 = vsel %vm1398, %v1381, %v1383
        %v1400 = vsel %vm1398, %v1383, %v1385
        %v1401 = vsel %vm1398, %v1387, %v1389
        %v1402 = vsel %vm1398, %v1389, %v1391
        %v1403 = vsel %vm1398, %v1393, %v1395
        %v1404 = vsel %vm1398, %v1395, %v1397
        %v1414 = vadd.f32 %v1332, %v1381
        %v1415 = vadd.f32 %v1333, %v1399
        %v1416 = vadd.f32 %v1334, %v1400
        %v1417 = vadd.f32 %v1335, %v1387
        %v1418 = vadd.f32 %v1336, %v1401
        %v1419 = vadd.f32 %v1337, %v1402
        %v1420 = vadd.f32 %v1338, %v1393
        %v1421 = vadd.f32 %v1339, %v1403
        %v1422 = vadd.f32 %v1340, %v1404
        %s1423 = scalar_lea.vmem [#allocation4], 18
        %v1424 = vld [vmem:[%s1423] ss:$8 sm:$0x3]
        %v1426 = vlaneseq
        %v1427 = vshrl.u32 %v1426, 7
        %v1428 = vsub.s32 0, %v1427
        %v1429 = vrot.slane %v1424, %v1428
        %v1430 = vlaneseq
        %v1431 = vshrl.u32 %v1430, 7
        %v1432 = vsub.s32 1, %v1431
        %v1433 = vrot.slane %v1424, %v1432
        %1434 = vrot.lane.b32.xlu0 %v1429, 48
        %v1435 = vpop.permute.xlu0 %1434
        %1436 = vrot.lane.b32.xlu0 %v1433, 48
        %v1437 = vpop.permute.xlu0 %1436
        %vm1438 = vcmask 392192
        %v1439 = vsel %vm1438, %v1435, %v1437
        %v1443 = vmul.f32 %v1223, %v1435
        %v1444 = vmul.f32 %v1224, %v1439
        %v1445 = vmul.f32 %v1341, %v1437
        %v1446 = vmul.f32 %v437, %v1435
        %v1447 = vmul.f32 %v438, %v1439
        %v1448 = vmul.f32 %v439, %v1437
        %v1449 = vmul.f32 %v1229, %v1435
        %v1450 = vmul.f32 %v1230, %v1439
        %v1451 = vmul.f32 %v1342, %v1437
        %1461 = vrot.lane.b32.xlu0 %v1443, 32
        %v1462 = vpop.permute.xlu0 %1461
        %1463 = vrot.lane.b32.xlu0 %v1444, 32
        %v1464 = vpop.permute.xlu0 %1463
        %1465 = vrot.lane.b32.xlu0 %v1445, 32
        %v1466 = vpop.permute.xlu0 %1465
        %1467 = vrot.lane.b32.xlu0 %v1446, 32
        %v1468 = vpop.permute.xlu0 %1467
        %1469 = vrot.lane.b32.xlu0 %v1447, 32
        %v1470 = vpop.permute.xlu0 %1469
        %1471 = vrot.lane.b32.xlu0 %v1448, 32
        %v1472 = vpop.permute.xlu0 %1471
        %1473 = vrot.lane.b32.xlu0 %v1449, 32
        %v1474 = vpop.permute.xlu0 %1473
        %1475 = vrot.lane.b32.xlu0 %v1450, 32
        %v1476 = vpop.permute.xlu0 %1475
        %1477 = vrot.lane.b32.xlu0 %v1451, 32
        %v1478 = vpop.permute.xlu0 %1477
        %v1479 = vsel %vm331, %v1462, %v1464
        %v1480 = vsel %vm331, %v1464, %v1466
        %v1481 = vsel %vm331, %v1468, %v1470
        %v1482 = vsel %vm331, %v1470, %v1472
        %v1483 = vsel %vm331, %v1474, %v1476
        %v1484 = vsel %vm331, %v1476, %v1478
        %v1494 = vadd.f32 %v1414, %v1462
        %v1495 = vadd.f32 %v1415, %v1479
        %v1496 = vadd.f32 %v1416, %v1480
        %v1497 = vadd.f32 %v1417, %v1468
        %v1498 = vadd.f32 %v1418, %v1481
        %v1499 = vadd.f32 %v1419, %v1482
        %v1500 = vadd.f32 %v1420, %v1474
        %v1501 = vadd.f32 %v1421, %v1483
        %v1502 = vadd.f32 %v1422, %v1484
        %s1503 = scalar_lea.vmem [#allocation4], 19
        %v1504 = vld [vmem:[%s1503] ss:$8 sm:$0x3]
        %v1506 = vlaneseq
        %v1507 = vshrl.u32 %v1506, 7
        %v1508 = vsub.s32 0, %v1507
        %v1509 = vrot.slane %v1504, %v1508
        %v1510 = vlaneseq
        %v1511 = vshrl.u32 %v1510, 7
        %v1512 = vsub.s32 1, %v1511
        %v1513 = vrot.slane %v1504, %v1512
        %1514 = vrot.lane.b32.xlu0 %v1509, 80
        %v1515 = vpop.permute.xlu0 %1514
        %1516 = vrot.lane.b32.xlu0 %v1513, 80
        %v1517 = vpop.permute.xlu0 %1516
        %v1518 = vsel %vm1246, %v1515, %v1517
        %v1522 = vmul.f32 %v1223, %v1515
        %v1523 = vmul.f32 %v1224, %v1518
        %v1524 = vmul.f32 %v1341, %v1517
        %v1525 = vmul.f32 %v437, %v1515
        %v1526 = vmul.f32 %v438, %v1518
        %v1527 = vmul.f32 %v439, %v1517
        %v1528 = vmul.f32 %v1229, %v1515
        %v1529 = vmul.f32 %v1230, %v1518
        %v1530 = vmul.f32 %v1342, %v1517
        %v1531 = vadd.f32 %v1494, %v1522
        %v1532 = vadd.f32 %v1495, %v1523
        %v1533 = vadd.f32 %v1496, %v1524
        %v1534 = vadd.f32 %v1497, %v1525
        %v1535 = vadd.f32 %v1498, %v1526
        %v1536 = vadd.f32 %v1499, %v1527
        %v1537 = vadd.f32 %v1500, %v1528
        %v1538 = vadd.f32 %v1501, %v1529
        %v1539 = vadd.f32 %v1502, %v1530
        %v1540 = vld [vmem:[#allocation2] sm:$0x80]
        %v1541 = vld [vmem:[#allocation2 + $0x8] sm:$0x80]
        %v1542 = vld [vmem:[#allocation2 + $0x10] sm:$0x80]
        %v1543 = vld [vmem:[#allocation2 + $0x50] sm:$0x7f]
        %v1544 = vld [vmem:[#allocation2 + $0x58] sm:$0x7f]
        %v1545 = vld [vmem:[#allocation2 + $0x60] sm:$0x7f]
        %s1546 = scalar_lea.vmem [#allocation4], 20
        %v1547 = vld [vmem:[%s1546] ss:$8 sm:$0x3]
        %v1549 = vlaneseq
        %v1550 = vshrl.u32 %v1549, 7
        %v1551 = vsub.s32 0, %v1550
        %v1552 = vrot.slane %v1547, %v1551
        %v1553 = vlaneseq
        %v1554 = vshrl.u32 %v1553, 7
        %v1555 = vsub.s32 1, %v1554
        %v1556 = vrot.slane %v1547, %v1555
        %1557 = vrot.lane.b32.xlu0 %v1552, 80
        %v1558 = vpop.permute.xlu0 %1557
        %1559 = vrot.lane.b32.xlu0 %v1556, 80
        %v1560 = vpop.permute.xlu0 %1559
        %v1561 = vsel %vm1246, %v1558, %v1560
        %v1565 = vmul.f32 %v1540, %v1558
        %v1566 = vmul.f32 %v1541, %v1561
        %v1567 = vmul.f32 %v1542, %v1560
        %v1568 = vmul.f32 %v1225, %v1558
        %v1569 = vmul.f32 %v1226, %v1561
        %v1570 = vmul.f32 %v1227, %v1560
        %v1571 = vmul.f32 %v1543, %v1558
        %v1572 = vmul.f32 %v1544, %v1561
        %v1573 = vmul.f32 %v1545, %v1560
        %s1574 = scalar_lea.vmem [#allocation4], 21
        %v1575 = vld [vmem:[%s1574] ss:$8 sm:$0x3]
        %v1577 = vlaneseq
        %v1578 = vshrl.u32 %v1577, 7
        %v1579 = vsub.s32 0, %v1578
        %v1580 = vrot.slane %v1575, %v1579
        %v1581 = vlaneseq
        %v1582 = vshrl.u32 %v1581, 7
        %v1583 = vsub.s32 1, %v1582
        %v1584 = vrot.slane %v1575, %v1583
        %1585 = vrot.lane.b32.xlu0 %v1580, 112
        %v1586 = vpop.permute.xlu0 %1585
        %1587 = vrot.lane.b32.xlu0 %v1584, 112
        %v1588 = vpop.permute.xlu0 %1587
        %v1589 = vsel %vm1275, %v1586, %v1588
        %v1593 = vmul.f32 %v1540, %v1586
        %v1594 = vmul.f32 %v1541, %v1589
        %v1595 = vmul.f32 %v1542, %v1588
        %v1596 = vmul.f32 %v1225, %v1586
        %v1597 = vmul.f32 %v1226, %v1589
        %v1598 = vmul.f32 %v1227, %v1588
        %v1599 = vmul.f32 %v1543, %v1586
        %v1600 = vmul.f32 %v1544, %v1589
        %v1601 = vmul.f32 %v1545, %v1588
        %1611 = vrot.lane.b32.xlu0 %v1593, 96
        %v1612 = vpop.permute.xlu0 %1611
        %1613 = vrot.lane.b32.xlu0 %v1594, 96
        %v1614 = vpop.permute.xlu0 %1613
        %1615 = vrot.lane.b32.xlu0 %v1595, 96
        %v1616 = vpop.permute.xlu0 %1615
        %1617 = vrot.lane.b32.xlu0 %v1596, 96
        %v1618 = vpop.permute.xlu0 %1617
        %1619 = vrot.lane.b32.xlu0 %v1597, 96
        %v1620 = vpop.permute.xlu0 %1619
        %1621 = vrot.lane.b32.xlu0 %v1598, 96
        %v1622 = vpop.permute.xlu0 %1621
        %1623 = vrot.lane.b32.xlu0 %v1599, 96
        %v1624 = vpop.permute.xlu0 %1623
        %1625 = vrot.lane.b32.xlu0 %v1600, 96
        %v1626 = vpop.permute.xlu0 %1625
        %1627 = vrot.lane.b32.xlu0 %v1601, 96
        %v1628 = vpop.permute.xlu0 %1627
        %v1629 = vsel %vm1316, %v1612, %v1614
        %v1630 = vsel %vm1316, %v1614, %v1616
        %v1631 = vsel %vm1316, %v1618, %v1620
        %v1632 = vsel %vm1316, %v1620, %v1622
        %v1633 = vsel %vm1316, %v1624, %v1626
        %v1634 = vsel %vm1316, %v1626, %v1628
        %v1644 = vadd.f32 %v1565, %v1629
        %v1645 = vadd.f32 %v1566, %v1630
        %v1646 = vadd.f32 %v1567, %v1616
        %v1647 = vadd.f32 %v1568, %v1631
        %v1648 = vadd.f32 %v1569, %v1632
        %v1649 = vadd.f32 %v1570, %v1622
        %v1650 = vadd.f32 %v1571, %v1633
        %v1651 = vadd.f32 %v1572, %v1634
        %v1652 = vadd.f32 %v1573, %v1628
        %v1653 = vld [vmem:[#allocation2 + $0x18] sm:$0x80]
        %v1654 = vld [vmem:[#allocation2 + $0x68] sm:$0x7f]
        %s1655 = scalar_lea.vmem [#allocation4], 22
        %v1656 = vld [vmem:[%s1655] ss:$8 sm:$0x3]
        %v1658 = vlaneseq
        %v1659 = vshrl.u32 %v1658, 7
        %v1660 = vsub.s32 0, %v1659
        %v1661 = vrot.slane %v1656, %v1660
        %v1662 = vlaneseq
        %v1663 = vshrl.u32 %v1662, 7
        %v1664 = vsub.s32 1, %v1663
        %v1665 = vrot.slane %v1656, %v1664
        %1666 = vrot.lane.b32.xlu0 %v1661, 16
        %v1667 = vpop.permute.xlu0 %1666
        %1668 = vrot.lane.b32.xlu0 %v1665, 16
        %v1669 = vpop.permute.xlu0 %1668
        %v1670 = vsel %vm377, %v1667, %v1669
        %v1674 = vmul.f32 %v1541, %v1667
        %v1675 = vmul.f32 %v1542, %v1670
        %v1676 = vmul.f32 %v1653, %v1669
        %v1677 = vmul.f32 %v437, %v1667
        %v1678 = vmul.f32 %v438, %v1670
        %v1679 = vmul.f32 %v439, %v1669
        %v1680 = vmul.f32 %v1544, %v1667
        %v1681 = vmul.f32 %v1545, %v1670
        %v1682 = vmul.f32 %v1654, %v1669
        %1692 = vrot.lane.b32.xlu0 %v1674, 64
        %v1693 = vpop.permute.xlu0 %1692
        %1694 = vrot.lane.b32.xlu0 %v1675, 64
        %v1695 = vpop.permute.xlu0 %1694
        %1696 = vrot.lane.b32.xlu0 %v1676, 64
        %v1697 = vpop.permute.xlu0 %1696
        %1698 = vrot.lane.b32.xlu0 %v1677, 64
        %v1699 = vpop.permute.xlu0 %1698
        %1700 = vrot.lane.b32.xlu0 %v1678, 64
        %v1701 = vpop.permute.xlu0 %1700
        %1702 = vrot.lane.b32.xlu0 %v1679, 64
        %v1703 = vpop.permute.xlu0 %1702
        %1704 = vrot.lane.b32.xlu0 %v1680, 64
        %v1705 = vpop.permute.xlu0 %1704
        %1706 = vrot.lane.b32.xlu0 %v1681, 64
        %v1707 = vpop.permute.xlu0 %1706
        %1708 = vrot.lane.b32.xlu0 %v1682, 64
        %v1709 = vpop.permute.xlu0 %1708
        %v1710 = vsel %vm1398, %v1693, %v1695
        %v1711 = vsel %vm1398, %v1695, %v1697
        %v1712 = vsel %vm1398, %v1699, %v1701
        %v1713 = vsel %vm1398, %v1701, %v1703
        %v1714 = vsel %vm1398, %v1705, %v1707
        %v1715 = vsel %vm1398, %v1707, %v1709
        %v1725 = vadd.f32 %v1644, %v1693
        %v1726 = vadd.f32 %v1645, %v1710
        %v1727 = vadd.f32 %v1646, %v1711
        %v1728 = vadd.f32 %v1647, %v1699
        %v1729 = vadd.f32 %v1648, %v1712
        %v1730 = vadd.f32 %v1649, %v1713
        %v1731 = vadd.f32 %v1650, %v1705
        %v1732 = vadd.f32 %v1651, %v1714
        %v1733 = vadd.f32 %v1652, %v1715
        %s1734 = scalar_lea.vmem [#allocation4], 23
        %v1735 = vld [vmem:[%s1734] ss:$8 sm:$0x3]
        %v1737 = vlaneseq
        %v1738 = vshrl.u32 %v1737, 7
        %v1739 = vsub.s32 0, %v1738
        %v1740 = vrot.slane %v1735, %v1739
        %v1741 = vlaneseq
        %v1742 = vshrl.u32 %v1741, 7
        %v1743 = vsub.s32 1, %v1742
        %v1744 = vrot.slane %v1735, %v1743
        %1745 = vrot.lane.b32.xlu0 %v1740, 48
        %v1746 = vpop.permute.xlu0 %1745
        %1747 = vrot.lane.b32.xlu0 %v1744, 48
        %v1748 = vpop.permute.xlu0 %1747
        %v1749 = vsel %vm1438, %v1746, %v1748
        %v1753 = vmul.f32 %v1541, %v1746
        %v1754 = vmul.f32 %v1542, %v1749
        %v1755 = vmul.f32 %v1653, %v1748
        %v1756 = vmul.f32 %v437, %v1746
        %v1757 = vmul.f32 %v438, %v1749
        %v1758 = vmul.f32 %v439, %v1748
        %v1759 = vmul.f32 %v1544, %v1746
        %v1760 = vmul.f32 %v1545, %v1749
        %v1761 = vmul.f32 %v1654, %v1748
        %1771 = vrot.lane.b32.xlu0 %v1753, 32
        %v1772 = vpop.permute.xlu0 %1771
        %1773 = vrot.lane.b32.xlu0 %v1754, 32
        %v1774 = vpop.permute.xlu0 %1773
        %1775 = vrot.lane.b32.xlu0 %v1755, 32
        %v1776 = vpop.permute.xlu0 %1775
        %1777 = vrot.lane.b32.xlu0 %v1756, 32
        %v1778 = vpop.permute.xlu0 %1777
        %1779 = vrot.lane.b32.xlu0 %v1757, 32
        %v1780 = vpop.permute.xlu0 %1779
        %1781 = vrot.lane.b32.xlu0 %v1758, 32
        %v1782 = vpop.permute.xlu0 %1781
        %1783 = vrot.lane.b32.xlu0 %v1759, 32
        %v1784 = vpop.permute.xlu0 %1783
        %1785 = vrot.lane.b32.xlu0 %v1760, 32
        %v1786 = vpop.permute.xlu0 %1785
        %1787 = vrot.lane.b32.xlu0 %v1761, 32
        %v1788 = vpop.permute.xlu0 %1787
        %v1789 = vsel %vm331, %v1772, %v1774
        %v1790 = vsel %vm331, %v1774, %v1776
        %v1791 = vsel %vm331, %v1778, %v1780
        %v1792 = vsel %vm331, %v1780, %v1782
        %v1793 = vsel %vm331, %v1784, %v1786
        %v1794 = vsel %vm331, %v1786, %v1788
        %v1804 = vadd.f32 %v1725, %v1772
        %v1805 = vadd.f32 %v1726, %v1789
        %v1806 = vadd.f32 %v1727, %v1790
        %v1807 = vadd.f32 %v1728, %v1778
        %v1808 = vadd.f32 %v1729, %v1791
        %v1809 = vadd.f32 %v1730, %v1792
        %v1810 = vadd.f32 %v1731, %v1784
        %v1811 = vadd.f32 %v1732, %v1793
        %v1812 = vadd.f32 %v1733, %v1794
        %s1813 = scalar_lea.vmem [#allocation4], 32
        %v1814 = vld [vmem:[%s1813] ss:$8 sm:$0x3]
        %v1816 = vlaneseq
        %v1817 = vshrl.u32 %v1816, 7
        %v1818 = vsub.s32 0, %v1817
        %v1819 = vrot.slane %v1814, %v1818
        %v1820 = vlaneseq
        %v1821 = vshrl.u32 %v1820, 7
        %v1822 = vsub.s32 1, %v1821
        %v1823 = vrot.slane %v1814, %v1822
        %1824 = vrot.lane.b32.xlu0 %v1819, 80
        %v1825 = vpop.permute.xlu0 %1824
        %1826 = vrot.lane.b32.xlu0 %v1823, 80
        %v1827 = vpop.permute.xlu0 %1826
        %v1828 = vsel %vm1246, %v1825, %v1827
        %v1832 = vmul.f32 %v1541, %v1825
        %v1833 = vmul.f32 %v1542, %v1828
        %v1834 = vmul.f32 %v1653, %v1827
        %v1835 = vmul.f32 %v437, %v1825
        %v1836 = vmul.f32 %v438, %v1828
        %v1837 = vmul.f32 %v439, %v1827
        %v1838 = vmul.f32 %v1544, %v1825
        %v1839 = vmul.f32 %v1545, %v1828
        %v1840 = vmul.f32 %v1654, %v1827
        %v1841 = vadd.f32 %v1804, %v1832
        %v1842 = vadd.f32 %v1805, %v1833
        %v1843 = vadd.f32 %v1806, %v1834
        %v1844 = vadd.f32 %v1807, %v1835
        %v1845 = vadd.f32 %v1808, %v1836
        %v1846 = vadd.f32 %v1809, %v1837
        %v1847 = vadd.f32 %v1810, %v1838
        %v1848 = vadd.f32 %v1811, %v1839
        %v1849 = vadd.f32 %v1812, %v1840
        %v1850 = vld [vmem:[#allocation2 + $0x28] sm:$0xfe]
        %v1851 = vld [vmem:[#allocation2 + $0x30] sm:$0xfe]
        %v1852 = vld [vmem:[#allocation2 + $0x38] sm:$0xfe]
        %v1853 = vld [vmem:[#allocation2 + $0x50] sm:$0xff]
        %v1854 = vld [vmem:[#allocation2 + $0x58] sm:$0xff]
        %v1855 = vld [vmem:[#allocation2 + $0x60] sm:$0xff]
        %v1856 = vld [vmem:[#allocation2 + $0x78] sm:$0x1]
        %v1857 = vld [vmem:[#allocation2 + $0x80] sm:$0x1]
        %v1858 = vld [vmem:[#allocation2 + $0x88] sm:$0x1]
        %s1859 = scalar_lea.vmem [#allocation4], 33
        %v1860 = vld [vmem:[%s1859] ss:$8 sm:$0x3]
        %v1862 = vlaneseq
        %v1863 = vshrl.u32 %v1862, 7
        %v1864 = vsub.s32 0, %v1863
        %v1865 = vrot.slane %v1860, %v1864
        %v1866 = vlaneseq
        %v1867 = vshrl.u32 %v1866, 7
        %v1868 = vsub.s32 1, %v1867
        %v1869 = vrot.slane %v1860, %v1868
        %1870 = vrot.lane.b32.xlu0 %v1865, 80
        %v1871 = vpop.permute.xlu0 %1870
        %1872 = vrot.lane.b32.xlu0 %v1869, 80
        %v1873 = vpop.permute.xlu0 %1872
        %v1874 = vsel %vm1246, %v1871, %v1873
        %v1878 = vmul.f32 %v1850, %v1871
        %v1879 = vmul.f32 %v1851, %v1874
        %v1880 = vmul.f32 %v1852, %v1873
        %v1881 = vmul.f32 %v1853, %v1871
        %v1882 = vmul.f32 %v1854, %v1874
        %v1883 = vmul.f32 %v1855, %v1873
        %v1884 = vmul.f32 %v1856, %v1871
        %v1885 = vmul.f32 %v1857, %v1874
        %v1886 = vmul.f32 %v1858, %v1873
        %s1887 = scalar_lea.vmem [#allocation4], 34
        %v1888 = vld [vmem:[%s1887] ss:$8 sm:$0x3]
        %v1890 = vlaneseq
        %v1891 = vshrl.u32 %v1890, 7
        %v1892 = vsub.s32 0, %v1891
        %v1893 = vrot.slane %v1888, %v1892
        %v1894 = vlaneseq
        %v1895 = vshrl.u32 %v1894, 7
        %v1896 = vsub.s32 1, %v1895
        %v1897 = vrot.slane %v1888, %v1896
        %1898 = vrot.lane.b32.xlu0 %v1893, 112
        %v1899 = vpop.permute.xlu0 %1898
        %1900 = vrot.lane.b32.xlu0 %v1897, 112
        %v1901 = vpop.permute.xlu0 %1900
        %v1902 = vsel %vm1275, %v1899, %v1901
        %v1906 = vmul.f32 %v1850, %v1899
        %v1907 = vmul.f32 %v1851, %v1902
        %v1908 = vmul.f32 %v1852, %v1901
        %v1909 = vmul.f32 %v1853, %v1899
        %v1910 = vmul.f32 %v1854, %v1902
        %v1911 = vmul.f32 %v1855, %v1901
        %v1912 = vmul.f32 %v1856, %v1899
        %v1913 = vmul.f32 %v1857, %v1902
        %v1914 = vmul.f32 %v1858, %v1901
        %1924 = vrot.lane.b32.xlu0 %v1906, 96
        %v1925 = vpop.permute.xlu0 %1924
        %1926 = vrot.lane.b32.xlu0 %v1907, 96
        %v1927 = vpop.permute.xlu0 %1926
        %1928 = vrot.lane.b32.xlu0 %v1908, 96
        %v1929 = vpop.permute.xlu0 %1928
        %1930 = vrot.lane.b32.xlu0 %v1909, 96
        %v1931 = vpop.permute.xlu0 %1930
        %1932 = vrot.lane.b32.xlu0 %v1910, 96
        %v1933 = vpop.permute.xlu0 %1932
        %1934 = vrot.lane.b32.xlu0 %v1911, 96
        %v1935 = vpop.permute.xlu0 %1934
        %1936 = vrot.lane.b32.xlu0 %v1912, 96
        %v1937 = vpop.permute.xlu0 %1936
        %1938 = vrot.lane.b32.xlu0 %v1913, 96
        %v1939 = vpop.permute.xlu0 %1938
        %1940 = vrot.lane.b32.xlu0 %v1914, 96
        %v1941 = vpop.permute.xlu0 %1940
        %v1942 = vsel %vm1316, %v1925, %v1927
        %v1943 = vsel %vm1316, %v1927, %v1929
        %v1944 = vsel %vm1316, %v1931, %v1933
        %v1945 = vsel %vm1316, %v1933, %v1935
        %v1946 = vsel %vm1316, %v1937, %v1939
        %v1947 = vsel %vm1316, %v1939, %v1941
        %v1957 = vadd.f32 %v1878, %v1942
        %v1958 = vadd.f32 %v1879, %v1943
        %v1959 = vadd.f32 %v1880, %v1929
        %v1960 = vadd.f32 %v1881, %v1944
        %v1961 = vadd.f32 %v1882, %v1945
        %v1962 = vadd.f32 %v1883, %v1935
        %v1963 = vadd.f32 %v1884, %v1946
        %v1964 = vadd.f32 %v1885, %v1947
        %v1965 = vadd.f32 %v1886, %v1941
        %s1966 = scalar_lea.vmem [#allocation4], 35
        %v1967 = vld [vmem:[%s1966] ss:$8 sm:$0x3]
        %v1969 = vlaneseq
        %v1970 = vshrl.u32 %v1969, 7
        %v1971 = vsub.s32 0, %v1970
        %v1972 = vrot.slane %v1967, %v1971
        %v1973 = vlaneseq
        %v1974 = vshrl.u32 %v1973, 7
        %v1975 = vsub.s32 1, %v1974
        %v1976 = vrot.slane %v1967, %v1975
        %1977 = vrot.lane.b32.xlu0 %v1972, 16
        %v1978 = vpop.permute.xlu0 %1977
        %1979 = vrot.lane.b32.xlu0 %v1976, 16
        %v1980 = vpop.permute.xlu0 %1979
        %v1981 = vsel %vm377, %v1978, %v1980
        %v1985 = vmul.f32 %v515, %v1978
        %v1986 = vmul.f32 %v516, %v1981
        %v1987 = vmul.f32 %v517, %v1980
        %v1988 = vmul.f32 %v440, %v1978
        %v1989 = vmul.f32 %v441, %v1981
        %v1990 = vmul.f32 %v442, %v1980
        %v1991 = vmul.f32 %v518, %v1978
        %v1992 = vmul.f32 %v519, %v1981
        %v1993 = vmul.f32 %v520, %v1980
        %2003 = vrot.lane.b32.xlu0 %v1985, 64
        %v2004 = vpop.permute.xlu0 %2003
        %2005 = vrot.lane.b32.xlu0 %v1986, 64
        %v2006 = vpop.permute.xlu0 %2005
        %2007 = vrot.lane.b32.xlu0 %v1987, 64
        %v2008 = vpop.permute.xlu0 %2007
        %2009 = vrot.lane.b32.xlu0 %v1988, 64
        %v2010 = vpop.permute.xlu0 %2009
        %2011 = vrot.lane.b32.xlu0 %v1989, 64
        %v2012 = vpop.permute.xlu0 %2011
        %2013 = vrot.lane.b32.xlu0 %v1990, 64
        %v2014 = vpop.permute.xlu0 %2013
        %2015 = vrot.lane.b32.xlu0 %v1991, 64
        %v2016 = vpop.permute.xlu0 %2015
        %2017 = vrot.lane.b32.xlu0 %v1992, 64
        %v2018 = vpop.permute.xlu0 %2017
        %2019 = vrot.lane.b32.xlu0 %v1993, 64
        %v2020 = vpop.permute.xlu0 %2019
        %v2021 = vsel %vm1398, %v2004, %v2006
        %v2022 = vsel %vm1398, %v2006, %v2008
        %v2023 = vsel %vm1398, %v2010, %v2012
        %v2024 = vsel %vm1398, %v2012, %v2014
        %v2025 = vsel %vm1398, %v2016, %v2018
        %v2026 = vsel %vm1398, %v2018, %v2020
        %v2036 = vadd.f32 %v1957, %v2004
        %v2037 = vadd.f32 %v1958, %v2021
        %v2038 = vadd.f32 %v1959, %v2022
        %v2039 = vadd.f32 %v1960, %v2010
        %v2040 = vadd.f32 %v1961, %v2023
        %v2041 = vadd.f32 %v1962, %v2024
        %v2042 = vadd.f32 %v1963, %v2016
        %v2043 = vadd.f32 %v1964, %v2025
        %v2044 = vadd.f32 %v1965, %v2026
        %s2045 = scalar_lea.vmem [#allocation4], 36
        %v2046 = vld [vmem:[%s2045] ss:$8 sm:$0x3]
        %v2048 = vlaneseq
        %v2049 = vshrl.u32 %v2048, 7
        %v2050 = vsub.s32 0, %v2049
        %v2051 = vrot.slane %v2046, %v2050
        %v2052 = vlaneseq
        %v2053 = vshrl.u32 %v2052, 7
        %v2054 = vsub.s32 1, %v2053
        %v2055 = vrot.slane %v2046, %v2054
        %2056 = vrot.lane.b32.xlu0 %v2051, 48
        %v2057 = vpop.permute.xlu0 %2056
        %2058 = vrot.lane.b32.xlu0 %v2055, 48
        %v2059 = vpop.permute.xlu0 %2058
        %v2060 = vsel %vm1438, %v2057, %v2059
        %v2064 = vmul.f32 %v515, %v2057
        %v2065 = vmul.f32 %v516, %v2060
        %v2066 = vmul.f32 %v517, %v2059
        %v2067 = vmul.f32 %v440, %v2057
        %v2068 = vmul.f32 %v441, %v2060
        %v2069 = vmul.f32 %v442, %v2059
        %v2070 = vmul.f32 %v518, %v2057
        %v2071 = vmul.f32 %v519, %v2060
        %v2072 = vmul.f32 %v520, %v2059
        %2082 = vrot.lane.b32.xlu0 %v2064, 32
        %v2083 = vpop.permute.xlu0 %2082
        %2084 = vrot.lane.b32.xlu0 %v2065, 32
        %v2085 = vpop.permute.xlu0 %2084
        %2086 = vrot.lane.b32.xlu0 %v2066, 32
        %v2087 = vpop.permute.xlu0 %2086
        %2088 = vrot.lane.b32.xlu0 %v2067, 32
        %v2089 = vpop.permute.xlu0 %2088
        %2090 = vrot.lane.b32.xlu0 %v2068, 32
        %v2091 = vpop.permute.xlu0 %2090
        %2092 = vrot.lane.b32.xlu0 %v2069, 32
        %v2093 = vpop.permute.xlu0 %2092
        %2094 = vrot.lane.b32.xlu0 %v2070, 32
        %v2095 = vpop.permute.xlu0 %2094
        %2096 = vrot.lane.b32.xlu0 %v2071, 32
        %v2097 = vpop.permute.xlu0 %2096
        %2098 = vrot.lane.b32.xlu0 %v2072, 32
        %v2099 = vpop.permute.xlu0 %2098
        %v2100 = vsel %vm331, %v2083, %v2085
        %v2101 = vsel %vm331, %v2085, %v2087
        %v2102 = vsel %vm331, %v2089, %v2091
        %v2103 = vsel %vm331, %v2091, %v2093
        %v2104 = vsel %vm331, %v2095, %v2097
        %v2105 = vsel %vm331, %v2097, %v2099
        %v2115 = vadd.f32 %v2036, %v2083
        %v2116 = vadd.f32 %v2037, %v2100
        %v2117 = vadd.f32 %v2038, %v2101
        %v2118 = vadd.f32 %v2039, %v2089
        %v2119 = vadd.f32 %v2040, %v2102
        %v2120 = vadd.f32 %v2041, %v2103
        %v2121 = vadd.f32 %v2042, %v2095
        %v2122 = vadd.f32 %v2043, %v2104
        %v2123 = vadd.f32 %v2044, %v2105
        %s2124 = scalar_lea.vmem [#allocation4], 37
        %v2125 = vld [vmem:[%s2124] ss:$8 sm:$0x3]
        %v2127 = vlaneseq
        %v2128 = vshrl.u32 %v2127, 7
        %v2129 = vsub.s32 0, %v2128
        %v2130 = vrot.slane %v2125, %v2129
        %v2131 = vlaneseq
        %v2132 = vshrl.u32 %v2131, 7
        %v2133 = vsub.s32 1, %v2132
        %v2134 = vrot.slane %v2125, %v2133
        %2135 = vrot.lane.b32.xlu0 %v2130, 80
        %v2136 = vpop.permute.xlu0 %2135
        %2137 = vrot.lane.b32.xlu0 %v2134, 80
        %v2138 = vpop.permute.xlu0 %2137
        %v2139 = vsel %vm1246, %v2136, %v2138
        %v2143 = vmul.f32 %v515, %v2136
        %v2144 = vmul.f32 %v516, %v2139
        %v2145 = vmul.f32 %v517, %v2138
        %v2146 = vmul.f32 %v440, %v2136
        %v2147 = vmul.f32 %v441, %v2139
        %v2148 = vmul.f32 %v442, %v2138
        %v2149 = vmul.f32 %v518, %v2136
        %v2150 = vmul.f32 %v519, %v2139
        %v2151 = vmul.f32 %v520, %v2138
        %v2152 = vadd.f32 %v2115, %v2143
        %v2153 = vadd.f32 %v2116, %v2144
        %v2154 = vadd.f32 %v2117, %v2145
        %v2155 = vadd.f32 %v2118, %v2146
        %v2156 = vadd.f32 %v2119, %v2147
        %v2157 = vadd.f32 %v2120, %v2148
        %v2158 = vadd.f32 %v2121, %v2149
        %v2159 = vadd.f32 %v2122, %v2150
        %v2160 = vadd.f32 %v2123, %v2151
        %v2161 = vld [vmem:[#allocation2 + $0x28] sm:$0xf8]
        %v2162 = vld [vmem:[#allocation2 + $0x30] sm:$0xf8]
        %v2163 = vld [vmem:[#allocation2 + $0x38] sm:$0xf8]
        %v2164 = vld [vmem:[#allocation2 + $0x78] sm:$0x7]
        %v2165 = vld [vmem:[#allocation2 + $0x80] sm:$0x7]
        %v2166 = vld [vmem:[#allocation2 + $0x88] sm:$0x7]
        %s2167 = scalar_lea.vmem [#allocation4], 38
        %v2168 = vld [vmem:[%s2167] ss:$8 sm:$0x3]
        %v2170 = vlaneseq
        %v2171 = vshrl.u32 %v2170, 7
        %v2172 = vsub.s32 0, %v2171
        %v2173 = vrot.slane %v2168, %v2172
        %v2174 = vlaneseq
        %v2175 = vshrl.u32 %v2174, 7
        %v2176 = vsub.s32 1, %v2175
        %v2177 = vrot.slane %v2168, %v2176
        %2178 = vrot.lane.b32.xlu0 %v2173, 80
        %v2179 = vpop.permute.xlu0 %2178
        %2180 = vrot.lane.b32.xlu0 %v2177, 80
        %v2181 = vpop.permute.xlu0 %2180
        %v2182 = vsel %vm1246, %v2179, %v2181
        %v2186 = vmul.f32 %v2161, %v2179
        %v2187 = vmul.f32 %v2162, %v2182
        %v2188 = vmul.f32 %v2163, %v2181
        %v2189 = vmul.f32 %v1853, %v2179
        %v2190 = vmul.f32 %v1854, %v2182
        %v2191 = vmul.f32 %v1855, %v2181
        %v2192 = vmul.f32 %v2164, %v2179
        %v2193 = vmul.f32 %v2165, %v2182
        %v2194 = vmul.f32 %v2166, %v2181
        %s2195 = scalar_lea.vmem [#allocation4], 39
        %v2196 = vld [vmem:[%s2195] ss:$8 sm:$0x3]
        %v2198 = vlaneseq
        %v2199 = vshrl.u32 %v2198, 7
        %v2200 = vsub.s32 0, %v2199
        %v2201 = vrot.slane %v2196, %v2200
        %v2202 = vlaneseq
        %v2203 = vshrl.u32 %v2202, 7
        %v2204 = vsub.s32 1, %v2203
        %v2205 = vrot.slane %v2196, %v2204
        %2206 = vrot.lane.b32.xlu0 %v2201, 112
        %v2207 = vpop.permute.xlu0 %2206
        %2208 = vrot.lane.b32.xlu0 %v2205, 112
        %v2209 = vpop.permute.xlu0 %2208
        %v2210 = vsel %vm1275, %v2207, %v2209
        %v2214 = vmul.f32 %v2161, %v2207
        %v2215 = vmul.f32 %v2162, %v2210
        %v2216 = vmul.f32 %v2163, %v2209
        %v2217 = vmul.f32 %v1853, %v2207
        %v2218 = vmul.f32 %v1854, %v2210
        %v2219 = vmul.f32 %v1855, %v2209
        %v2220 = vmul.f32 %v2164, %v2207
        %v2221 = vmul.f32 %v2165, %v2210
        %v2222 = vmul.f32 %v2166, %v2209
        %2232 = vrot.lane.b32.xlu0 %v2214, 96
        %v2233 = vpop.permute.xlu0 %2232
        %2234 = vrot.lane.b32.xlu0 %v2215, 96
        %v2235 = vpop.permute.xlu0 %2234
        %2236 = vrot.lane.b32.xlu0 %v2216, 96
        %v2237 = vpop.permute.xlu0 %2236
        %2238 = vrot.lane.b32.xlu0 %v2217, 96
        %v2239 = vpop.permute.xlu0 %2238
        %2240 = vrot.lane.b32.xlu0 %v2218, 96
        %v2241 = vpop.permute.xlu0 %2240
        %2242 = vrot.lane.b32.xlu0 %v2219, 96
        %v2243 = vpop.permute.xlu0 %2242
        %2244 = vrot.lane.b32.xlu0 %v2220, 96
        %v2245 = vpop.permute.xlu0 %2244
        %2246 = vrot.lane.b32.xlu0 %v2221, 96
        %v2247 = vpop.permute.xlu0 %2246
        %2248 = vrot.lane.b32.xlu0 %v2222, 96
        %v2249 = vpop.permute.xlu0 %2248
        %v2250 = vsel %vm1316, %v2233, %v2235
        %v2251 = vsel %vm1316, %v2235, %v2237
        %v2252 = vsel %vm1316, %v2239, %v2241
        %v2253 = vsel %vm1316, %v2241, %v2243
        %v2254 = vsel %vm1316, %v2245, %v2247
        %v2255 = vsel %vm1316, %v2247, %v2249
        %v2265 = vadd.f32 %v2186, %v2250
        %v2266 = vadd.f32 %v2187, %v2251
        %v2267 = vadd.f32 %v2188, %v2237
        %v2268 = vadd.f32 %v2189, %v2252
        %v2269 = vadd.f32 %v2190, %v2253
        %v2270 = vadd.f32 %v2191, %v2243
        %v2271 = vadd.f32 %v2192, %v2254
        %v2272 = vadd.f32 %v2193, %v2255
        %v2273 = vadd.f32 %v2194, %v2249
        %v2274 = vld [vmem:[#allocation2 + $0x40] sm:$0xf8]
        %v2275 = vld [vmem:[#allocation2 + $0x90] sm:$0x7]
        %s2276 = scalar_lea.vmem [#allocation4], 48
        %v2277 = vld [vmem:[%s2276] ss:$8 sm:$0x3]
        %v2279 = vlaneseq
        %v2280 = vshrl.u32 %v2279, 7
        %v2281 = vsub.s32 0, %v2280
        %v2282 = vrot.slane %v2277, %v2281
        %v2283 = vlaneseq
        %v2284 = vshrl.u32 %v2283, 7
        %v2285 = vsub.s32 1, %v2284
        %v2286 = vrot.slane %v2277, %v2285
        %2287 = vrot.lane.b32.xlu0 %v2282, 16
        %v2288 = vpop.permute.xlu0 %2287
        %2289 = vrot.lane.b32.xlu0 %v2286, 16
        %v2290 = vpop.permute.xlu0 %2289
        %v2291 = vsel %vm377, %v2288, %v2290
        %v2295 = vmul.f32 %v2162, %v2288
        %v2296 = vmul.f32 %v2163, %v2291
        %v2297 = vmul.f32 %v2274, %v2290
        %v2298 = vmul.f32 %v440, %v2288
        %v2299 = vmul.f32 %v441, %v2291
        %v2300 = vmul.f32 %v442, %v2290
        %v2301 = vmul.f32 %v2165, %v2288
        %v2302 = vmul.f32 %v2166, %v2291
        %v2303 = vmul.f32 %v2275, %v2290
        %2313 = vrot.lane.b32.xlu0 %v2295, 64
        %v2314 = vpop.permute.xlu0 %2313
        %2315 = vrot.lane.b32.xlu0 %v2296, 64
        %v2316 = vpop.permute.xlu0 %2315
        %2317 = vrot.lane.b32.xlu0 %v2297, 64
        %v2318 = vpop.permute.xlu0 %2317
        %2319 = vrot.lane.b32.xlu0 %v2298, 64
        %v2320 = vpop.permute.xlu0 %2319
        %2321 = vrot.lane.b32.xlu0 %v2299, 64
        %v2322 = vpop.permute.xlu0 %2321
        %2323 = vrot.lane.b32.xlu0 %v2300, 64
        %v2324 = vpop.permute.xlu0 %2323
        %2325 = vrot.lane.b32.xlu0 %v2301, 64
        %v2326 = vpop.permute.xlu0 %2325
        %2327 = vrot.lane.b32.xlu0 %v2302, 64
        %v2328 = vpop.permute.xlu0 %2327
        %2329 = vrot.lane.b32.xlu0 %v2303, 64
        %v2330 = vpop.permute.xlu0 %2329
        %v2331 = vsel %vm1398, %v2314, %v2316
        %v2332 = vsel %vm1398, %v2316, %v2318
        %v2333 = vsel %vm1398, %v2320, %v2322
        %v2334 = vsel %vm1398, %v2322, %v2324
        %v2335 = vsel %vm1398, %v2326, %v2328
        %v2336 = vsel %vm1398, %v2328, %v2330
        %v2346 = vadd.f32 %v2265, %v2314
        %v2347 = vadd.f32 %v2266, %v2331
        %v2348 = vadd.f32 %v2267, %v2332
        %v2349 = vadd.f32 %v2268, %v2320
        %v2350 = vadd.f32 %v2269, %v2333
        %v2351 = vadd.f32 %v2270, %v2334
        %v2352 = vadd.f32 %v2271, %v2326
        %v2353 = vadd.f32 %v2272, %v2335
        %v2354 = vadd.f32 %v2273, %v2336
        %s2355 = scalar_lea.vmem [#allocation4], 49
        %v2356 = vld [vmem:[%s2355] ss:$8 sm:$0x3]
        %v2358 = vlaneseq
        %v2359 = vshrl.u32 %v2358, 7
        %v2360 = vsub.s32 0, %v2359
        %v2361 = vrot.slane %v2356, %v2360
        %v2362 = vlaneseq
        %v2363 = vshrl.u32 %v2362, 7
        %v2364 = vsub.s32 1, %v2363
        %v2365 = vrot.slane %v2356, %v2364
        %2366 = vrot.lane.b32.xlu0 %v2361, 48
        %v2367 = vpop.permute.xlu0 %2366
        %2368 = vrot.lane.b32.xlu0 %v2365, 48
        %v2369 = vpop.permute.xlu0 %2368
        %v2370 = vsel %vm1438, %v2367, %v2369
        %v2374 = vmul.f32 %v2162, %v2367
        %v2375 = vmul.f32 %v2163, %v2370
        %v2376 = vmul.f32 %v2274, %v2369
        %v2377 = vmul.f32 %v440, %v2367
        %v2378 = vmul.f32 %v441, %v2370
        %v2379 = vmul.f32 %v442, %v2369
        %v2380 = vmul.f32 %v2165, %v2367
        %v2381 = vmul.f32 %v2166, %v2370
        %v2382 = vmul.f32 %v2275, %v2369
        %2392 = vrot.lane.b32.xlu0 %v2374, 32
        %v2393 = vpop.permute.xlu0 %2392
        %2394 = vrot.lane.b32.xlu0 %v2375, 32
        %v2395 = vpop.permute.xlu0 %2394
        %2396 = vrot.lane.b32.xlu0 %v2376, 32
        %v2397 = vpop.permute.xlu0 %2396
        %2398 = vrot.lane.b32.xlu0 %v2377, 32
        %v2399 = vpop.permute.xlu0 %2398
        %2400 = vrot.lane.b32.xlu0 %v2378, 32
        %v2401 = vpop.permute.xlu0 %2400
        %2402 = vrot.lane.b32.xlu0 %v2379, 32
        %v2403 = vpop.permute.xlu0 %2402
        %2404 = vrot.lane.b32.xlu0 %v2380, 32
        %v2405 = vpop.permute.xlu0 %2404
        %2406 = vrot.lane.b32.xlu0 %v2381, 32
        %v2407 = vpop.permute.xlu0 %2406
        %2408 = vrot.lane.b32.xlu0 %v2382, 32
        %v2409 = vpop.permute.xlu0 %2408
        %v2410 = vsel %vm331, %v2393, %v2395
        %v2411 = vsel %vm331, %v2395, %v2397
        %v2412 = vsel %vm331, %v2399, %v2401
        %v2413 = vsel %vm331, %v2401, %v2403
        %v2414 = vsel %vm331, %v2405, %v2407
        %v2415 = vsel %vm331, %v2407, %v2409
        %v2425 = vadd.f32 %v2346, %v2393
        %v2426 = vadd.f32 %v2347, %v2410
        %v2427 = vadd.f32 %v2348, %v2411
        %v2428 = vadd.f32 %v2349, %v2399
        %v2429 = vadd.f32 %v2350, %v2412
        %v2430 = vadd.f32 %v2351, %v2413
        %v2431 = vadd.f32 %v2352, %v2405
        %v2432 = vadd.f32 %v2353, %v2414
        %v2433 = vadd.f32 %v2354, %v2415
        %s2434 = scalar_lea.vmem [#allocation4], 50
        %v2435 = vld [vmem:[%s2434] ss:$8 sm:$0x3]
        %v2437 = vlaneseq
        %v2438 = vshrl.u32 %v2437, 7
        %v2439 = vsub.s32 0, %v2438
        %v2440 = vrot.slane %v2435, %v2439
        %v2441 = vlaneseq
        %v2442 = vshrl.u32 %v2441, 7
        %v2443 = vsub.s32 1, %v2442
        %v2444 = vrot.slane %v2435, %v2443
        %2445 = vrot.lane.b32.xlu0 %v2440, 80
        %v2446 = vpop.permute.xlu0 %2445
        %2447 = vrot.lane.b32.xlu0 %v2444, 80
        %v2448 = vpop.permute.xlu0 %2447
        %v2449 = vsel %vm1246, %v2446, %v2448
        %v2453 = vmul.f32 %v2162, %v2446
        %v2454 = vmul.f32 %v2163, %v2449
        %v2455 = vmul.f32 %v2274, %v2448
        %v2456 = vmul.f32 %v440, %v2446
        %v2457 = vmul.f32 %v441, %v2449
        %v2458 = vmul.f32 %v442, %v2448
        %v2459 = vmul.f32 %v2165, %v2446
        %v2460 = vmul.f32 %v2166, %v2449
        %v2461 = vmul.f32 %v2275, %v2448
        %v2462 = vadd.f32 %v2425, %v2453
        %v2463 = vadd.f32 %v2426, %v2454
        %v2464 = vadd.f32 %v2427, %v2455
        %v2465 = vadd.f32 %v2428, %v2456
        %v2466 = vadd.f32 %v2429, %v2457
        %v2467 = vadd.f32 %v2430, %v2458
        %v2468 = vadd.f32 %v2431, %v2459
        %v2469 = vadd.f32 %v2432, %v2460
        %v2470 = vadd.f32 %v2433, %v2461
        %v2471 = vld [vmem:[#allocation2 + $0x28] sm:$0xe0]
        %v2472 = vld [vmem:[#allocation2 + $0x30] sm:$0xe0]
        %v2473 = vld [vmem:[#allocation2 + $0x38] sm:$0xe0]
        %v2474 = vld [vmem:[#allocation2 + $0x78] sm:$0x1f]
        %v2475 = vld [vmem:[#allocation2 + $0x80] sm:$0x1f]
        %v2476 = vld [vmem:[#allocation2 + $0x88] sm:$0x1f]
        %s2477 = scalar_lea.vmem [#allocation4], 51
        %v2478 = vld [vmem:[%s2477] ss:$8 sm:$0x3]
        %v2480 = vlaneseq
        %v2481 = vshrl.u32 %v2480, 7
        %v2482 = vsub.s32 0, %v2481
        %v2483 = vrot.slane %v2478, %v2482
        %v2484 = vlaneseq
        %v2485 = vshrl.u32 %v2484, 7
        %v2486 = vsub.s32 1, %v2485
        %v2487 = vrot.slane %v2478, %v2486
        %2488 = vrot.lane.b32.xlu0 %v2483, 80
        %v2489 = vpop.permute.xlu0 %2488
        %2490 = vrot.lane.b32.xlu0 %v2487, 80
        %v2491 = vpop.permute.xlu0 %2490
        %v2492 = vsel %vm1246, %v2489, %v2491
        %v2496 = vmul.f32 %v2471, %v2489
        %v2497 = vmul.f32 %v2472, %v2492
        %v2498 = vmul.f32 %v2473, %v2491
        %v2499 = vmul.f32 %v1853, %v2489
        %v2500 = vmul.f32 %v1854, %v2492
        %v2501 = vmul.f32 %v1855, %v2491
        %v2502 = vmul.f32 %v2474, %v2489
        %v2503 = vmul.f32 %v2475, %v2492
        %v2504 = vmul.f32 %v2476, %v2491
        %s2505 = scalar_lea.vmem [#allocation4], 52
        %v2506 = vld [vmem:[%s2505] ss:$8 sm:$0x3]
        %v2508 = vlaneseq
        %v2509 = vshrl.u32 %v2508, 7
        %v2510 = vsub.s32 0, %v2509
        %v2511 = vrot.slane %v2506, %v2510
        %v2512 = vlaneseq
        %v2513 = vshrl.u32 %v2512, 7
        %v2514 = vsub.s32 1, %v2513
        %v2515 = vrot.slane %v2506, %v2514
        %2516 = vrot.lane.b32.xlu0 %v2511, 112
        %v2517 = vpop.permute.xlu0 %2516
        %2518 = vrot.lane.b32.xlu0 %v2515, 112
        %v2519 = vpop.permute.xlu0 %2518
        %v2520 = vsel %vm1275, %v2517, %v2519
        %v2524 = vmul.f32 %v2471, %v2517
        %v2525 = vmul.f32 %v2472, %v2520
        %v2526 = vmul.f32 %v2473, %v2519
        %v2527 = vmul.f32 %v1853, %v2517
        %v2528 = vmul.f32 %v1854, %v2520
        %v2529 = vmul.f32 %v1855, %v2519
        %v2530 = vmul.f32 %v2474, %v2517
        %v2531 = vmul.f32 %v2475, %v2520
        %v2532 = vmul.f32 %v2476, %v2519
        %2542 = vrot.lane.b32.xlu0 %v2524, 96
        %v2543 = vpop.permute.xlu0 %2542
        %2544 = vrot.lane.b32.xlu0 %v2525, 96
        %v2545 = vpop.permute.xlu0 %2544
        %2546 = vrot.lane.b32.xlu0 %v2526, 96
        %v2547 = vpop.permute.xlu0 %2546
        %2548 = vrot.lane.b32.xlu0 %v2527, 96
        %v2549 = vpop.permute.xlu0 %2548
        %2550 = vrot.lane.b32.xlu0 %v2528, 96
        %v2551 = vpop.permute.xlu0 %2550
        %2552 = vrot.lane.b32.xlu0 %v2529, 96
        %v2553 = vpop.permute.xlu0 %2552
        %2554 = vrot.lane.b32.xlu0 %v2530, 96
        %v2555 = vpop.permute.xlu0 %2554
        %2556 = vrot.lane.b32.xlu0 %v2531, 96
        %v2557 = vpop.permute.xlu0 %2556
        %2558 = vrot.lane.b32.xlu0 %v2532, 96
        %v2559 = vpop.permute.xlu0 %2558
        %v2560 = vsel %vm1316, %v2543, %v2545
        %v2561 = vsel %vm1316, %v2545, %v2547
        %v2562 = vsel %vm1316, %v2549, %v2551
        %v2563 = vsel %vm1316, %v2551, %v2553
        %v2564 = vsel %vm1316, %v2555, %v2557
        %v2565 = vsel %vm1316, %v2557, %v2559
        %v2575 = vadd.f32 %v2496, %v2560
        %v2576 = vadd.f32 %v2497, %v2561
        %v2577 = vadd.f32 %v2498, %v2547
        %v2578 = vadd.f32 %v2499, %v2562
        %v2579 = vadd.f32 %v2500, %v2563
        %v2580 = vadd.f32 %v2501, %v2553
        %v2581 = vadd.f32 %v2502, %v2564
        %v2582 = vadd.f32 %v2503, %v2565
        %v2583 = vadd.f32 %v2504, %v2559
        %v2584 = vld [vmem:[#allocation2 + $0x40] sm:$0xe0]
        %v2585 = vld [vmem:[#allocation2 + $0x90] sm:$0x1f]
        %s2586 = scalar_lea.vmem [#allocation4], 53
        %v2587 = vld [vmem:[%s2586] ss:$8 sm:$0x3]
        %v2589 = vlaneseq
        %v2590 = vshrl.u32 %v2589, 7
        %v2591 = vsub.s32 0, %v2590
        %v2592 = vrot.slane %v2587, %v2591
        %v2593 = vlaneseq
        %v2594 = vshrl.u32 %v2593, 7
        %v2595 = vsub.s32 1, %v2594
        %v2596 = vrot.slane %v2587, %v2595
        %2597 = vrot.lane.b32.xlu0 %v2592, 16
        %v2598 = vpop.permute.xlu0 %2597
        %2599 = vrot.lane.b32.xlu0 %v2596, 16
        %v2600 = vpop.permute.xlu0 %2599
        %v2601 = vsel %vm377, %v2598, %v2600
        %v2605 = vmul.f32 %v2472, %v2598
        %v2606 = vmul.f32 %v2473, %v2601
        %v2607 = vmul.f32 %v2584, %v2600
        %v2608 = vmul.f32 %v440, %v2598
        %v2609 = vmul.f32 %v441, %v2601
        %v2610 = vmul.f32 %v442, %v2600
        %v2611 = vmul.f32 %v2475, %v2598
        %v2612 = vmul.f32 %v2476, %v2601
        %v2613 = vmul.f32 %v2585, %v2600
        %2623 = vrot.lane.b32.xlu0 %v2605, 64
        %v2624 = vpop.permute.xlu0 %2623
        %2625 = vrot.lane.b32.xlu0 %v2606, 64
        %v2626 = vpop.permute.xlu0 %2625
        %2627 = vrot.lane.b32.xlu0 %v2607, 64
        %v2628 = vpop.permute.xlu0 %2627
        %2629 = vrot.lane.b32.xlu0 %v2608, 64
        %v2630 = vpop.permute.xlu0 %2629
        %2631 = vrot.lane.b32.xlu0 %v2609, 64
        %v2632 = vpop.permute.xlu0 %2631
        %2633 = vrot.lane.b32.xlu0 %v2610, 64
        %v2634 = vpop.permute.xlu0 %2633
        %2635 = vrot.lane.b32.xlu0 %v2611, 64
        %v2636 = vpop.permute.xlu0 %2635
        %2637 = vrot.lane.b32.xlu0 %v2612, 64
        %v2638 = vpop.permute.xlu0 %2637
        %2639 = vrot.lane.b32.xlu0 %v2613, 64
        %v2640 = vpop.permute.xlu0 %2639
        %v2641 = vsel %vm1398, %v2624, %v2626
        %v2642 = vsel %vm1398, %v2626, %v2628
        %v2643 = vsel %vm1398, %v2630, %v2632
        %v2644 = vsel %vm1398, %v2632, %v2634
        %v2645 = vsel %vm1398, %v2636, %v2638
        %v2646 = vsel %vm1398, %v2638, %v2640
        %v2656 = vadd.f32 %v2575, %v2624
        %v2657 = vadd.f32 %v2576, %v2641
        %v2658 = vadd.f32 %v2577, %v2642
        %v2659 = vadd.f32 %v2578, %v2630
        %v2660 = vadd.f32 %v2579, %v2643
        %v2661 = vadd.f32 %v2580, %v2644
        %v2662 = vadd.f32 %v2581, %v2636
        %v2663 = vadd.f32 %v2582, %v2645
        %v2664 = vadd.f32 %v2583, %v2646
        %s2665 = scalar_lea.vmem [#allocation4], 54
        %v2666 = vld [vmem:[%s2665] ss:$8 sm:$0x3]
        %v2668 = vlaneseq
        %v2669 = vshrl.u32 %v2668, 7
        %v2670 = vsub.s32 0, %v2669
        %v2671 = vrot.slane %v2666, %v2670
        %v2672 = vlaneseq
        %v2673 = vshrl.u32 %v2672, 7
        %v2674 = vsub.s32 1, %v2673
        %v2675 = vrot.slane %v2666, %v2674
        %2676 = vrot.lane.b32.xlu0 %v2671, 48
        %v2677 = vpop.permute.xlu0 %2676
        %2678 = vrot.lane.b32.xlu0 %v2675, 48
        %v2679 = vpop.permute.xlu0 %2678
        %v2680 = vsel %vm1438, %v2677, %v2679
        %v2684 = vmul.f32 %v2472, %v2677
        %v2685 = vmul.f32 %v2473, %v2680
        %v2686 = vmul.f32 %v2584, %v2679
        %v2687 = vmul.f32 %v440, %v2677
        %v2688 = vmul.f32 %v441, %v2680
        %v2689 = vmul.f32 %v442, %v2679
        %v2690 = vmul.f32 %v2475, %v2677
        %v2691 = vmul.f32 %v2476, %v2680
        %v2692 = vmul.f32 %v2585, %v2679
        %2702 = vrot.lane.b32.xlu0 %v2684, 32
        %v2703 = vpop.permute.xlu0 %2702
        %2704 = vrot.lane.b32.xlu0 %v2685, 32
        %v2705 = vpop.permute.xlu0 %2704
        %2706 = vrot.lane.b32.xlu0 %v2686, 32
        %v2707 = vpop.permute.xlu0 %2706
        %2708 = vrot.lane.b32.xlu0 %v2687, 32
        %v2709 = vpop.permute.xlu0 %2708
        %2710 = vrot.lane.b32.xlu0 %v2688, 32
        %v2711 = vpop.permute.xlu0 %2710
        %2712 = vrot.lane.b32.xlu0 %v2689, 32
        %v2713 = vpop.permute.xlu0 %2712
        %2714 = vrot.lane.b32.xlu0 %v2690, 32
        %v2715 = vpop.permute.xlu0 %2714
        %2716 = vrot.lane.b32.xlu0 %v2691, 32
        %v2717 = vpop.permute.xlu0 %2716
        %2718 = vrot.lane.b32.xlu0 %v2692, 32
        %v2719 = vpop.permute.xlu0 %2718
        %v2720 = vsel %vm331, %v2703, %v2705
        %v2721 = vsel %vm331, %v2705, %v2707
        %v2722 = vsel %vm331, %v2709, %v2711
        %v2723 = vsel %vm331, %v2711, %v2713
        %v2724 = vsel %vm331, %v2715, %v2717
        %v2725 = vsel %vm331, %v2717, %v2719
        %v2735 = vadd.f32 %v2656, %v2703
        %v2736 = vadd.f32 %v2657, %v2720
        %v2737 = vadd.f32 %v2658, %v2721
        %v2738 = vadd.f32 %v2659, %v2709
        %v2739 = vadd.f32 %v2660, %v2722
        %v2740 = vadd.f32 %v2661, %v2723
        %v2741 = vadd.f32 %v2662, %v2715
        %v2742 = vadd.f32 %v2663, %v2724
        %v2743 = vadd.f32 %v2664, %v2725
        %s2744 = scalar_lea.vmem [#allocation4], 55
        %v2745 = vld [vmem:[%s2744] ss:$8 sm:$0x3]
        %v2747 = vlaneseq
        %v2748 = vshrl.u32 %v2747, 7
        %v2749 = vsub.s32 0, %v2748
        %v2750 = vrot.slane %v2745, %v2749
        %v2751 = vlaneseq
        %v2752 = vshrl.u32 %v2751, 7
        %v2753 = vsub.s32 1, %v2752
        %v2754 = vrot.slane %v2745, %v2753
        %2755 = vrot.lane.b32.xlu0 %v2750, 80
        %v2756 = vpop.permute.xlu0 %2755
        %2757 = vrot.lane.b32.xlu0 %v2754, 80
        %v2758 = vpop.permute.xlu0 %2757
        %v2759 = vsel %vm1246, %v2756, %v2758
        %v2763 = vmul.f32 %v2472, %v2756
        %v2764 = vmul.f32 %v2473, %v2759
        %v2765 = vmul.f32 %v2584, %v2758
        %v2766 = vmul.f32 %v440, %v2756
        %v2767 = vmul.f32 %v441, %v2759
        %v2768 = vmul.f32 %v442, %v2758
        %v2769 = vmul.f32 %v2475, %v2756
        %v2770 = vmul.f32 %v2476, %v2759
        %v2771 = vmul.f32 %v2585, %v2758
        %v2772 = vadd.f32 %v2735, %v2763
        %v2773 = vadd.f32 %v2736, %v2764
        %v2774 = vadd.f32 %v2737, %v2765
        %v2775 = vadd.f32 %v2738, %v2766
        %v2776 = vadd.f32 %v2739, %v2767
        %v2777 = vadd.f32 %v2740, %v2768
        %v2778 = vadd.f32 %v2741, %v2769
        %v2779 = vadd.f32 %v2742, %v2770
        %v2780 = vadd.f32 %v2743, %v2771
        %v2790 = vrot.slane %v1841, 2
        %v2791 = vrot.slane %v1844, 2
        %v2792 = vsel %vm864, %v2790, %v2791
        %v2793 = vrot.slane %v1842, 2
        %v2794 = vrot.slane %v1845, 2
        %v2795 = vsel %vm864, %v2793, %v2794
        %v2796 = vrot.slane %v1843, 2
        %v2797 = vrot.slane %v1846, 2
        %v2798 = vsel %vm864, %v2796, %v2797
        %v2799 = vrot.slane %v1847, 2
        %v2800 = vsel %vm864, %v2791, %v2799
        %v2801 = vrot.slane %v1848, 2
        %v2802 = vsel %vm864, %v2794, %v2801
        %v2803 = vrot.slane %v1849, 2
        %v2804 = vsel %vm864, %v2797, %v2803
        %v2814 = vadd.f32 %v1531, %v2792
        %v2815 = vadd.f32 %v1532, %v2795
        %v2816 = vadd.f32 %v1533, %v2798
        %v2817 = vadd.f32 %v1534, %v2800
        %v2818 = vadd.f32 %v1535, %v2802
        %v2819 = vadd.f32 %v1536, %v2804
        %v2820 = vadd.f32 %v1537, %v2799
        %v2821 = vadd.f32 %v1538, %v2801
        %v2822 = vadd.f32 %v1539, %v2803
        %v2832 = vrot.slane %v2462, 2
        %v2833 = vrot.slane %v2465, 2
        %v2834 = vsel %vm864, %v2832, %v2833
        %v2835 = vrot.slane %v2463, 2
        %v2836 = vrot.slane %v2466, 2
        %v2837 = vsel %vm864, %v2835, %v2836
        %v2838 = vrot.slane %v2464, 2
        %v2839 = vrot.slane %v2467, 2
        %v2840 = vsel %vm864, %v2838, %v2839
        %v2841 = vrot.slane %v2468, 2
        %v2842 = vsel %vm864, %v2833, %v2841
        %v2843 = vrot.slane %v2469, 2
        %v2844 = vsel %vm864, %v2836, %v2843
        %v2845 = vrot.slane %v2470, 2
        %v2846 = vsel %vm864, %v2839, %v2845
        %v2856 = vadd.f32 %v2152, %v2834
        %v2857 = vadd.f32 %v2153, %v2837
        %v2858 = vadd.f32 %v2154, %v2840
        %v2859 = vadd.f32 %v2155, %v2842
        %v2860 = vadd.f32 %v2156, %v2844
        %v2861 = vadd.f32 %v2157, %v2846
        %v2862 = vadd.f32 %v2158, %v2841
        %v2863 = vadd.f32 %v2159, %v2843
        %v2864 = vadd.f32 %v2160, %v2845
        %vm2874 = vcmask 1043456
        %v2875 = vrot.slane %v2856, 4
        %v2876 = vrot.slane %v2857, 4
        %v2877 = vrot.slane %v2858, 4
        %v2878 = vrot.slane %v2859, 4
        %v2879 = vsel %vm2874, %v2875, %v2878
        %v2880 = vrot.slane %v2860, 4
        %v2881 = vsel %vm2874, %v2876, %v2880
        %v2882 = vrot.slane %v2861, 4
        %v2883 = vsel %vm2874, %v2877, %v2882
        %v2884 = vrot.slane %v2862, 4
        %v2885 = vsel %vm2874, %v2878, %v2884
        %v2886 = vrot.slane %v2863, 4
        %v2887 = vsel %vm2874, %v2880, %v2886
        %v2888 = vrot.slane %v2864, 4
        %v2889 = vsel %vm2874, %v2882, %v2888
        %v2899 = vadd.f32 %v2814, %v2875
        %v2900 = vadd.f32 %v2815, %v2876
        %v2901 = vadd.f32 %v2816, %v2877
        %v2902 = vadd.f32 %v2817, %v2879
        %v2903 = vadd.f32 %v2818, %v2881
        %v2904 = vadd.f32 %v2819, %v2883
        %v2905 = vadd.f32 %v2820, %v2885
        %v2906 = vadd.f32 %v2821, %v2887
        %v2907 = vadd.f32 %v2822, %v2889
        %v2908 = vadd.f32 %v2899, %v2772
        %v2909 = vadd.f32 %v2900, %v2773
        %v2910 = vadd.f32 %v2901, %v2774
        %v2911 = vadd.f32 %v2902, %v2775
        %v2912 = vadd.f32 %v2903, %v2776
        %v2913 = vadd.f32 %v2904, %v2777
        %v2914 = vadd.f32 %v2905, %v2778
        %v2915 = vadd.f32 %v2906, %v2779
        %v2916 = vadd.f32 %v2907, %v2780
        %s2917 = scalar_lea.vmem [#allocation4], 3
        %v2918 = vld [vmem:[%s2917] ss:$8 sm:$0x3]
        %v2920 = vlaneseq
        %v2921 = vshrl.u32 %v2920, 7
        %v2922 = vsub.s32 0, %v2921
        %v2923 = vrot.slane %v2918, %v2922
        %v2924 = vlaneseq
        %v2925 = vshrl.u32 %v2924, 7
        %v2926 = vsub.s32 1, %v2925
        %v2927 = vrot.slane %v2918, %v2926
        %2928 = vrot.lane.b32.xlu0 %v2923, 80
        %v2929 = vpop.permute.xlu0 %2928
        %2930 = vrot.lane.b32.xlu0 %v2927, 80
        %v2931 = vpop.permute.xlu0 %2930
        %v2932 = vsel %vm1246, %v2929, %v2931
        %v2936 = vadd.f32 %v2908, %v2929
        %v2937 = vadd.f32 %v2909, %v2932
        %v2938 = vadd.f32 %v2910, %v2931
        %v2939 = vadd.f32 %v2911, %v2929
        %v2940 = vadd.f32 %v2912, %v2932
        %v2941 = vadd.f32 %v2913, %v2931
        %v2942 = vadd.f32 %v2914, %v2929
        %v2943 = vadd.f32 %v2915, %v2932
        %v2944 = vadd.f32 %v2916, %v2931
        %v2945 = vld [vmem:[#allocation2] sm:$0xff]
        %v2946 = vld [vmem:[#allocation2 + $0x8] sm:$0xff]
        %s2947 = scalar_lea.vmem [#allocation4], 64
        %v2948 = vld [vmem:[%s2947] ss:$8 sm:$0x3]
        %v2950 = vlaneseq
        %v2951 = vshrl.u32 %v2950, 7
        %v2952 = vsub.s32 0, %v2951
        %v2953 = vrot.slane %v2948, %v2952
        %v2954 = vlaneseq
        %v2955 = vshrl.u32 %v2954, 7
        %v2956 = vsub.s32 1, %v2955
        %v2957 = vrot.slane %v2948, %v2956
        %v2960 = vmul.f32 %v2945, %v2953
        %v2961 = vmul.f32 %v2946, %v2957
        %v2962 = vmul.f32 %v1225, %v2953
        %v2963 = vmul.f32 %v1226, %v2957
        %v2964 = vld [vmem:[#allocation2 + $0x10] sm:$0xff]
        %s2965 = scalar_lea.vmem [#allocation4], 65
        %v2966 = vld [vmem:[%s2965] ss:$8 sm:$0x3]
        %v2968 = vlaneseq
        %v2969 = vshrl.u32 %v2968, 7
        %v2970 = vsub.s32 0, %v2969
        %v2971 = vrot.slane %v2966, %v2970
        %v2972 = vlaneseq
        %v2973 = vshrl.u32 %v2972, 7
        %v2974 = vsub.s32 1, %v2973
        %v2975 = vrot.slane %v2966, %v2974
        %2976 = vrot.lane.b32.xlu0 %v2971, 48
        %v2977 = vpop.permute.xlu0 %2976
        %2978 = vrot.lane.b32.xlu0 %v2975, 48
        %v2979 = vpop.permute.xlu0 %2978
        %v2980 = vsel %vm1438, %v2977, %v2979
        %v2984 = vmul.f32 %v2945, %v2977
        %v2985 = vmul.f32 %v2946, %v2980
        %v2986 = vmul.f32 %v2964, %v2979
        %v2987 = vmul.f32 %v1225, %v2977
        %v2988 = vmul.f32 %v1226, %v2980
        %v2989 = vmul.f32 %v1227, %v2979
        %2996 = vrot.lane.b32.xlu0 %v2984, 80
        %v2997 = vpop.permute.xlu0 %2996
        %2998 = vrot.lane.b32.xlu0 %v2985, 80
        %v2999 = vpop.permute.xlu0 %2998
        %3000 = vrot.lane.b32.xlu0 %v2986, 80
        %v3001 = vpop.permute.xlu0 %3000
        %3002 = vrot.lane.b32.xlu0 %v2987, 80
        %v3003 = vpop.permute.xlu0 %3002
        %3004 = vrot.lane.b32.xlu0 %v2988, 80
        %v3005 = vpop.permute.xlu0 %3004
        %3006 = vrot.lane.b32.xlu0 %v2989, 80
        %v3007 = vpop.permute.xlu0 %3006
        %v3008 = vsel %vm1246, %v2997, %v2999
        %v3009 = vsel %vm1246, %v2999, %v3001
        %v3010 = vsel %vm1246, %v3003, %v3005
        %v3011 = vsel %vm1246, %v3005, %v3007
        %v3016 = vadd.f32 %v2960, %v3008
        %v3017 = vadd.f32 %v2961, %v3009
        %v3018 = vadd.f32 %v2962, %v3010
        %v3019 = vadd.f32 %v2963, %v3011
        %s3020 = scalar_lea.vmem [#allocation4], 66
        %v3021 = vld [vmem:[%s3020] ss:$8 sm:$0x3]
        %v3023 = vlaneseq
        %v3024 = vshrl.u32 %v3023, 7
        %v3025 = vsub.s32 0, %v3024
        %v3026 = vrot.slane %v3021, %v3025
        %v3027 = vlaneseq
        %v3028 = vshrl.u32 %v3027, 7
        %v3029 = vsub.s32 1, %v3028
        %v3030 = vrot.slane %v3021, %v3029
        %3031 = vrot.lane.b32.xlu0 %v3026, 96
        %v3032 = vpop.permute.xlu0 %3031
        %3033 = vrot.lane.b32.xlu0 %v3030, 96
        %v3034 = vpop.permute.xlu0 %3033
        %v3035 = vsel %vm1316, %v3032, %v3034
        %v3039 = vmul.f32 %v2945, %v3032
        %v3040 = vmul.f32 %v2946, %v3035
        %v3041 = vmul.f32 %v2964, %v3034
        %v3042 = vmul.f32 %v1225, %v3032
        %v3043 = vmul.f32 %v1226, %v3035
        %v3044 = vmul.f32 %v1227, %v3034
        %3051 = vrot.lane.b32.xlu0 %v3039, 32
        %v3052 = vpop.permute.xlu0 %3051
        %3053 = vrot.lane.b32.xlu0 %v3040, 32
        %v3054 = vpop.permute.xlu0 %3053
        %3055 = vrot.lane.b32.xlu0 %v3041, 32
        %v3056 = vpop.permute.xlu0 %3055
        %3057 = vrot.lane.b32.xlu0 %v3042, 32
        %v3058 = vpop.permute.xlu0 %3057
        %3059 = vrot.lane.b32.xlu0 %v3043, 32
        %v3060 = vpop.permute.xlu0 %3059
        %3061 = vrot.lane.b32.xlu0 %v3044, 32
        %v3062 = vpop.permute.xlu0 %3061
        %v3063 = vsel %vm331, %v3052, %v3054
        %v3064 = vsel %vm331, %v3054, %v3056
        %v3065 = vsel %vm331, %v3058, %v3060
        %v3066 = vsel %vm331, %v3060, %v3062
        %v3071 = vadd.f32 %v3016, %v3063
        %v3072 = vadd.f32 %v3017, %v3064
        %v3073 = vadd.f32 %v3018, %v3065
        %v3074 = vadd.f32 %v3019, %v3066
        %v3075 = vld [vmem:[#allocation2 + $0x18] sm:$0xff]
        %v3076 = vld [vmem:[#allocation2 + $0x40] sm:$0xff]
        %s3077 = scalar_lea.vmem [#allocation4], 67
        %v3078 = vld [vmem:[%s3077] ss:$8 sm:$0x3]
        %v3080 = vlaneseq
        %v3081 = vshrl.u32 %v3080, 7
        %v3082 = vsub.s32 0, %v3081
        %v3083 = vrot.slane %v3078, %v3082
        %v3084 = vlaneseq
        %v3085 = vshrl.u32 %v3084, 7
        %v3086 = vsub.s32 1, %v3085
        %v3087 = vrot.slane %v3078, %v3086
        %3088 = vrot.lane.b32.xlu0 %v3083, 16
        %v3089 = vpop.permute.xlu0 %3088
        %3090 = vrot.lane.b32.xlu0 %v3087, 16
        %v3091 = vpop.permute.xlu0 %3090
        %v3092 = vsel %vm377, %v3089, %v3091
        %v3096 = vmul.f32 %v2946, %v3089
        %v3097 = vmul.f32 %v2964, %v3092
        %v3098 = vmul.f32 %v3075, %v3091
        %v3099 = vmul.f32 %v1226, %v3089
        %v3100 = vmul.f32 %v1227, %v3092
        %v3101 = vmul.f32 %v3076, %v3091
        %3108 = vrot.lane.b32.xlu0 %v3096, 112
        %v3109 = vpop.permute.xlu0 %3108
        %3110 = vrot.lane.b32.xlu0 %v3097, 112
        %v3111 = vpop.permute.xlu0 %3110
        %3112 = vrot.lane.b32.xlu0 %v3098, 112
        %v3113 = vpop.permute.xlu0 %3112
        %3114 = vrot.lane.b32.xlu0 %v3099, 112
        %v3115 = vpop.permute.xlu0 %3114
        %3116 = vrot.lane.b32.xlu0 %v3100, 112
        %v3117 = vpop.permute.xlu0 %3116
        %3118 = vrot.lane.b32.xlu0 %v3101, 112
        %v3119 = vpop.permute.xlu0 %3118
        %v3120 = vsel %vm1275, %v3109, %v3111
        %v3121 = vsel %vm1275, %v3111, %v3113
        %v3122 = vsel %vm1275, %v3115, %v3117
        %v3123 = vsel %vm1275, %v3117, %v3119
        %v3128 = vadd.f32 %v3071, %v3120
        %v3129 = vadd.f32 %v3072, %v3121
        %v3130 = vadd.f32 %v3073, %v3122
        %v3131 = vadd.f32 %v3074, %v3123
        %s3132 = scalar_lea.vmem [#allocation4], 68
        %v3133 = vld [vmem:[%s3132] ss:$8 sm:$0x3]
        %v3135 = vlaneseq
        %v3136 = vshrl.u32 %v3135, 7
        %v3137 = vsub.s32 0, %v3136
        %v3138 = vrot.slane %v3133, %v3137
        %v3139 = vlaneseq
        %v3140 = vshrl.u32 %v3139, 7
        %v3141 = vsub.s32 1, %v3140
        %v3142 = vrot.slane %v3133, %v3141
        %3143 = vrot.lane.b32.xlu0 %v3138, 64
        %v3144 = vpop.permute.xlu0 %3143
        %3145 = vrot.lane.b32.xlu0 %v3142, 64
        %v3146 = vpop.permute.xlu0 %3145
        %v3147 = vsel %vm1398, %v3144, %v3146
        %v3151 = vmul.f32 %v2946, %v3144
        %v3152 = vmul.f32 %v2964, %v3147
        %v3153 = vmul.f32 %v3075, %v3146
        %v3154 = vmul.f32 %v1226, %v3144
        %v3155 = vmul.f32 %v1227, %v3147
        %v3156 = vmul.f32 %v3076, %v3146
        %3163 = vrot.lane.b32.xlu0 %v3151, 64
        %v3164 = vpop.permute.xlu0 %3163
        %3165 = vrot.lane.b32.xlu0 %v3152, 64
        %v3166 = vpop.permute.xlu0 %3165
        %3167 = vrot.lane.b32.xlu0 %v3153, 64
        %v3168 = vpop.permute.xlu0 %3167
        %3169 = vrot.lane.b32.xlu0 %v3154, 64
        %v3170 = vpop.permute.xlu0 %3169
        %3171 = vrot.lane.b32.xlu0 %v3155, 64
        %v3172 = vpop.permute.xlu0 %3171
        %3173 = vrot.lane.b32.xlu0 %v3156, 64
        %v3174 = vpop.permute.xlu0 %3173
        %v3175 = vsel %vm1398, %v3164, %v3166
        %v3176 = vsel %vm1398, %v3166, %v3168
        %v3177 = vsel %vm1398, %v3170, %v3172
        %v3178 = vsel %vm1398, %v3172, %v3174
        %v3183 = vadd.f32 %v3128, %v3175
        %v3184 = vadd.f32 %v3129, %v3176
        %v3185 = vadd.f32 %v3130, %v3177
        %v3186 = vadd.f32 %v3131, %v3178
        %s3187 = scalar_lea.vmem [#allocation4], 69
        %v3188 = vld [vmem:[%s3187] ss:$8 sm:$0x3]
        %v3190 = vlaneseq
        %v3191 = vshrl.u32 %v3190, 7
        %v3192 = vsub.s32 0, %v3191
        %v3193 = vrot.slane %v3188, %v3192
        %v3194 = vlaneseq
        %v3195 = vshrl.u32 %v3194, 7
        %v3196 = vsub.s32 1, %v3195
        %v3197 = vrot.slane %v3188, %v3196
        %3198 = vrot.lane.b32.xlu0 %v3193, 112
        %v3199 = vpop.permute.xlu0 %3198
        %3200 = vrot.lane.b32.xlu0 %v3197, 112
        %v3201 = vpop.permute.xlu0 %3200
        %v3202 = vsel %vm1275, %v3199, %v3201
        %v3206 = vmul.f32 %v2946, %v3199
        %v3207 = vmul.f32 %v2964, %v3202
        %v3208 = vmul.f32 %v3075, %v3201
        %v3209 = vmul.f32 %v1226, %v3199
        %v3210 = vmul.f32 %v1227, %v3202
        %v3211 = vmul.f32 %v3076, %v3201
        %3218 = vrot.lane.b32.xlu0 %v3206, 16
        %v3219 = vpop.permute.xlu0 %3218
        %3220 = vrot.lane.b32.xlu0 %v3207, 16
        %v3221 = vpop.permute.xlu0 %3220
        %3222 = vrot.lane.b32.xlu0 %v3208, 16
        %v3223 = vpop.permute.xlu0 %3222
        %3224 = vrot.lane.b32.xlu0 %v3209, 16
        %v3225 = vpop.permute.xlu0 %3224
        %3226 = vrot.lane.b32.xlu0 %v3210, 16
        %v3227 = vpop.permute.xlu0 %3226
        %3228 = vrot.lane.b32.xlu0 %v3211, 16
        %v3229 = vpop.permute.xlu0 %3228
        %v3230 = vsel %vm377, %v3219, %v3221
        %v3231 = vsel %vm377, %v3221, %v3223
        %v3232 = vsel %vm377, %v3225, %v3227
        %v3233 = vsel %vm377, %v3227, %v3229
        %v3238 = vadd.f32 %v3183, %v3230
        %v3239 = vadd.f32 %v3184, %v3231
        %v3240 = vadd.f32 %v3185, %v3232
        %v3241 = vadd.f32 %v3186, %v3233
        %v3242 = vld [vmem:[#allocation2 + $0x20] sm:$0xff]
        %v3243 = vld [vmem:[#allocation2 + $0x48] sm:$0xff]
        %s3244 = scalar_lea.vmem [#allocation4], 70
        %v3245 = vld [vmem:[%s3244] ss:$8 sm:$0x3]
        %v3247 = vlaneseq
        %v3248 = vshrl.u32 %v3247, 7
        %v3249 = vsub.s32 0, %v3248
        %v3250 = vrot.slane %v3245, %v3249
        %v3251 = vlaneseq
        %v3252 = vshrl.u32 %v3251, 7
        %v3253 = vsub.s32 1, %v3252
        %v3254 = vrot.slane %v3245, %v3253
        %3255 = vrot.lane.b32.xlu0 %v3250, 32
        %v3256 = vpop.permute.xlu0 %3255
        %3257 = vrot.lane.b32.xlu0 %v3254, 32
        %v3258 = vpop.permute.xlu0 %3257
        %v3259 = vsel %vm331, %v3256, %v3258
        %v3263 = vmul.f32 %v2964, %v3256
        %v3264 = vmul.f32 %v3075, %v3259
        %v3265 = vmul.f32 %v3242, %v3258
        %v3266 = vmul.f32 %v1227, %v3256
        %v3267 = vmul.f32 %v3076, %v3259
        %v3268 = vmul.f32 %v3243, %v3258
        %3275 = vrot.lane.b32.xlu0 %v3263, 96
        %v3276 = vpop.permute.xlu0 %3275
        %3277 = vrot.lane.b32.xlu0 %v3264, 96
        %v3278 = vpop.permute.xlu0 %3277
        %3279 = vrot.lane.b32.xlu0 %v3265, 96
        %v3280 = vpop.permute.xlu0 %3279
        %3281 = vrot.lane.b32.xlu0 %v3266, 96
        %v3282 = vpop.permute.xlu0 %3281
        %3283 = vrot.lane.b32.xlu0 %v3267, 96
        %v3284 = vpop.permute.xlu0 %3283
        %3285 = vrot.lane.b32.xlu0 %v3268, 96
        %v3286 = vpop.permute.xlu0 %3285
        %v3287 = vsel %vm1316, %v3276, %v3278
        %v3288 = vsel %vm1316, %v3278, %v3280
        %v3289 = vsel %vm1316, %v3282, %v3284
        %v3290 = vsel %vm1316, %v3284, %v3286
        %v3295 = vadd.f32 %v3238, %v3287
        %v3296 = vadd.f32 %v3239, %v3288
        %v3297 = vadd.f32 %v3240, %v3289
        %v3298 = vadd.f32 %v3241, %v3290
        %v3299 = vld [vmem:[#allocation2] sm:$0xf8]
        %v3300 = vld [vmem:[#allocation2 + $0x8] sm:$0xf8]
        %v3301 = vld [vmem:[#allocation2 + $0x50] sm:$0x7]
        %v3302 = vld [vmem:[#allocation2 + $0x58] sm:$0x7]
        %s3303 = scalar_lea.vmem [#allocation4], 71
        %v3304 = vld [vmem:[%s3303] ss:$8 sm:$0x3]
        %v3306 = vlaneseq
        %v3307 = vshrl.u32 %v3306, 7
        %v3308 = vsub.s32 0, %v3307
        %v3309 = vrot.slane %v3304, %v3308
        %v3310 = vlaneseq
        %v3311 = vshrl.u32 %v3310, 7
        %v3312 = vsub.s32 1, %v3311
        %v3313 = vrot.slane %v3304, %v3312
        %v3316 = vmul.f32 %v3299, %v3309
        %v3317 = vmul.f32 %v3300, %v3313
        %v3318 = vmul.f32 %v1225, %v3309
        %v3319 = vmul.f32 %v1226, %v3313
        %v3320 = vmul.f32 %v3301, %v3309
        %v3321 = vmul.f32 %v3302, %v3313
        %v3322 = vld [vmem:[#allocation2 + $0x10] sm:$0xf8]
        %v3323 = vld [vmem:[#allocation2 + $0x60] sm:$0x7]
        %s3324 = scalar_lea.vmem [#allocation4], 80
        %v3325 = vld [vmem:[%s3324] ss:$8 sm:$0x3]
        %v3327 = vlaneseq
        %v3328 = vshrl.u32 %v3327, 7
        %v3329 = vsub.s32 0, %v3328
        %v3330 = vrot.slane %v3325, %v3329
        %v3331 = vlaneseq
        %v3332 = vshrl.u32 %v3331, 7
        %v3333 = vsub.s32 1, %v3332
        %v3334 = vrot.slane %v3325, %v3333
        %3335 = vrot.lane.b32.xlu0 %v3330, 48
        %v3336 = vpop.permute.xlu0 %3335
        %3337 = vrot.lane.b32.xlu0 %v3334, 48
        %v3338 = vpop.permute.xlu0 %3337
        %v3339 = vsel %vm1438, %v3336, %v3338
        %v3343 = vmul.f32 %v3299, %v3336
        %v3344 = vmul.f32 %v3300, %v3339
        %v3345 = vmul.f32 %v3322, %v3338
        %v3346 = vmul.f32 %v1225, %v3336
        %v3347 = vmul.f32 %v1226, %v3339
        %v3348 = vmul.f32 %v1227, %v3338
        %v3349 = vmul.f32 %v3301, %v3336
        %v3350 = vmul.f32 %v3302, %v3339
        %v3351 = vmul.f32 %v3323, %v3338
        %3361 = vrot.lane.b32.xlu0 %v3343, 80
        %v3362 = vpop.permute.xlu0 %3361
        %3363 = vrot.lane.b32.xlu0 %v3344, 80
        %v3364 = vpop.permute.xlu0 %3363
        %3365 = vrot.lane.b32.xlu0 %v3345, 80
        %v3366 = vpop.permute.xlu0 %3365
        %3367 = vrot.lane.b32.xlu0 %v3346, 80
        %v3368 = vpop.permute.xlu0 %3367
        %3369 = vrot.lane.b32.xlu0 %v3347, 80
        %v3370 = vpop.permute.xlu0 %3369
        %3371 = vrot.lane.b32.xlu0 %v3348, 80
        %v3372 = vpop.permute.xlu0 %3371
        %3373 = vrot.lane.b32.xlu0 %v3349, 80
        %v3374 = vpop.permute.xlu0 %3373
        %3375 = vrot.lane.b32.xlu0 %v3350, 80
        %v3376 = vpop.permute.xlu0 %3375
        %3377 = vrot.lane.b32.xlu0 %v3351, 80
        %v3378 = vpop.permute.xlu0 %3377
        %v3379 = vsel %vm1246, %v3362, %v3364
        %v3380 = vsel %vm1246, %v3364, %v3366
        %v3381 = vsel %vm1246, %v3368, %v3370
        %v3382 = vsel %vm1246, %v3370, %v3372
        %v3383 = vsel %vm1246, %v3374, %v3376
        %v3384 = vsel %vm1246, %v3376, %v3378
        %v3391 = vadd.f32 %v3316, %v3379
        %v3392 = vadd.f32 %v3317, %v3380
        %v3393 = vadd.f32 %v3318, %v3381
        %v3394 = vadd.f32 %v3319, %v3382
        %v3395 = vadd.f32 %v3320, %v3383
        %v3396 = vadd.f32 %v3321, %v3384
        %s3397 = scalar_lea.vmem [#allocation4], 81
        %v3398 = vld [vmem:[%s3397] ss:$8 sm:$0x3]
        %v3400 = vlaneseq
        %v3401 = vshrl.u32 %v3400, 7
        %v3402 = vsub.s32 0, %v3401
        %v3403 = vrot.slane %v3398, %v3402
        %v3404 = vlaneseq
        %v3405 = vshrl.u32 %v3404, 7
        %v3406 = vsub.s32 1, %v3405
        %v3407 = vrot.slane %v3398, %v3406
        %3408 = vrot.lane.b32.xlu0 %v3403, 96
        %v3409 = vpop.permute.xlu0 %3408
        %3410 = vrot.lane.b32.xlu0 %v3407, 96
        %v3411 = vpop.permute.xlu0 %3410
        %v3412 = vsel %vm1316, %v3409, %v3411
        %v3416 = vmul.f32 %v3299, %v3409
        %v3417 = vmul.f32 %v3300, %v3412
        %v3418 = vmul.f32 %v3322, %v3411
        %v3419 = vmul.f32 %v1225, %v3409
        %v3420 = vmul.f32 %v1226, %v3412
        %v3421 = vmul.f32 %v1227, %v3411
        %v3422 = vmul.f32 %v3301, %v3409
        %v3423 = vmul.f32 %v3302, %v3412
        %v3424 = vmul.f32 %v3323, %v3411
        %3434 = vrot.lane.b32.xlu0 %v3416, 32
        %v3435 = vpop.permute.xlu0 %3434
        %3436 = vrot.lane.b32.xlu0 %v3417, 32
        %v3437 = vpop.permute.xlu0 %3436
        %3438 = vrot.lane.b32.xlu0 %v3418, 32
        %v3439 = vpop.permute.xlu0 %3438
        %3440 = vrot.lane.b32.xlu0 %v3419, 32
        %v3441 = vpop.permute.xlu0 %3440
        %3442 = vrot.lane.b32.xlu0 %v3420, 32
        %v3443 = vpop.permute.xlu0 %3442
        %3444 = vrot.lane.b32.xlu0 %v3421, 32
        %v3445 = vpop.permute.xlu0 %3444
        %3446 = vrot.lane.b32.xlu0 %v3422, 32
        %v3447 = vpop.permute.xlu0 %3446
        %3448 = vrot.lane.b32.xlu0 %v3423, 32
        %v3449 = vpop.permute.xlu0 %3448
        %3450 = vrot.lane.b32.xlu0 %v3424, 32
        %v3451 = vpop.permute.xlu0 %3450
        %v3452 = vsel %vm331, %v3435, %v3437
        %v3453 = vsel %vm331, %v3437, %v3439
        %v3454 = vsel %vm331, %v3441, %v3443
        %v3455 = vsel %vm331, %v3443, %v3445
        %v3456 = vsel %vm331, %v3447, %v3449
        %v3457 = vsel %vm331, %v3449, %v3451
        %v3464 = vadd.f32 %v3391, %v3452
        %v3465 = vadd.f32 %v3392, %v3453
        %v3466 = vadd.f32 %v3393, %v3454
        %v3467 = vadd.f32 %v3394, %v3455
        %v3468 = vadd.f32 %v3395, %v3456
        %v3469 = vadd.f32 %v3396, %v3457
        %v3470 = vld [vmem:[#allocation2 + $0x18] sm:$0xf8]
        %v3471 = vld [vmem:[#allocation2 + $0x68] sm:$0x7]
        %s3472 = scalar_lea.vmem [#allocation4], 82
        %v3473 = vld [vmem:[%s3472] ss:$8 sm:$0x3]
        %v3475 = vlaneseq
        %v3476 = vshrl.u32 %v3475, 7
        %v3477 = vsub.s32 0, %v3476
        %v3478 = vrot.slane %v3473, %v3477
        %v3479 = vlaneseq
        %v3480 = vshrl.u32 %v3479, 7
        %v3481 = vsub.s32 1, %v3480
        %v3482 = vrot.slane %v3473, %v3481
        %3483 = vrot.lane.b32.xlu0 %v3478, 16
        %v3484 = vpop.permute.xlu0 %3483
        %3485 = vrot.lane.b32.xlu0 %v3482, 16
        %v3486 = vpop.permute.xlu0 %3485
        %v3487 = vsel %vm377, %v3484, %v3486
        %v3491 = vmul.f32 %v3300, %v3484
        %v3492 = vmul.f32 %v3322, %v3487
        %v3493 = vmul.f32 %v3470, %v3486
        %v3494 = vmul.f32 %v437, %v3484
        %v3495 = vmul.f32 %v438, %v3487
        %v3496 = vmul.f32 %v439, %v3486
        %v3497 = vmul.f32 %v3302, %v3484
        %v3498 = vmul.f32 %v3323, %v3487
        %v3499 = vmul.f32 %v3471, %v3486
        %3509 = vrot.lane.b32.xlu0 %v3491, 112
        %v3510 = vpop.permute.xlu0 %3509
        %3511 = vrot.lane.b32.xlu0 %v3492, 112
        %v3512 = vpop.permute.xlu0 %3511
        %3513 = vrot.lane.b32.xlu0 %v3493, 112
        %v3514 = vpop.permute.xlu0 %3513
        %3515 = vrot.lane.b32.xlu0 %v3494, 112
        %v3516 = vpop.permute.xlu0 %3515
        %3517 = vrot.lane.b32.xlu0 %v3495, 112
        %v3518 = vpop.permute.xlu0 %3517
        %3519 = vrot.lane.b32.xlu0 %v3496, 112
        %v3520 = vpop.permute.xlu0 %3519
        %3521 = vrot.lane.b32.xlu0 %v3497, 112
        %v3522 = vpop.permute.xlu0 %3521
        %3523 = vrot.lane.b32.xlu0 %v3498, 112
        %v3524 = vpop.permute.xlu0 %3523
        %3525 = vrot.lane.b32.xlu0 %v3499, 112
        %v3526 = vpop.permute.xlu0 %3525
        %v3527 = vsel %vm1275, %v3510, %v3512
        %v3528 = vsel %vm1275, %v3512, %v3514
        %v3529 = vsel %vm1275, %v3516, %v3518
        %v3530 = vsel %vm1275, %v3518, %v3520
        %v3531 = vsel %vm1275, %v3522, %v3524
        %v3532 = vsel %vm1275, %v3524, %v3526
        %v3539 = vadd.f32 %v3464, %v3527
        %v3540 = vadd.f32 %v3465, %v3528
        %v3541 = vadd.f32 %v3466, %v3529
        %v3542 = vadd.f32 %v3467, %v3530
        %v3543 = vadd.f32 %v3468, %v3531
        %v3544 = vadd.f32 %v3469, %v3532
        %s3545 = scalar_lea.vmem [#allocation4], 83
        %v3546 = vld [vmem:[%s3545] ss:$8 sm:$0x3]
        %v3548 = vlaneseq
        %v3549 = vshrl.u32 %v3548, 7
        %v3550 = vsub.s32 0, %v3549
        %v3551 = vrot.slane %v3546, %v3550
        %v3552 = vlaneseq
        %v3553 = vshrl.u32 %v3552, 7
        %v3554 = vsub.s32 1, %v3553
        %v3555 = vrot.slane %v3546, %v3554
        %3556 = vrot.lane.b32.xlu0 %v3551, 64
        %v3557 = vpop.permute.xlu0 %3556
        %3558 = vrot.lane.b32.xlu0 %v3555, 64
        %v3559 = vpop.permute.xlu0 %3558
        %v3560 = vsel %vm1398, %v3557, %v3559
        %v3564 = vmul.f32 %v3300, %v3557
        %v3565 = vmul.f32 %v3322, %v3560
        %v3566 = vmul.f32 %v3470, %v3559
        %v3567 = vmul.f32 %v437, %v3557
        %v3568 = vmul.f32 %v438, %v3560
        %v3569 = vmul.f32 %v439, %v3559
        %v3570 = vmul.f32 %v3302, %v3557
        %v3571 = vmul.f32 %v3323, %v3560
        %v3572 = vmul.f32 %v3471, %v3559
        %3582 = vrot.lane.b32.xlu0 %v3564, 64
        %v3583 = vpop.permute.xlu0 %3582
        %3584 = vrot.lane.b32.xlu0 %v3565, 64
        %v3585 = vpop.permute.xlu0 %3584
        %3586 = vrot.lane.b32.xlu0 %v3566, 64
        %v3587 = vpop.permute.xlu0 %3586
        %3588 = vrot.lane.b32.xlu0 %v3567, 64
        %v3589 = vpop.permute.xlu0 %3588
        %3590 = vrot.lane.b32.xlu0 %v3568, 64
        %v3591 = vpop.permute.xlu0 %3590
        %3592 = vrot.lane.b32.xlu0 %v3569, 64
        %v3593 = vpop.permute.xlu0 %3592
        %3594 = vrot.lane.b32.xlu0 %v3570, 64
        %v3595 = vpop.permute.xlu0 %3594
        %3596 = vrot.lane.b32.xlu0 %v3571, 64
        %v3597 = vpop.permute.xlu0 %3596
        %3598 = vrot.lane.b32.xlu0 %v3572, 64
        %v3599 = vpop.permute.xlu0 %3598
        %v3600 = vsel %vm1398, %v3583, %v3585
        %v3601 = vsel %vm1398, %v3585, %v3587
        %v3602 = vsel %vm1398, %v3589, %v3591
        %v3603 = vsel %vm1398, %v3591, %v3593
        %v3604 = vsel %vm1398, %v3595, %v3597
        %v3605 = vsel %vm1398, %v3597, %v3599
        %v3612 = vadd.f32 %v3539, %v3600
        %v3613 = vadd.f32 %v3540, %v3601
        %v3614 = vadd.f32 %v3541, %v3602
        %v3615 = vadd.f32 %v3542, %v3603
        %v3616 = vadd.f32 %v3543, %v3604
        %v3617 = vadd.f32 %v3544, %v3605
        %s3618 = scalar_lea.vmem [#allocation4], 84
        %v3619 = vld [vmem:[%s3618] ss:$8 sm:$0x3]
        %v3621 = vlaneseq
        %v3622 = vshrl.u32 %v3621, 7
        %v3623 = vsub.s32 0, %v3622
        %v3624 = vrot.slane %v3619, %v3623
        %v3625 = vlaneseq
        %v3626 = vshrl.u32 %v3625, 7
        %v3627 = vsub.s32 1, %v3626
        %v3628 = vrot.slane %v3619, %v3627
        %3629 = vrot.lane.b32.xlu0 %v3624, 112
        %v3630 = vpop.permute.xlu0 %3629
        %3631 = vrot.lane.b32.xlu0 %v3628, 112
        %v3632 = vpop.permute.xlu0 %3631
        %v3633 = vsel %vm1275, %v3630, %v3632
        %v3637 = vmul.f32 %v3300, %v3630
        %v3638 = vmul.f32 %v3322, %v3633
        %v3639 = vmul.f32 %v3470, %v3632
        %v3640 = vmul.f32 %v437, %v3630
        %v3641 = vmul.f32 %v438, %v3633
        %v3642 = vmul.f32 %v439, %v3632
        %v3643 = vmul.f32 %v3302, %v3630
        %v3644 = vmul.f32 %v3323, %v3633
        %v3645 = vmul.f32 %v3471, %v3632
        %3655 = vrot.lane.b32.xlu0 %v3637, 16
        %v3656 = vpop.permute.xlu0 %3655
        %3657 = vrot.lane.b32.xlu0 %v3638, 16
        %v3658 = vpop.permute.xlu0 %3657
        %3659 = vrot.lane.b32.xlu0 %v3639, 16
        %v3660 = vpop.permute.xlu0 %3659
        %3661 = vrot.lane.b32.xlu0 %v3640, 16
        %v3662 = vpop.permute.xlu0 %3661
        %3663 = vrot.lane.b32.xlu0 %v3641, 16
        %v3664 = vpop.permute.xlu0 %3663
        %3665 = vrot.lane.b32.xlu0 %v3642, 16
        %v3666 = vpop.permute.xlu0 %3665
        %3667 = vrot.lane.b32.xlu0 %v3643, 16
        %v3668 = vpop.permute.xlu0 %3667
        %3669 = vrot.lane.b32.xlu0 %v3644, 16
        %v3670 = vpop.permute.xlu0 %3669
        %3671 = vrot.lane.b32.xlu0 %v3645, 16
        %v3672 = vpop.permute.xlu0 %3671
        %v3673 = vsel %vm377, %v3656, %v3658
        %v3674 = vsel %vm377, %v3658, %v3660
        %v3675 = vsel %vm377, %v3662, %v3664
        %v3676 = vsel %vm377, %v3664, %v3666
        %v3677 = vsel %vm377, %v3668, %v3670
        %v3678 = vsel %vm377, %v3670, %v3672
        %v3685 = vadd.f32 %v3612, %v3673
        %v3686 = vadd.f32 %v3613, %v3674
        %v3687 = vadd.f32 %v3614, %v3675
        %v3688 = vadd.f32 %v3615, %v3676
        %v3689 = vadd.f32 %v3616, %v3677
        %v3690 = vadd.f32 %v3617, %v3678
        %v3691 = vld [vmem:[#allocation2 + $0x20] sm:$0xf8]
        %v3692 = vld [vmem:[#allocation2 + $0x70] sm:$0x7]
        %s3693 = scalar_lea.vmem [#allocation4], 85
        %v3694 = vld [vmem:[%s3693] ss:$8 sm:$0x3]
        %v3696 = vlaneseq
        %v3697 = vshrl.u32 %v3696, 7
        %v3698 = vsub.s32 0, %v3697
        %v3699 = vrot.slane %v3694, %v3698
        %v3700 = vlaneseq
        %v3701 = vshrl.u32 %v3700, 7
        %v3702 = vsub.s32 1, %v3701
        %v3703 = vrot.slane %v3694, %v3702
        %3704 = vrot.lane.b32.xlu0 %v3699, 32
        %v3705 = vpop.permute.xlu0 %3704
        %3706 = vrot.lane.b32.xlu0 %v3703, 32
        %v3707 = vpop.permute.xlu0 %3706
        %v3708 = vsel %vm331, %v3705, %v3707
        %v3712 = vmul.f32 %v3322, %v3705
        %v3713 = vmul.f32 %v3470, %v3708
        %v3714 = vmul.f32 %v3691, %v3707
        %v3715 = vmul.f32 %v1227, %v3705
        %v3716 = vmul.f32 %v3076, %v3708
        %v3717 = vmul.f32 %v3243, %v3707
        %v3718 = vmul.f32 %v3323, %v3705
        %v3719 = vmul.f32 %v3471, %v3708
        %v3720 = vmul.f32 %v3692, %v3707
        %3730 = vrot.lane.b32.xlu0 %v3712, 96
        %v3731 = vpop.permute.xlu0 %3730
        %3732 = vrot.lane.b32.xlu0 %v3713, 96
        %v3733 = vpop.permute.xlu0 %3732
        %3734 = vrot.lane.b32.xlu0 %v3714, 96
        %v3735 = vpop.permute.xlu0 %3734
        %3736 = vrot.lane.b32.xlu0 %v3715, 96
        %v3737 = vpop.permute.xlu0 %3736
        %3738 = vrot.lane.b32.xlu0 %v3716, 96
        %v3739 = vpop.permute.xlu0 %3738
        %3740 = vrot.lane.b32.xlu0 %v3717, 96
        %v3741 = vpop.permute.xlu0 %3740
        %3742 = vrot.lane.b32.xlu0 %v3718, 96
        %v3743 = vpop.permute.xlu0 %3742
        %3744 = vrot.lane.b32.xlu0 %v3719, 96
        %v3745 = vpop.permute.xlu0 %3744
        %3746 = vrot.lane.b32.xlu0 %v3720, 96
        %v3747 = vpop.permute.xlu0 %3746
        %v3748 = vsel %vm1316, %v3731, %v3733
        %v3749 = vsel %vm1316, %v3733, %v3735
        %v3750 = vsel %vm1316, %v3737, %v3739
        %v3751 = vsel %vm1316, %v3739, %v3741
        %v3752 = vsel %vm1316, %v3743, %v3745
        %v3753 = vsel %vm1316, %v3745, %v3747
        %v3760 = vadd.f32 %v3685, %v3748
        %v3761 = vadd.f32 %v3686, %v3749
        %v3762 = vadd.f32 %v3687, %v3750
        %v3763 = vadd.f32 %v3688, %v3751
        %v3764 = vadd.f32 %v3689, %v3752
        %v3765 = vadd.f32 %v3690, %v3753
        %v3766 = vld [vmem:[#allocation2] sm:$0xc0]
        %v3767 = vld [vmem:[#allocation2 + $0x8] sm:$0xc0]
        %v3768 = vld [vmem:[#allocation2 + $0x50] sm:$0x3f]
        %v3769 = vld [vmem:[#allocation2 + $0x58] sm:$0x3f]
        %s3770 = scalar_lea.vmem [#allocation4], 86
        %v3771 = vld [vmem:[%s3770] ss:$8 sm:$0x3]
        %v3773 = vlaneseq
        %v3774 = vshrl.u32 %v3773, 7
        %v3775 = vsub.s32 0, %v3774
        %v3776 = vrot.slane %v3771, %v3775
        %v3777 = vlaneseq
        %v3778 = vshrl.u32 %v3777, 7
        %v3779 = vsub.s32 1, %v3778
        %v3780 = vrot.slane %v3771, %v3779
        %v3783 = vmul.f32 %v3766, %v3776
        %v3784 = vmul.f32 %v3767, %v3780
        %v3785 = vmul.f32 %v1225, %v3776
        %v3786 = vmul.f32 %v1226, %v3780
        %v3787 = vmul.f32 %v3768, %v3776
        %v3788 = vmul.f32 %v3769, %v3780
        %v3789 = vld [vmem:[#allocation2 + $0x10] sm:$0xc0]
        %v3790 = vld [vmem:[#allocation2 + $0x60] sm:$0x3f]
        %s3791 = scalar_lea.vmem [#allocation4], 87
        %v3792 = vld [vmem:[%s3791] ss:$8 sm:$0x3]
        %v3794 = vlaneseq
        %v3795 = vshrl.u32 %v3794, 7
        %v3796 = vsub.s32 0, %v3795
        %v3797 = vrot.slane %v3792, %v3796
        %v3798 = vlaneseq
        %v3799 = vshrl.u32 %v3798, 7
        %v3800 = vsub.s32 1, %v3799
        %v3801 = vrot.slane %v3792, %v3800
        %3802 = vrot.lane.b32.xlu0 %v3797, 48
        %v3803 = vpop.permute.xlu0 %3802
        %3804 = vrot.lane.b32.xlu0 %v3801, 48
        %v3805 = vpop.permute.xlu0 %3804
        %v3806 = vsel %vm1438, %v3803, %v3805
        %v3810 = vmul.f32 %v3766, %v3803
        %v3811 = vmul.f32 %v3767, %v3806
        %v3812 = vmul.f32 %v3789, %v3805
        %v3813 = vmul.f32 %v1225, %v3803
        %v3814 = vmul.f32 %v1226, %v3806
        %v3815 = vmul.f32 %v1227, %v3805
        %v3816 = vmul.f32 %v3768, %v3803
        %v3817 = vmul.f32 %v3769, %v3806
        %v3818 = vmul.f32 %v3790, %v3805
        %3828 = vrot.lane.b32.xlu0 %v3810, 80
        %v3829 = vpop.permute.xlu0 %3828
        %3830 = vrot.lane.b32.xlu0 %v3811, 80
        %v3831 = vpop.permute.xlu0 %3830
        %3832 = vrot.lane.b32.xlu0 %v3812, 80
        %v3833 = vpop.permute.xlu0 %3832
        %3834 = vrot.lane.b32.xlu0 %v3813, 80
        %v3835 = vpop.permute.xlu0 %3834
        %3836 = vrot.lane.b32.xlu0 %v3814, 80
        %v3837 = vpop.permute.xlu0 %3836
        %3838 = vrot.lane.b32.xlu0 %v3815, 80
        %v3839 = vpop.permute.xlu0 %3838
        %3840 = vrot.lane.b32.xlu0 %v3816, 80
        %v3841 = vpop.permute.xlu0 %3840
        %3842 = vrot.lane.b32.xlu0 %v3817, 80
        %v3843 = vpop.permute.xlu0 %3842
        %3844 = vrot.lane.b32.xlu0 %v3818, 80
        %v3845 = vpop.permute.xlu0 %3844
        %v3846 = vsel %vm1246, %v3829, %v3831
        %v3847 = vsel %vm1246, %v3831, %v3833
        %v3848 = vsel %vm1246, %v3835, %v3837
        %v3849 = vsel %vm1246, %v3837, %v3839
        %v3850 = vsel %vm1246, %v3841, %v3843
        %v3851 = vsel %vm1246, %v3843, %v3845
        %v3858 = vadd.f32 %v3783, %v3846
        %v3859 = vadd.f32 %v3784, %v3847
        %v3860 = vadd.f32 %v3785, %v3848
        %v3861 = vadd.f32 %v3786, %v3849
        %v3862 = vadd.f32 %v3787, %v3850
        %v3863 = vadd.f32 %v3788, %v3851
        %s3864 = scalar_lea.vmem [#allocation4], 96
        %v3865 = vld [vmem:[%s3864] ss:$8 sm:$0x3]
        %v3867 = vlaneseq
        %v3868 = vshrl.u32 %v3867, 7
        %v3869 = vsub.s32 0, %v3868
        %v3870 = vrot.slane %v3865, %v3869
        %v3871 = vlaneseq
        %v3872 = vshrl.u32 %v3871, 7
        %v3873 = vsub.s32 1, %v3872
        %v3874 = vrot.slane %v3865, %v3873
        %3875 = vrot.lane.b32.xlu0 %v3870, 96
        %v3876 = vpop.permute.xlu0 %3875
        %3877 = vrot.lane.b32.xlu0 %v3874, 96
        %v3878 = vpop.permute.xlu0 %3877
        %v3879 = vsel %vm1316, %v3876, %v3878
        %v3883 = vmul.f32 %v3766, %v3876
        %v3884 = vmul.f32 %v3767, %v3879
        %v3885 = vmul.f32 %v3789, %v3878
        %v3886 = vmul.f32 %v1225, %v3876
        %v3887 = vmul.f32 %v1226, %v3879
        %v3888 = vmul.f32 %v1227, %v3878
        %v3889 = vmul.f32 %v3768, %v3876
        %v3890 = vmul.f32 %v3769, %v3879
        %v3891 = vmul.f32 %v3790, %v3878
        %3901 = vrot.lane.b32.xlu0 %v3883, 32
        %v3902 = vpop.permute.xlu0 %3901
        %3903 = vrot.lane.b32.xlu0 %v3884, 32
        %v3904 = vpop.permute.xlu0 %3903
        %3905 = vrot.lane.b32.xlu0 %v3885, 32
        %v3906 = vpop.permute.xlu0 %3905
        %3907 = vrot.lane.b32.xlu0 %v3886, 32
        %v3908 = vpop.permute.xlu0 %3907
        %3909 = vrot.lane.b32.xlu0 %v3887, 32
        %v3910 = vpop.permute.xlu0 %3909
        %3911 = vrot.lane.b32.xlu0 %v3888, 32
        %v3912 = vpop.permute.xlu0 %3911
        %3913 = vrot.lane.b32.xlu0 %v3889, 32
        %v3914 = vpop.permute.xlu0 %3913
        %3915 = vrot.lane.b32.xlu0 %v3890, 32
        %v3916 = vpop.permute.xlu0 %3915
        %3917 = vrot.lane.b32.xlu0 %v3891, 32
        %v3918 = vpop.permute.xlu0 %3917
        %v3919 = vsel %vm331, %v3902, %v3904
        %v3920 = vsel %vm331, %v3904, %v3906
        %v3921 = vsel %vm331, %v3908, %v3910
        %v3922 = vsel %vm331, %v3910, %v3912
        %v3923 = vsel %vm331, %v3914, %v3916
        %v3924 = vsel %vm331, %v3916, %v3918
        %v3931 = vadd.f32 %v3858, %v3919
        %v3932 = vadd.f32 %v3859, %v3920
        %v3933 = vadd.f32 %v3860, %v3921
        %v3934 = vadd.f32 %v3861, %v3922
        %v3935 = vadd.f32 %v3862, %v3923
        %v3936 = vadd.f32 %v3863, %v3924
        %v3937 = vld [vmem:[#allocation2 + $0x18] sm:$0xc0]
        %v3938 = vld [vmem:[#allocation2 + $0x68] sm:$0x3f]
        %s3939 = scalar_lea.vmem [#allocation4], 97
        %v3940 = vld [vmem:[%s3939] ss:$8 sm:$0x3]
        %v3942 = vlaneseq
        %v3943 = vshrl.u32 %v3942, 7
        %v3944 = vsub.s32 0, %v3943
        %v3945 = vrot.slane %v3940, %v3944
        %v3946 = vlaneseq
        %v3947 = vshrl.u32 %v3946, 7
        %v3948 = vsub.s32 1, %v3947
        %v3949 = vrot.slane %v3940, %v3948
        %3950 = vrot.lane.b32.xlu0 %v3945, 16
        %v3951 = vpop.permute.xlu0 %3950
        %3952 = vrot.lane.b32.xlu0 %v3949, 16
        %v3953 = vpop.permute.xlu0 %3952
        %v3954 = vsel %vm377, %v3951, %v3953
        %v3958 = vmul.f32 %v3767, %v3951
        %v3959 = vmul.f32 %v3789, %v3954
        %v3960 = vmul.f32 %v3937, %v3953
        %v3961 = vmul.f32 %v437, %v3951
        %v3962 = vmul.f32 %v438, %v3954
        %v3963 = vmul.f32 %v439, %v3953
        %v3964 = vmul.f32 %v3769, %v3951
        %v3965 = vmul.f32 %v3790, %v3954
        %v3966 = vmul.f32 %v3938, %v3953
        %3976 = vrot.lane.b32.xlu0 %v3958, 112
        %v3977 = vpop.permute.xlu0 %3976
        %3978 = vrot.lane.b32.xlu0 %v3959, 112
        %v3979 = vpop.permute.xlu0 %3978
        %3980 = vrot.lane.b32.xlu0 %v3960, 112
        %v3981 = vpop.permute.xlu0 %3980
        %3982 = vrot.lane.b32.xlu0 %v3961, 112
        %v3983 = vpop.permute.xlu0 %3982
        %3984 = vrot.lane.b32.xlu0 %v3962, 112
        %v3985 = vpop.permute.xlu0 %3984
        %3986 = vrot.lane.b32.xlu0 %v3963, 112
        %v3987 = vpop.permute.xlu0 %3986
        %3988 = vrot.lane.b32.xlu0 %v3964, 112
        %v3989 = vpop.permute.xlu0 %3988
        %3990 = vrot.lane.b32.xlu0 %v3965, 112
        %v3991 = vpop.permute.xlu0 %3990
        %3992 = vrot.lane.b32.xlu0 %v3966, 112
        %v3993 = vpop.permute.xlu0 %3992
        %v3994 = vsel %vm1275, %v3977, %v3979
        %v3995 = vsel %vm1275, %v3979, %v3981
        %v3996 = vsel %vm1275, %v3983, %v3985
        %v3997 = vsel %vm1275, %v3985, %v3987
        %v3998 = vsel %vm1275, %v3989, %v3991
        %v3999 = vsel %vm1275, %v3991, %v3993
        %v4006 = vadd.f32 %v3931, %v3994
        %v4007 = vadd.f32 %v3932, %v3995
        %v4008 = vadd.f32 %v3933, %v3996
        %v4009 = vadd.f32 %v3934, %v3997
        %v4010 = vadd.f32 %v3935, %v3998
        %v4011 = vadd.f32 %v3936, %v3999
        %s4012 = scalar_lea.vmem [#allocation4], 98
        %v4013 = vld [vmem:[%s4012] ss:$8 sm:$0x3]
        %v4015 = vlaneseq
        %v4016 = vshrl.u32 %v4015, 7
        %v4017 = vsub.s32 0, %v4016
        %v4018 = vrot.slane %v4013, %v4017
        %v4019 = vlaneseq
        %v4020 = vshrl.u32 %v4019, 7
        %v4021 = vsub.s32 1, %v4020
        %v4022 = vrot.slane %v4013, %v4021
        %4023 = vrot.lane.b32.xlu0 %v4018, 64
        %v4024 = vpop.permute.xlu0 %4023
        %4025 = vrot.lane.b32.xlu0 %v4022, 64
        %v4026 = vpop.permute.xlu0 %4025
        %v4027 = vsel %vm1398, %v4024, %v4026
        %v4031 = vmul.f32 %v3767, %v4024
        %v4032 = vmul.f32 %v3789, %v4027
        %v4033 = vmul.f32 %v3937, %v4026
        %v4034 = vmul.f32 %v437, %v4024
        %v4035 = vmul.f32 %v438, %v4027
        %v4036 = vmul.f32 %v439, %v4026
        %v4037 = vmul.f32 %v3769, %v4024
        %v4038 = vmul.f32 %v3790, %v4027
        %v4039 = vmul.f32 %v3938, %v4026
        %4049 = vrot.lane.b32.xlu0 %v4031, 64
        %v4050 = vpop.permute.xlu0 %4049
        %4051 = vrot.lane.b32.xlu0 %v4032, 64
        %v4052 = vpop.permute.xlu0 %4051
        %4053 = vrot.lane.b32.xlu0 %v4033, 64
        %v4054 = vpop.permute.xlu0 %4053
        %4055 = vrot.lane.b32.xlu0 %v4034, 64
        %v4056 = vpop.permute.xlu0 %4055
        %4057 = vrot.lane.b32.xlu0 %v4035, 64
        %v4058 = vpop.permute.xlu0 %4057
        %4059 = vrot.lane.b32.xlu0 %v4036, 64
        %v4060 = vpop.permute.xlu0 %4059
        %4061 = vrot.lane.b32.xlu0 %v4037, 64
        %v4062 = vpop.permute.xlu0 %4061
        %4063 = vrot.lane.b32.xlu0 %v4038, 64
        %v4064 = vpop.permute.xlu0 %4063
        %4065 = vrot.lane.b32.xlu0 %v4039, 64
        %v4066 = vpop.permute.xlu0 %4065
        %v4067 = vsel %vm1398, %v4050, %v4052
        %v4068 = vsel %vm1398, %v4052, %v4054
        %v4069 = vsel %vm1398, %v4056, %v4058
        %v4070 = vsel %vm1398, %v4058, %v4060
        %v4071 = vsel %vm1398, %v4062, %v4064
        %v4072 = vsel %vm1398, %v4064, %v4066
        %v4079 = vadd.f32 %v4006, %v4067
        %v4080 = vadd.f32 %v4007, %v4068
        %v4081 = vadd.f32 %v4008, %v4069
        %v4082 = vadd.f32 %v4009, %v4070
        %v4083 = vadd.f32 %v4010, %v4071
        %v4084 = vadd.f32 %v4011, %v4072
        %s4085 = scalar_lea.vmem [#allocation4], 99
        %v4086 = vld [vmem:[%s4085] ss:$8 sm:$0x3]
        %v4088 = vlaneseq
        %v4089 = vshrl.u32 %v4088, 7
        %v4090 = vsub.s32 0, %v4089
        %v4091 = vrot.slane %v4086, %v4090
        %v4092 = vlaneseq
        %v4093 = vshrl.u32 %v4092, 7
        %v4094 = vsub.s32 1, %v4093
        %v4095 = vrot.slane %v4086, %v4094
        %4096 = vrot.lane.b32.xlu0 %v4091, 112
        %v4097 = vpop.permute.xlu0 %4096
        %4098 = vrot.lane.b32.xlu0 %v4095, 112
        %v4099 = vpop.permute.xlu0 %4098
        %v4100 = vsel %vm1275, %v4097, %v4099
        %v4104 = vmul.f32 %v3767, %v4097
        %v4105 = vmul.f32 %v3789, %v4100
        %v4106 = vmul.f32 %v3937, %v4099
        %v4107 = vmul.f32 %v437, %v4097
        %v4108 = vmul.f32 %v438, %v4100
        %v4109 = vmul.f32 %v439, %v4099
        %v4110 = vmul.f32 %v3769, %v4097
        %v4111 = vmul.f32 %v3790, %v4100
        %v4112 = vmul.f32 %v3938, %v4099
        %4122 = vrot.lane.b32.xlu0 %v4104, 16
        %v4123 = vpop.permute.xlu0 %4122
        %4124 = vrot.lane.b32.xlu0 %v4105, 16
        %v4125 = vpop.permute.xlu0 %4124
        %4126 = vrot.lane.b32.xlu0 %v4106, 16
        %v4127 = vpop.permute.xlu0 %4126
        %4128 = vrot.lane.b32.xlu0 %v4107, 16
        %v4129 = vpop.permute.xlu0 %4128
        %4130 = vrot.lane.b32.xlu0 %v4108, 16
        %v4131 = vpop.permute.xlu0 %4130
        %4132 = vrot.lane.b32.xlu0 %v4109, 16
        %v4133 = vpop.permute.xlu0 %4132
        %4134 = vrot.lane.b32.xlu0 %v4110, 16
        %v4135 = vpop.permute.xlu0 %4134
        %4136 = vrot.lane.b32.xlu0 %v4111, 16
        %v4137 = vpop.permute.xlu0 %4136
        %4138 = vrot.lane.b32.xlu0 %v4112, 16
        %v4139 = vpop.permute.xlu0 %4138
        %v4140 = vsel %vm377, %v4123, %v4125
        %v4141 = vsel %vm377, %v4125, %v4127
        %v4142 = vsel %vm377, %v4129, %v4131
        %v4143 = vsel %vm377, %v4131, %v4133
        %v4144 = vsel %vm377, %v4135, %v4137
        %v4145 = vsel %vm377, %v4137, %v4139
        %v4152 = vadd.f32 %v4079, %v4140
        %v4153 = vadd.f32 %v4080, %v4141
        %v4154 = vadd.f32 %v4081, %v4142
        %v4155 = vadd.f32 %v4082, %v4143
        %v4156 = vadd.f32 %v4083, %v4144
        %v4157 = vadd.f32 %v4084, %v4145
        %v4158 = vld [vmem:[#allocation2 + $0x20] sm:$0xc0]
        %v4159 = vld [vmem:[#allocation2 + $0x70] sm:$0x3f]
        %s4160 = scalar_lea.vmem [#allocation4], 100
        %v4161 = vld [vmem:[%s4160] ss:$8 sm:$0x3]
        %v4163 = vlaneseq
        %v4164 = vshrl.u32 %v4163, 7
        %v4165 = vsub.s32 0, %v4164
        %v4166 = vrot.slane %v4161, %v4165
        %v4167 = vlaneseq
        %v4168 = vshrl.u32 %v4167, 7
        %v4169 = vsub.s32 1, %v4168
        %v4170 = vrot.slane %v4161, %v4169
        %4171 = vrot.lane.b32.xlu0 %v4166, 32
        %v4172 = vpop.permute.xlu0 %4171
        %4173 = vrot.lane.b32.xlu0 %v4170, 32
        %v4174 = vpop.permute.xlu0 %4173
        %v4175 = vsel %vm331, %v4172, %v4174
        %v4179 = vmul.f32 %v3789, %v4172
        %v4180 = vmul.f32 %v3937, %v4175
        %v4181 = vmul.f32 %v4158, %v4174
        %v4182 = vmul.f32 %v1227, %v4172
        %v4183 = vmul.f32 %v3076, %v4175
        %v4184 = vmul.f32 %v3243, %v4174
        %v4185 = vmul.f32 %v3790, %v4172
        %v4186 = vmul.f32 %v3938, %v4175
        %v4187 = vmul.f32 %v4159, %v4174
        %4197 = vrot.lane.b32.xlu0 %v4179, 96
        %v4198 = vpop.permute.xlu0 %4197
        %4199 = vrot.lane.b32.xlu0 %v4180, 96
        %v4200 = vpop.permute.xlu0 %4199
        %4201 = vrot.lane.b32.xlu0 %v4181, 96
        %v4202 = vpop.permute.xlu0 %4201
        %4203 = vrot.lane.b32.xlu0 %v4182, 96
        %v4204 = vpop.permute.xlu0 %4203
        %4205 = vrot.lane.b32.xlu0 %v4183, 96
        %v4206 = vpop.permute.xlu0 %4205
        %4207 = vrot.lane.b32.xlu0 %v4184, 96
        %v4208 = vpop.permute.xlu0 %4207
        %4209 = vrot.lane.b32.xlu0 %v4185, 96
        %v4210 = vpop.permute.xlu0 %4209
        %4211 = vrot.lane.b32.xlu0 %v4186, 96
        %v4212 = vpop.permute.xlu0 %4211
        %4213 = vrot.lane.b32.xlu0 %v4187, 96
        %v4214 = vpop.permute.xlu0 %4213
        %v4215 = vsel %vm1316, %v4198, %v4200
        %v4216 = vsel %vm1316, %v4200, %v4202
        %v4217 = vsel %vm1316, %v4204, %v4206
        %v4218 = vsel %vm1316, %v4206, %v4208
        %v4219 = vsel %vm1316, %v4210, %v4212
        %v4220 = vsel %vm1316, %v4212, %v4214
        %v4227 = vadd.f32 %v4152, %v4215
        %v4228 = vadd.f32 %v4153, %v4216
        %v4229 = vadd.f32 %v4154, %v4217
        %v4230 = vadd.f32 %v4155, %v4218
        %v4231 = vadd.f32 %v4156, %v4219
        %v4232 = vadd.f32 %v4157, %v4220
        %s4233 = scalar_lea.vmem [#allocation4], 101
        %v4234 = vld [vmem:[%s4233] ss:$8 sm:$0x3]
        %v4236 = vlaneseq
        %v4237 = vshrl.u32 %v4236, 7
        %v4238 = vsub.s32 0, %v4237
        %v4239 = vrot.slane %v4234, %v4238
        %v4240 = vlaneseq
        %v4241 = vshrl.u32 %v4240, 7
        %v4242 = vsub.s32 1, %v4241
        %v4243 = vrot.slane %v4234, %v4242
        %v4246 = vmul.f32 %v1850, %v4239
        %v4247 = vmul.f32 %v1851, %v4243
        %v4248 = vmul.f32 %v1853, %v4239
        %v4249 = vmul.f32 %v1854, %v4243
        %v4250 = vmul.f32 %v1856, %v4239
        %v4251 = vmul.f32 %v1857, %v4243
        %s4252 = scalar_lea.vmem [#allocation4], 102
        %v4253 = vld [vmem:[%s4252] ss:$8 sm:$0x3]
        %v4255 = vlaneseq
        %v4256 = vshrl.u32 %v4255, 7
        %v4257 = vsub.s32 0, %v4256
        %v4258 = vrot.slane %v4253, %v4257
        %v4259 = vlaneseq
        %v4260 = vshrl.u32 %v4259, 7
        %v4261 = vsub.s32 1, %v4260
        %v4262 = vrot.slane %v4253, %v4261
        %4263 = vrot.lane.b32.xlu0 %v4258, 48
        %v4264 = vpop.permute.xlu0 %4263
        %4265 = vrot.lane.b32.xlu0 %v4262, 48
        %v4266 = vpop.permute.xlu0 %4265
        %v4267 = vsel %vm1438, %v4264, %v4266
        %v4271 = vmul.f32 %v1850, %v4264
        %v4272 = vmul.f32 %v1851, %v4267
        %v4273 = vmul.f32 %v1852, %v4266
        %v4274 = vmul.f32 %v1853, %v4264
        %v4275 = vmul.f32 %v1854, %v4267
        %v4276 = vmul.f32 %v1855, %v4266
        %v4277 = vmul.f32 %v1856, %v4264
        %v4278 = vmul.f32 %v1857, %v4267
        %v4279 = vmul.f32 %v1858, %v4266
        %4289 = vrot.lane.b32.xlu0 %v4271, 80
        %v4290 = vpop.permute.xlu0 %4289
        %4291 = vrot.lane.b32.xlu0 %v4272, 80
        %v4292 = vpop.permute.xlu0 %4291
        %4293 = vrot.lane.b32.xlu0 %v4273, 80
        %v4294 = vpop.permute.xlu0 %4293
        %4295 = vrot.lane.b32.xlu0 %v4274, 80
        %v4296 = vpop.permute.xlu0 %4295
        %4297 = vrot.lane.b32.xlu0 %v4275, 80
        %v4298 = vpop.permute.xlu0 %4297
        %4299 = vrot.lane.b32.xlu0 %v4276, 80
        %v4300 = vpop.permute.xlu0 %4299
        %4301 = vrot.lane.b32.xlu0 %v4277, 80
        %v4302 = vpop.permute.xlu0 %4301
        %4303 = vrot.lane.b32.xlu0 %v4278, 80
        %v4304 = vpop.permute.xlu0 %4303
        %4305 = vrot.lane.b32.xlu0 %v4279, 80
        %v4306 = vpop.permute.xlu0 %4305
        %v4307 = vsel %vm1246, %v4290, %v4292
        %v4308 = vsel %vm1246, %v4292, %v4294
        %v4309 = vsel %vm1246, %v4296, %v4298
        %v4310 = vsel %vm1246, %v4298, %v4300
        %v4311 = vsel %vm1246, %v4302, %v4304
        %v4312 = vsel %vm1246, %v4304, %v4306
        %v4319 = vadd.f32 %v4246, %v4307
        %v4320 = vadd.f32 %v4247, %v4308
        %v4321 = vadd.f32 %v4248, %v4309
        %v4322 = vadd.f32 %v4249, %v4310
        %v4323 = vadd.f32 %v4250, %v4311
        %v4324 = vadd.f32 %v4251, %v4312
        %s4325 = scalar_lea.vmem [#allocation4], 103
        %v4326 = vld [vmem:[%s4325] ss:$8 sm:$0x3]
        %v4328 = vlaneseq
        %v4329 = vshrl.u32 %v4328, 7
        %v4330 = vsub.s32 0, %v4329
        %v4331 = vrot.slane %v4326, %v4330
        %v4332 = vlaneseq
        %v4333 = vshrl.u32 %v4332, 7
        %v4334 = vsub.s32 1, %v4333
        %v4335 = vrot.slane %v4326, %v4334
        %4336 = vrot.lane.b32.xlu0 %v4331, 96
        %v4337 = vpop.permute.xlu0 %4336
        %4338 = vrot.lane.b32.xlu0 %v4335, 96
        %v4339 = vpop.permute.xlu0 %4338
        %v4340 = vsel %vm1316, %v4337, %v4339
        %v4344 = vmul.f32 %v1850, %v4337
        %v4345 = vmul.f32 %v1851, %v4340
        %v4346 = vmul.f32 %v1852, %v4339
        %v4347 = vmul.f32 %v1853, %v4337
        %v4348 = vmul.f32 %v1854, %v4340
        %v4349 = vmul.f32 %v1855, %v4339
        %v4350 = vmul.f32 %v1856, %v4337
        %v4351 = vmul.f32 %v1857, %v4340
        %v4352 = vmul.f32 %v1858, %v4339
        %4362 = vrot.lane.b32.xlu0 %v4344, 32
        %v4363 = vpop.permute.xlu0 %4362
        %4364 = vrot.lane.b32.xlu0 %v4345, 32
        %v4365 = vpop.permute.xlu0 %4364
        %4366 = vrot.lane.b32.xlu0 %v4346, 32
        %v4367 = vpop.permute.xlu0 %4366
        %4368 = vrot.lane.b32.xlu0 %v4347, 32
        %v4369 = vpop.permute.xlu0 %4368
        %4370 = vrot.lane.b32.xlu0 %v4348, 32
        %v4371 = vpop.permute.xlu0 %4370
        %4372 = vrot.lane.b32.xlu0 %v4349, 32
        %v4373 = vpop.permute.xlu0 %4372
        %4374 = vrot.lane.b32.xlu0 %v4350, 32
        %v4375 = vpop.permute.xlu0 %4374
        %4376 = vrot.lane.b32.xlu0 %v4351, 32
        %v4377 = vpop.permute.xlu0 %4376
        %4378 = vrot.lane.b32.xlu0 %v4352, 32
        %v4379 = vpop.permute.xlu0 %4378
        %v4380 = vsel %vm331, %v4363, %v4365
        %v4381 = vsel %vm331, %v4365, %v4367
        %v4382 = vsel %vm331, %v4369, %v4371
        %v4383 = vsel %vm331, %v4371, %v4373
        %v4384 = vsel %vm331, %v4375, %v4377
        %v4385 = vsel %vm331, %v4377, %v4379
        %v4392 = vadd.f32 %v4319, %v4380
        %v4393 = vadd.f32 %v4320, %v4381
        %v4394 = vadd.f32 %v4321, %v4382
        %v4395 = vadd.f32 %v4322, %v4383
        %v4396 = vadd.f32 %v4323, %v4384
        %v4397 = vadd.f32 %v4324, %v4385
        %s4398 = scalar_lea.vmem [#allocation4], 112
        %v4399 = vld [vmem:[%s4398] ss:$8 sm:$0x3]
        %v4401 = vlaneseq
        %v4402 = vshrl.u32 %v4401, 7
        %v4403 = vsub.s32 0, %v4402
        %v4404 = vrot.slane %v4399, %v4403
        %v4405 = vlaneseq
        %v4406 = vshrl.u32 %v4405, 7
        %v4407 = vsub.s32 1, %v4406
        %v4408 = vrot.slane %v4399, %v4407
        %4409 = vrot.lane.b32.xlu0 %v4404, 16
        %v4410 = vpop.permute.xlu0 %4409
        %4411 = vrot.lane.b32.xlu0 %v4408, 16
        %v4412 = vpop.permute.xlu0 %4411
        %v4413 = vsel %vm377, %v4410, %v4412
        %v4417 = vmul.f32 %v515, %v4410
        %v4418 = vmul.f32 %v516, %v4413
        %v4419 = vmul.f32 %v517, %v4412
        %v4420 = vmul.f32 %v440, %v4410
        %v4421 = vmul.f32 %v441, %v4413
        %v4422 = vmul.f32 %v442, %v4412
        %v4423 = vmul.f32 %v518, %v4410
        %v4424 = vmul.f32 %v519, %v4413
        %v4425 = vmul.f32 %v520, %v4412
        %4435 = vrot.lane.b32.xlu0 %v4417, 112
        %v4436 = vpop.permute.xlu0 %4435
        %4437 = vrot.lane.b32.xlu0 %v4418, 112
        %v4438 = vpop.permute.xlu0 %4437
        %4439 = vrot.lane.b32.xlu0 %v4419, 112
        %v4440 = vpop.permute.xlu0 %4439
        %4441 = vrot.lane.b32.xlu0 %v4420, 112
        %v4442 = vpop.permute.xlu0 %4441
        %4443 = vrot.lane.b32.xlu0 %v4421, 112
        %v4444 = vpop.permute.xlu0 %4443
        %4445 = vrot.lane.b32.xlu0 %v4422, 112
        %v4446 = vpop.permute.xlu0 %4445
        %4447 = vrot.lane.b32.xlu0 %v4423, 112
        %v4448 = vpop.permute.xlu0 %4447
        %4449 = vrot.lane.b32.xlu0 %v4424, 112
        %v4450 = vpop.permute.xlu0 %4449
        %4451 = vrot.lane.b32.xlu0 %v4425, 112
        %v4452 = vpop.permute.xlu0 %4451
        %v4453 = vsel %vm1275, %v4436, %v4438
        %v4454 = vsel %vm1275, %v4438, %v4440
        %v4455 = vsel %vm1275, %v4442, %v4444
        %v4456 = vsel %vm1275, %v4444, %v4446
        %v4457 = vsel %vm1275, %v4448, %v4450
        %v4458 = vsel %vm1275, %v4450, %v4452
        %v4465 = vadd.f32 %v4392, %v4453
        %v4466 = vadd.f32 %v4393, %v4454
        %v4467 = vadd.f32 %v4394, %v4455
        %v4468 = vadd.f32 %v4395, %v4456
        %v4469 = vadd.f32 %v4396, %v4457
        %v4470 = vadd.f32 %v4397, %v4458
        %s4471 = scalar_lea.vmem [#allocation4], 113
        %v4472 = vld [vmem:[%s4471] ss:$8 sm:$0x3]
        %v4474 = vlaneseq
        %v4475 = vshrl.u32 %v4474, 7
        %v4476 = vsub.s32 0, %v4475
        %v4477 = vrot.slane %v4472, %v4476
        %v4478 = vlaneseq
        %v4479 = vshrl.u32 %v4478, 7
        %v4480 = vsub.s32 1, %v4479
        %v4481 = vrot.slane %v4472, %v4480
        %4482 = vrot.lane.b32.xlu0 %v4477, 64
        %v4483 = vpop.permute.xlu0 %4482
        %4484 = vrot.lane.b32.xlu0 %v4481, 64
        %v4485 = vpop.permute.xlu0 %4484
        %v4486 = vsel %vm1398, %v4483, %v4485
        %v4490 = vmul.f32 %v515, %v4483
        %v4491 = vmul.f32 %v516, %v4486
        %v4492 = vmul.f32 %v517, %v4485
        %v4493 = vmul.f32 %v440, %v4483
        %v4494 = vmul.f32 %v441, %v4486
        %v4495 = vmul.f32 %v442, %v4485
        %v4496 = vmul.f32 %v518, %v4483
        %v4497 = vmul.f32 %v519, %v4486
        %v4498 = vmul.f32 %v520, %v4485
        %4508 = vrot.lane.b32.xlu0 %v4490, 64
        %v4509 = vpop.permute.xlu0 %4508
        %4510 = vrot.lane.b32.xlu0 %v4491, 64
        %v4511 = vpop.permute.xlu0 %4510
        %4512 = vrot.lane.b32.xlu0 %v4492, 64
        %v4513 = vpop.permute.xlu0 %4512
        %4514 = vrot.lane.b32.xlu0 %v4493, 64
        %v4515 = vpop.permute.xlu0 %4514
        %4516 = vrot.lane.b32.xlu0 %v4494, 64
        %v4517 = vpop.permute.xlu0 %4516
        %4518 = vrot.lane.b32.xlu0 %v4495, 64
        %v4519 = vpop.permute.xlu0 %4518
        %4520 = vrot.lane.b32.xlu0 %v4496, 64
        %v4521 = vpop.permute.xlu0 %4520
        %4522 = vrot.lane.b32.xlu0 %v4497, 64
        %v4523 = vpop.permute.xlu0 %4522
        %4524 = vrot.lane.b32.xlu0 %v4498, 64
        %v4525 = vpop.permute.xlu0 %4524
        %v4526 = vsel %vm1398, %v4509, %v4511
        %v4527 = vsel %vm1398, %v4511, %v4513
        %v4528 = vsel %vm1398, %v4515, %v4517
        %v4529 = vsel %vm1398, %v4517, %v4519
        %v4530 = vsel %vm1398, %v4521, %v4523
        %v4531 = vsel %vm1398, %v4523, %v4525
        %v4538 = vadd.f32 %v4465, %v4526
        %v4539 = vadd.f32 %v4466, %v4527
        %v4540 = vadd.f32 %v4467, %v4528
        %v4541 = vadd.f32 %v4468, %v4529
        %v4542 = vadd.f32 %v4469, %v4530
        %v4543 = vadd.f32 %v4470, %v4531
        %s4544 = scalar_lea.vmem [#allocation4], 114
        %v4545 = vld [vmem:[%s4544] ss:$8 sm:$0x3]
        %v4547 = vlaneseq
        %v4548 = vshrl.u32 %v4547, 7
        %v4549 = vsub.s32 0, %v4548
        %v4550 = vrot.slane %v4545, %v4549
        %v4551 = vlaneseq
        %v4552 = vshrl.u32 %v4551, 7
        %v4553 = vsub.s32 1, %v4552
        %v4554 = vrot.slane %v4545, %v4553
        %4555 = vrot.lane.b32.xlu0 %v4550, 112
        %v4556 = vpop.permute.xlu0 %4555
        %4557 = vrot.lane.b32.xlu0 %v4554, 112
        %v4558 = vpop.permute.xlu0 %4557
        %v4559 = vsel %vm1275, %v4556, %v4558
        %v4563 = vmul.f32 %v515, %v4556
        %v4564 = vmul.f32 %v516, %v4559
        %v4565 = vmul.f32 %v517, %v4558
        %v4566 = vmul.f32 %v440, %v4556
        %v4567 = vmul.f32 %v441, %v4559
        %v4568 = vmul.f32 %v442, %v4558
        %v4569 = vmul.f32 %v518, %v4556
        %v4570 = vmul.f32 %v519, %v4559
        %v4571 = vmul.f32 %v520, %v4558
        %4581 = vrot.lane.b32.xlu0 %v4563, 16
        %v4582 = vpop.permute.xlu0 %4581
        %4583 = vrot.lane.b32.xlu0 %v4564, 16
        %v4584 = vpop.permute.xlu0 %4583
        %4585 = vrot.lane.b32.xlu0 %v4565, 16
        %v4586 = vpop.permute.xlu0 %4585
        %4587 = vrot.lane.b32.xlu0 %v4566, 16
        %v4588 = vpop.permute.xlu0 %4587
        %4589 = vrot.lane.b32.xlu0 %v4567, 16
        %v4590 = vpop.permute.xlu0 %4589
        %4591 = vrot.lane.b32.xlu0 %v4568, 16
        %v4592 = vpop.permute.xlu0 %4591
        %4593 = vrot.lane.b32.xlu0 %v4569, 16
        %v4594 = vpop.permute.xlu0 %4593
        %4595 = vrot.lane.b32.xlu0 %v4570, 16
        %v4596 = vpop.permute.xlu0 %4595
        %4597 = vrot.lane.b32.xlu0 %v4571, 16
        %v4598 = vpop.permute.xlu0 %4597
        %v4599 = vsel %vm377, %v4582, %v4584
        %v4600 = vsel %vm377, %v4584, %v4586
        %v4601 = vsel %vm377, %v4588, %v4590
        %v4602 = vsel %vm377, %v4590, %v4592
        %v4603 = vsel %vm377, %v4594, %v4596
        %v4604 = vsel %vm377, %v4596, %v4598
        %v4611 = vadd.f32 %v4538, %v4599
        %v4612 = vadd.f32 %v4539, %v4600
        %v4613 = vadd.f32 %v4540, %v4601
        %v4614 = vadd.f32 %v4541, %v4602
        %v4615 = vadd.f32 %v4542, %v4603
        %v4616 = vadd.f32 %v4543, %v4604
        %v4617 = vld [vmem:[#allocation2 + $0x40] sm:$0xfe]
        %v4618 = vld [vmem:[#allocation2 + $0x48] sm:$0xfe]
        %v4619 = vld [vmem:[#allocation2 + $0x68] sm:$0xff]
        %v4620 = vld [vmem:[#allocation2 + $0x70] sm:$0xff]
        %v4621 = vld [vmem:[#allocation2 + $0x90] sm:$0x1]
        %v4622 = vld [vmem:[#allocation2 + $0x98] sm:$0x1]
        %s4623 = scalar_lea.vmem [#allocation4], 115
        %v4624 = vld [vmem:[%s4623] ss:$8 sm:$0x3]
        %v4626 = vlaneseq
        %v4627 = vshrl.u32 %v4626, 7
        %v4628 = vsub.s32 0, %v4627
        %v4629 = vrot.slane %v4624, %v4628
        %v4630 = vlaneseq
        %v4631 = vshrl.u32 %v4630, 7
        %v4632 = vsub.s32 1, %v4631
        %v4633 = vrot.slane %v4624, %v4632
        %4634 = vrot.lane.b32.xlu0 %v4629, 32
        %v4635 = vpop.permute.xlu0 %4634
        %4636 = vrot.lane.b32.xlu0 %v4633, 32
        %v4637 = vpop.permute.xlu0 %4636
        %v4638 = vsel %vm331, %v4635, %v4637
        %v4642 = vmul.f32 %v1852, %v4635
        %v4643 = vmul.f32 %v4617, %v4638
        %v4644 = vmul.f32 %v4618, %v4637
        %v4645 = vmul.f32 %v1855, %v4635
        %v4646 = vmul.f32 %v4619, %v4638
        %v4647 = vmul.f32 %v4620, %v4637
        %v4648 = vmul.f32 %v1858, %v4635
        %v4649 = vmul.f32 %v4621, %v4638
        %v4650 = vmul.f32 %v4622, %v4637
        %4660 = vrot.lane.b32.xlu0 %v4642, 96
        %v4661 = vpop.permute.xlu0 %4660
        %4662 = vrot.lane.b32.xlu0 %v4643, 96
        %v4663 = vpop.permute.xlu0 %4662
        %4664 = vrot.lane.b32.xlu0 %v4644, 96
        %v4665 = vpop.permute.xlu0 %4664
        %4666 = vrot.lane.b32.xlu0 %v4645, 96
        %v4667 = vpop.permute.xlu0 %4666
        %4668 = vrot.lane.b32.xlu0 %v4646, 96
        %v4669 = vpop.permute.xlu0 %4668
        %4670 = vrot.lane.b32.xlu0 %v4647, 96
        %v4671 = vpop.permute.xlu0 %4670
        %4672 = vrot.lane.b32.xlu0 %v4648, 96
        %v4673 = vpop.permute.xlu0 %4672
        %4674 = vrot.lane.b32.xlu0 %v4649, 96
        %v4675 = vpop.permute.xlu0 %4674
        %4676 = vrot.lane.b32.xlu0 %v4650, 96
        %v4677 = vpop.permute.xlu0 %4676
        %v4678 = vsel %vm1316, %v4661, %v4663
        %v4679 = vsel %vm1316, %v4663, %v4665
        %v4680 = vsel %vm1316, %v4667, %v4669
        %v4681 = vsel %vm1316, %v4669, %v4671
        %v4682 = vsel %vm1316, %v4673, %v4675
        %v4683 = vsel %vm1316, %v4675, %v4677
        %v4690 = vadd.f32 %v4611, %v4678
        %v4691 = vadd.f32 %v4612, %v4679
        %v4692 = vadd.f32 %v4613, %v4680
        %v4693 = vadd.f32 %v4614, %v4681
        %v4694 = vadd.f32 %v4615, %v4682
        %v4695 = vadd.f32 %v4616, %v4683
        %v4696 = vld [vmem:[#allocation2 + $0x28] sm:$0xf0]
        %v4697 = vld [vmem:[#allocation2 + $0x30] sm:$0xf0]
        %v4698 = vld [vmem:[#allocation2 + $0x78] sm:$0xf]
        %v4699 = vld [vmem:[#allocation2 + $0x80] sm:$0xf]
        %s4700 = scalar_lea.vmem [#allocation4], 116
        %v4701 = vld [vmem:[%s4700] ss:$8 sm:$0x3]
        %v4703 = vlaneseq
        %v4704 = vshrl.u32 %v4703, 7
        %v4705 = vsub.s32 0, %v4704
        %v4706 = vrot.slane %v4701, %v4705
        %v4707 = vlaneseq
        %v4708 = vshrl.u32 %v4707, 7
        %v4709 = vsub.s32 1, %v4708
        %v4710 = vrot.slane %v4701, %v4709
        %v4713 = vmul.f32 %v4696, %v4706
        %v4714 = vmul.f32 %v4697, %v4710
        %v4715 = vmul.f32 %v1853, %v4706
        %v4716 = vmul.f32 %v1854, %v4710
        %v4717 = vmul.f32 %v4698, %v4706
        %v4718 = vmul.f32 %v4699, %v4710
        %v4719 = vld [vmem:[#allocation2 + $0x38] sm:$0xf0]
        %v4720 = vld [vmem:[#allocation2 + $0x88] sm:$0xf]
        %s4721 = scalar_lea.vmem [#allocation4], 117
        %v4722 = vld [vmem:[%s4721] ss:$8 sm:$0x3]
        %v4724 = vlaneseq
        %v4725 = vshrl.u32 %v4724, 7
        %v4726 = vsub.s32 0, %v4725
        %v4727 = vrot.slane %v4722, %v4726
        %v4728 = vlaneseq
        %v4729 = vshrl.u32 %v4728, 7
        %v4730 = vsub.s32 1, %v4729
        %v4731 = vrot.slane %v4722, %v4730
        %4732 = vrot.lane.b32.xlu0 %v4727, 48
        %v4733 = vpop.permute.xlu0 %4732
        %4734 = vrot.lane.b32.xlu0 %v4731, 48
        %v4735 = vpop.permute.xlu0 %4734
        %v4736 = vsel %vm1438, %v4733, %v4735
        %v4740 = vmul.f32 %v4696, %v4733
        %v4741 = vmul.f32 %v4697, %v4736
        %v4742 = vmul.f32 %v4719, %v4735
        %v4743 = vmul.f32 %v1853, %v4733
        %v4744 = vmul.f32 %v1854, %v4736
        %v4745 = vmul.f32 %v1855, %v4735
        %v4746 = vmul.f32 %v4698, %v4733
        %v4747 = vmul.f32 %v4699, %v4736
        %v4748 = vmul.f32 %v4720, %v4735
        %4758 = vrot.lane.b32.xlu0 %v4740, 80
        %v4759 = vpop.permute.xlu0 %4758
        %4760 = vrot.lane.b32.xlu0 %v4741, 80
        %v4761 = vpop.permute.xlu0 %4760
        %4762 = vrot.lane.b32.xlu0 %v4742, 80
        %v4763 = vpop.permute.xlu0 %4762
        %4764 = vrot.lane.b32.xlu0 %v4743, 80
        %v4765 = vpop.permute.xlu0 %4764
        %4766 = vrot.lane.b32.xlu0 %v4744, 80
        %v4767 = vpop.permute.xlu0 %4766
        %4768 = vrot.lane.b32.xlu0 %v4745, 80
        %v4769 = vpop.permute.xlu0 %4768
        %4770 = vrot.lane.b32.xlu0 %v4746, 80
        %v4771 = vpop.permute.xlu0 %4770
        %4772 = vrot.lane.b32.xlu0 %v4747, 80
        %v4773 = vpop.permute.xlu0 %4772
        %4774 = vrot.lane.b32.xlu0 %v4748, 80
        %v4775 = vpop.permute.xlu0 %4774
        %v4776 = vsel %vm1246, %v4759, %v4761
        %v4777 = vsel %vm1246, %v4761, %v4763
        %v4778 = vsel %vm1246, %v4765, %v4767
        %v4779 = vsel %vm1246, %v4767, %v4769
        %v4780 = vsel %vm1246, %v4771, %v4773
        %v4781 = vsel %vm1246, %v4773, %v4775
        %v4788 = vadd.f32 %v4713, %v4776
        %v4789 = vadd.f32 %v4714, %v4777
        %v4790 = vadd.f32 %v4715, %v4778
        %v4791 = vadd.f32 %v4716, %v4779
        %v4792 = vadd.f32 %v4717, %v4780
        %v4793 = vadd.f32 %v4718, %v4781
        %s4794 = scalar_lea.vmem [#allocation4], 118
        %v4795 = vld [vmem:[%s4794] ss:$8 sm:$0x3]
        %v4797 = vlaneseq
        %v4798 = vshrl.u32 %v4797, 7
        %v4799 = vsub.s32 0, %v4798
        %v4800 = vrot.slane %v4795, %v4799
        %v4801 = vlaneseq
        %v4802 = vshrl.u32 %v4801, 7
        %v4803 = vsub.s32 1, %v4802
        %v4804 = vrot.slane %v4795, %v4803
        %4805 = vrot.lane.b32.xlu0 %v4800, 96
        %v4806 = vpop.permute.xlu0 %4805
        %4807 = vrot.lane.b32.xlu0 %v4804, 96
        %v4808 = vpop.permute.xlu0 %4807
        %v4809 = vsel %vm1316, %v4806, %v4808
        %v4813 = vmul.f32 %v4696, %v4806
        %v4814 = vmul.f32 %v4697, %v4809
        %v4815 = vmul.f32 %v4719, %v4808
        %v4816 = vmul.f32 %v1853, %v4806
        %v4817 = vmul.f32 %v1854, %v4809
        %v4818 = vmul.f32 %v1855, %v4808
        %v4819 = vmul.f32 %v4698, %v4806
        %v4820 = vmul.f32 %v4699, %v4809
        %v4821 = vmul.f32 %v4720, %v4808
        %4831 = vrot.lane.b32.xlu0 %v4813, 32
        %v4832 = vpop.permute.xlu0 %4831
        %4833 = vrot.lane.b32.xlu0 %v4814, 32
        %v4834 = vpop.permute.xlu0 %4833
        %4835 = vrot.lane.b32.xlu0 %v4815, 32
        %v4836 = vpop.permute.xlu0 %4835
        %4837 = vrot.lane.b32.xlu0 %v4816, 32
        %v4838 = vpop.permute.xlu0 %4837
        %4839 = vrot.lane.b32.xlu0 %v4817, 32
        %v4840 = vpop.permute.xlu0 %4839
        %4841 = vrot.lane.b32.xlu0 %v4818, 32
        %v4842 = vpop.permute.xlu0 %4841
        %4843 = vrot.lane.b32.xlu0 %v4819, 32
        %v4844 = vpop.permute.xlu0 %4843
        %4845 = vrot.lane.b32.xlu0 %v4820, 32
        %v4846 = vpop.permute.xlu0 %4845
        %4847 = vrot.lane.b32.xlu0 %v4821, 32
        %v4848 = vpop.permute.xlu0 %4847
        %v4849 = vsel %vm331, %v4832, %v4834
        %v4850 = vsel %vm331, %v4834, %v4836
        %v4851 = vsel %vm331, %v4838, %v4840
        %v4852 = vsel %vm331, %v4840, %v4842
        %v4853 = vsel %vm331, %v4844, %v4846
        %v4854 = vsel %vm331, %v4846, %v4848
        %v4861 = vadd.f32 %v4788, %v4849
        %v4862 = vadd.f32 %v4789, %v4850
        %v4863 = vadd.f32 %v4790, %v4851
        %v4864 = vadd.f32 %v4791, %v4852
        %v4865 = vadd.f32 %v4792, %v4853
        %v4866 = vadd.f32 %v4793, %v4854
        %v4867 = vld [vmem:[#allocation2 + $0x40] sm:$0xf0]
        %v4868 = vld [vmem:[#allocation2 + $0x90] sm:$0xf]
        %s4869 = scalar_lea.vmem [#allocation4], 119
        %v4870 = vld [vmem:[%s4869] ss:$8 sm:$0x3]
        %v4872 = vlaneseq
        %v4873 = vshrl.u32 %v4872, 7
        %v4874 = vsub.s32 0, %v4873
        %v4875 = vrot.slane %v4870, %v4874
        %v4876 = vlaneseq
        %v4877 = vshrl.u32 %v4876, 7
        %v4878 = vsub.s32 1, %v4877
        %v4879 = vrot.slane %v4870, %v4878
        %4880 = vrot.lane.b32.xlu0 %v4875, 16
        %v4881 = vpop.permute.xlu0 %4880
        %4882 = vrot.lane.b32.xlu0 %v4879, 16
        %v4883 = vpop.permute.xlu0 %4882
        %v4884 = vsel %vm377, %v4881, %v4883
        %v4888 = vmul.f32 %v4697, %v4881
        %v4889 = vmul.f32 %v4719, %v4884
        %v4890 = vmul.f32 %v4867, %v4883
        %v4891 = vmul.f32 %v440, %v4881
        %v4892 = vmul.f32 %v441, %v4884
        %v4893 = vmul.f32 %v442, %v4883
        %v4894 = vmul.f32 %v4699, %v4881
        %v4895 = vmul.f32 %v4720, %v4884
        %v4896 = vmul.f32 %v4868, %v4883
        %4906 = vrot.lane.b32.xlu0 %v4888, 112
        %v4907 = vpop.permute.xlu0 %4906
        %4908 = vrot.lane.b32.xlu0 %v4889, 112
        %v4909 = vpop.permute.xlu0 %4908
        %4910 = vrot.lane.b32.xlu0 %v4890, 112
        %v4911 = vpop.permute.xlu0 %4910
        %4912 = vrot.lane.b32.xlu0 %v4891, 112
        %v4913 = vpop.permute.xlu0 %4912
        %4914 = vrot.lane.b32.xlu0 %v4892, 112
        %v4915 = vpop.permute.xlu0 %4914
        %4916 = vrot.lane.b32.xlu0 %v4893, 112
        %v4917 = vpop.permute.xlu0 %4916
        %4918 = vrot.lane.b32.xlu0 %v4894, 112
        %v4919 = vpop.permute.xlu0 %4918
        %4920 = vrot.lane.b32.xlu0 %v4895, 112
        %v4921 = vpop.permute.xlu0 %4920
        %4922 = vrot.lane.b32.xlu0 %v4896, 112
        %v4923 = vpop.permute.xlu0 %4922
        %v4924 = vsel %vm1275, %v4907, %v4909
        %v4925 = vsel %vm1275, %v4909, %v4911
        %v4926 = vsel %vm1275, %v4913, %v4915
        %v4927 = vsel %vm1275, %v4915, %v4917
        %v4928 = vsel %vm1275, %v4919, %v4921
        %v4929 = vsel %vm1275, %v4921, %v4923
        %v4936 = vadd.f32 %v4861, %v4924
        %v4937 = vadd.f32 %v4862, %v4925
        %v4938 = vadd.f32 %v4863, %v4926
        %v4939 = vadd.f32 %v4864, %v4927
        %v4940 = vadd.f32 %v4865, %v4928
        %v4941 = vadd.f32 %v4866, %v4929
        %s4942 = scalar_lea.vmem [#allocation4], 128
        %v4943 = vld [vmem:[%s4942] ss:$8 sm:$0x3]
        %v4945 = vlaneseq
        %v4946 = vshrl.u32 %v4945, 7
        %v4947 = vsub.s32 0, %v4946
        %v4948 = vrot.slane %v4943, %v4947
        %v4949 = vlaneseq
        %v4950 = vshrl.u32 %v4949, 7
        %v4951 = vsub.s32 1, %v4950
        %v4952 = vrot.slane %v4943, %v4951
        %4953 = vrot.lane.b32.xlu0 %v4948, 64
        %v4954 = vpop.permute.xlu0 %4953
        %4955 = vrot.lane.b32.xlu0 %v4952, 64
        %v4956 = vpop.permute.xlu0 %4955
        %v4957 = vsel %vm1398, %v4954, %v4956
        %v4961 = vmul.f32 %v4697, %v4954
        %v4962 = vmul.f32 %v4719, %v4957
        %v4963 = vmul.f32 %v4867, %v4956
        %v4964 = vmul.f32 %v440, %v4954
        %v4965 = vmul.f32 %v441, %v4957
        %v4966 = vmul.f32 %v442, %v4956
        %v4967 = vmul.f32 %v4699, %v4954
        %v4968 = vmul.f32 %v4720, %v4957
        %v4969 = vmul.f32 %v4868, %v4956
        %4979 = vrot.lane.b32.xlu0 %v4961, 64
        %v4980 = vpop.permute.xlu0 %4979
        %4981 = vrot.lane.b32.xlu0 %v4962, 64
        %v4982 = vpop.permute.xlu0 %4981
        %4983 = vrot.lane.b32.xlu0 %v4963, 64
        %v4984 = vpop.permute.xlu0 %4983
        %4985 = vrot.lane.b32.xlu0 %v4964, 64
        %v4986 = vpop.permute.xlu0 %4985
        %4987 = vrot.lane.b32.xlu0 %v4965, 64
        %v4988 = vpop.permute.xlu0 %4987
        %4989 = vrot.lane.b32.xlu0 %v4966, 64
        %v4990 = vpop.permute.xlu0 %4989
        %4991 = vrot.lane.b32.xlu0 %v4967, 64
        %v4992 = vpop.permute.xlu0 %4991
        %4993 = vrot.lane.b32.xlu0 %v4968, 64
        %v4994 = vpop.permute.xlu0 %4993
        %4995 = vrot.lane.b32.xlu0 %v4969, 64
        %v4996 = vpop.permute.xlu0 %4995
        %v4997 = vsel %vm1398, %v4980, %v4982
        %v4998 = vsel %vm1398, %v4982, %v4984
        %v4999 = vsel %vm1398, %v4986, %v4988
        %v5000 = vsel %vm1398, %v4988, %v4990
        %v5001 = vsel %vm1398, %v4992, %v4994
        %v5002 = vsel %vm1398, %v4994, %v4996
        %v5009 = vadd.f32 %v4936, %v4997
        %v5010 = vadd.f32 %v4937, %v4998
        %v5011 = vadd.f32 %v4938, %v4999
        %v5012 = vadd.f32 %v4939, %v5000
        %v5013 = vadd.f32 %v4940, %v5001
        %v5014 = vadd.f32 %v4941, %v5002
        %s5015 = scalar_lea.vmem [#allocation4], 129
        %v5016 = vld [vmem:[%s5015] ss:$8 sm:$0x3]
        %v5018 = vlaneseq
        %v5019 = vshrl.u32 %v5018, 7
        %v5020 = vsub.s32 0, %v5019
        %v5021 = vrot.slane %v5016, %v5020
        %v5022 = vlaneseq
        %v5023 = vshrl.u32 %v5022, 7
        %v5024 = vsub.s32 1, %v5023
        %v5025 = vrot.slane %v5016, %v5024
        %5026 = vrot.lane.b32.xlu0 %v5021, 112
        %v5027 = vpop.permute.xlu0 %5026
        %5028 = vrot.lane.b32.xlu0 %v5025, 112
        %v5029 = vpop.permute.xlu0 %5028
        %v5030 = vsel %vm1275, %v5027, %v5029
        %v5034 = vmul.f32 %v4697, %v5027
        %v5035 = vmul.f32 %v4719, %v5030
        %v5036 = vmul.f32 %v4867, %v5029
        %v5037 = vmul.f32 %v440, %v5027
        %v5038 = vmul.f32 %v441, %v5030
        %v5039 = vmul.f32 %v442, %v5029
        %v5040 = vmul.f32 %v4699, %v5027
        %v5041 = vmul.f32 %v4720, %v5030
        %v5042 = vmul.f32 %v4868, %v5029
        %5052 = vrot.lane.b32.xlu0 %v5034, 16
        %v5053 = vpop.permute.xlu0 %5052
        %5054 = vrot.lane.b32.xlu0 %v5035, 16
        %v5055 = vpop.permute.xlu0 %5054
        %5056 = vrot.lane.b32.xlu0 %v5036, 16
        %v5057 = vpop.permute.xlu0 %5056
        %5058 = vrot.lane.b32.xlu0 %v5037, 16
        %v5059 = vpop.permute.xlu0 %5058
        %5060 = vrot.lane.b32.xlu0 %v5038, 16
        %v5061 = vpop.permute.xlu0 %5060
        %5062 = vrot.lane.b32.xlu0 %v5039, 16
        %v5063 = vpop.permute.xlu0 %5062
        %5064 = vrot.lane.b32.xlu0 %v5040, 16
        %v5065 = vpop.permute.xlu0 %5064
        %5066 = vrot.lane.b32.xlu0 %v5041, 16
        %v5067 = vpop.permute.xlu0 %5066
        %5068 = vrot.lane.b32.xlu0 %v5042, 16
        %v5069 = vpop.permute.xlu0 %5068
        %v5070 = vsel %vm377, %v5053, %v5055
        %v5071 = vsel %vm377, %v5055, %v5057
        %v5072 = vsel %vm377, %v5059, %v5061
        %v5073 = vsel %vm377, %v5061, %v5063
        %v5074 = vsel %vm377, %v5065, %v5067
        %v5075 = vsel %vm377, %v5067, %v5069
        %v5082 = vadd.f32 %v5009, %v5070
        %v5083 = vadd.f32 %v5010, %v5071
        %v5084 = vadd.f32 %v5011, %v5072
        %v5085 = vadd.f32 %v5012, %v5073
        %v5086 = vadd.f32 %v5013, %v5074
        %v5087 = vadd.f32 %v5014, %v5075
        %v5088 = vld [vmem:[#allocation2 + $0x48] sm:$0xf0]
        %v5089 = vld [vmem:[#allocation2 + $0x98] sm:$0xf]
        %s5090 = scalar_lea.vmem [#allocation4], 130
        %v5091 = vld [vmem:[%s5090] ss:$8 sm:$0x3]
        %v5093 = vlaneseq
        %v5094 = vshrl.u32 %v5093, 7
        %v5095 = vsub.s32 0, %v5094
        %v5096 = vrot.slane %v5091, %v5095
        %v5097 = vlaneseq
        %v5098 = vshrl.u32 %v5097, 7
        %v5099 = vsub.s32 1, %v5098
        %v5100 = vrot.slane %v5091, %v5099
        %5101 = vrot.lane.b32.xlu0 %v5096, 32
        %v5102 = vpop.permute.xlu0 %5101
        %5103 = vrot.lane.b32.xlu0 %v5100, 32
        %v5104 = vpop.permute.xlu0 %5103
        %v5105 = vsel %vm331, %v5102, %v5104
        %v5109 = vmul.f32 %v4719, %v5102
        %v5110 = vmul.f32 %v4867, %v5105
        %v5111 = vmul.f32 %v5088, %v5104
        %v5112 = vmul.f32 %v1855, %v5102
        %v5113 = vmul.f32 %v4619, %v5105
        %v5114 = vmul.f32 %v4620, %v5104
        %v5115 = vmul.f32 %v4720, %v5102
        %v5116 = vmul.f32 %v4868, %v5105
        %v5117 = vmul.f32 %v5089, %v5104
        %5127 = vrot.lane.b32.xlu0 %v5109, 96
        %v5128 = vpop.permute.xlu0 %5127
        %5129 = vrot.lane.b32.xlu0 %v5110, 96
        %v5130 = vpop.permute.xlu0 %5129
        %5131 = vrot.lane.b32.xlu0 %v5111, 96
        %v5132 = vpop.permute.xlu0 %5131
        %5133 = vrot.lane.b32.xlu0 %v5112, 96
        %v5134 = vpop.permute.xlu0 %5133
        %5135 = vrot.lane.b32.xlu0 %v5113, 96
        %v5136 = vpop.permute.xlu0 %5135
        %5137 = vrot.lane.b32.xlu0 %v5114, 96
        %v5138 = vpop.permute.xlu0 %5137
        %5139 = vrot.lane.b32.xlu0 %v5115, 96
        %v5140 = vpop.permute.xlu0 %5139
        %5141 = vrot.lane.b32.xlu0 %v5116, 96
        %v5142 = vpop.permute.xlu0 %5141
        %5143 = vrot.lane.b32.xlu0 %v5117, 96
        %v5144 = vpop.permute.xlu0 %5143
        %v5145 = vsel %vm1316, %v5128, %v5130
        %v5146 = vsel %vm1316, %v5130, %v5132
        %v5147 = vsel %vm1316, %v5134, %v5136
        %v5148 = vsel %vm1316, %v5136, %v5138
        %v5149 = vsel %vm1316, %v5140, %v5142
        %v5150 = vsel %vm1316, %v5142, %v5144
        %v5157 = vadd.f32 %v5082, %v5145
        %v5158 = vadd.f32 %v5083, %v5146
        %v5159 = vadd.f32 %v5084, %v5147
        %v5160 = vadd.f32 %v5085, %v5148
        %v5161 = vadd.f32 %v5086, %v5149
        %v5162 = vadd.f32 %v5087, %v5150
        %v5163 = vld [vmem:[#allocation2 + $0x28] sm:$0x80]
        %v5164 = vld [vmem:[#allocation2 + $0x30] sm:$0x80]
        %v5165 = vld [vmem:[#allocation2 + $0x78] sm:$0x7f]
        %v5166 = vld [vmem:[#allocation2 + $0x80] sm:$0x7f]
        %s5167 = scalar_lea.vmem [#allocation4], 131
        %v5168 = vld [vmem:[%s5167] ss:$8 sm:$0x3]
        %v5170 = vlaneseq
        %v5171 = vshrl.u32 %v5170, 7
        %v5172 = vsub.s32 0, %v5171
        %v5173 = vrot.slane %v5168, %v5172
        %v5174 = vlaneseq
        %v5175 = vshrl.u32 %v5174, 7
        %v5176 = vsub.s32 1, %v5175
        %v5177 = vrot.slane %v5168, %v5176
        %v5180 = vmul.f32 %v5163, %v5173
        %v5181 = vmul.f32 %v5164, %v5177
        %v5182 = vmul.f32 %v1853, %v5173
        %v5183 = vmul.f32 %v1854, %v5177
        %v5184 = vmul.f32 %v5165, %v5173
        %v5185 = vmul.f32 %v5166, %v5177
        %v5186 = vld [vmem:[#allocation2 + $0x38] sm:$0x80]
        %v5187 = vld [vmem:[#allocation2 + $0x88] sm:$0x7f]
        %s5188 = scalar_lea.vmem [#allocation4], 132
        %v5189 = vld [vmem:[%s5188] ss:$8 sm:$0x3]
        %v5191 = vlaneseq
        %v5192 = vshrl.u32 %v5191, 7
        %v5193 = vsub.s32 0, %v5192
        %v5194 = vrot.slane %v5189, %v5193
        %v5195 = vlaneseq
        %v5196 = vshrl.u32 %v5195, 7
        %v5197 = vsub.s32 1, %v5196
        %v5198 = vrot.slane %v5189, %v5197
        %5199 = vrot.lane.b32.xlu0 %v5194, 48
        %v5200 = vpop.permute.xlu0 %5199
        %5201 = vrot.lane.b32.xlu0 %v5198, 48
        %v5202 = vpop.permute.xlu0 %5201
        %v5203 = vsel %vm1438, %v5200, %v5202
        %v5207 = vmul.f32 %v5163, %v5200
        %v5208 = vmul.f32 %v5164, %v5203
        %v5209 = vmul.f32 %v5186, %v5202
        %v5210 = vmul.f32 %v1853, %v5200
        %v5211 = vmul.f32 %v1854, %v5203
        %v5212 = vmul.f32 %v1855, %v5202
        %v5213 = vmul.f32 %v5165, %v5200
        %v5214 = vmul.f32 %v5166, %v5203
        %v5215 = vmul.f32 %v5187, %v5202
        %5225 = vrot.lane.b32.xlu0 %v5207, 80
        %v5226 = vpop.permute.xlu0 %5225
        %5227 = vrot.lane.b32.xlu0 %v5208, 80
        %v5228 = vpop.permute.xlu0 %5227
        %5229 = vrot.lane.b32.xlu0 %v5209, 80
        %v5230 = vpop.permute.xlu0 %5229
        %5231 = vrot.lane.b32.xlu0 %v5210, 80
        %v5232 = vpop.permute.xlu0 %5231
        %5233 = vrot.lane.b32.xlu0 %v5211, 80
        %v5234 = vpop.permute.xlu0 %5233
        %5235 = vrot.lane.b32.xlu0 %v5212, 80
        %v5236 = vpop.permute.xlu0 %5235
        %5237 = vrot.lane.b32.xlu0 %v5213, 80
        %v5238 = vpop.permute.xlu0 %5237
        %5239 = vrot.lane.b32.xlu0 %v5214, 80
        %v5240 = vpop.permute.xlu0 %5239
        %5241 = vrot.lane.b32.xlu0 %v5215, 80
        %v5242 = vpop.permute.xlu0 %5241
        %v5243 = vsel %vm1246, %v5226, %v5228
        %v5244 = vsel %vm1246, %v5228, %v5230
        %v5245 = vsel %vm1246, %v5232, %v5234
        %v5246 = vsel %vm1246, %v5234, %v5236
        %v5247 = vsel %vm1246, %v5238, %v5240
        %v5248 = vsel %vm1246, %v5240, %v5242
        %v5255 = vadd.f32 %v5180, %v5243
        %v5256 = vadd.f32 %v5181, %v5244
        %v5257 = vadd.f32 %v5182, %v5245
        %v5258 = vadd.f32 %v5183, %v5246
        %v5259 = vadd.f32 %v5184, %v5247
        %v5260 = vadd.f32 %v5185, %v5248
        %s5261 = scalar_lea.vmem [#allocation4], 133
        %v5262 = vld [vmem:[%s5261] ss:$8 sm:$0x3]
        %v5264 = vlaneseq
        %v5265 = vshrl.u32 %v5264, 7
        %v5266 = vsub.s32 0, %v5265
        %v5267 = vrot.slane %v5262, %v5266
        %v5268 = vlaneseq
        %v5269 = vshrl.u32 %v5268, 7
        %v5270 = vsub.s32 1, %v5269
        %v5271 = vrot.slane %v5262, %v5270
        %5272 = vrot.lane.b32.xlu0 %v5267, 96
        %v5273 = vpop.permute.xlu0 %5272
        %5274 = vrot.lane.b32.xlu0 %v5271, 96
        %v5275 = vpop.permute.xlu0 %5274
        %v5276 = vsel %vm1316, %v5273, %v5275
        %v5280 = vmul.f32 %v5163, %v5273
        %v5281 = vmul.f32 %v5164, %v5276
        %v5282 = vmul.f32 %v5186, %v5275
        %v5283 = vmul.f32 %v1853, %v5273
        %v5284 = vmul.f32 %v1854, %v5276
        %v5285 = vmul.f32 %v1855, %v5275
        %v5286 = vmul.f32 %v5165, %v5273
        %v5287 = vmul.f32 %v5166, %v5276
        %v5288 = vmul.f32 %v5187, %v5275
        %5298 = vrot.lane.b32.xlu0 %v5280, 32
        %v5299 = vpop.permute.xlu0 %5298
        %5300 = vrot.lane.b32.xlu0 %v5281, 32
        %v5301 = vpop.permute.xlu0 %5300
        %5302 = vrot.lane.b32.xlu0 %v5282, 32
        %v5303 = vpop.permute.xlu0 %5302
        %5304 = vrot.lane.b32.xlu0 %v5283, 32
        %v5305 = vpop.permute.xlu0 %5304
        %5306 = vrot.lane.b32.xlu0 %v5284, 32
        %v5307 = vpop.permute.xlu0 %5306
        %5308 = vrot.lane.b32.xlu0 %v5285, 32
        %v5309 = vpop.permute.xlu0 %5308
        %5310 = vrot.lane.b32.xlu0 %v5286, 32
        %v5311 = vpop.permute.xlu0 %5310
        %5312 = vrot.lane.b32.xlu0 %v5287, 32
        %v5313 = vpop.permute.xlu0 %5312
        %5314 = vrot.lane.b32.xlu0 %v5288, 32
        %v5315 = vpop.permute.xlu0 %5314
        %v5316 = vsel %vm331, %v5299, %v5301
        %v5317 = vsel %vm331, %v5301, %v5303
        %v5318 = vsel %vm331, %v5305, %v5307
        %v5319 = vsel %vm331, %v5307, %v5309
        %v5320 = vsel %vm331, %v5311, %v5313
        %v5321 = vsel %vm331, %v5313, %v5315
        %v5328 = vadd.f32 %v5255, %v5316
        %v5329 = vadd.f32 %v5256, %v5317
        %v5330 = vadd.f32 %v5257, %v5318
        %v5331 = vadd.f32 %v5258, %v5319
        %v5332 = vadd.f32 %v5259, %v5320
        %v5333 = vadd.f32 %v5260, %v5321
        %v5334 = vld [vmem:[#allocation2 + $0x40] sm:$0x80]
        %v5335 = vld [vmem:[#allocation2 + $0x90] sm:$0x7f]
        %s5336 = scalar_lea.vmem [#allocation4], 134
        %v5337 = vld [vmem:[%s5336] ss:$8 sm:$0x3]
        %v5339 = vlaneseq
        %v5340 = vshrl.u32 %v5339, 7
        %v5341 = vsub.s32 0, %v5340
        %v5342 = vrot.slane %v5337, %v5341
        %v5343 = vlaneseq
        %v5344 = vshrl.u32 %v5343, 7
        %v5345 = vsub.s32 1, %v5344
        %v5346 = vrot.slane %v5337, %v5345
        %5347 = vrot.lane.b32.xlu0 %v5342, 16
        %v5348 = vpop.permute.xlu0 %5347
        %5349 = vrot.lane.b32.xlu0 %v5346, 16
        %v5350 = vpop.permute.xlu0 %5349
        %v5351 = vsel %vm377, %v5348, %v5350
        %v5355 = vmul.f32 %v5164, %v5348
        %v5356 = vmul.f32 %v5186, %v5351
        %v5357 = vmul.f32 %v5334, %v5350
        %v5358 = vmul.f32 %v440, %v5348
        %v5359 = vmul.f32 %v441, %v5351
        %v5360 = vmul.f32 %v442, %v5350
        %v5361 = vmul.f32 %v5166, %v5348
        %v5362 = vmul.f32 %v5187, %v5351
        %v5363 = vmul.f32 %v5335, %v5350
        %5373 = vrot.lane.b32.xlu0 %v5355, 112
        %v5374 = vpop.permute.xlu0 %5373
        %5375 = vrot.lane.b32.xlu0 %v5356, 112
        %v5376 = vpop.permute.xlu0 %5375
        %5377 = vrot.lane.b32.xlu0 %v5357, 112
        %v5378 = vpop.permute.xlu0 %5377
        %5379 = vrot.lane.b32.xlu0 %v5358, 112
        %v5380 = vpop.permute.xlu0 %5379
        %5381 = vrot.lane.b32.xlu0 %v5359, 112
        %v5382 = vpop.permute.xlu0 %5381
        %5383 = vrot.lane.b32.xlu0 %v5360, 112
        %v5384 = vpop.permute.xlu0 %5383
        %5385 = vrot.lane.b32.xlu0 %v5361, 112
        %v5386 = vpop.permute.xlu0 %5385
        %5387 = vrot.lane.b32.xlu0 %v5362, 112
        %v5388 = vpop.permute.xlu0 %5387
        %5389 = vrot.lane.b32.xlu0 %v5363, 112
        %v5390 = vpop.permute.xlu0 %5389
        %v5391 = vsel %vm1275, %v5374, %v5376
        %v5392 = vsel %vm1275, %v5376, %v5378
        %v5393 = vsel %vm1275, %v5380, %v5382
        %v5394 = vsel %vm1275, %v5382, %v5384
        %v5395 = vsel %vm1275, %v5386, %v5388
        %v5396 = vsel %vm1275, %v5388, %v5390
        %v5403 = vadd.f32 %v5328, %v5391
        %v5404 = vadd.f32 %v5329, %v5392
        %v5405 = vadd.f32 %v5330, %v5393
        %v5406 = vadd.f32 %v5331, %v5394
        %v5407 = vadd.f32 %v5332, %v5395
        %v5408 = vadd.f32 %v5333, %v5396
        %s5409 = scalar_lea.vmem [#allocation4], 135
        %v5410 = vld [vmem:[%s5409] ss:$8 sm:$0x3]
        %v5412 = vlaneseq
        %v5413 = vshrl.u32 %v5412, 7
        %v5414 = vsub.s32 0, %v5413
        %v5415 = vrot.slane %v5410, %v5414
        %v5416 = vlaneseq
        %v5417 = vshrl.u32 %v5416, 7
        %v5418 = vsub.s32 1, %v5417
        %v5419 = vrot.slane %v5410, %v5418
        %5420 = vrot.lane.b32.xlu0 %v5415, 64
        %v5421 = vpop.permute.xlu0 %5420
        %5422 = vrot.lane.b32.xlu0 %v5419, 64
        %v5423 = vpop.permute.xlu0 %5422
        %v5424 = vsel %vm1398, %v5421, %v5423
        %v5428 = vmul.f32 %v5164, %v5421
        %v5429 = vmul.f32 %v5186, %v5424
        %v5430 = vmul.f32 %v5334, %v5423
        %v5431 = vmul.f32 %v440, %v5421
        %v5432 = vmul.f32 %v441, %v5424
        %v5433 = vmul.f32 %v442, %v5423
        %v5434 = vmul.f32 %v5166, %v5421
        %v5435 = vmul.f32 %v5187, %v5424
        %v5436 = vmul.f32 %v5335, %v5423
        %5446 = vrot.lane.b32.xlu0 %v5428, 64
        %v5447 = vpop.permute.xlu0 %5446
        %5448 = vrot.lane.b32.xlu0 %v5429, 64
        %v5449 = vpop.permute.xlu0 %5448
        %5450 = vrot.lane.b32.xlu0 %v5430, 64
        %v5451 = vpop.permute.xlu0 %5450
        %5452 = vrot.lane.b32.xlu0 %v5431, 64
        %v5453 = vpop.permute.xlu0 %5452
        %5454 = vrot.lane.b32.xlu0 %v5432, 64
        %v5455 = vpop.permute.xlu0 %5454
        %5456 = vrot.lane.b32.xlu0 %v5433, 64
        %v5457 = vpop.permute.xlu0 %5456
        %5458 = vrot.lane.b32.xlu0 %v5434, 64
        %v5459 = vpop.permute.xlu0 %5458
        %5460 = vrot.lane.b32.xlu0 %v5435, 64
        %v5461 = vpop.permute.xlu0 %5460
        %5462 = vrot.lane.b32.xlu0 %v5436, 64
        %v5463 = vpop.permute.xlu0 %5462
        %v5464 = vsel %vm1398, %v5447, %v5449
        %v5465 = vsel %vm1398, %v5449, %v5451
        %v5466 = vsel %vm1398, %v5453, %v5455
        %v5467 = vsel %vm1398, %v5455, %v5457
        %v5468 = vsel %vm1398, %v5459, %v5461
        %v5469 = vsel %vm1398, %v5461, %v5463
        %v5476 = vadd.f32 %v5403, %v5464
        %v5477 = vadd.f32 %v5404, %v5465
        %v5478 = vadd.f32 %v5405, %v5466
        %v5479 = vadd.f32 %v5406, %v5467
        %v5480 = vadd.f32 %v5407, %v5468
        %v5481 = vadd.f32 %v5408, %v5469
        %s5482 = scalar_lea.vmem [#allocation4], 144
        %v5483 = vld [vmem:[%s5482] ss:$8 sm:$0x3]
        %v5485 = vlaneseq
        %v5486 = vshrl.u32 %v5485, 7
        %v5487 = vsub.s32 0, %v5486
        %v5488 = vrot.slane %v5483, %v5487
        %v5489 = vlaneseq
        %v5490 = vshrl.u32 %v5489, 7
        %v5491 = vsub.s32 1, %v5490
        %v5492 = vrot.slane %v5483, %v5491
        %5493 = vrot.lane.b32.xlu0 %v5488, 112
        %v5494 = vpop.permute.xlu0 %5493
        %5495 = vrot.lane.b32.xlu0 %v5492, 112
        %v5496 = vpop.permute.xlu0 %5495
        %v5497 = vsel %vm1275, %v5494, %v5496
        %v5501 = vmul.f32 %v5164, %v5494
        %v5502 = vmul.f32 %v5186, %v5497
        %v5503 = vmul.f32 %v5334, %v5496
        %v5504 = vmul.f32 %v440, %v5494
        %v5505 = vmul.f32 %v441, %v5497
        %v5506 = vmul.f32 %v442, %v5496
        %v5507 = vmul.f32 %v5166, %v5494
        %v5508 = vmul.f32 %v5187, %v5497
        %v5509 = vmul.f32 %v5335, %v5496
        %5519 = vrot.lane.b32.xlu0 %v5501, 16
        %v5520 = vpop.permute.xlu0 %5519
        %5521 = vrot.lane.b32.xlu0 %v5502, 16
        %v5522 = vpop.permute.xlu0 %5521
        %5523 = vrot.lane.b32.xlu0 %v5503, 16
        %v5524 = vpop.permute.xlu0 %5523
        %5525 = vrot.lane.b32.xlu0 %v5504, 16
        %v5526 = vpop.permute.xlu0 %5525
        %5527 = vrot.lane.b32.xlu0 %v5505, 16
        %v5528 = vpop.permute.xlu0 %5527
        %5529 = vrot.lane.b32.xlu0 %v5506, 16
        %v5530 = vpop.permute.xlu0 %5529
        %5531 = vrot.lane.b32.xlu0 %v5507, 16
        %v5532 = vpop.permute.xlu0 %5531
        %5533 = vrot.lane.b32.xlu0 %v5508, 16
        %v5534 = vpop.permute.xlu0 %5533
        %5535 = vrot.lane.b32.xlu0 %v5509, 16
        %v5536 = vpop.permute.xlu0 %5535
        %v5537 = vsel %vm377, %v5520, %v5522
        %v5538 = vsel %vm377, %v5522, %v5524
        %v5539 = vsel %vm377, %v5526, %v5528
        %v5540 = vsel %vm377, %v5528, %v5530
        %v5541 = vsel %vm377, %v5532, %v5534
        %v5542 = vsel %vm377, %v5534, %v5536
        %v5549 = vadd.f32 %v5476, %v5537
        %v5550 = vadd.f32 %v5477, %v5538
        %v5551 = vadd.f32 %v5478, %v5539
        %v5552 = vadd.f32 %v5479, %v5540
        %v5553 = vadd.f32 %v5480, %v5541
        %v5554 = vadd.f32 %v5481, %v5542
        %v5555 = vld [vmem:[#allocation2 + $0x48] sm:$0x80]
        %v5556 = vld [vmem:[#allocation2 + $0x98] sm:$0x7f]
        %s5557 = scalar_lea.vmem [#allocation4], 145
        %v5558 = vld [vmem:[%s5557] ss:$8 sm:$0x3]
        %v5560 = vlaneseq
        %v5561 = vshrl.u32 %v5560, 7
        %v5562 = vsub.s32 0, %v5561
        %v5563 = vrot.slane %v5558, %v5562
        %v5564 = vlaneseq
        %v5565 = vshrl.u32 %v5564, 7
        %v5566 = vsub.s32 1, %v5565
        %v5567 = vrot.slane %v5558, %v5566
        %5568 = vrot.lane.b32.xlu0 %v5563, 32
        %v5569 = vpop.permute.xlu0 %5568
        %5570 = vrot.lane.b32.xlu0 %v5567, 32
        %v5571 = vpop.permute.xlu0 %5570
        %v5572 = vsel %vm331, %v5569, %v5571
        %v5576 = vmul.f32 %v5186, %v5569
        %v5577 = vmul.f32 %v5334, %v5572
        %v5578 = vmul.f32 %v5555, %v5571
        %v5579 = vmul.f32 %v1855, %v5569
        %v5580 = vmul.f32 %v4619, %v5572
        %v5581 = vmul.f32 %v4620, %v5571
        %v5582 = vmul.f32 %v5187, %v5569
        %v5583 = vmul.f32 %v5335, %v5572
        %v5584 = vmul.f32 %v5556, %v5571
        %5594 = vrot.lane.b32.xlu0 %v5576, 96
        %v5595 = vpop.permute.xlu0 %5594
        %5596 = vrot.lane.b32.xlu0 %v5577, 96
        %v5597 = vpop.permute.xlu0 %5596
        %5598 = vrot.lane.b32.xlu0 %v5578, 96
        %v5599 = vpop.permute.xlu0 %5598
        %5600 = vrot.lane.b32.xlu0 %v5579, 96
        %v5601 = vpop.permute.xlu0 %5600
        %5602 = vrot.lane.b32.xlu0 %v5580, 96
        %v5603 = vpop.permute.xlu0 %5602
        %5604 = vrot.lane.b32.xlu0 %v5581, 96
        %v5605 = vpop.permute.xlu0 %5604
        %5606 = vrot.lane.b32.xlu0 %v5582, 96
        %v5607 = vpop.permute.xlu0 %5606
        %5608 = vrot.lane.b32.xlu0 %v5583, 96
        %v5609 = vpop.permute.xlu0 %5608
        %5610 = vrot.lane.b32.xlu0 %v5584, 96
        %v5611 = vpop.permute.xlu0 %5610
        %v5612 = vsel %vm1316, %v5595, %v5597
        %v5613 = vsel %vm1316, %v5597, %v5599
        %v5614 = vsel %vm1316, %v5601, %v5603
        %v5615 = vsel %vm1316, %v5603, %v5605
        %v5616 = vsel %vm1316, %v5607, %v5609
        %v5617 = vsel %vm1316, %v5609, %v5611
        %v5624 = vadd.f32 %v5549, %v5612
        %v5625 = vadd.f32 %v5550, %v5613
        %v5626 = vadd.f32 %v5551, %v5614
        %v5627 = vadd.f32 %v5552, %v5615
        %v5628 = vadd.f32 %v5553, %v5616
        %v5629 = vadd.f32 %v5554, %v5617
        %v5630 = vld [vmem:[#allocation2 + $0x50] sm:$0xfc]
        %v5631 = vld [vmem:[#allocation2 + $0x58] sm:$0xfc]
        %v5632 = vld [vmem:[#allocation2 + $0x78] sm:$0xff]
        %v5633 = vld [vmem:[#allocation2 + $0x80] sm:$0xff]
        %v5634 = vld [vmem:[#allocation2 + $0xa0] sm:$0x3]
        %v5635 = vld [vmem:[#allocation2 + $0xa8] sm:$0x3]
        %s5636 = scalar_lea.vmem [#allocation4], 146
        %v5637 = vld [vmem:[%s5636] ss:$8 sm:$0x3]
        %v5639 = vlaneseq
        %v5640 = vshrl.u32 %v5639, 7
        %v5641 = vsub.s32 0, %v5640
        %v5642 = vrot.slane %v5637, %v5641
        %v5643 = vlaneseq
        %v5644 = vshrl.u32 %v5643, 7
        %v5645 = vsub.s32 1, %v5644
        %v5646 = vrot.slane %v5637, %v5645
        %v5649 = vmul.f32 %v5630, %v5642
        %v5650 = vmul.f32 %v5631, %v5646
        %v5651 = vmul.f32 %v5632, %v5642
        %v5652 = vmul.f32 %v5633, %v5646
        %v5653 = vmul.f32 %v5634, %v5642
        %v5654 = vmul.f32 %v5635, %v5646
        %v5655 = vld [vmem:[#allocation2 + $0x60] sm:$0xfc]
        %v5656 = vld [vmem:[#allocation2 + $0x88] sm:$0xff]
        %v5657 = vld [vmem:[#allocation2 + $0xb0] sm:$0x3]
        %s5658 = scalar_lea.vmem [#allocation4], 147
        %v5659 = vld [vmem:[%s5658] ss:$8 sm:$0x3]
        %v5661 = vlaneseq
        %v5662 = vshrl.u32 %v5661, 7
        %v5663 = vsub.s32 0, %v5662
        %v5664 = vrot.slane %v5659, %v5663
        %v5665 = vlaneseq
        %v5666 = vshrl.u32 %v5665, 7
        %v5667 = vsub.s32 1, %v5666
        %v5668 = vrot.slane %v5659, %v5667
        %5669 = vrot.lane.b32.xlu0 %v5664, 48
        %v5670 = vpop.permute.xlu0 %5669
        %5671 = vrot.lane.b32.xlu0 %v5668, 48
        %v5672 = vpop.permute.xlu0 %5671
        %v5673 = vsel %vm1438, %v5670, %v5672
        %v5677 = vmul.f32 %v5630, %v5670
        %v5678 = vmul.f32 %v5631, %v5673
        %v5679 = vmul.f32 %v5655, %v5672
        %v5680 = vmul.f32 %v5632, %v5670
        %v5681 = vmul.f32 %v5633, %v5673
        %v5682 = vmul.f32 %v5656, %v5672
        %v5683 = vmul.f32 %v5634, %v5670
        %v5684 = vmul.f32 %v5635, %v5673
        %v5685 = vmul.f32 %v5657, %v5672
        %5695 = vrot.lane.b32.xlu0 %v5677, 80
        %v5696 = vpop.permute.xlu0 %5695
        %5697 = vrot.lane.b32.xlu0 %v5678, 80
        %v5698 = vpop.permute.xlu0 %5697
        %5699 = vrot.lane.b32.xlu0 %v5679, 80
        %v5700 = vpop.permute.xlu0 %5699
        %5701 = vrot.lane.b32.xlu0 %v5680, 80
        %v5702 = vpop.permute.xlu0 %5701
        %5703 = vrot.lane.b32.xlu0 %v5681, 80
        %v5704 = vpop.permute.xlu0 %5703
        %5705 = vrot.lane.b32.xlu0 %v5682, 80
        %v5706 = vpop.permute.xlu0 %5705
        %5707 = vrot.lane.b32.xlu0 %v5683, 80
        %v5708 = vpop.permute.xlu0 %5707
        %5709 = vrot.lane.b32.xlu0 %v5684, 80
        %v5710 = vpop.permute.xlu0 %5709
        %5711 = vrot.lane.b32.xlu0 %v5685, 80
        %v5712 = vpop.permute.xlu0 %5711
        %v5713 = vsel %vm1246, %v5696, %v5698
        %v5714 = vsel %vm1246, %v5698, %v5700
        %v5715 = vsel %vm1246, %v5702, %v5704
        %v5716 = vsel %vm1246, %v5704, %v5706
        %v5717 = vsel %vm1246, %v5708, %v5710
        %v5718 = vsel %vm1246, %v5710, %v5712
        %v5725 = vadd.f32 %v5649, %v5713
        %v5726 = vadd.f32 %v5650, %v5714
        %v5727 = vadd.f32 %v5651, %v5715
        %v5728 = vadd.f32 %v5652, %v5716
        %v5729 = vadd.f32 %v5653, %v5717
        %v5730 = vadd.f32 %v5654, %v5718
        %s5731 = scalar_lea.vmem [#allocation4], 148
        %v5732 = vld [vmem:[%s5731] ss:$8 sm:$0x3]
        %v5734 = vlaneseq
        %v5735 = vshrl.u32 %v5734, 7
        %v5736 = vsub.s32 0, %v5735
        %v5737 = vrot.slane %v5732, %v5736
        %v5738 = vlaneseq
        %v5739 = vshrl.u32 %v5738, 7
        %v5740 = vsub.s32 1, %v5739
        %v5741 = vrot.slane %v5732, %v5740
        %5742 = vrot.lane.b32.xlu0 %v5737, 96
        %v5743 = vpop.permute.xlu0 %5742
        %5744 = vrot.lane.b32.xlu0 %v5741, 96
        %v5745 = vpop.permute.xlu0 %5744
        %v5746 = vsel %vm1316, %v5743, %v5745
        %v5750 = vmul.f32 %v5630, %v5743
        %v5751 = vmul.f32 %v5631, %v5746
        %v5752 = vmul.f32 %v5655, %v5745
        %v5753 = vmul.f32 %v5632, %v5743
        %v5754 = vmul.f32 %v5633, %v5746
        %v5755 = vmul.f32 %v5656, %v5745
        %v5756 = vmul.f32 %v5634, %v5743
        %v5757 = vmul.f32 %v5635, %v5746
        %v5758 = vmul.f32 %v5657, %v5745
        %5768 = vrot.lane.b32.xlu0 %v5750, 32
        %v5769 = vpop.permute.xlu0 %5768
        %5770 = vrot.lane.b32.xlu0 %v5751, 32
        %v5771 = vpop.permute.xlu0 %5770
        %5772 = vrot.lane.b32.xlu0 %v5752, 32
        %v5773 = vpop.permute.xlu0 %5772
        %5774 = vrot.lane.b32.xlu0 %v5753, 32
        %v5775 = vpop.permute.xlu0 %5774
        %5776 = vrot.lane.b32.xlu0 %v5754, 32
        %v5777 = vpop.permute.xlu0 %5776
        %5778 = vrot.lane.b32.xlu0 %v5755, 32
        %v5779 = vpop.permute.xlu0 %5778
        %5780 = vrot.lane.b32.xlu0 %v5756, 32
        %v5781 = vpop.permute.xlu0 %5780
        %5782 = vrot.lane.b32.xlu0 %v5757, 32
        %v5783 = vpop.permute.xlu0 %5782
        %5784 = vrot.lane.b32.xlu0 %v5758, 32
        %v5785 = vpop.permute.xlu0 %5784
        %v5786 = vsel %vm331, %v5769, %v5771
        %v5787 = vsel %vm331, %v5771, %v5773
        %v5788 = vsel %vm331, %v5775, %v5777
        %v5789 = vsel %vm331, %v5777, %v5779
        %v5790 = vsel %vm331, %v5781, %v5783
        %v5791 = vsel %vm331, %v5783, %v5785
        %v5798 = vadd.f32 %v5725, %v5786
        %v5799 = vadd.f32 %v5726, %v5787
        %v5800 = vadd.f32 %v5727, %v5788
        %v5801 = vadd.f32 %v5728, %v5789
        %v5802 = vadd.f32 %v5729, %v5790
        %v5803 = vadd.f32 %v5730, %v5791
        %v5804 = vld [vmem:[#allocation2 + $0x68] sm:$0xfc]
        %v5805 = vld [vmem:[#allocation2 + $0x90] sm:$0xff]
        %v5806 = vld [vmem:[#allocation2 + $0xb8] sm:$0x3]
        %s5807 = scalar_lea.vmem [#allocation4], 149
        %v5808 = vld [vmem:[%s5807] ss:$8 sm:$0x3]
        %v5810 = vlaneseq
        %v5811 = vshrl.u32 %v5810, 7
        %v5812 = vsub.s32 0, %v5811
        %v5813 = vrot.slane %v5808, %v5812
        %v5814 = vlaneseq
        %v5815 = vshrl.u32 %v5814, 7
        %v5816 = vsub.s32 1, %v5815
        %v5817 = vrot.slane %v5808, %v5816
        %5818 = vrot.lane.b32.xlu0 %v5813, 16
        %v5819 = vpop.permute.xlu0 %5818
        %5820 = vrot.lane.b32.xlu0 %v5817, 16
        %v5821 = vpop.permute.xlu0 %5820
        %v5822 = vsel %vm377, %v5819, %v5821
        %v5826 = vmul.f32 %v5631, %v5819
        %v5827 = vmul.f32 %v5655, %v5822
        %v5828 = vmul.f32 %v5804, %v5821
        %v5829 = vmul.f32 %v5633, %v5819
        %v5830 = vmul.f32 %v5656, %v5822
        %v5831 = vmul.f32 %v5805, %v5821
        %v5832 = vmul.f32 %v5635, %v5819
        %v5833 = vmul.f32 %v5657, %v5822
        %v5834 = vmul.f32 %v5806, %v5821
        %5844 = vrot.lane.b32.xlu0 %v5826, 112
        %v5845 = vpop.permute.xlu0 %5844
        %5846 = vrot.lane.b32.xlu0 %v5827, 112
        %v5847 = vpop.permute.xlu0 %5846
        %5848 = vrot.lane.b32.xlu0 %v5828, 112
        %v5849 = vpop.permute.xlu0 %5848
        %5850 = vrot.lane.b32.xlu0 %v5829, 112
        %v5851 = vpop.permute.xlu0 %5850
        %5852 = vrot.lane.b32.xlu0 %v5830, 112
        %v5853 = vpop.permute.xlu0 %5852
        %5854 = vrot.lane.b32.xlu0 %v5831, 112
        %v5855 = vpop.permute.xlu0 %5854
        %5856 = vrot.lane.b32.xlu0 %v5832, 112
        %v5857 = vpop.permute.xlu0 %5856
        %5858 = vrot.lane.b32.xlu0 %v5833, 112
        %v5859 = vpop.permute.xlu0 %5858
        %5860 = vrot.lane.b32.xlu0 %v5834, 112
        %v5861 = vpop.permute.xlu0 %5860
        %v5862 = vsel %vm1275, %v5845, %v5847
        %v5863 = vsel %vm1275, %v5847, %v5849
        %v5864 = vsel %vm1275, %v5851, %v5853
        %v5865 = vsel %vm1275, %v5853, %v5855
        %v5866 = vsel %vm1275, %v5857, %v5859
        %v5867 = vsel %vm1275, %v5859, %v5861
        %v5874 = vadd.f32 %v5798, %v5862
        %v5875 = vadd.f32 %v5799, %v5863
        %v5876 = vadd.f32 %v5800, %v5864
        %v5877 = vadd.f32 %v5801, %v5865
        %v5878 = vadd.f32 %v5802, %v5866
        %v5879 = vadd.f32 %v5803, %v5867
        %s5880 = scalar_lea.vmem [#allocation4], 150
        %v5881 = vld [vmem:[%s5880] ss:$8 sm:$0x3]
        %v5883 = vlaneseq
        %v5884 = vshrl.u32 %v5883, 7
        %v5885 = vsub.s32 0, %v5884
        %v5886 = vrot.slane %v5881, %v5885
        %v5887 = vlaneseq
        %v5888 = vshrl.u32 %v5887, 7
        %v5889 = vsub.s32 1, %v5888
        %v5890 = vrot.slane %v5881, %v5889
        %5891 = vrot.lane.b32.xlu0 %v5886, 64
        %v5892 = vpop.permute.xlu0 %5891
        %5893 = vrot.lane.b32.xlu0 %v5890, 64
        %v5894 = vpop.permute.xlu0 %5893
        %v5895 = vsel %vm1398, %v5892, %v5894
        %v5899 = vmul.f32 %v5631, %v5892
        %v5900 = vmul.f32 %v5655, %v5895
        %v5901 = vmul.f32 %v5804, %v5894
        %v5902 = vmul.f32 %v5633, %v5892
        %v5903 = vmul.f32 %v5656, %v5895
        %v5904 = vmul.f32 %v5805, %v5894
        %v5905 = vmul.f32 %v5635, %v5892
        %v5906 = vmul.f32 %v5657, %v5895
        %v5907 = vmul.f32 %v5806, %v5894
        %5917 = vrot.lane.b32.xlu0 %v5899, 64
        %v5918 = vpop.permute.xlu0 %5917
        %5919 = vrot.lane.b32.xlu0 %v5900, 64
        %v5920 = vpop.permute.xlu0 %5919
        %5921 = vrot.lane.b32.xlu0 %v5901, 64
        %v5922 = vpop.permute.xlu0 %5921
        %5923 = vrot.lane.b32.xlu0 %v5902, 64
        %v5924 = vpop.permute.xlu0 %5923
        %5925 = vrot.lane.b32.xlu0 %v5903, 64
        %v5926 = vpop.permute.xlu0 %5925
        %5927 = vrot.lane.b32.xlu0 %v5904, 64
        %v5928 = vpop.permute.xlu0 %5927
        %5929 = vrot.lane.b32.xlu0 %v5905, 64
        %v5930 = vpop.permute.xlu0 %5929
        %5931 = vrot.lane.b32.xlu0 %v5906, 64
        %v5932 = vpop.permute.xlu0 %5931
        %5933 = vrot.lane.b32.xlu0 %v5907, 64
        %v5934 = vpop.permute.xlu0 %5933
        %v5935 = vsel %vm1398, %v5918, %v5920
        %v5936 = vsel %vm1398, %v5920, %v5922
        %v5937 = vsel %vm1398, %v5924, %v5926
        %v5938 = vsel %vm1398, %v5926, %v5928
        %v5939 = vsel %vm1398, %v5930, %v5932
        %v5940 = vsel %vm1398, %v5932, %v5934
        %v5947 = vadd.f32 %v5874, %v5935
        %v5948 = vadd.f32 %v5875, %v5936
        %v5949 = vadd.f32 %v5876, %v5937
        %v5950 = vadd.f32 %v5877, %v5938
        %v5951 = vadd.f32 %v5878, %v5939
        %v5952 = vadd.f32 %v5879, %v5940
        %s5953 = scalar_lea.vmem [#allocation4], 151
        %v5954 = vld [vmem:[%s5953] ss:$8 sm:$0x3]
        %v5956 = vlaneseq
        %v5957 = vshrl.u32 %v5956, 7
        %v5958 = vsub.s32 0, %v5957
        %v5959 = vrot.slane %v5954, %v5958
        %v5960 = vlaneseq
        %v5961 = vshrl.u32 %v5960, 7
        %v5962 = vsub.s32 1, %v5961
        %v5963 = vrot.slane %v5954, %v5962
        %5964 = vrot.lane.b32.xlu0 %v5959, 112
        %v5965 = vpop.permute.xlu0 %5964
        %5966 = vrot.lane.b32.xlu0 %v5963, 112
        %v5967 = vpop.permute.xlu0 %5966
        %v5968 = vsel %vm1275, %v5965, %v5967
        %v5972 = vmul.f32 %v5631, %v5965
        %v5973 = vmul.f32 %v5655, %v5968
        %v5974 = vmul.f32 %v5804, %v5967
        %v5975 = vmul.f32 %v5633, %v5965
        %v5976 = vmul.f32 %v5656, %v5968
        %v5977 = vmul.f32 %v5805, %v5967
        %v5978 = vmul.f32 %v5635, %v5965
        %v5979 = vmul.f32 %v5657, %v5968
        %v5980 = vmul.f32 %v5806, %v5967
        %5990 = vrot.lane.b32.xlu0 %v5972, 16
        %v5991 = vpop.permute.xlu0 %5990
        %5992 = vrot.lane.b32.xlu0 %v5973, 16
        %v5993 = vpop.permute.xlu0 %5992
        %5994 = vrot.lane.b32.xlu0 %v5974, 16
        %v5995 = vpop.permute.xlu0 %5994
        %5996 = vrot.lane.b32.xlu0 %v5975, 16
        %v5997 = vpop.permute.xlu0 %5996
        %5998 = vrot.lane.b32.xlu0 %v5976, 16
        %v5999 = vpop.permute.xlu0 %5998
        %6000 = vrot.lane.b32.xlu0 %v5977, 16
        %v6001 = vpop.permute.xlu0 %6000
        %6002 = vrot.lane.b32.xlu0 %v5978, 16
        %v6003 = vpop.permute.xlu0 %6002
        %6004 = vrot.lane.b32.xlu0 %v5979, 16
        %v6005 = vpop.permute.xlu0 %6004
        %6006 = vrot.lane.b32.xlu0 %v5980, 16
        %v6007 = vpop.permute.xlu0 %6006
        %v6008 = vsel %vm377, %v5991, %v5993
        %v6009 = vsel %vm377, %v5993, %v5995
        %v6010 = vsel %vm377, %v5997, %v5999
        %v6011 = vsel %vm377, %v5999, %v6001
        %v6012 = vsel %vm377, %v6003, %v6005
        %v6013 = vsel %vm377, %v6005, %v6007
        %v6020 = vadd.f32 %v5947, %v6008
        %v6021 = vadd.f32 %v5948, %v6009
        %v6022 = vadd.f32 %v5949, %v6010
        %v6023 = vadd.f32 %v5950, %v6011
        %v6024 = vadd.f32 %v5951, %v6012
        %v6025 = vadd.f32 %v5952, %v6013
        %v6026 = vld [vmem:[#allocation2 + $0x70] sm:$0xfc]
        %v6027 = vld [vmem:[#allocation2 + $0x98] sm:$0xff]
        %v6028 = vld [vmem:[#allocation2 + $0xc0] sm:$0x3]
        %s6029 = scalar_lea.vmem [#allocation4], 160
        %v6030 = vld [vmem:[%s6029] ss:$8 sm:$0x3]
        %v6032 = vlaneseq
        %v6033 = vshrl.u32 %v6032, 7
        %v6034 = vsub.s32 0, %v6033
        %v6035 = vrot.slane %v6030, %v6034
        %v6036 = vlaneseq
        %v6037 = vshrl.u32 %v6036, 7
        %v6038 = vsub.s32 1, %v6037
        %v6039 = vrot.slane %v6030, %v6038
        %6040 = vrot.lane.b32.xlu0 %v6035, 32
        %v6041 = vpop.permute.xlu0 %6040
        %6042 = vrot.lane.b32.xlu0 %v6039, 32
        %v6043 = vpop.permute.xlu0 %6042
        %v6044 = vsel %vm331, %v6041, %v6043
        %v6048 = vmul.f32 %v5655, %v6041
        %v6049 = vmul.f32 %v5804, %v6044
        %v6050 = vmul.f32 %v6026, %v6043
        %v6051 = vmul.f32 %v5656, %v6041
        %v6052 = vmul.f32 %v5805, %v6044
        %v6053 = vmul.f32 %v6027, %v6043
        %v6054 = vmul.f32 %v5657, %v6041
        %v6055 = vmul.f32 %v5806, %v6044
        %v6056 = vmul.f32 %v6028, %v6043
        %6066 = vrot.lane.b32.xlu0 %v6048, 96
        %v6067 = vpop.permute.xlu0 %6066
        %6068 = vrot.lane.b32.xlu0 %v6049, 96
        %v6069 = vpop.permute.xlu0 %6068
        %6070 = vrot.lane.b32.xlu0 %v6050, 96
        %v6071 = vpop.permute.xlu0 %6070
        %6072 = vrot.lane.b32.xlu0 %v6051, 96
        %v6073 = vpop.permute.xlu0 %6072
        %6074 = vrot.lane.b32.xlu0 %v6052, 96
        %v6075 = vpop.permute.xlu0 %6074
        %6076 = vrot.lane.b32.xlu0 %v6053, 96
        %v6077 = vpop.permute.xlu0 %6076
        %6078 = vrot.lane.b32.xlu0 %v6054, 96
        %v6079 = vpop.permute.xlu0 %6078
        %6080 = vrot.lane.b32.xlu0 %v6055, 96
        %v6081 = vpop.permute.xlu0 %6080
        %6082 = vrot.lane.b32.xlu0 %v6056, 96
        %v6083 = vpop.permute.xlu0 %6082
        %v6084 = vsel %vm1316, %v6067, %v6069
        %v6085 = vsel %vm1316, %v6069, %v6071
        %v6086 = vsel %vm1316, %v6073, %v6075
        %v6087 = vsel %vm1316, %v6075, %v6077
        %v6088 = vsel %vm1316, %v6079, %v6081
        %v6089 = vsel %vm1316, %v6081, %v6083
        %v6096 = vadd.f32 %v6020, %v6084
        %v6097 = vadd.f32 %v6021, %v6085
        %v6098 = vadd.f32 %v6022, %v6086
        %v6099 = vadd.f32 %v6023, %v6087
        %v6100 = vadd.f32 %v6024, %v6088
        %v6101 = vadd.f32 %v6025, %v6089
        %vm6108 = vcmask 1044480
        %v6109 = vrot.slane %v3760, 3
        %v6110 = vrot.slane %v3762, 3
        %v6111 = vsel %vm6108, %v6109, %v6110
        %v6112 = vrot.slane %v3761, 3
        %v6113 = vrot.slane %v3763, 3
        %v6114 = vsel %vm6108, %v6112, %v6113
        %v6115 = vrot.slane %v3764, 3
        %v6116 = vsel %vm6108, %v6110, %v6115
        %v6117 = vrot.slane %v3765, 3
        %v6118 = vsel %vm6108, %v6113, %v6117
        %v6123 = vadd.f32 %v3295, %v6111
        %v6124 = vadd.f32 %v3296, %v6114
        %v6125 = vadd.f32 %v3297, %v6116
        %v6126 = vadd.f32 %v3298, %v6118
        %v6133 = vrot.slane %v4690, 3
        %v6134 = vrot.slane %v4691, 3
        %v6135 = vrot.slane %v4692, 3
        %v6136 = vsel %vm6108, %v6133, %v6135
        %v6137 = vrot.slane %v4693, 3
        %v6138 = vsel %vm6108, %v6134, %v6137
        %v6139 = vrot.slane %v4694, 3
        %v6140 = vsel %vm6108, %v6135, %v6139
        %v6141 = vrot.slane %v4695, 3
        %v6142 = vsel %vm6108, %v6137, %v6141
        %v6149 = vadd.f32 %v4227, %v6133
        %v6150 = vadd.f32 %v4228, %v6134
        %v6151 = vadd.f32 %v4229, %v6136
        %v6152 = vadd.f32 %v4230, %v6138
        %v6153 = vadd.f32 %v4231, %v6140
        %v6154 = vadd.f32 %v4232, %v6142
        %v6161 = vrot.slane %v5624, 3
        %v6162 = vrot.slane %v5626, 3
        %v6163 = vsel %vm6108, %v6161, %v6162
        %v6164 = vrot.slane %v5625, 3
        %v6165 = vrot.slane %v5627, 3
        %v6166 = vsel %vm6108, %v6164, %v6165
        %v6167 = vrot.slane %v5628, 3
        %v6168 = vsel %vm6108, %v6162, %v6167
        %v6169 = vrot.slane %v5629, 3
        %v6170 = vsel %vm6108, %v6165, %v6169
        %v6177 = vadd.f32 %v5157, %v6163
        %v6178 = vadd.f32 %v5158, %v6166
        %v6179 = vadd.f32 %v5159, %v6168
        %v6180 = vadd.f32 %v5160, %v6170
        %v6181 = vadd.f32 %v5161, %v6167
        %v6182 = vadd.f32 %v5162, %v6169
        %vm6189 = vcmask 1041408
        %v6190 = vrot.slane %v6149, 6
        %v6191 = vrot.slane %v6151, 6
        %v6192 = vsel %vm6189, %v6190, %v6191
        %v6193 = vrot.slane %v6150, 6
        %v6194 = vrot.slane %v6152, 6
        %v6195 = vsel %vm6189, %v6193, %v6194
        %v6196 = vrot.slane %v6153, 6
        %v6197 = vsel %vm6189, %v6191, %v6196
        %v6198 = vrot.slane %v6154, 6
        %v6199 = vsel %vm6189, %v6194, %v6198
        %v6204 = vadd.f32 %v6123, %v6192
        %v6205 = vadd.f32 %v6124, %v6195
        %v6206 = vadd.f32 %v6125, %v6197
        %v6207 = vadd.f32 %v6126, %v6199
        %v6214 = vrot.slane %v6096, 6
        %v6215 = vrot.slane %v6097, 6
        %v6216 = vrot.slane %v6098, 6
        %v6217 = vsel %vm6189, %v6214, %v6216
        %v6218 = vrot.slane %v6099, 6
        %v6219 = vsel %vm6189, %v6215, %v6218
        %v6220 = vrot.slane %v6100, 6
        %v6221 = vsel %vm6189, %v6216, %v6220
        %v6222 = vrot.slane %v6101, 6
        %v6223 = vsel %vm6189, %v6218, %v6222
        %v6230 = vadd.f32 %v6177, %v6214
        %v6231 = vadd.f32 %v6178, %v6215
        %v6232 = vadd.f32 %v6179, %v6217
        %v6233 = vadd.f32 %v6180, %v6219
        %v6234 = vadd.f32 %v6181, %v6221
        %v6235 = vadd.f32 %v6182, %v6223
        %v6242 = vrot.slane %v6230, 4
        %v6243 = vrot.slane %v6232, 4
        %v6244 = vsel %vm2874, %v6242, %v6243
        %v6245 = vrot.slane %v6231, 4
        %v6246 = vrot.slane %v6233, 4
        %v6247 = vsel %vm2874, %v6245, %v6246
        %v6248 = vrot.slane %v6234, 4
        %v6249 = vsel %vm2874, %v6243, %v6248
        %v6250 = vrot.slane %v6235, 4
        %v6251 = vsel %vm2874, %v6246, %v6250
        %v6256 = vadd.f32 %v6204, %v6244
        %v6257 = vadd.f32 %v6205, %v6247
        %v6258 = vadd.f32 %v6206, %v6249
        %v6259 = vadd.f32 %v6207, %v6251
        %s6260 = scalar_lea.vmem [#allocation4], 4
        %v6261 = vld [vmem:[%s6260] ss:$8 sm:$0x3]
        %v6263 = vlaneseq
        %v6264 = vshrl.u32 %v6263, 7
        %v6265 = vsub.s32 0, %v6264
        %v6266 = vrot.slane %v6261, %v6265
        %v6267 = vlaneseq
        %v6268 = vshrl.u32 %v6267, 7
        %v6269 = vsub.s32 1, %v6268
        %v6270 = vrot.slane %v6261, %v6269
        %v6273 = vadd.f32 %v6256, %v6266
        %v6274 = vadd.f32 %v6257, %v6270
        %v6275 = vadd.f32 %v6258, %v6266
        %v6276 = vadd.f32 %v6259, %v6270
        %vm6286 = vcmask 1042432
        %v6287 = vrot.slane %v2936, 5
        %v6288 = vrot.slane %v2939, 5
        %v6289 = vsel %vm6286, %v6287, %v6288
        %v6290 = vrot.slane %v2937, 5
        %v6291 = vrot.slane %v2940, 5
        %v6292 = vsel %vm6286, %v6290, %v6291
        %v6293 = vrot.slane %v2938, 5
        %v6294 = vrot.slane %v2941, 5
        %v6295 = vsel %vm6286, %v6293, %v6294
        %v6296 = vrot.slane %v2942, 5
        %v6297 = vsel %vm6286, %v6288, %v6296
        %v6298 = vrot.slane %v2943, 5
        %v6299 = vsel %vm6286, %v6291, %v6298
        %v6300 = vrot.slane %v2944, 5
        %v6301 = vsel %vm6286, %v6294, %v6300
        %6302 = vrot.lane.b32.xlu0 %v6289, 48
        %v6303 = vpop.permute.xlu0 %6302
        %6304 = vrot.lane.b32.xlu0 %v6292, 48
        %v6305 = vpop.permute.xlu0 %6304
        %6306 = vrot.lane.b32.xlu0 %v6295, 48
        %v6307 = vpop.permute.xlu0 %6306
        %6308 = vrot.lane.b32.xlu0 %v6297, 48
        %v6309 = vpop.permute.xlu0 %6308
        %6310 = vrot.lane.b32.xlu0 %v6299, 48
        %v6311 = vpop.permute.xlu0 %6310
        %6312 = vrot.lane.b32.xlu0 %v6301, 48
        %v6313 = vpop.permute.xlu0 %6312
        %v6314 = vsel %vm1438, %v6303, %v6305
        %v6315 = vsel %vm1438, %v6305, %v6307
        %v6316 = vsel %vm1438, %v6309, %v6311
        %v6317 = vsel %vm1438, %v6311, %v6313
        %v6322 = vld [vmem:[#allocation6 + $0x6c0] sm:$0xff]
        %v6323 = vld [vmem:[#allocation6 + $0x6c8] sm:$0xff]
        %v6324 = vld [vmem:[#allocation6 + $0x6d0] sm:$0xff]
        %v6325 = vld [vmem:[#allocation6 + $0x6d8] sm:$0xff]
        %v6326 = vld [vmem:[#allocation6 + $0x6e0] sm:$0xff]
        %v6327 = vld [vmem:[#allocation6 + $0x6e8] sm:$0xff]
        %v6328 = vld [vmem:[#allocation6 + $0x6f0] sm:$0xff]
        %v6329 = vld [vmem:[#allocation6 + $0x6f8] sm:$0xff]
        %v6330 = vld [vmem:[#allocation6 + $0x700] sm:$0xff]
        %v6331 = vld [vmem:[#allocation6 + $0x708] sm:$0xff]
        %v6332 = vld [vmem:[#allocation6 + $0x710] sm:$0xff]
        %v6333 = vld [vmem:[#allocation6 + $0x718] sm:$0xff]
        %v6334 = vld [vmem:[#allocation6 + $0x720] sm:$0xff]
        %v6335 = vld [vmem:[#allocation6 + $0x728] sm:$0xff]
        %v6336 = vld [vmem:[#allocation6 + $0x730] sm:$0xff]
        %v6337 = vld [vmem:[#allocation6 + $0x738] sm:$0xff]
        %v6338 = vld [vmem:[#allocation6 + $0x740] sm:$0xff]
        %v6339 = vld [vmem:[#allocation6 + $0x748] sm:$0xff]
        %v6340 = vld [vmem:[#allocation6 + $0x750] sm:$0xff]
        %v6341 = vld [vmem:[#allocation6 + $0x758] sm:$0xff]
        %v6342 = vld [vmem:[#allocation6 + $0x760] sm:$0xff]
        %v6343 = vld [vmem:[#allocation6 + $0x768] sm:$0xff]
        %v6344 = vld [vmem:[#allocation6 + $0x770] sm:$0xff]
        %v6345 = vld [vmem:[#allocation6 + $0x778] sm:$0xff]
        %v6346 = vld [vmem:[#allocation6 + $0x780] sm:$0xff]
        %v6347 = vld [vmem:[#allocation6 + $0x788] sm:$0xff]
        %v6348 = vld [vmem:[#allocation6 + $0x790] sm:$0xff]
        %v6349 = vld [vmem:[#allocation6 + $0x798] sm:$0xff]
        %v6350 = vld [vmem:[#allocation6 + $0x7a0] sm:$0xff]
        %v6351 = vld [vmem:[#allocation6 + $0x7a8] sm:$0xff]
        %v6352 = vld [vmem:[#allocation6 + $0x7b0] sm:$0xff]
        %v6353 = vld [vmem:[#allocation6 + $0x7b8] sm:$0xff]
        %v6354 = vld [vmem:[#allocation6 + $0x7c0] sm:$0xff]
        %v6355 = vld [vmem:[#allocation6 + $0x7c8] sm:$0xff]
        %v6356 = vld [vmem:[#allocation6 + $0x7d0] sm:$0xff]
        %v6357 = vld [vmem:[#allocation6 + $0x7d8] sm:$0xff]
        %v6358 = vld [vmem:[#allocation6 + $0x7e0] sm:$0xff]
        %v6359 = vld [vmem:[#allocation6 + $0x7e8] sm:$0xff]
        %v6360 = vld [vmem:[#allocation6 + $0x7f0] sm:$0xff]
        %v6361 = vld [vmem:[#allocation6 + $0x7f8] sm:$0xff]
        %v6362 = vld [vmem:[#allocation6 + $0x800] sm:$0xff]
        %v6363 = vld [vmem:[#allocation6 + $0x808] sm:$0xff]
        %v6364 = vld [vmem:[#allocation6 + $0x810] sm:$0xff]
        %v6365 = vld [vmem:[#allocation6 + $0x818] sm:$0xff]
        %v6366 = vld [vmem:[#allocation6 + $0x820] sm:$0xff]
        %v6367 = vld [vmem:[#allocation6 + $0x828] sm:$0xff]
        %v6368 = vld [vmem:[#allocation6 + $0x830] sm:$0xff]
        %v6369 = vld [vmem:[#allocation6 + $0x838] sm:$0xff]
        %v6370 = vld [vmem:[#allocation6 + $0x840] sm:$0xff]
        %v6371 = vld [vmem:[#allocation6 + $0x848] sm:$0xff]
        %v6372 = vld [vmem:[#allocation6 + $0x850] sm:$0xff]
        %v6373 = vld [vmem:[#allocation6 + $0x858] sm:$0xff]
        %v6374 = vld [vmem:[#allocation6 + $0x860] sm:$0xff]
        %v6375 = vld [vmem:[#allocation6 + $0x868] sm:$0xff]
        %v6376 = vld [vmem:[#allocation6 + $0x870] sm:$0xff]
        %v6377 = vld [vmem:[#allocation6 + $0x878] sm:$0xff]
        %v6378 = vld [vmem:[#allocation6 + $0x880] sm:$0xff]
        %v6379 = vld [vmem:[#allocation6 + $0x888] sm:$0xff]
        %v6380 = vld [vmem:[#allocation6 + $0x890] sm:$0xff]
        %v6381 = vld [vmem:[#allocation6 + $0x898] sm:$0xff]
        %v6382 = vld [vmem:[#allocation6 + $0x8a0] sm:$0xff]
        %v6383 = vld [vmem:[#allocation6 + $0x8a8] sm:$0xff]
        %v6384 = vld [vmem:[#allocation6 + $0x8b0] sm:$0xff]
        %v6385 = vld [vmem:[#allocation6 + $0x8b8] sm:$0xff]
        %v6386 = vld [vmem:[#allocation6 + $0x8c0] sm:$0xff]
        %v6387 = vld [vmem:[#allocation6 + $0x8c8] sm:$0xff]
        %v6388 = vld [vmem:[#allocation6 + $0x8d0] sm:$0xff]
        %v6389 = vld [vmem:[#allocation6 + $0x8d8] sm:$0xff]
        %v6390 = vld [vmem:[#allocation6 + $0x8e0] sm:$0xff]
        %v6391 = vld [vmem:[#allocation6 + $0x8e8] sm:$0xff]
        %v6392 = vld [vmem:[#allocation6 + $0x8f0] sm:$0xff]
        %v6393 = vld [vmem:[#allocation6 + $0x8f8] sm:$0xff]
        %v6394 = vld [vmem:[#allocation6 + $0x900] sm:$0xff]
        %v6395 = vld [vmem:[#allocation6 + $0x908] sm:$0xff]
        %v6396 = vld [vmem:[#allocation6 + $0x910] sm:$0xff]
        %v6397 = vld [vmem:[#allocation6 + $0x918] sm:$0xff]
        %v6398 = vld [vmem:[#allocation6 + $0x920] sm:$0xff]
        %v6399 = vld [vmem:[#allocation6 + $0x928] sm:$0xff]
        %v6400 = vld [vmem:[#allocation6 + $0x930] sm:$0xff]
        %v6401 = vld [vmem:[#allocation6 + $0x938] sm:$0xff]
        %v6402 = vld [vmem:[#allocation6 + $0x940] sm:$0xff]
        %v6403 = vld [vmem:[#allocation6 + $0x948] sm:$0xff]
        %v6404 = vld [vmem:[#allocation6 + $0x950] sm:$0xff]
        %v6405 = vld [vmem:[#allocation6 + $0x958] sm:$0xff]
        %v6406 = vld [vmem:[#allocation6 + $0x960] sm:$0xff]
        %v6407 = vld [vmem:[#allocation6 + $0x968] sm:$0xff]
        %v6408 = vld [vmem:[#allocation6 + $0x970] sm:$0xff]
        %v6409 = vld [vmem:[#allocation6 + $0x978] sm:$0xff]
        %v6410 = vld [vmem:[#allocation6 + $0x980] sm:$0xff]
        %v6411 = vld [vmem:[#allocation6 + $0x988] sm:$0xff]
        %v6412 = vld [vmem:[#allocation6 + $0x990] sm:$0xff]
        %v6413 = vld [vmem:[#allocation6 + $0x998] sm:$0xff]
        %v6414 = vld [vmem:[#allocation6 + $0x9a0] sm:$0xff]
        %v6415 = vld [vmem:[#allocation6 + $0x9a8] sm:$0xff]
        %v6416 = vld [vmem:[#allocation6 + $0x9b0] sm:$0xff]
        %v6417 = vld [vmem:[#allocation6 + $0x9b8] sm:$0xff]
        %v6418 = vld [vmem:[#allocation6 + $0x9c0] sm:$0xff]
        %v6419 = vld [vmem:[#allocation6 + $0x9c8] sm:$0xff]
        %v6420 = vld [vmem:[#allocation6 + $0x9d0] sm:$0xff]
        %v6421 = vld [vmem:[#allocation6 + $0x9d8] sm:$0xff]
        %v6422 = vld [vmem:[#allocation6 + $0x9e0] sm:$0xff]
        %v6423 = vld [vmem:[#allocation6 + $0x9e8] sm:$0xff]
        %v6424 = vld [vmem:[#allocation6 + $0x9f0] sm:$0xff]
        %v6425 = vld [vmem:[#allocation6 + $0x9f8] sm:$0xff]
        %v6426 = vld [vmem:[#allocation6 + $0xa00] sm:$0xff]
        %v6427 = vld [vmem:[#allocation6 + $0xa08] sm:$0xff]
        %v6428 = vld [vmem:[#allocation6 + $0xa10] sm:$0xff]
        %v6429 = vld [vmem:[#allocation6 + $0xa18] sm:$0xff]
        %v6430 = vld [vmem:[#allocation6 + $0xa20] sm:$0xff]
        %v6431 = vld [vmem:[#allocation6 + $0xa28] sm:$0xff]
        %v6432 = vld [vmem:[#allocation6 + $0xa30] sm:$0xff]
        %v6433 = vld [vmem:[#allocation6 + $0xa38] sm:$0xff]
        %v6434 = vld [vmem:[#allocation6 + $0xa40] sm:$0xff]
        %v6435 = vld [vmem:[#allocation6 + $0xa48] sm:$0xff]
        %v6436 = vld [vmem:[#allocation6 + $0xa50] sm:$0xff]
        %v6437 = vld [vmem:[#allocation6 + $0xa58] sm:$0xff]
        %v6438 = vld [vmem:[#allocation6 + $0xa60] sm:$0xff]
        %v6439 = vld [vmem:[#allocation6 + $0xa68] sm:$0xff]
        %v6440 = vld [vmem:[#allocation6 + $0xa70] sm:$0xff]
        %v6441 = vld [vmem:[#allocation6 + $0xa78] sm:$0xff]
        %v6442 = vld [vmem:[#allocation6 + $0xa80] sm:$0xff]
        %v6443 = vld [vmem:[#allocation6 + $0xa88] sm:$0xff]
        %v6444 = vld [vmem:[#allocation6 + $0xa90] sm:$0xff]
        %v6445 = vld [vmem:[#allocation6 + $0xa98] sm:$0xff]
        %v6446 = vld [vmem:[#allocation6 + $0xaa0] sm:$0xff]
        %v6447 = vld [vmem:[#allocation6 + $0xaa8] sm:$0xff]
        %v6448 = vld [vmem:[#allocation6 + $0xab0] sm:$0xff]
        %v6449 = vld [vmem:[#allocation6 + $0xab8] sm:$0xff]
        %v6450 = vld [vmem:[#allocation6 + $0xac0] sm:$0xff]
        %v6451 = vld [vmem:[#allocation6 + $0xac8] sm:$0xff]
        %v6452 = vld [vmem:[#allocation6 + $0xad0] sm:$0xff]
        %v6453 = vld [vmem:[#allocation6 + $0xad8] sm:$0xff]
        %v6454 = vld [vmem:[#allocation6 + $0xae0] sm:$0xff]
        %v6455 = vld [vmem:[#allocation6 + $0xae8] sm:$0xff]
        %v6456 = vld [vmem:[#allocation6 + $0xaf0] sm:$0xff]
        %v6457 = vld [vmem:[#allocation6 + $0xaf8] sm:$0xff]
        %v6458 = vld [vmem:[#allocation6 + $0xb00] sm:$0xff]
        %v6459 = vld [vmem:[#allocation6 + $0xb08] sm:$0xff]
        %v6460 = vld [vmem:[#allocation6 + $0xb10] sm:$0xff]
        %v6461 = vld [vmem:[#allocation6 + $0xb18] sm:$0xff]
        %v6462 = vld [vmem:[#allocation6 + $0xb20] sm:$0xff]
        %v6463 = vld [vmem:[#allocation6 + $0xb28] sm:$0xff]
        %v6464 = vld [vmem:[#allocation6 + $0xb30] sm:$0xff]
        %v6465 = vld [vmem:[#allocation6 + $0xb38] sm:$0xff]
        %v6466 = vld [vmem:[#allocation6 + $0xb40] sm:$0xff]
        %v6467 = vld [vmem:[#allocation6 + $0xb48] sm:$0xff]
        %v6468 = vld [vmem:[#allocation6 + $0xb50] sm:$0xff]
        %v6469 = vld [vmem:[#allocation6 + $0xb58] sm:$0xff]
        %v6470 = vld [vmem:[#allocation6 + $0xb60] sm:$0xff]
        %v6471 = vld [vmem:[#allocation6 + $0xb68] sm:$0xff]
        %v6472 = vld [vmem:[#allocation6 + $0xb70] sm:$0xff]
        %v6473 = vld [vmem:[#allocation6 + $0xb78] sm:$0xff]
        %v6474 = vld [vmem:[#allocation6 + $0xb80] sm:$0xff]
        %v6475 = vld [vmem:[#allocation6 + $0xb88] sm:$0xff]
        %v6476 = vld [vmem:[#allocation6 + $0xb90] sm:$0xff]
        %v6477 = vld [vmem:[#allocation6 + $0xb98] sm:$0xff]
        %v6478 = vld [vmem:[#allocation6 + $0xba0] sm:$0xff]
        %v6479 = vld [vmem:[#allocation6 + $0xba8] sm:$0xff]
        %v6480 = vld [vmem:[#allocation6 + $0xbb0] sm:$0xff]
        %v6481 = vld [vmem:[#allocation6 + $0xbb8] sm:$0xff]
        %v6482 = vld [vmem:[#allocation6 + $0xbc0] sm:$0xff]
        %v6483 = vld [vmem:[#allocation6 + $0xbc8] sm:$0xff]
        %v6484 = vld [vmem:[#allocation6 + $0xbd0] sm:$0xff]
        %v6485 = vld [vmem:[#allocation6 + $0xbd8] sm:$0xff]
        %v6486 = vld [vmem:[#allocation6 + $0xbe0] sm:$0xff]
        %v6487 = vld [vmem:[#allocation6 + $0xbe8] sm:$0xff]
        %v6488 = vld [vmem:[#allocation6 + $0xbf0] sm:$0xff]
        %v6489 = vld [vmem:[#allocation6 + $0xbf8] sm:$0xff]
        %v6490 = vld [vmem:[#allocation6 + $0xc00] sm:$0xff]
        %v6491 = vld [vmem:[#allocation6 + $0xc08] sm:$0xff]
        %v6492 = vld [vmem:[#allocation6 + $0xc10] sm:$0xff]
        %v6493 = vld [vmem:[#allocation6 + $0xc18] sm:$0xff]
        %v6494 = vld [vmem:[#allocation6 + $0xc20] sm:$0xff]
        %v6495 = vld [vmem:[#allocation6 + $0xc28] sm:$0xff]
        %v6496 = vld [vmem:[#allocation6 + $0xc30] sm:$0xff]
        %v6497 = vld [vmem:[#allocation6 + $0xc38] sm:$0xff]
        %v6498 = vld [vmem:[#allocation6 + $0xc40] sm:$0xff]
        %v6499 = vld [vmem:[#allocation6 + $0xc48] sm:$0xff]
        %v6500 = vld [vmem:[#allocation6 + $0xc50] sm:$0xff]
        %v6501 = vld [vmem:[#allocation6 + $0xc58] sm:$0xff]
        %v6502 = vld [vmem:[#allocation6 + $0xc60] sm:$0xff]
        %v6503 = vld [vmem:[#allocation6 + $0xc68] sm:$0xff]
        %v6504 = vld [vmem:[#allocation6 + $0xc70] sm:$0xff]
        %v6505 = vld [vmem:[#allocation6 + $0xc78] sm:$0xff]
        %v6506 = vld [vmem:[#allocation6 + $0xc80] sm:$0xff]
        %v6507 = vld [vmem:[#allocation6 + $0xc88] sm:$0xff]
        %v6508 = vld [vmem:[#allocation6 + $0xc90] sm:$0xff]
        %v6509 = vld [vmem:[#allocation6 + $0xc98] sm:$0xff]
        %v6510 = vld [vmem:[#allocation6 + $0xca0] sm:$0xff]
        %v6511 = vld [vmem:[#allocation6 + $0xca8] sm:$0xff]
        %v6512 = vld [vmem:[#allocation6 + $0xcb0] sm:$0xff]
        %v6513 = vld [vmem:[#allocation6 + $0xcb8] sm:$0xff]
        %v6514 = vld [vmem:[#allocation6 + $0xcc0] sm:$0xff]
        %v6515 = vld [vmem:[#allocation6 + $0xcc8] sm:$0xff]
        %v6516 = vld [vmem:[#allocation6 + $0xcd0] sm:$0xff]
        %v6517 = vld [vmem:[#allocation6 + $0xcd8] sm:$0xff]
        %v6518 = vld [vmem:[#allocation6 + $0xce0] sm:$0xff]
        %v6519 = vld [vmem:[#allocation6 + $0xce8] sm:$0xff]
        %v6520 = vld [vmem:[#allocation6 + $0xcf0] sm:$0xff]
        %v6521 = vld [vmem:[#allocation6 + $0xcf8] sm:$0xff]
        %v6522 = vld [vmem:[#allocation6 + $0xd00] sm:$0xff]
        %v6523 = vld [vmem:[#allocation6 + $0xd08] sm:$0xff]
        %v6524 = vld [vmem:[#allocation6 + $0xd10] sm:$0xff]
        %v6525 = vld [vmem:[#allocation6 + $0xd18] sm:$0xff]
        %v6526 = vld [vmem:[#allocation6 + $0xd20] sm:$0xff]
        %v6527 = vld [vmem:[#allocation6 + $0xd28] sm:$0xff]
        %v6528 = vld [vmem:[#allocation6 + $0xd30] sm:$0xff]
        %v6529 = vld [vmem:[#allocation6 + $0xd38] sm:$0xff]
        %v6530 = vld [vmem:[#allocation6 + $0xd40] sm:$0xff]
        %v6531 = vld [vmem:[#allocation6 + $0xd48] sm:$0xff]
        %v6532 = vld [vmem:[#allocation6 + $0xd50] sm:$0xff]
        %v6533 = vld [vmem:[#allocation6 + $0xd58] sm:$0xff]
        %v6534 = vld [vmem:[#allocation6 + $0xd60] sm:$0xff]
        %v6535 = vld [vmem:[#allocation6 + $0xd68] sm:$0xff]
        %v6536 = vld [vmem:[#allocation6 + $0xd70] sm:$0xff]
        %v6537 = vld [vmem:[#allocation6 + $0xd78] sm:$0xff]
        %v6538 = vld [vmem:[#allocation6 + $0xd80] sm:$0xff]
        %v6539 = vld [vmem:[#allocation6 + $0xd88] sm:$0xff]
        %v6540 = vld [vmem:[#allocation6 + $0xd90] sm:$0xff]
        %v6541 = vld [vmem:[#allocation6 + $0xd98] sm:$0xff]
        %v6542 = vld [vmem:[#allocation6 + $0xda0] sm:$0xff]
        %v6543 = vld [vmem:[#allocation6 + $0xda8] sm:$0xff]
        %v6544 = vld [vmem:[#allocation6 + $0xdb0] sm:$0xff]
        %v6545 = vld [vmem:[#allocation6 + $0xdb8] sm:$0xff]
        %v6546 = vld [vmem:[#allocation6 + $0xdc0] sm:$0xff]
        %v6547 = vld [vmem:[#allocation6 + $0xdc8] sm:$0xff]
        %v6548 = vld [vmem:[#allocation6 + $0xdd0] sm:$0xff]
        %v6549 = vld [vmem:[#allocation6 + $0xdd8] sm:$0xff]
        %v6550 = vld [vmem:[#allocation6 + $0xde0] sm:$0xff]
        %v6551 = vld [vmem:[#allocation6 + $0xde8] sm:$0xff]
        %v6552 = vld [vmem:[#allocation6 + $0xdf0] sm:$0xff]
        %v6553 = vld [vmem:[#allocation6 + $0xdf8] sm:$0xff]
        %v6554 = vld [vmem:[#allocation6 + $0xe00] sm:$0xff]
        %v6555 = vld [vmem:[#allocation6 + $0xe08] sm:$0xff]
        %v6556 = vld [vmem:[#allocation6 + $0xe10] sm:$0xff]
        %v6557 = vld [vmem:[#allocation6 + $0xe18] sm:$0xff]
        %v6558 = vld [vmem:[#allocation6 + $0xe20] sm:$0xff]
        %v6559 = vld [vmem:[#allocation6 + $0xe28] sm:$0xff]
        %v6560 = vld [vmem:[#allocation6 + $0xe30] sm:$0xff]
        %v6561 = vld [vmem:[#allocation6 + $0xe38] sm:$0xff]
        %v6562 = vld [vmem:[#allocation6 + $0xe40] sm:$0xff]
        %v6563 = vld [vmem:[#allocation6 + $0xe48] sm:$0xff]
        %v6564 = vld [vmem:[#allocation6 + $0xe50] sm:$0xff]
        %v6565 = vld [vmem:[#allocation6 + $0xe58] sm:$0xff]
        %v6566 = vld [vmem:[#allocation6 + $0xe60] sm:$0xff]
        %v6567 = vld [vmem:[#allocation6 + $0xe68] sm:$0xff]
        %v6568 = vld [vmem:[#allocation6 + $0xe70] sm:$0xff]
        %v6569 = vld [vmem:[#allocation6 + $0xe78] sm:$0xff]
        %v6570 = vld [vmem:[#allocation6 + $0xe80] sm:$0xff]
        %v6571 = vld [vmem:[#allocation6 + $0xe88] sm:$0xff]
        %v6572 = vld [vmem:[#allocation6 + $0xe90] sm:$0xff]
        %v6573 = vld [vmem:[#allocation6 + $0xe98] sm:$0xff]
        %v6574 = vld [vmem:[#allocation6 + $0xea0] sm:$0xff]
        %v6575 = vld [vmem:[#allocation6 + $0xea8] sm:$0xff]
        %v6576 = vld [vmem:[#allocation6 + $0xeb0] sm:$0xff]
        %v6577 = vld [vmem:[#allocation6 + $0xeb8] sm:$0xff]
        %s6578 = scalar_lea.vmem [#allocation4], 5
        %v6579 = vld [vmem:[%s6578] ss:$8 sm:$0x3]
        %v6581 = vlaneseq
        %v6582 = vshrl.u32 %v6581, 7
        %v6583 = vsub.s32 0, %v6582
        %v6584 = vrot.slane %v6579, %v6583
        %v6585 = vlaneseq
        %v6586 = vshrl.u32 %v6585, 7
        %v6587 = vsub.s32 1, %v6586
        %v6588 = vrot.slane %v6579, %v6587
        %6591 = vmatprep.subr.mxu0 %v6353
        %6592 = vmatpush1.msra.mxu0 %v6352
        %6593 = vmatprep.subr.mxu0 %v6351
        %6594 = vmatpush1.msra.mxu0 %v6350
        %6595 = vmatprep.subr.mxu0 %v6349
        %6596 = vmatpush1.msra.mxu0 %v6348
        %6597 = vmatprep.subr.mxu0 %v6347
        %6598 = vmatpush1.msra.mxu0 %v6346
        %6599 = vmatprep.subr.mxu0 %v6345
        %6600 = vmatpush1.msra.mxu0 %v6344
        %6601 = vmatprep.subr.mxu0 %v6343
        %6602 = vmatpush1.msra.mxu0 %v6342
        %6603 = vmatprep.subr.mxu0 %v6341
        %6604 = vmatpush1.msra.mxu0 %v6340
        %6605 = vmatprep.subr.mxu0 %v6339
        %6606 = vmatpush1.msra.mxu0 %v6338
        %6607 = vmatprep.subr.mxu0 %v6337
        %6608 = vmatpush1.msra.mxu0 %v6336
        %6609 = vmatprep.subr.mxu0 %v6335
        %6610 = vmatpush1.msra.mxu0 %v6334
        %6611 = vmatprep.subr.mxu0 %v6333
        %6612 = vmatpush1.msra.mxu0 %v6332
        %6613 = vmatprep.subr.mxu0 %v6331
        %6614 = vmatpush1.msra.mxu0 %v6330
        %6615 = vmatprep.subr.mxu0 %v6329
        %6616 = vmatpush1.msra.mxu0 %v6328
        %6617 = vmatprep.subr.mxu0 %v6327
        %6618 = vmatpush1.msra.mxu0 %v6326
        %6619 = vmatprep.subr.mxu0 %v6325
        %6620 = vmatpush1.msra.mxu0 %v6324
        %6621 = vmatprep.subr.mxu0 %v6323
        %6622 = vmatpush1.msra.mxu0 %v6322
        %6623 = vmatprep.subr.mxu0 %v6385
        %6624 = vmatpush2.msra.mxu0 %v6384
        %6625 = vmatprep.subr.mxu0 %v6383
        %6626 = vmatpush2.msra.mxu0 %v6382
        %6627 = vmatprep.subr.mxu0 %v6381
        %6628 = vmatpush2.msra.mxu0 %v6380
        %6629 = vmatprep.subr.mxu0 %v6379
        %6630 = vmatpush2.msra.mxu0 %v6378
        %6631 = vmatprep.subr.mxu0 %v6377
        %6632 = vmatpush2.msra.mxu0 %v6376
        %6633 = vmatprep.subr.mxu0 %v6375
        %6634 = vmatpush2.msra.mxu0 %v6374
        %6635 = vmatprep.subr.mxu0 %v6373
        %6636 = vmatpush2.msra.mxu0 %v6372
        %6637 = vmatprep.subr.mxu0 %v6371
        %6638 = vmatpush2.msra.mxu0 %v6370
        %6639 = vmatprep.subr.mxu0 %v6369
        %6640 = vmatpush2.msra.mxu0 %v6368
        %6641 = vmatprep.subr.mxu0 %v6367
        %6642 = vmatpush2.msra.mxu0 %v6366
        %6643 = vmatprep.subr.mxu0 %v6365
        %6644 = vmatpush2.msra.mxu0 %v6364
        %6645 = vmatprep.subr.mxu0 %v6363
        %6646 = vmatpush2.msra.mxu0 %v6362
        %6647 = vmatprep.subr.mxu0 %v6361
        %6648 = vmatpush2.msra.mxu0 %v6360
        %6649 = vmatprep.subr.mxu0 %v6359
        %6650 = vmatpush2.msra.mxu0 %v6358
        %6651 = vmatprep.subr.mxu0 %v6357
        %6652 = vmatpush2.msra.mxu0 %v6356
        %6653 = vmatprep.subr.mxu0 %v6355
        %6654 = vmatpush2.msra.mxu0 %v6354
        %6655 = vmatprep.mubr.f32.mxu0 %v434
        %6656 = vmatmul.mubr.f32.gmra.mxu0 %v433
        %v6657 = vpop.f32.mrf.mxu0
        %v6658 = vadd.f32 %v6584, %v6657
        %v6659 = vpop.f32.mrf.mxu0
        %v6660 = vadd.f32 %v6588, %v6659
        %6661 = vmatprep.mubr.f32.mxu0 %v436
        %6662 = vmatmul.mubr.f32.gmra.mxu0 %v435
        %v6663 = vpop.f32.mrf.mxu0
        %v6664 = vadd.f32 %v6584, %v6663
        %v6665 = vpop.f32.mrf.mxu0
        %v6666 = vadd.f32 %v6588, %v6665
        %6667 = vdwg.mxu0
        %6668 = vmatprep.subr.mxu0 %v6417
        %6669 = vmatpush1.msra.mxu0 %v6416
        %6670 = vmatprep.subr.mxu0 %v6415
        %6671 = vmatpush1.msra.mxu0 %v6414
        %6672 = vmatprep.subr.mxu0 %v6413
        %6673 = vmatpush1.msra.mxu0 %v6412
        %6674 = vmatprep.subr.mxu0 %v6411
        %6675 = vmatpush1.msra.mxu0 %v6410
        %6676 = vmatprep.subr.mxu0 %v6409
        %6677 = vmatpush1.msra.mxu0 %v6408
        %6678 = vmatprep.subr.mxu0 %v6407
        %6679 = vmatpush1.msra.mxu0 %v6406
        %6680 = vmatprep.subr.mxu0 %v6405
        %6681 = vmatpush1.msra.mxu0 %v6404
        %6682 = vmatprep.subr.mxu0 %v6403
        %6683 = vmatpush1.msra.mxu0 %v6402
        %6684 = vmatprep.subr.mxu0 %v6401
        %6685 = vmatpush1.msra.mxu0 %v6400
        %6686 = vmatprep.subr.mxu0 %v6399
        %6687 = vmatpush1.msra.mxu0 %v6398
        %6688 = vmatprep.subr.mxu0 %v6397
        %6689 = vmatpush1.msra.mxu0 %v6396
        %6690 = vmatprep.subr.mxu0 %v6395
        %6691 = vmatpush1.msra.mxu0 %v6394
        %6692 = vmatprep.subr.mxu0 %v6393
        %6693 = vmatpush1.msra.mxu0 %v6392
        %6694 = vmatprep.subr.mxu0 %v6391
        %6695 = vmatpush1.msra.mxu0 %v6390
        %6696 = vmatprep.subr.mxu0 %v6389
        %6697 = vmatpush1.msra.mxu0 %v6388
        %6698 = vmatprep.subr.mxu0 %v6387
        %6699 = vmatpush1.msra.mxu0 %v6386
        %6700 = vmatprep.subr.mxu0 %v6449
        %6701 = vmatpush2.msra.mxu0 %v6448
        %6702 = vmatprep.subr.mxu0 %v6447
        %6703 = vmatpush2.msra.mxu0 %v6446
        %6704 = vmatprep.subr.mxu0 %v6445
        %6705 = vmatpush2.msra.mxu0 %v6444
        %6706 = vmatprep.subr.mxu0 %v6443
        %6707 = vmatpush2.msra.mxu0 %v6442
        %6708 = vmatprep.subr.mxu0 %v6441
        %6709 = vmatpush2.msra.mxu0 %v6440
        %6710 = vmatprep.subr.mxu0 %v6439
        %6711 = vmatpush2.msra.mxu0 %v6438
        %6712 = vmatprep.subr.mxu0 %v6437
        %6713 = vmatpush2.msra.mxu0 %v6436
        %6714 = vmatprep.subr.mxu0 %v6435
        %6715 = vmatpush2.msra.mxu0 %v6434
        %6716 = vmatprep.subr.mxu0 %v6433
        %6717 = vmatpush2.msra.mxu0 %v6432
        %6718 = vmatprep.subr.mxu0 %v6431
        %6719 = vmatpush2.msra.mxu0 %v6430
        %6720 = vmatprep.subr.mxu0 %v6429
        %6721 = vmatpush2.msra.mxu0 %v6428
        %6722 = vmatprep.subr.mxu0 %v6427
        %6723 = vmatpush2.msra.mxu0 %v6426
        %6724 = vmatprep.subr.mxu0 %v6425
        %6725 = vmatpush2.msra.mxu0 %v6424
        %6726 = vmatprep.subr.mxu0 %v6423
        %6727 = vmatpush2.msra.mxu0 %v6422
        %6728 = vmatprep.subr.mxu0 %v6421
        %6729 = vmatpush2.msra.mxu0 %v6420
        %6730 = vmatprep.subr.mxu0 %v6419
        %6731 = vmatpush2.msra.mxu0 %v6418
        %6732 = vmatprep.mubr.f32.mxu0 %v1219
        %6733 = vmatmul.mubr.f32.gmra.mxu0 %v1218
        %v6734 = vpop.f32.mrf.mxu0
        %v6735 = vadd.f32 %v6658, %v6734
        %v6736 = vpop.f32.mrf.mxu0
        %v6737 = vadd.f32 %v6660, %v6736
        %6738 = vmatprep.mubr.f32.mxu0 %v1221
        %6739 = vmatmul.mubr.f32.gmra.mxu0 %v1220
        %v6740 = vpop.f32.mrf.mxu0
        %v6741 = vadd.f32 %v6664, %v6740
        %v6742 = vpop.f32.mrf.mxu0
        %v6743 = vadd.f32 %v6666, %v6742
        %6744 = vdwg.mxu0
        %6745 = vmatprep.subr.mxu0 %v6481
        %6746 = vmatpush1.msra.mxu0 %v6480
        %6747 = vmatprep.subr.mxu0 %v6479
        %6748 = vmatpush1.msra.mxu0 %v6478
        %6749 = vmatprep.subr.mxu0 %v6477
        %6750 = vmatpush1.msra.mxu0 %v6476
        %6751 = vmatprep.subr.mxu0 %v6475
        %6752 = vmatpush1.msra.mxu0 %v6474
        %6753 = vmatprep.subr.mxu0 %v6473
        %6754 = vmatpush1.msra.mxu0 %v6472
        %6755 = vmatprep.subr.mxu0 %v6471
        %6756 = vmatpush1.msra.mxu0 %v6470
        %6757 = vmatprep.subr.mxu0 %v6469
        %6758 = vmatpush1.msra.mxu0 %v6468
        %6759 = vmatprep.subr.mxu0 %v6467
        %6760 = vmatpush1.msra.mxu0 %v6466
        %6761 = vmatprep.subr.mxu0 %v6465
        %6762 = vmatpush1.msra.mxu0 %v6464
        %6763 = vmatprep.subr.mxu0 %v6463
        %6764 = vmatpush1.msra.mxu0 %v6462
        %6765 = vmatprep.subr.mxu0 %v6461
        %6766 = vmatpush1.msra.mxu0 %v6460
        %6767 = vmatprep.subr.mxu0 %v6459
        %6768 = vmatpush1.msra.mxu0 %v6458
        %6769 = vmatprep.subr.mxu0 %v6457
        %6770 = vmatpush1.msra.mxu0 %v6456
        %6771 = vmatprep.subr.mxu0 %v6455
        %6772 = vmatpush1.msra.mxu0 %v6454
        %6773 = vmatprep.subr.mxu0 %v6453
        %6774 = vmatpush1.msra.mxu0 %v6452
        %6775 = vmatprep.subr.mxu0 %v6451
        %6776 = vmatpush1.msra.mxu0 %v6450
        %6777 = vmatprep.subr.mxu0 %v6513
        %6778 = vmatpush2.msra.mxu0 %v6512
        %6779 = vmatprep.subr.mxu0 %v6511
        %6780 = vmatpush2.msra.mxu0 %v6510
        %6781 = vmatprep.subr.mxu0 %v6509
        %6782 = vmatpush2.msra.mxu0 %v6508
        %6783 = vmatprep.subr.mxu0 %v6507
        %6784 = vmatpush2.msra.mxu0 %v6506
        %6785 = vmatprep.subr.mxu0 %v6505
        %6786 = vmatpush2.msra.mxu0 %v6504
        %6787 = vmatprep.subr.mxu0 %v6503
        %6788 = vmatpush2.msra.mxu0 %v6502
        %6789 = vmatprep.subr.mxu0 %v6501
        %6790 = vmatpush2.msra.mxu0 %v6500
        %6791 = vmatprep.subr.mxu0 %v6499
        %6792 = vmatpush2.msra.mxu0 %v6498
        %6793 = vmatprep.subr.mxu0 %v6497
        %6794 = vmatpush2.msra.mxu0 %v6496
        %6795 = vmatprep.subr.mxu0 %v6495
        %6796 = vmatpush2.msra.mxu0 %v6494
        %6797 = vmatprep.subr.mxu0 %v6493
        %6798 = vmatpush2.msra.mxu0 %v6492
        %6799 = vmatprep.subr.mxu0 %v6491
        %6800 = vmatpush2.msra.mxu0 %v6490
        %6801 = vmatprep.subr.mxu0 %v6489
        %6802 = vmatpush2.msra.mxu0 %v6488
        %6803 = vmatprep.subr.mxu0 %v6487
        %6804 = vmatpush2.msra.mxu0 %v6486
        %6805 = vmatprep.subr.mxu0 %v6485
        %6806 = vmatpush2.msra.mxu0 %v6484
        %6807 = vmatprep.subr.mxu0 %v6483
        %6808 = vmatpush2.msra.mxu0 %v6482
        %6809 = vmatprep.mubr.f32.mxu0 %v6315
        %6810 = vmatmul.mubr.f32.gmra.mxu0 %v6314
        %v6811 = vpop.f32.mrf.mxu0
        %v6812 = vadd.f32 %v6735, %v6811
        %v6813 = vpop.f32.mrf.mxu0
        %v6814 = vadd.f32 %v6737, %v6813
        %6815 = vmatprep.mubr.f32.mxu0 %v6317
        %6816 = vmatmul.mubr.f32.gmra.mxu0 %v6316
        %v6817 = vpop.f32.mrf.mxu0
        %v6818 = vadd.f32 %v6741, %v6817
        %v6819 = vpop.f32.mrf.mxu0
        %v6820 = vadd.f32 %v6743, %v6819
        %6821 = vdwg.mxu0
        %6822 = vmatprep.subr.mxu0 %v6545
        %6823 = vmatpush1.msra.mxu0 %v6544
        %6824 = vmatprep.subr.mxu0 %v6543
        %6825 = vmatpush1.msra.mxu0 %v6542
        %6826 = vmatprep.subr.mxu0 %v6541
        %6827 = vmatpush1.msra.mxu0 %v6540
        %6828 = vmatprep.subr.mxu0 %v6539
        %6829 = vmatpush1.msra.mxu0 %v6538
        %6830 = vmatprep.subr.mxu0 %v6537
        %6831 = vmatpush1.msra.mxu0 %v6536
        %6832 = vmatprep.subr.mxu0 %v6535
        %6833 = vmatpush1.msra.mxu0 %v6534
        %6834 = vmatprep.subr.mxu0 %v6533
        %6835 = vmatpush1.msra.mxu0 %v6532
        %6836 = vmatprep.subr.mxu0 %v6531
        %6837 = vmatpush1.msra.mxu0 %v6530
        %6838 = vmatprep.subr.mxu0 %v6529
        %6839 = vmatpush1.msra.mxu0 %v6528
        %6840 = vmatprep.subr.mxu0 %v6527
        %6841 = vmatpush1.msra.mxu0 %v6526
        %6842 = vmatprep.subr.mxu0 %v6525
        %6843 = vmatpush1.msra.mxu0 %v6524
        %6844 = vmatprep.subr.mxu0 %v6523
        %6845 = vmatpush1.msra.mxu0 %v6522
        %6846 = vmatprep.subr.mxu0 %v6521
        %6847 = vmatpush1.msra.mxu0 %v6520
        %6848 = vmatprep.subr.mxu0 %v6519
        %6849 = vmatpush1.msra.mxu0 %v6518
        %6850 = vmatprep.subr.mxu0 %v6517
        %6851 = vmatpush1.msra.mxu0 %v6516
        %6852 = vmatprep.subr.mxu0 %v6515
        %6853 = vmatpush1.msra.mxu0 %v6514
        %6854 = vmatprep.subr.mxu0 %v6577
        %6855 = vmatpush2.msra.mxu0 %v6576
        %6856 = vmatprep.subr.mxu0 %v6575
        %6857 = vmatpush2.msra.mxu0 %v6574
        %6858 = vmatprep.subr.mxu0 %v6573
        %6859 = vmatpush2.msra.mxu0 %v6572
        %6860 = vmatprep.subr.mxu0 %v6571
        %6861 = vmatpush2.msra.mxu0 %v6570
        %6862 = vmatprep.subr.mxu0 %v6569
        %6863 = vmatpush2.msra.mxu0 %v6568
        %6864 = vmatprep.subr.mxu0 %v6567
        %6865 = vmatpush2.msra.mxu0 %v6566
        %6866 = vmatprep.subr.mxu0 %v6565
        %6867 = vmatpush2.msra.mxu0 %v6564
        %6868 = vmatprep.subr.mxu0 %v6563
        %6869 = vmatpush2.msra.mxu0 %v6562
        %6870 = vmatprep.subr.mxu0 %v6561
        %6871 = vmatpush2.msra.mxu0 %v6560
        %6872 = vmatprep.subr.mxu0 %v6559
        %6873 = vmatpush2.msra.mxu0 %v6558
        %6874 = vmatprep.subr.mxu0 %v6557
        %6875 = vmatpush2.msra.mxu0 %v6556
        %6876 = vmatprep.subr.mxu0 %v6555
        %6877 = vmatpush2.msra.mxu0 %v6554
        %6878 = vmatprep.subr.mxu0 %v6553
        %6879 = vmatpush2.msra.mxu0 %v6552
        %6880 = vmatprep.subr.mxu0 %v6551
        %6881 = vmatpush2.msra.mxu0 %v6550
        %6882 = vmatprep.subr.mxu0 %v6549
        %6883 = vmatpush2.msra.mxu0 %v6548
        %6884 = vmatprep.subr.mxu0 %v6547
        %6885 = vmatpush2.msra.mxu0 %v6546
        %6886 = vmatprep.mubr.f32.mxu0 %v6274
        %6887 = vmatmul.mubr.f32.gmra.mxu0 %v6273
        %v6888 = vpop.f32.mrf.mxu0
        %v6889 = vadd.f32 %v6812, %v6888
        %v6890 = vpop.f32.mrf.mxu0
        %v6891 = vadd.f32 %v6814, %v6890
        %6892 = vmatprep.mubr.f32.mxu0 %v6276
        %6893 = vmatmul.mubr.f32.gmra.mxu0 %v6275
        %v6894 = vpop.f32.mrf.mxu0
        %v6895 = vadd.f32 %v6818, %v6894
        %v6896 = vpop.f32.mrf.mxu0
        %v6897 = vadd.f32 %v6820, %v6896
        %6898 = vdwg.mxu0
        %6901 = vrot.lane.b32.xlu0 %v6889, 64
        %v6902 = vpop.permute.xlu0 %6901
        %6903 = vrot.lane.b32.xlu0 %v6895, 64
        %v6904 = vpop.permute.xlu0 %6903
        %v6907 = vadd.f32 %v6889, %v6902
        %v6908 = vadd.f32 %v6895, %v6904
        %6911 = vrot.lane.b32.xlu0 %v6891, 64
        %v6912 = vpop.permute.xlu0 %6911
        %6913 = vrot.lane.b32.xlu0 %v6897, 64
        %v6914 = vpop.permute.xlu0 %6913
        %v6917 = vadd.f32 %v6891, %v6912
        %v6918 = vadd.f32 %v6897, %v6914
        %v6919 = vadd.f32 %v6907, %v6917
        %v6920 = vadd.f32 %v6908, %v6918
        %v6921 = vmax.f32 %v6889, %v6902
        %v6922 = vmax.f32 %v6895, %v6904
        %v6923 = vmax.f32 %v6891, %v6912
        %v6924 = vmax.f32 %v6897, %v6914
        %v6925 = vmax.f32 %v6921, %v6923
        %v6926 = vmax.f32 %v6922, %v6924
        %6929 = vrot.lane.b32.xlu0 %v6919, 112
        %v6930 = vpop.permute.xlu0 %6929
        %6931 = vrot.lane.b32.xlu0 %v6920, 112
        %v6932 = vpop.permute.xlu0 %6931
        %v6935 = vadd.f32 %v6919, %v6930
        %v6936 = vadd.f32 %v6920, %v6932
        %6939 = vrot.lane.b32.xlu0 %v6935, 96
        %v6940 = vpop.permute.xlu0 %6939
        %6941 = vrot.lane.b32.xlu0 %v6936, 96
        %v6942 = vpop.permute.xlu0 %6941
        %v6945 = vadd.f32 %v6935, %v6940
        %v6946 = vadd.f32 %v6936, %v6942
        %v6947 = vmul.f32 %v6945, 0.0625
        %v6948 = vmul.f32 %v6946, 0.0625
        %6951 = vrot.lane.b32.xlu0 %v6925, 112
        %v6952 = vpop.permute.xlu0 %6951
        %6953 = vrot.lane.b32.xlu0 %v6926, 112
        %v6954 = vpop.permute.xlu0 %6953
        %v6957 = vmax.f32 %v6925, %v6952
        %v6958 = vmax.f32 %v6926, %v6954
        %6959 = vrot.lane.b32.xlu0 %v6925, 96
        %v6960 = vpop.permute.xlu0 %6959
        %6961 = vrot.lane.b32.xlu0 %v6926, 96
        %v6962 = vpop.permute.xlu0 %6961
        %v6965 = vmax.f32 %v6957, %v6960
        %v6966 = vmax.f32 %v6958, %v6962
        %6967 = vrot.lane.b32.xlu0 %v6925, 80
        %v6968 = vpop.permute.xlu0 %6967
        %6969 = vrot.lane.b32.xlu0 %v6926, 80
        %v6970 = vpop.permute.xlu0 %6969
        %v6973 = vmax.f32 %v6965, %v6968
        %v6974 = vmax.f32 %v6966, %v6970
        %vm6975 = vcmask 359424
        %6976 = vst.msk [vmem:[#allocation3] sm:$0xff] %vm6975, 0.0
        %6977 = vst.msk [vmem:[#allocation3 + $0x8] sm:$0xff] %vm6975, 0.0
        %vm6978 = vcmask 357376
        %6979 = vst.msk [vmem:[#allocation3 + $0x10] sm:$0x3f] %vm6978, 0.0
        %6982 = vrot.lane.b32.xlu0 %v6947, 3
        %v6983 = vpop.permute.xlu0 %6982
        %6984 = vrot.lane.b32.xlu0 %v6948, 3
        %v6985 = vpop.permute.xlu0 %6984
        %vm6988 = vcmask 154648
        %6989 = vst.msk [vmem:[#allocation3 + $0x3] sm:$0xff] %vm6988, %v6983
        %6990 = vst.msk [vmem:[#allocation3 + $0xb] sm:$0xff] %vm6988, %v6985
        %6993 = vrot.lane.b32.xlu0 %v6973, 25
        %v6994 = vpop.permute.xlu0 %6993
        %6995 = vrot.lane.b32.xlu0 %v6974, 25
        %v6996 = vpop.permute.xlu0 %6995
        %vm6999 = vcmask 335048
        %7000 = vst.msk [vmem:[#allocation3 + $0x3] sm:$0xff] %vm6999, %v6994
        %7001 = vst.msk [vmem:[#allocation3 + $0xb] sm:$0xff] %vm6999, %v6996
        %v7002 = vld [vmem:[#allocation3] sm:$0xff]
        %v7003 = vld [vmem:[#allocation3 + $0x8] sm:$0xff]
        %v7004 = vld [vmem:[#allocation8] sm:$0xff]
        %v7005 = vld [vmem:[#allocation8 + $0x8] sm:$0xff]
        %v7006 = vld [vmem:[#allocation8 + $0x10] sm:$0xff]
        %v7007 = vld [vmem:[#allocation8 + $0x18] sm:$0xff]
        %v7008 = vld [vmem:[#allocation8 + $0x20] sm:$0xff]
        %v7009 = vld [vmem:[#allocation8 + $0x28] sm:$0xf]
        %v7010 = vld [vmem:[#allocation3 + $0x1] sm:$0xff]
        %v7011 = vld [vmem:[#allocation3 + $0x9] sm:$0xff]
        %s7012 = scalar_lea.vmem [#allocation8], 48
        %v7013 = vld [vmem:[%s7012] sm:$0xff]
        %v7014 = vld [vmem:[%s7012 + $0x8] sm:$0xff]
        %v7015 = vld [vmem:[%s7012 + $0x10] sm:$0xff]
        %v7016 = vld [vmem:[%s7012 + $0x18] sm:$0xff]
        %v7017 = vld [vmem:[%s7012 + $0x20] sm:$0xff]
        %v7018 = vld [vmem:[%s7012 + $0x28] sm:$0xf]
        %v7020 = vsel %vm6975, %v7010, 0
        %v7023 = vsel %vm6975, %v7011, 0
        %v7026 = vsel %vm2874, %v7018, 0
        %7028 = vmatprep.subr.mxu0 0.0
        %7029 = vmatpush1.msra.mxu0 0.0
        %7030 = vmatprep.subr.mxu0 0.0
        %7031 = vmatpush1.msra.mxu0 0.0
        %7032 = vmatprep.subr.mxu0 0.0
        %7033 = vmatpush1.msra.mxu0 0.0
        %7034 = vmatprep.subr.mxu0 0.0
        %7035 = vmatpush1.msra.mxu0 0.0
        %7036 = vmatprep.subr.mxu0 0.0
        %7037 = vmatpush1.msra.mxu0 0.0
        %7038 = vmatprep.subr.mxu0 0.0
        %7039 = vmatpush1.msra.mxu0 0.0
        %7040 = vmatprep.subr.mxu0 0.0
        %7041 = vmatpush1.msra.mxu0 0.0
        %7042 = vmatprep.subr.mxu0 0.0
        %7043 = vmatpush1.msra.mxu0 0.0
        %7044 = vmatprep.subr.mxu0 0.0
        %7045 = vmatpush1.msra.mxu0 0.0
        %7046 = vmatprep.subr.mxu0 0.0
        %7047 = vmatpush1.msra.mxu0 0.0
        %7048 = vmatprep.subr.mxu0 0.0
        %7049 = vmatpush1.msra.mxu0 %v7026
        %7050 = vmatprep.subr.mxu0 0.0
        %7051 = vmatpush1.msra.mxu0 %v7017
        %7052 = vmatprep.subr.mxu0 0.0
        %7053 = vmatpush1.msra.mxu0 %v7016
        %7054 = vmatprep.subr.mxu0 0.0
        %7055 = vmatpush1.msra.mxu0 %v7015
        %7056 = vmatprep.subr.mxu0 0.0
        %7057 = vmatpush1.msra.mxu0 %v7014
        %7058 = vmatprep.subr.mxu0 0.0
        %7059 = vmatpush1.msra.mxu0 %v7013
        %7060 = vmatprep.subr.mxu0 0.0
        %7061 = vmatpush2.msra.mxu0 0.0
        %7062 = vmatprep.subr.mxu0 0.0
        %7063 = vmatpush2.msra.mxu0 0.0
        %7064 = vmatprep.subr.mxu0 0.0
        %7065 = vmatpush2.msra.mxu0 0.0
        %7066 = vmatprep.subr.mxu0 0.0
        %7067 = vmatpush2.msra.mxu0 0.0
        %7068 = vmatprep.subr.mxu0 0.0
        %7069 = vmatpush2.msra.mxu0 0.0
        %7070 = vmatprep.subr.mxu0 0.0
        %7071 = vmatpush2.msra.mxu0 0.0
        %7072 = vmatprep.subr.mxu0 0.0
        %7073 = vmatpush2.msra.mxu0 0.0
        %7074 = vmatprep.subr.mxu0 0.0
        %7075 = vmatpush2.msra.mxu0 0.0
        %7076 = vmatprep.subr.mxu0 0.0
        %7077 = vmatpush2.msra.mxu0 0.0
        %7078 = vmatprep.subr.mxu0 0.0
        %7079 = vmatpush2.msra.mxu0 0.0
        %7080 = vmatprep.subr.mxu0 0.0
        %7081 = vmatpush2.msra.mxu0 0.0
        %7082 = vmatprep.subr.mxu0 0.0
        %7083 = vmatpush2.msra.mxu0 0.0
        %7084 = vmatprep.subr.mxu0 0.0
        %7085 = vmatpush2.msra.mxu0 0.0
        %7086 = vmatprep.subr.mxu0 0.0
        %7087 = vmatpush2.msra.mxu0 0.0
        %7088 = vmatprep.subr.mxu0 0.0
        %7089 = vmatpush2.msra.mxu0 0.0
        %7090 = vmatprep.subr.mxu0 0.0
        %7091 = vmatpush2.msra.mxu0 0.0
        %7092 = vmatprep.mubr.f32.mxu0 0.0
        %7093 = vmatmul.mubr.f32.gmra.mxu0 %v7020
        %v7094 = vpop.f32.mrf.mxu0
        %v7095 = vadd.f32 0.0, %v7094
        %v7096 = vpop.f32.mrf.mxu0
        %7097 = vmatprep.mubr.f32.mxu0 0.0
        %7098 = vmatmul.mubr.f32.gmra.mxu0 %v7023
        %v7099 = vpop.f32.mrf.mxu0
        %v7100 = vadd.f32 0.0, %v7099
        %v7101 = vpop.f32.mrf.mxu0
        %7102 = vdwg.mxu0
        %v7103 = vld [vmem:[#allocation3 + $0x2] sm:$0xff]
        %v7104 = vld [vmem:[#allocation3 + $0xa] sm:$0xff]
        %s7105 = scalar_lea.vmem [#allocation8], 96
        %v7106 = vld [vmem:[%s7105] sm:$0xff]
        %v7107 = vld [vmem:[%s7105 + $0x8] sm:$0xff]
        %v7108 = vld [vmem:[%s7105 + $0x10] sm:$0xff]
        %v7109 = vld [vmem:[%s7105 + $0x18] sm:$0xff]
        %v7110 = vld [vmem:[%s7105 + $0x20] sm:$0xff]
        %v7111 = vld [vmem:[%s7105 + $0x28] sm:$0xf]
        %v7112 = vld [vmem:[#allocation3 + $0x3] sm:$0xff]
        %v7113 = vld [vmem:[#allocation3 + $0xb] sm:$0xff]
        %s7114 = scalar_lea.vmem [#allocation8], 144
        %v7115 = vld [vmem:[%s7114] sm:$0xff]
        %v7116 = vld [vmem:[%s7114 + $0x8] sm:$0xff]
        %v7117 = vld [vmem:[%s7114 + $0x10] sm:$0xff]
        %v7118 = vld [vmem:[%s7114 + $0x18] sm:$0xff]
        %v7119 = vld [vmem:[%s7114 + $0x20] sm:$0xff]
        %v7120 = vld [vmem:[%s7114 + $0x28] sm:$0xf]
        %v7122 = vsel %vm6975, %v7112, 0
        %v7125 = vsel %vm6975, %v7113, 0
        %v7128 = vsel %vm2874, %v7120, 0
        %7130 = vmatprep.subr.mxu0 0.0
        %7131 = vmatpush1.msra.mxu0 0.0
        %7132 = vmatprep.subr.mxu0 0.0
        %7133 = vmatpush1.msra.mxu0 0.0
        %7134 = vmatprep.subr.mxu0 0.0
        %7135 = vmatpush1.msra.mxu0 0.0
        %7136 = vmatprep.subr.mxu0 0.0
        %7137 = vmatpush1.msra.mxu0 0.0
        %7138 = vmatprep.subr.mxu0 0.0
        %7139 = vmatpush1.msra.mxu0 0.0
        %7140 = vmatprep.subr.mxu0 0.0
        %7141 = vmatpush1.msra.mxu0 0.0
        %7142 = vmatprep.subr.mxu0 0.0
        %7143 = vmatpush1.msra.mxu0 0.0
        %7144 = vmatprep.subr.mxu0 0.0
        %7145 = vmatpush1.msra.mxu0 0.0
        %7146 = vmatprep.subr.mxu0 0.0
        %7147 = vmatpush1.msra.mxu0 0.0
        %7148 = vmatprep.subr.mxu0 0.0
        %7149 = vmatpush1.msra.mxu0 0.0
        %7150 = vmatprep.subr.mxu0 0.0
        %7151 = vmatpush1.msra.mxu0 %v7128
        %7152 = vmatprep.subr.mxu0 0.0
        %7153 = vmatpush1.msra.mxu0 %v7119
        %7154 = vmatprep.subr.mxu0 0.0
        %7155 = vmatpush1.msra.mxu0 %v7118
        %7156 = vmatprep.subr.mxu0 0.0
        %7157 = vmatpush1.msra.mxu0 %v7117
        %7158 = vmatprep.subr.mxu0 0.0
        %7159 = vmatpush1.msra.mxu0 %v7116
        %7160 = vmatprep.subr.mxu0 0.0
        %7161 = vmatpush1.msra.mxu0 %v7115
        %7162 = vmatprep.subr.mxu0 0.0
        %7163 = vmatpush2.msra.mxu0 0.0
        %7164 = vmatprep.subr.mxu0 0.0
        %7165 = vmatpush2.msra.mxu0 0.0
        %7166 = vmatprep.subr.mxu0 0.0
        %7167 = vmatpush2.msra.mxu0 0.0
        %7168 = vmatprep.subr.mxu0 0.0
        %7169 = vmatpush2.msra.mxu0 0.0
        %7170 = vmatprep.subr.mxu0 0.0
        %7171 = vmatpush2.msra.mxu0 0.0
        %7172 = vmatprep.subr.mxu0 0.0
        %7173 = vmatpush2.msra.mxu0 0.0
        %7174 = vmatprep.subr.mxu0 0.0
        %7175 = vmatpush2.msra.mxu0 0.0
        %7176 = vmatprep.subr.mxu0 0.0
        %7177 = vmatpush2.msra.mxu0 0.0
        %7178 = vmatprep.subr.mxu0 0.0
        %7179 = vmatpush2.msra.mxu0 0.0
        %7180 = vmatprep.subr.mxu0 0.0
        %7181 = vmatpush2.msra.mxu0 0.0
        %7182 = vmatprep.subr.mxu0 0.0
        %7183 = vmatpush2.msra.mxu0 0.0
        %7184 = vmatprep.subr.mxu0 0.0
        %7185 = vmatpush2.msra.mxu0 0.0
        %7186 = vmatprep.subr.mxu0 0.0
        %7187 = vmatpush2.msra.mxu0 0.0
        %7188 = vmatprep.subr.mxu0 0.0
        %7189 = vmatpush2.msra.mxu0 0.0
        %7190 = vmatprep.subr.mxu0 0.0
        %7191 = vmatpush2.msra.mxu0 0.0
        %7192 = vmatprep.subr.mxu0 0.0
        %7193 = vmatpush2.msra.mxu0 0.0
        %7194 = vmatprep.mubr.f32.mxu0 0.0
        %7195 = vmatmul.mubr.f32.gmra.mxu0 %v7122
        %v7196 = vpop.f32.mrf.mxu0
        %v7197 = vadd.f32 0.0, %v7196
        %v7198 = vpop.f32.mrf.mxu0
        %7199 = vmatprep.mubr.f32.mxu0 0.0
        %7200 = vmatmul.mubr.f32.gmra.mxu0 %v7125
        %v7201 = vpop.f32.mrf.mxu0
        %v7202 = vadd.f32 0.0, %v7201
        %v7203 = vpop.f32.mrf.mxu0
        %7204 = vdwg.mxu0
        %v7205 = vld [vmem:[#allocation3 + $0x4] sm:$0xff]
        %v7206 = vld [vmem:[#allocation3 + $0xc] sm:$0xff]
        %s7207 = scalar_lea.vmem [#allocation8], 192
        %v7208 = vld [vmem:[%s7207] sm:$0xff]
        %v7209 = vld [vmem:[%s7207 + $0x8] sm:$0xff]
        %v7210 = vld [vmem:[%s7207 + $0x10] sm:$0xff]
        %v7211 = vld [vmem:[%s7207 + $0x18] sm:$0xff]
        %v7212 = vld [vmem:[%s7207 + $0x20] sm:$0xff]
        %v7213 = vld [vmem:[%s7207 + $0x28] sm:$0xf]
        %v7214 = vld [vmem:[#allocation3 + $0x5] sm:$0xff]
        %v7215 = vld [vmem:[#allocation3 + $0xd] sm:$0xff]
        %s7216 = scalar_lea.vmem [#allocation8], 240
        %v7217 = vld [vmem:[%s7216] sm:$0xff]
        %v7218 = vld [vmem:[%s7216 + $0x8] sm:$0xff]
        %v7219 = vld [vmem:[%s7216 + $0x10] sm:$0xff]
        %v7220 = vld [vmem:[%s7216 + $0x18] sm:$0xff]
        %v7221 = vld [vmem:[%s7216 + $0x20] sm:$0xff]
        %v7222 = vld [vmem:[%s7216 + $0x28] sm:$0xf]
        %v7224 = vsel %vm6975, %v7214, 0
        %v7227 = vsel %vm6975, %v7215, 0
        %v7230 = vsel %vm2874, %v7222, 0
        %7232 = vmatprep.subr.mxu0 0.0
        %7233 = vmatpush1.msra.mxu0 0.0
        %7234 = vmatprep.subr.mxu0 0.0
        %7235 = vmatpush1.msra.mxu0 0.0
        %7236 = vmatprep.subr.mxu0 0.0
        %7237 = vmatpush1.msra.mxu0 0.0
        %7238 = vmatprep.subr.mxu0 0.0
        %7239 = vmatpush1.msra.mxu0 0.0
        %7240 = vmatprep.subr.mxu0 0.0
        %7241 = vmatpush1.msra.mxu0 0.0
        %7242 = vmatprep.subr.mxu0 0.0
        %7243 = vmatpush1.msra.mxu0 0.0
        %7244 = vmatprep.subr.mxu0 0.0
        %7245 = vmatpush1.msra.mxu0 0.0
        %7246 = vmatprep.subr.mxu0 0.0
        %7247 = vmatpush1.msra.mxu0 0.0
        %7248 = vmatprep.subr.mxu0 0.0
        %7249 = vmatpush1.msra.mxu0 0.0
        %7250 = vmatprep.subr.mxu0 0.0
        %7251 = vmatpush1.msra.mxu0 0.0
        %7252 = vmatprep.subr.mxu0 0.0
        %7253 = vmatpush1.msra.mxu0 %v7230
        %7254 = vmatprep.subr.mxu0 0.0
        %7255 = vmatpush1.msra.mxu0 %v7221
        %7256 = vmatprep.subr.mxu0 0.0
        %7257 = vmatpush1.msra.mxu0 %v7220
        %7258 = vmatprep.subr.mxu0 0.0
        %7259 = vmatpush1.msra.mxu0 %v7219
        %7260 = vmatprep.subr.mxu0 0.0
        %7261 = vmatpush1.msra.mxu0 %v7218
        %7262 = vmatprep.subr.mxu0 0.0
        %7263 = vmatpush1.msra.mxu0 %v7217
        %7264 = vmatprep.subr.mxu0 0.0
        %7265 = vmatpush2.msra.mxu0 0.0
        %7266 = vmatprep.subr.mxu0 0.0
        %7267 = vmatpush2.msra.mxu0 0.0
        %7268 = vmatprep.subr.mxu0 0.0
        %7269 = vmatpush2.msra.mxu0 0.0
        %7270 = vmatprep.subr.mxu0 0.0
        %7271 = vmatpush2.msra.mxu0 0.0
        %7272 = vmatprep.subr.mxu0 0.0
        %7273 = vmatpush2.msra.mxu0 0.0
        %7274 = vmatprep.subr.mxu0 0.0
        %7275 = vmatpush2.msra.mxu0 0.0
        %7276 = vmatprep.subr.mxu0 0.0
        %7277 = vmatpush2.msra.mxu0 0.0
        %7278 = vmatprep.subr.mxu0 0.0
        %7279 = vmatpush2.msra.mxu0 0.0
        %7280 = vmatprep.subr.mxu0 0.0
        %7281 = vmatpush2.msra.mxu0 0.0
        %7282 = vmatprep.subr.mxu0 0.0
        %7283 = vmatpush2.msra.mxu0 0.0
        %7284 = vmatprep.subr.mxu0 0.0
        %7285 = vmatpush2.msra.mxu0 0.0
        %7286 = vmatprep.subr.mxu0 0.0
        %7287 = vmatpush2.msra.mxu0 0.0
        %7288 = vmatprep.subr.mxu0 0.0
        %7289 = vmatpush2.msra.mxu0 0.0
        %7290 = vmatprep.subr.mxu0 0.0
        %7291 = vmatpush2.msra.mxu0 0.0
        %7292 = vmatprep.subr.mxu0 0.0
        %7293 = vmatpush2.msra.mxu0 0.0
        %7294 = vmatprep.subr.mxu0 0.0
        %7295 = vmatpush2.msra.mxu0 0.0
        %7296 = vmatprep.mubr.f32.mxu0 0.0
        %7297 = vmatmul.mubr.f32.gmra.mxu0 %v7224
        %v7298 = vpop.f32.mrf.mxu0
        %v7299 = vadd.f32 0.0, %v7298
        %v7300 = vpop.f32.mrf.mxu0
        %7301 = vmatprep.mubr.f32.mxu0 0.0
        %7302 = vmatmul.mubr.f32.gmra.mxu0 %v7227
        %v7303 = vpop.f32.mrf.mxu0
        %v7304 = vadd.f32 0.0, %v7303
        %v7305 = vpop.f32.mrf.mxu0
        %7306 = vdwg.mxu0
        %v7307 = vld [vmem:[#allocation3 + $0x6] sm:$0xff]
        %v7308 = vld [vmem:[#allocation3 + $0xe] sm:$0xff]
        %s7309 = scalar_lea.vmem [#allocation8], 288
        %v7310 = vld [vmem:[%s7309] sm:$0xff]
        %v7311 = vld [vmem:[%s7309 + $0x8] sm:$0xff]
        %v7312 = vld [vmem:[%s7309 + $0x10] sm:$0xff]
        %v7313 = vld [vmem:[%s7309 + $0x18] sm:$0xff]
        %v7314 = vld [vmem:[%s7309 + $0x20] sm:$0xff]
        %v7315 = vld [vmem:[%s7309 + $0x28] sm:$0xf]
        %v7317 = vsel %vm6975, %v7307, 0
        %v7320 = vsel %vm6975, %v7308, 0
        %v7323 = vsel %vm2874, %v7315, 0
        %7325 = vmatprep.subr.mxu0 0.0
        %7326 = vmatpush1.msra.mxu0 0.0
        %7327 = vmatprep.subr.mxu0 0.0
        %7328 = vmatpush1.msra.mxu0 0.0
        %7329 = vmatprep.subr.mxu0 0.0
        %7330 = vmatpush1.msra.mxu0 0.0
        %7331 = vmatprep.subr.mxu0 0.0
        %7332 = vmatpush1.msra.mxu0 0.0
        %7333 = vmatprep.subr.mxu0 0.0
        %7334 = vmatpush1.msra.mxu0 0.0
        %7335 = vmatprep.subr.mxu0 0.0
        %7336 = vmatpush1.msra.mxu0 0.0
        %7337 = vmatprep.subr.mxu0 0.0
        %7338 = vmatpush1.msra.mxu0 0.0
        %7339 = vmatprep.subr.mxu0 0.0
        %7340 = vmatpush1.msra.mxu0 0.0
        %7341 = vmatprep.subr.mxu0 0.0
        %7342 = vmatpush1.msra.mxu0 0.0
        %7343 = vmatprep.subr.mxu0 0.0
        %7344 = vmatpush1.msra.mxu0 0.0
        %7345 = vmatprep.subr.mxu0 0.0
        %7346 = vmatpush1.msra.mxu0 %v7323
        %7347 = vmatprep.subr.mxu0 0.0
        %7348 = vmatpush1.msra.mxu0 %v7314
        %7349 = vmatprep.subr.mxu0 0.0
        %7350 = vmatpush1.msra.mxu0 %v7313
        %7351 = vmatprep.subr.mxu0 0.0
        %7352 = vmatpush1.msra.mxu0 %v7312
        %7353 = vmatprep.subr.mxu0 0.0
        %7354 = vmatpush1.msra.mxu0 %v7311
        %7355 = vmatprep.subr.mxu0 0.0
        %7356 = vmatpush1.msra.mxu0 %v7310
        %7357 = vmatprep.subr.mxu0 0.0
        %7358 = vmatpush2.msra.mxu0 0.0
        %7359 = vmatprep.subr.mxu0 0.0
        %7360 = vmatpush2.msra.mxu0 0.0
        %7361 = vmatprep.subr.mxu0 0.0
        %7362 = vmatpush2.msra.mxu0 0.0
        %7363 = vmatprep.subr.mxu0 0.0
        %7364 = vmatpush2.msra.mxu0 0.0
        %7365 = vmatprep.subr.mxu0 0.0
        %7366 = vmatpush2.msra.mxu0 0.0
        %7367 = vmatprep.subr.mxu0 0.0
        %7368 = vmatpush2.msra.mxu0 0.0
        %7369 = vmatprep.subr.mxu0 0.0
        %7370 = vmatpush2.msra.mxu0 0.0
        %7371 = vmatprep.subr.mxu0 0.0
        %7372 = vmatpush2.msra.mxu0 0.0
        %7373 = vmatprep.subr.mxu0 0.0
        %7374 = vmatpush2.msra.mxu0 0.0
        %7375 = vmatprep.subr.mxu0 0.0
        %7376 = vmatpush2.msra.mxu0 0.0
        %7377 = vmatprep.subr.mxu0 0.0
        %7378 = vmatpush2.msra.mxu0 0.0
        %7379 = vmatprep.subr.mxu0 0.0
        %7380 = vmatpush2.msra.mxu0 0.0
        %7381 = vmatprep.subr.mxu0 0.0
        %7382 = vmatpush2.msra.mxu0 0.0
        %7383 = vmatprep.subr.mxu0 0.0
        %7384 = vmatpush2.msra.mxu0 0.0
        %7385 = vmatprep.subr.mxu0 0.0
        %7386 = vmatpush2.msra.mxu0 0.0
        %7387 = vmatprep.subr.mxu0 0.0
        %7388 = vmatpush2.msra.mxu0 0.0
        %7389 = vmatprep.mubr.f32.mxu0 0.0
        %7390 = vmatmul.mubr.f32.gmra.mxu0 %v7317
        %v7391 = vpop.f32.mrf.mxu0
        %v7392 = vadd.f32 0.0, %v7391
        %v7393 = vpop.f32.mrf.mxu0
        %7394 = vmatprep.mubr.f32.mxu0 0.0
        %7395 = vmatmul.mubr.f32.gmra.mxu0 %v7320
        %v7396 = vpop.f32.mrf.mxu0
        %v7397 = vadd.f32 0.0, %v7396
        %v7398 = vpop.f32.mrf.mxu0
        %7399 = vdwg.mxu0
        %v7401 = vsel %vm6975, %v7002, 0
        %v7404 = vsel %vm6975, %v7003, 0
        %v7407 = vsel %vm2874, %v7009, 0
        %7409 = vmatprep.subr.mxu0 0.0
        %7410 = vmatpush1.msra.mxu0 0.0
        %7411 = vmatprep.subr.mxu0 0.0
        %7412 = vmatpush1.msra.mxu0 0.0
        %7413 = vmatprep.subr.mxu0 0.0
        %7414 = vmatpush1.msra.mxu0 0.0
        %7415 = vmatprep.subr.mxu0 0.0
        %7416 = vmatpush1.msra.mxu0 0.0
        %7417 = vmatprep.subr.mxu0 0.0
        %7418 = vmatpush1.msra.mxu0 0.0
        %7419 = vmatprep.subr.mxu0 0.0
        %7420 = vmatpush1.msra.mxu0 0.0
        %7421 = vmatprep.subr.mxu0 0.0
        %7422 = vmatpush1.msra.mxu0 0.0
        %7423 = vmatprep.subr.mxu0 0.0
        %7424 = vmatpush1.msra.mxu0 0.0
        %7425 = vmatprep.subr.mxu0 0.0
        %7426 = vmatpush1.msra.mxu0 0.0
        %7427 = vmatprep.subr.mxu0 0.0
        %7428 = vmatpush1.msra.mxu0 0.0
        %7429 = vmatprep.subr.mxu0 0.0
        %7430 = vmatpush1.msra.mxu0 %v7407
        %7431 = vmatprep.subr.mxu0 0.0
        %7432 = vmatpush1.msra.mxu0 %v7008
        %7433 = vmatprep.subr.mxu0 0.0
        %7434 = vmatpush1.msra.mxu0 %v7007
        %7435 = vmatprep.subr.mxu0 0.0
        %7436 = vmatpush1.msra.mxu0 %v7006
        %7437 = vmatprep.subr.mxu0 0.0
        %7438 = vmatpush1.msra.mxu0 %v7005
        %7439 = vmatprep.subr.mxu0 0.0
        %7440 = vmatpush1.msra.mxu0 %v7004
        %7441 = vmatprep.subr.mxu0 0.0
        %7442 = vmatpush2.msra.mxu0 0.0
        %7443 = vmatprep.subr.mxu0 0.0
        %7444 = vmatpush2.msra.mxu0 0.0
        %7445 = vmatprep.subr.mxu0 0.0
        %7446 = vmatpush2.msra.mxu0 0.0
        %7447 = vmatprep.subr.mxu0 0.0
        %7448 = vmatpush2.msra.mxu0 0.0
        %7449 = vmatprep.subr.mxu0 0.0
        %7450 = vmatpush2.msra.mxu0 0.0
        %7451 = vmatprep.subr.mxu0 0.0
        %7452 = vmatpush2.msra.mxu0 0.0
        %7453 = vmatprep.subr.mxu0 0.0
        %7454 = vmatpush2.msra.mxu0 0.0
        %7455 = vmatprep.subr.mxu0 0.0
        %7456 = vmatpush2.msra.mxu0 0.0
        %7457 = vmatprep.subr.mxu0 0.0
        %7458 = vmatpush2.msra.mxu0 0.0
        %7459 = vmatprep.subr.mxu0 0.0
        %7460 = vmatpush2.msra.mxu0 0.0
        %7461 = vmatprep.subr.mxu0 0.0
        %7462 = vmatpush2.msra.mxu0 0.0
        %7463 = vmatprep.subr.mxu0 0.0
        %7464 = vmatpush2.msra.mxu0 0.0
        %7465 = vmatprep.subr.mxu0 0.0
        %7466 = vmatpush2.msra.mxu0 0.0
        %7467 = vmatprep.subr.mxu0 0.0
        %7468 = vmatpush2.msra.mxu0 0.0
        %7469 = vmatprep.subr.mxu0 0.0
        %7470 = vmatpush2.msra.mxu0 0.0
        %7471 = vmatprep.subr.mxu0 0.0
        %7472 = vmatpush2.msra.mxu0 0.0
        %7473 = vmatprep.mubr.f32.mxu0 0.0
        %7474 = vmatmul.mubr.f32.gmra.mxu0 %v7401
        %v7475 = vpop.f32.mrf.mxu0
        %v7476 = vadd.f32 %v7095, %v7475
        %v7477 = vpop.f32.mrf.mxu0
        %7478 = vmatprep.mubr.f32.mxu0 0.0
        %7479 = vmatmul.mubr.f32.gmra.mxu0 %v7404
        %v7480 = vpop.f32.mrf.mxu0
        %v7481 = vadd.f32 %v7100, %v7480
        %v7482 = vpop.f32.mrf.mxu0
        %7483 = vdwg.mxu0
        %v7485 = vsel %vm6975, %v7103, 0
        %v7488 = vsel %vm6975, %v7104, 0
        %v7491 = vsel %vm2874, %v7111, 0
        %7493 = vmatprep.subr.mxu0 0.0
        %7494 = vmatpush1.msra.mxu0 0.0
        %7495 = vmatprep.subr.mxu0 0.0
        %7496 = vmatpush1.msra.mxu0 0.0
        %7497 = vmatprep.subr.mxu0 0.0
        %7498 = vmatpush1.msra.mxu0 0.0
        %7499 = vmatprep.subr.mxu0 0.0
        %7500 = vmatpush1.msra.mxu0 0.0
        %7501 = vmatprep.subr.mxu0 0.0
        %7502 = vmatpush1.msra.mxu0 0.0
        %7503 = vmatprep.subr.mxu0 0.0
        %7504 = vmatpush1.msra.mxu0 0.0
        %7505 = vmatprep.subr.mxu0 0.0
        %7506 = vmatpush1.msra.mxu0 0.0
        %7507 = vmatprep.subr.mxu0 0.0
        %7508 = vmatpush1.msra.mxu0 0.0
        %7509 = vmatprep.subr.mxu0 0.0
        %7510 = vmatpush1.msra.mxu0 0.0
        %7511 = vmatprep.subr.mxu0 0.0
        %7512 = vmatpush1.msra.mxu0 0.0
        %7513 = vmatprep.subr.mxu0 0.0
        %7514 = vmatpush1.msra.mxu0 %v7491
        %7515 = vmatprep.subr.mxu0 0.0
        %7516 = vmatpush1.msra.mxu0 %v7110
        %7517 = vmatprep.subr.mxu0 0.0
        %7518 = vmatpush1.msra.mxu0 %v7109
        %7519 = vmatprep.subr.mxu0 0.0
        %7520 = vmatpush1.msra.mxu0 %v7108
        %7521 = vmatprep.subr.mxu0 0.0
        %7522 = vmatpush1.msra.mxu0 %v7107
        %7523 = vmatprep.subr.mxu0 0.0
        %7524 = vmatpush1.msra.mxu0 %v7106
        %7525 = vmatprep.subr.mxu0 0.0
        %7526 = vmatpush2.msra.mxu0 0.0
        %7527 = vmatprep.subr.mxu0 0.0
        %7528 = vmatpush2.msra.mxu0 0.0
        %7529 = vmatprep.subr.mxu0 0.0
        %7530 = vmatpush2.msra.mxu0 0.0
        %7531 = vmatprep.subr.mxu0 0.0
        %7532 = vmatpush2.msra.mxu0 0.0
        %7533 = vmatprep.subr.mxu0 0.0
        %7534 = vmatpush2.msra.mxu0 0.0
        %7535 = vmatprep.subr.mxu0 0.0
        %7536 = vmatpush2.msra.mxu0 0.0
        %7537 = vmatprep.subr.mxu0 0.0
        %7538 = vmatpush2.msra.mxu0 0.0
        %7539 = vmatprep.subr.mxu0 0.0
        %7540 = vmatpush2.msra.mxu0 0.0
        %7541 = vmatprep.subr.mxu0 0.0
        %7542 = vmatpush2.msra.mxu0 0.0
        %7543 = vmatprep.subr.mxu0 0.0
        %7544 = vmatpush2.msra.mxu0 0.0
        %7545 = vmatprep.subr.mxu0 0.0
        %7546 = vmatpush2.msra.mxu0 0.0
        %7547 = vmatprep.subr.mxu0 0.0
        %7548 = vmatpush2.msra.mxu0 0.0
        %7549 = vmatprep.subr.mxu0 0.0
        %7550 = vmatpush2.msra.mxu0 0.0
        %7551 = vmatprep.subr.mxu0 0.0
        %7552 = vmatpush2.msra.mxu0 0.0
        %7553 = vmatprep.subr.mxu0 0.0
        %7554 = vmatpush2.msra.mxu0 0.0
        %7555 = vmatprep.subr.mxu0 0.0
        %7556 = vmatpush2.msra.mxu0 0.0
        %7557 = vmatprep.mubr.f32.mxu0 0.0
        %7558 = vmatmul.mubr.f32.gmra.mxu0 %v7485
        %v7559 = vpop.f32.mrf.mxu0
        %v7560 = vadd.f32 %v7197, %v7559
        %v7561 = vpop.f32.mrf.mxu0
        %7562 = vmatprep.mubr.f32.mxu0 0.0
        %7563 = vmatmul.mubr.f32.gmra.mxu0 %v7488
        %v7564 = vpop.f32.mrf.mxu0
        %v7565 = vadd.f32 %v7202, %v7564
        %v7566 = vpop.f32.mrf.mxu0
        %7567 = vdwg.mxu0
        %v7569 = vsel %vm6975, %v7205, 0
        %v7572 = vsel %vm6975, %v7206, 0
        %v7575 = vsel %vm2874, %v7213, 0
        %7577 = vmatprep.subr.mxu0 0.0
        %7578 = vmatpush1.msra.mxu0 0.0
        %7579 = vmatprep.subr.mxu0 0.0
        %7580 = vmatpush1.msra.mxu0 0.0
        %7581 = vmatprep.subr.mxu0 0.0
        %7582 = vmatpush1.msra.mxu0 0.0
        %7583 = vmatprep.subr.mxu0 0.0
        %7584 = vmatpush1.msra.mxu0 0.0
        %7585 = vmatprep.subr.mxu0 0.0
        %7586 = vmatpush1.msra.mxu0 0.0
        %7587 = vmatprep.subr.mxu0 0.0
        %7588 = vmatpush1.msra.mxu0 0.0
        %7589 = vmatprep.subr.mxu0 0.0
        %7590 = vmatpush1.msra.mxu0 0.0
        %7591 = vmatprep.subr.mxu0 0.0
        %7592 = vmatpush1.msra.mxu0 0.0
        %7593 = vmatprep.subr.mxu0 0.0
        %7594 = vmatpush1.msra.mxu0 0.0
        %7595 = vmatprep.subr.mxu0 0.0
        %7596 = vmatpush1.msra.mxu0 0.0
        %7597 = vmatprep.subr.mxu0 0.0
        %7598 = vmatpush1.msra.mxu0 %v7575
        %7599 = vmatprep.subr.mxu0 0.0
        %7600 = vmatpush1.msra.mxu0 %v7212
        %7601 = vmatprep.subr.mxu0 0.0
        %7602 = vmatpush1.msra.mxu0 %v7211
        %7603 = vmatprep.subr.mxu0 0.0
        %7604 = vmatpush1.msra.mxu0 %v7210
        %7605 = vmatprep.subr.mxu0 0.0
        %7606 = vmatpush1.msra.mxu0 %v7209
        %7607 = vmatprep.subr.mxu0 0.0
        %7608 = vmatpush1.msra.mxu0 %v7208
        %7609 = vmatprep.subr.mxu0 0.0
        %7610 = vmatpush2.msra.mxu0 0.0
        %7611 = vmatprep.subr.mxu0 0.0
        %7612 = vmatpush2.msra.mxu0 0.0
        %7613 = vmatprep.subr.mxu0 0.0
        %7614 = vmatpush2.msra.mxu0 0.0
        %7615 = vmatprep.subr.mxu0 0.0
        %7616 = vmatpush2.msra.mxu0 0.0
        %7617 = vmatprep.subr.mxu0 0.0
        %7618 = vmatpush2.msra.mxu0 0.0
        %7619 = vmatprep.subr.mxu0 0.0
        %7620 = vmatpush2.msra.mxu0 0.0
        %7621 = vmatprep.subr.mxu0 0.0
        %7622 = vmatpush2.msra.mxu0 0.0
        %7623 = vmatprep.subr.mxu0 0.0
        %7624 = vmatpush2.msra.mxu0 0.0
        %7625 = vmatprep.subr.mxu0 0.0
        %7626 = vmatpush2.msra.mxu0 0.0
        %7627 = vmatprep.subr.mxu0 0.0
        %7628 = vmatpush2.msra.mxu0 0.0
        %7629 = vmatprep.subr.mxu0 0.0
        %7630 = vmatpush2.msra.mxu0 0.0
        %7631 = vmatprep.subr.mxu0 0.0
        %7632 = vmatpush2.msra.mxu0 0.0
        %7633 = vmatprep.subr.mxu0 0.0
        %7634 = vmatpush2.msra.mxu0 0.0
        %7635 = vmatprep.subr.mxu0 0.0
        %7636 = vmatpush2.msra.mxu0 0.0
        %7637 = vmatprep.subr.mxu0 0.0
        %7638 = vmatpush2.msra.mxu0 0.0
        %7639 = vmatprep.subr.mxu0 0.0
        %7640 = vmatpush2.msra.mxu0 0.0
        %7641 = vmatprep.mubr.f32.mxu0 0.0
        %7642 = vmatmul.mubr.f32.gmra.mxu0 %v7569
        %v7643 = vpop.f32.mrf.mxu0
        %v7644 = vadd.f32 %v7299, %v7643
        %v7645 = vpop.f32.mrf.mxu0
        %7646 = vmatprep.mubr.f32.mxu0 0.0
        %7647 = vmatmul.mubr.f32.gmra.mxu0 %v7572
        %v7648 = vpop.f32.mrf.mxu0
        %v7649 = vadd.f32 %v7304, %v7648
        %v7650 = vpop.f32.mrf.mxu0
        %7651 = vdwg.mxu0
        %v7652 = vadd.f32 %v7476, %v7560
        %v7653 = vadd.f32 %v7481, %v7565
        %v7654 = vadd.f32 %v7644, %v7392
        %v7655 = vadd.f32 %v7649, %v7397
        %v7656 = vadd.f32 %v7652, %v7654
        %v7657 = vadd.f32 %v7653, %v7655
        %v7658 = vld [vmem:[#allocation9] sm:$0x1]
        %v7660 = vlaneseq
        %v7661 = vshrl.u32 %v7660, 7
        %v7662 = vsub.s32 0, %v7661
        %v7663 = vrot.slane %v7658, %v7662
        %v7665 = vadd.f32 %v7656, %v7663
        %v7666 = vadd.f32 %v7657, %v7663
        %v7667 = vsub.f32 0.0, %v7665
        %v7668 = vsub.f32 0.0, %v7666
        %v7669 = vmul.f32 %v7667, 1.442695
        %v7670 = vpow.pop %v7669
        %v7671 = vmul.f32 %v7668, 1.442695
        %v7672 = vpow.pop %v7671
        %v7673 = vadd.f32 %v7670, 1.0
        %v7674 = vadd.f32 %v7672, 1.0
        %v7675 = vrcp.pop %v7673
        %v7676 = vmul.f32 1.0, %v7675
        %v7677 = vrcp.pop %v7674
        %v7678 = vmul.f32 1.0, %v7677
        %v7679 = vld [vmem:[#allocation11] sm:$0xff]
        %v7680 = vld [vmem:[#allocation11 + $0x8] sm:$0xff]
        %v7681 = vld [vmem:[#allocation11 + $0x10] sm:$0xff]
        %v7682 = vld [vmem:[#allocation11 + $0x18] sm:$0xff]
        %v7683 = vld [vmem:[#allocation11 + $0x20] sm:$0xff]
        %v7684 = vld [vmem:[#allocation11 + $0x28] sm:$0xff]
        %v7685 = vld [vmem:[#allocation11 + $0x30] sm:$0xff]
        %v7686 = vld [vmem:[#allocation11 + $0x38] sm:$0xff]
        %v7687 = vld [vmem:[#allocation11 + $0x40] sm:$0xff]
        %v7688 = vld [vmem:[#allocation11 + $0x48] sm:$0xff]
        %v7689 = vld [vmem:[#allocation11 + $0x50] sm:$0xff]
        %v7690 = vld [vmem:[#allocation11 + $0x58] sm:$0xff]
        %v7691 = vld [vmem:[#allocation11 + $0x60] sm:$0xff]
        %v7692 = vld [vmem:[#allocation11 + $0x68] sm:$0xff]
        %v7693 = vld [vmem:[#allocation11 + $0x70] sm:$0xff]
        %v7694 = vld [vmem:[#allocation11 + $0x78] sm:$0xff]
        %v7695 = vld [vmem:[#allocation11 + $0x80] sm:$0xff]
        %v7696 = vld [vmem:[#allocation11 + $0x88] sm:$0xff]
        %v7697 = vld [vmem:[#allocation11 + $0x90] sm:$0xff]
        %v7698 = vld [vmem:[#allocation11 + $0x98] sm:$0xff]
        %v7699 = vld [vmem:[#allocation11 + $0xa0] sm:$0xff]
        %v7700 = vld [vmem:[#allocation11 + $0xa8] sm:$0xff]
        %v7701 = vld [vmem:[#allocation11 + $0xb0] sm:$0xff]
        %v7702 = vld [vmem:[#allocation11 + $0xb8] sm:$0xff]
        %v7703 = vld [vmem:[#allocation11 + $0xc0] sm:$0xff]
        %v7704 = vld [vmem:[#allocation11 + $0xc8] sm:$0xff]
        %v7705 = vld [vmem:[#allocation11 + $0xd0] sm:$0xff]
        %v7706 = vld [vmem:[#allocation11 + $0xd8] sm:$0xff]
        %v7707 = vld [vmem:[#allocation11 + $0xe0] sm:$0xff]
        %v7708 = vld [vmem:[#allocation11 + $0xe8] sm:$0xff]
        %v7709 = vld [vmem:[#allocation11 + $0xf0] sm:$0xff]
        %v7710 = vld [vmem:[#allocation11 + $0xf8] sm:$0xff]
        %v7711 = vld [vmem:[#allocation11 + $0x100] sm:$0xff]
        %v7712 = vld [vmem:[#allocation11 + $0x108] sm:$0xff]
        %v7713 = vld [vmem:[#allocation11 + $0x110] sm:$0xff]
        %v7714 = vld [vmem:[#allocation11 + $0x118] sm:$0xff]
        %v7715 = vld [vmem:[#allocation11 + $0x120] sm:$0xff]
        %v7716 = vld [vmem:[#allocation11 + $0x128] sm:$0xff]
        %v7717 = vld [vmem:[#allocation11 + $0x130] sm:$0xff]
        %v7718 = vld [vmem:[#allocation11 + $0x138] sm:$0xff]
        %v7719 = vld [vmem:[#allocation11 + $0x140] sm:$0xff]
        %v7720 = vld [vmem:[#allocation11 + $0x148] sm:$0xff]
        %v7721 = vld [vmem:[#allocation11 + $0x150] sm:$0xff]
        %v7722 = vld [vmem:[#allocation11 + $0x158] sm:$0xff]
        %v7723 = vld [vmem:[#allocation11 + $0x160] sm:$0xff]
        %v7724 = vld [vmem:[#allocation11 + $0x168] sm:$0xff]
        %v7725 = vld [vmem:[#allocation11 + $0x170] sm:$0xff]
        %v7726 = vld [vmem:[#allocation11 + $0x178] sm:$0xff]
        %v7727 = vld [vmem:[#allocation11 + $0x180] sm:$0xff]
        %v7728 = vld [vmem:[#allocation11 + $0x188] sm:$0xff]
        %v7729 = vld [vmem:[#allocation11 + $0x190] sm:$0xff]
        %v7730 = vld [vmem:[#allocation11 + $0x198] sm:$0xff]
        %v7731 = vld [vmem:[#allocation11 + $0x1a0] sm:$0xff]
        %v7732 = vld [vmem:[#allocation11 + $0x1a8] sm:$0xff]
        %v7733 = vld [vmem:[#allocation11 + $0x1b0] sm:$0xff]
        %v7734 = vld [vmem:[#allocation11 + $0x1b8] sm:$0xff]
        %v7735 = vld [vmem:[#allocation11 + $0x1c0] sm:$0xff]
        %v7736 = vld [vmem:[#allocation11 + $0x1c8] sm:$0xff]
        %v7737 = vld [vmem:[#allocation11 + $0x1d0] sm:$0xff]
        %v7738 = vld [vmem:[#allocation11 + $0x1d8] sm:$0xff]
        %v7739 = vld [vmem:[#allocation11 + $0x1e0] sm:$0xff]
        %v7740 = vld [vmem:[#allocation11 + $0x1e8] sm:$0xff]
        %v7741 = vld [vmem:[#allocation11 + $0x1f0] sm:$0xff]
        %v7742 = vld [vmem:[#allocation11 + $0x1f8] sm:$0xff]
        %v7744 = vsel %vm1398, %v7676, 0
        %v7747 = vsel %vm1398, %v7678, 0
        %7749 = vmatprep.subr.mxu0 0.0
        %7750 = vmatpush1.msra.mxu0 0.0
        %7751 = vmatprep.subr.mxu0 0.0
        %7752 = vmatpush1.msra.mxu0 0.0
        %7753 = vmatprep.subr.mxu0 0.0
        %7754 = vmatpush1.msra.mxu0 0.0
        %7755 = vmatprep.subr.mxu0 0.0
        %7756 = vmatpush1.msra.mxu0 0.0
        %7757 = vmatprep.subr.mxu0 0.0
        %7758 = vmatpush1.msra.mxu0 0.0
        %7759 = vmatprep.subr.mxu0 0.0
        %7760 = vmatpush1.msra.mxu0 0.0
        %7761 = vmatprep.subr.mxu0 0.0
        %7762 = vmatpush1.msra.mxu0 0.0
        %7763 = vmatprep.subr.mxu0 0.0
        %7764 = vmatpush1.msra.mxu0 0.0
        %7765 = vmatprep.subr.mxu0 %v7736
        %7766 = vmatpush1.msra.mxu0 %v7735
        %7767 = vmatprep.subr.mxu0 %v7728
        %7768 = vmatpush1.msra.mxu0 %v7727
        %7769 = vmatprep.subr.mxu0 %v7720
        %7770 = vmatpush1.msra.mxu0 %v7719
        %7771 = vmatprep.subr.mxu0 %v7712
        %7772 = vmatpush1.msra.mxu0 %v7711
        %7773 = vmatprep.subr.mxu0 %v7704
        %7774 = vmatpush1.msra.mxu0 %v7703
        %7775 = vmatprep.subr.mxu0 %v7696
        %7776 = vmatpush1.msra.mxu0 %v7695
        %7777 = vmatprep.subr.mxu0 %v7688
        %7778 = vmatpush1.msra.mxu0 %v7687
        %7779 = vmatprep.subr.mxu0 %v7680
        %7780 = vmatpush1.msra.mxu0 %v7679
        %7781 = vmatprep.subr.mxu0 0.0
        %7782 = vmatpush2.msra.mxu0 0.0
        %7783 = vmatprep.subr.mxu0 0.0
        %7784 = vmatpush2.msra.mxu0 0.0
        %7785 = vmatprep.subr.mxu0 0.0
        %7786 = vmatpush2.msra.mxu0 0.0
        %7787 = vmatprep.subr.mxu0 0.0
        %7788 = vmatpush2.msra.mxu0 0.0
        %7789 = vmatprep.subr.mxu0 0.0
        %7790 = vmatpush2.msra.mxu0 0.0
        %7791 = vmatprep.subr.mxu0 0.0
        %7792 = vmatpush2.msra.mxu0 0.0
        %7793 = vmatprep.subr.mxu0 0.0
        %7794 = vmatpush2.msra.mxu0 0.0
        %7795 = vmatprep.subr.mxu0 0.0
        %7796 = vmatpush2.msra.mxu0 0.0
        %7797 = vmatprep.subr.mxu0 0.0
        %7798 = vmatpush2.msra.mxu0 0.0
        %7799 = vmatprep.subr.mxu0 0.0
        %7800 = vmatpush2.msra.mxu0 0.0
        %7801 = vmatprep.subr.mxu0 0.0
        %7802 = vmatpush2.msra.mxu0 0.0
        %7803 = vmatprep.subr.mxu0 0.0
        %7804 = vmatpush2.msra.mxu0 0.0
        %7805 = vmatprep.subr.mxu0 0.0
        %7806 = vmatpush2.msra.mxu0 0.0
        %7807 = vmatprep.subr.mxu0 0.0
        %7808 = vmatpush2.msra.mxu0 0.0
        %7809 = vmatprep.subr.mxu0 0.0
        %7810 = vmatpush2.msra.mxu0 0.0
        %7811 = vmatprep.subr.mxu0 0.0
        %7812 = vmatpush2.msra.mxu0 0.0
        %7813 = vmatprep.mubr.f32.mxu0 0.0
        %7814 = vmatmul.mubr.f32.gmra.mxu0 %v7744
        %v7815 = vpop.f32.mrf.mxu0
        %v7816 = vadd.f32 0.0, %v7815
        %v7817 = vpop.f32.mrf.mxu0
        %v7818 = vadd.f32 0.0, %v7817
        %7819 = vmatprep.mubr.f32.mxu0 0.0
        %7820 = vmatmul.mubr.f32.gmra.mxu0 %v7747
        %v7821 = vpop.f32.mrf.mxu0
        %v7822 = vadd.f32 0.0, %v7821
        %v7823 = vpop.f32.mrf.mxu0
        %v7824 = vadd.f32 0.0, %v7823
        %7825 = vdwg.mxu0
        %7826 = vmatprep.subr.mxu0 0.0
        %7827 = vmatpush1.msra.mxu0 0.0
        %7828 = vmatprep.subr.mxu0 0.0
        %7829 = vmatpush1.msra.mxu0 0.0
        %7830 = vmatprep.subr.mxu0 0.0
        %7831 = vmatpush1.msra.mxu0 0.0
        %7832 = vmatprep.subr.mxu0 0.0
        %7833 = vmatpush1.msra.mxu0 0.0
        %7834 = vmatprep.subr.mxu0 0.0
        %7835 = vmatpush1.msra.mxu0 0.0
        %7836 = vmatprep.subr.mxu0 0.0
        %7837 = vmatpush1.msra.mxu0 0.0
        %7838 = vmatprep.subr.mxu0 0.0
        %7839 = vmatpush1.msra.mxu0 0.0
        %7840 = vmatprep.subr.mxu0 0.0
        %7841 = vmatpush1.msra.mxu0 0.0
        %7842 = vmatprep.subr.mxu0 %v7738
        %7843 = vmatpush1.msra.mxu0 %v7737
        %7844 = vmatprep.subr.mxu0 %v7730
        %7845 = vmatpush1.msra.mxu0 %v7729
        %7846 = vmatprep.subr.mxu0 %v7722
        %7847 = vmatpush1.msra.mxu0 %v7721
        %7848 = vmatprep.subr.mxu0 %v7714
        %7849 = vmatpush1.msra.mxu0 %v7713
        %7850 = vmatprep.subr.mxu0 %v7706
        %7851 = vmatpush1.msra.mxu0 %v7705
        %7852 = vmatprep.subr.mxu0 %v7698
        %7853 = vmatpush1.msra.mxu0 %v7697
        %7854 = vmatprep.subr.mxu0 %v7690
        %7855 = vmatpush1.msra.mxu0 %v7689
        %7856 = vmatprep.subr.mxu0 %v7682
        %7857 = vmatpush1.msra.mxu0 %v7681
        %7858 = vmatprep.subr.mxu0 0.0
        %7859 = vmatpush2.msra.mxu0 0.0
        %7860 = vmatprep.subr.mxu0 0.0
        %7861 = vmatpush2.msra.mxu0 0.0
        %7862 = vmatprep.subr.mxu0 0.0
        %7863 = vmatpush2.msra.mxu0 0.0
        %7864 = vmatprep.subr.mxu0 0.0
        %7865 = vmatpush2.msra.mxu0 0.0
        %7866 = vmatprep.subr.mxu0 0.0
        %7867 = vmatpush2.msra.mxu0 0.0
        %7868 = vmatprep.subr.mxu0 0.0
        %7869 = vmatpush2.msra.mxu0 0.0
        %7870 = vmatprep.subr.mxu0 0.0
        %7871 = vmatpush2.msra.mxu0 0.0
        %7872 = vmatprep.subr.mxu0 0.0
        %7873 = vmatpush2.msra.mxu0 0.0
        %7874 = vmatprep.subr.mxu0 0.0
        %7875 = vmatpush2.msra.mxu0 0.0
        %7876 = vmatprep.subr.mxu0 0.0
        %7877 = vmatpush2.msra.mxu0 0.0
        %7878 = vmatprep.subr.mxu0 0.0
        %7879 = vmatpush2.msra.mxu0 0.0
        %7880 = vmatprep.subr.mxu0 0.0
        %7881 = vmatpush2.msra.mxu0 0.0
        %7882 = vmatprep.subr.mxu0 0.0
        %7883 = vmatpush2.msra.mxu0 0.0
        %7884 = vmatprep.subr.mxu0 0.0
        %7885 = vmatpush2.msra.mxu0 0.0
        %7886 = vmatprep.subr.mxu0 0.0
        %7887 = vmatpush2.msra.mxu0 0.0
        %7888 = vmatprep.subr.mxu0 0.0
        %7889 = vmatpush2.msra.mxu0 0.0
        %7890 = vmatprep.mubr.f32.mxu0 0.0
        %7891 = vmatmul.mubr.f32.gmra.mxu0 %v7744
        %v7892 = vpop.f32.mrf.mxu0
        %v7893 = vadd.f32 0.0, %v7892
        %v7894 = vpop.f32.mrf.mxu0
        %v7895 = vadd.f32 0.0, %v7894
        %7896 = vmatprep.mubr.f32.mxu0 0.0
        %7897 = vmatmul.mubr.f32.gmra.mxu0 %v7747
        %v7898 = vpop.f32.mrf.mxu0
        %v7899 = vadd.f32 0.0, %v7898
        %v7900 = vpop.f32.mrf.mxu0
        %v7901 = vadd.f32 0.0, %v7900
        %7902 = vdwg.mxu0
        %7903 = vmatprep.subr.mxu0 0.0
        %7904 = vmatpush1.msra.mxu0 0.0
        %7905 = vmatprep.subr.mxu0 0.0
        %7906 = vmatpush1.msra.mxu0 0.0
        %7907 = vmatprep.subr.mxu0 0.0
        %7908 = vmatpush1.msra.mxu0 0.0
        %7909 = vmatprep.subr.mxu0 0.0
        %7910 = vmatpush1.msra.mxu0 0.0
        %7911 = vmatprep.subr.mxu0 0.0
        %7912 = vmatpush1.msra.mxu0 0.0
        %7913 = vmatprep.subr.mxu0 0.0
        %7914 = vmatpush1.msra.mxu0 0.0
        %7915 = vmatprep.subr.mxu0 0.0
        %7916 = vmatpush1.msra.mxu0 0.0
        %7917 = vmatprep.subr.mxu0 0.0
        %7918 = vmatpush1.msra.mxu0 0.0
        %7919 = vmatprep.subr.mxu0 %v7740
        %7920 = vmatpush1.msra.mxu0 %v7739
        %7921 = vmatprep.subr.mxu0 %v7732
        %7922 = vmatpush1.msra.mxu0 %v7731
        %7923 = vmatprep.subr.mxu0 %v7724
        %7924 = vmatpush1.msra.mxu0 %v7723
        %7925 = vmatprep.subr.mxu0 %v7716
        %7926 = vmatpush1.msra.mxu0 %v7715
        %7927 = vmatprep.subr.mxu0 %v7708
        %7928 = vmatpush1.msra.mxu0 %v7707
        %7929 = vmatprep.subr.mxu0 %v7700
        %7930 = vmatpush1.msra.mxu0 %v7699
        %7931 = vmatprep.subr.mxu0 %v7692
        %7932 = vmatpush1.msra.mxu0 %v7691
        %7933 = vmatprep.subr.mxu0 %v7684
        %7934 = vmatpush1.msra.mxu0 %v7683
        %7935 = vmatprep.subr.mxu0 0.0
        %7936 = vmatpush2.msra.mxu0 0.0
        %7937 = vmatprep.subr.mxu0 0.0
        %7938 = vmatpush2.msra.mxu0 0.0
        %7939 = vmatprep.subr.mxu0 0.0
        %7940 = vmatpush2.msra.mxu0 0.0
        %7941 = vmatprep.subr.mxu0 0.0
        %7942 = vmatpush2.msra.mxu0 0.0
        %7943 = vmatprep.subr.mxu0 0.0
        %7944 = vmatpush2.msra.mxu0 0.0
        %7945 = vmatprep.subr.mxu0 0.0
        %7946 = vmatpush2.msra.mxu0 0.0
        %7947 = vmatprep.subr.mxu0 0.0
        %7948 = vmatpush2.msra.mxu0 0.0
        %7949 = vmatprep.subr.mxu0 0.0
        %7950 = vmatpush2.msra.mxu0 0.0
        %7951 = vmatprep.subr.mxu0 0.0
        %7952 = vmatpush2.msra.mxu0 0.0
        %7953 = vmatprep.subr.mxu0 0.0
        %7954 = vmatpush2.msra.mxu0 0.0
        %7955 = vmatprep.subr.mxu0 0.0
        %7956 = vmatpush2.msra.mxu0 0.0
        %7957 = vmatprep.subr.mxu0 0.0
        %7958 = vmatpush2.msra.mxu0 0.0
        %7959 = vmatprep.subr.mxu0 0.0
        %7960 = vmatpush2.msra.mxu0 0.0
        %7961 = vmatprep.subr.mxu0 0.0
        %7962 = vmatpush2.msra.mxu0 0.0
        %7963 = vmatprep.subr.mxu0 0.0
        %7964 = vmatpush2.msra.mxu0 0.0
        %7965 = vmatprep.subr.mxu0 0.0
        %7966 = vmatpush2.msra.mxu0 0.0
        %7967 = vmatprep.mubr.f32.mxu0 0.0
        %7968 = vmatmul.mubr.f32.gmra.mxu0 %v7744
        %v7969 = vpop.f32.mrf.mxu0
        %v7970 = vadd.f32 0.0, %v7969
        %v7971 = vpop.f32.mrf.mxu0
        %v7972 = vadd.f32 0.0, %v7971
        %7973 = vmatprep.mubr.f32.mxu0 0.0
        %7974 = vmatmul.mubr.f32.gmra.mxu0 %v7747
        %v7975 = vpop.f32.mrf.mxu0
        %v7976 = vadd.f32 0.0, %v7975
        %v7977 = vpop.f32.mrf.mxu0
        %v7978 = vadd.f32 0.0, %v7977
        %7979 = vdwg.mxu0
        %7980 = vmatprep.subr.mxu0 0.0
        %7981 = vmatpush1.msra.mxu0 0.0
        %7982 = vmatprep.subr.mxu0 0.0
        %7983 = vmatpush1.msra.mxu0 0.0
        %7984 = vmatprep.subr.mxu0 0.0
        %7985 = vmatpush1.msra.mxu0 0.0
        %7986 = vmatprep.subr.mxu0 0.0
        %7987 = vmatpush1.msra.mxu0 0.0
        %7988 = vmatprep.subr.mxu0 0.0
        %7989 = vmatpush1.msra.mxu0 0.0
        %7990 = vmatprep.subr.mxu0 0.0
        %7991 = vmatpush1.msra.mxu0 0.0
        %7992 = vmatprep.subr.mxu0 0.0
        %7993 = vmatpush1.msra.mxu0 0.0
        %7994 = vmatprep.subr.mxu0 0.0
        %7995 = vmatpush1.msra.mxu0 0.0
        %7996 = vmatprep.subr.mxu0 %v7742
        %7997 = vmatpush1.msra.mxu0 %v7741
        %7998 = vmatprep.subr.mxu0 %v7734
        %7999 = vmatpush1.msra.mxu0 %v7733
        %8000 = vmatprep.subr.mxu0 %v7726
        %8001 = vmatpush1.msra.mxu0 %v7725
        %8002 = vmatprep.subr.mxu0 %v7718
        %8003 = vmatpush1.msra.mxu0 %v7717
        %8004 = vmatprep.subr.mxu0 %v7710
        %8005 = vmatpush1.msra.mxu0 %v7709
        %8006 = vmatprep.subr.mxu0 %v7702
        %8007 = vmatpush1.msra.mxu0 %v7701
        %8008 = vmatprep.subr.mxu0 %v7694
        %8009 = vmatpush1.msra.mxu0 %v7693
        %8010 = vmatprep.subr.mxu0 %v7686
        %8011 = vmatpush1.msra.mxu0 %v7685
        %8012 = vmatprep.subr.mxu0 0.0
        %8013 = vmatpush2.msra.mxu0 0.0
        %8014 = vmatprep.subr.mxu0 0.0
        %8015 = vmatpush2.msra.mxu0 0.0
        %8016 = vmatprep.subr.mxu0 0.0
        %8017 = vmatpush2.msra.mxu0 0.0
        %8018 = vmatprep.subr.mxu0 0.0
        %8019 = vmatpush2.msra.mxu0 0.0
        %8020 = vmatprep.subr.mxu0 0.0
        %8021 = vmatpush2.msra.mxu0 0.0
        %8022 = vmatprep.subr.mxu0 0.0
        %8023 = vmatpush2.msra.mxu0 0.0
        %8024 = vmatprep.subr.mxu0 0.0
        %8025 = vmatpush2.msra.mxu0 0.0
        %8026 = vmatprep.subr.mxu0 0.0
        %8027 = vmatpush2.msra.mxu0 0.0
        %8028 = vmatprep.subr.mxu0 0.0
        %8029 = vmatpush2.msra.mxu0 0.0
        %8030 = vmatprep.subr.mxu0 0.0
        %8031 = vmatpush2.msra.mxu0 0.0
        %8032 = vmatprep.subr.mxu0 0.0
        %8033 = vmatpush2.msra.mxu0 0.0
        %8034 = vmatprep.subr.mxu0 0.0
        %8035 = vmatpush2.msra.mxu0 0.0
        %8036 = vmatprep.subr.mxu0 0.0
        %8037 = vmatpush2.msra.mxu0 0.0
        %8038 = vmatprep.subr.mxu0 0.0
        %8039 = vmatpush2.msra.mxu0 0.0
        %8040 = vmatprep.subr.mxu0 0.0
        %8041 = vmatpush2.msra.mxu0 0.0
        %8042 = vmatprep.subr.mxu0 0.0
        %8043 = vmatpush2.msra.mxu0 0.0
        %8044 = vmatprep.mubr.f32.mxu0 0.0
        %8045 = vmatmul.mubr.f32.gmra.mxu0 %v7744
        %v8046 = vpop.f32.mrf.mxu0
        %v8047 = vadd.f32 0.0, %v8046
        %v8048 = vpop.f32.mrf.mxu0
        %v8049 = vadd.f32 0.0, %v8048
        %8050 = vmatprep.mubr.f32.mxu0 0.0
        %8051 = vmatmul.mubr.f32.gmra.mxu0 %v7747
        %v8052 = vpop.f32.mrf.mxu0
        %v8053 = vadd.f32 0.0, %v8052
        %v8054 = vpop.f32.mrf.mxu0
        %v8055 = vadd.f32 0.0, %v8054
        %8056 = vdwg.mxu0
        %v8057 = vmul.f32 %v433, %v7816
        %v8058 = vmul.f32 %v434, %v7818
        %v8059 = vmul.f32 %v1218, %v7893
        %v8060 = vmul.f32 %v1219, %v7895
        %v8061 = vmul.f32 %v6314, %v7970
        %v8062 = vmul.f32 %v6315, %v7972
        %v8063 = vmul.f32 %v6273, %v8047
        %v8064 = vmul.f32 %v6274, %v8049
        %v8065 = vmul.f32 %v435, %v7822
        %v8066 = vmul.f32 %v436, %v7824
        %v8067 = vmul.f32 %v1220, %v7899
        %v8068 = vmul.f32 %v1221, %v7901
        %v8069 = vmul.f32 %v6316, %v7976
        %v8070 = vmul.f32 %v6317, %v7978
        %v8071 = vmul.f32 %v6275, %v8053
        %v8072 = vmul.f32 %v6276, %v8055
        %v8073 = vadd.f32 %v8057, %v8059
        %v8074 = vadd.f32 %v8058, %v8060
        %v8075 = vadd.f32 %v8065, %v8067
        %v8076 = vadd.f32 %v8066, %v8068
        %v8077 = vadd.f32 %v8061, %v8063
        %v8078 = vadd.f32 %v8062, %v8064
        %v8079 = vadd.f32 %v8069, %v8071
        %v8080 = vadd.f32 %v8070, %v8072
        %v8081 = vadd.f32 %v8073, %v8077
        %v8082 = vadd.f32 %v8074, %v8078
        %v8083 = vadd.f32 %v8075, %v8079
        %v8084 = vadd.f32 %v8076, %v8080
        %v8085 = vld [vmem:[#allocation6 + $0xec0] sm:$0xff]
        %v8086 = vld [vmem:[#allocation6 + $0xec8] sm:$0xff]
        %v8087 = vld [vmem:[#allocation6 + $0xed0] sm:$0xff]
        %v8088 = vld [vmem:[#allocation6 + $0xed8] sm:$0xff]
        %v8089 = vld [vmem:[#allocation6 + $0xee0] sm:$0xff]
        %v8090 = vld [vmem:[#allocation6 + $0xee8] sm:$0xff]
        %v8091 = vld [vmem:[#allocation6 + $0xef0] sm:$0xff]
        %v8092 = vld [vmem:[#allocation6 + $0xef8] sm:$0xff]
        %v8093 = vld [vmem:[#allocation6 + $0xf00] sm:$0xff]
        %v8094 = vld [vmem:[#allocation6 + $0xf08] sm:$0xff]
        %v8095 = vld [vmem:[#allocation6 + $0xf10] sm:$0xff]
        %v8096 = vld [vmem:[#allocation6 + $0xf18] sm:$0xff]
        %v8097 = vld [vmem:[#allocation6 + $0xf20] sm:$0xff]
        %v8098 = vld [vmem:[#allocation6 + $0xf28] sm:$0xff]
        %v8099 = vld [vmem:[#allocation6 + $0xf30] sm:$0xff]
        %v8100 = vld [vmem:[#allocation6 + $0xf38] sm:$0xff]
        %v8101 = vld [vmem:[#allocation6 + $0xf40] sm:$0xff]
        %v8102 = vld [vmem:[#allocation6 + $0xf48] sm:$0xff]
        %v8103 = vld [vmem:[#allocation6 + $0xf50] sm:$0xff]
        %v8104 = vld [vmem:[#allocation6 + $0xf58] sm:$0xff]
        %v8105 = vld [vmem:[#allocation6 + $0xf60] sm:$0xff]
        %v8106 = vld [vmem:[#allocation6 + $0xf68] sm:$0xff]
        %v8107 = vld [vmem:[#allocation6 + $0xf70] sm:$0xff]
        %v8108 = vld [vmem:[#allocation6 + $0xf78] sm:$0xff]
        %v8109 = vld [vmem:[#allocation6 + $0xf80] sm:$0xff]
        %v8110 = vld [vmem:[#allocation6 + $0xf88] sm:$0xff]
        %v8111 = vld [vmem:[#allocation6 + $0xf90] sm:$0xff]
        %v8112 = vld [vmem:[#allocation6 + $0xf98] sm:$0xff]
        %v8113 = vld [vmem:[#allocation6 + $0xfa0] sm:$0xff]
        %v8114 = vld [vmem:[#allocation6 + $0xfa8] sm:$0xff]
        %v8115 = vld [vmem:[#allocation6 + $0xfb0] sm:$0xff]
        %v8116 = vld [vmem:[#allocation6 + $0xfb8] sm:$0xff]
        %v8117 = vld [vmem:[#allocation6 + $0xfc0] sm:$0xff]
        %v8118 = vld [vmem:[#allocation6 + $0xfc8] sm:$0xff]
        %v8119 = vld [vmem:[#allocation6 + $0xfd0] sm:$0xff]
        %v8120 = vld [vmem:[#allocation6 + $0xfd8] sm:$0xff]
        %v8121 = vld [vmem:[#allocation6 + $0xfe0] sm:$0xff]
        %v8122 = vld [vmem:[#allocation6 + $0xfe8] sm:$0xff]
        %v8123 = vld [vmem:[#allocation6 + $0xff0] sm:$0xff]
        %v8124 = vld [vmem:[#allocation6 + $0xff8] sm:$0xff]
        %v8125 = vld [vmem:[#allocation6 + $0x1000] sm:$0xff]
        %v8126 = vld [vmem:[#allocation6 + $0x1008] sm:$0xff]
        %v8127 = vld [vmem:[#allocation6 + $0x1010] sm:$0xff]
        %v8128 = vld [vmem:[#allocation6 + $0x1018] sm:$0xff]
        %v8129 = vld [vmem:[#allocation6 + $0x1020] sm:$0xff]
        %v8130 = vld [vmem:[#allocation6 + $0x1028] sm:$0xff]
        %v8131 = vld [vmem:[#allocation6 + $0x1030] sm:$0xff]
        %v8132 = vld [vmem:[#allocation6 + $0x1038] sm:$0xff]
        %v8133 = vld [vmem:[#allocation6 + $0x1040] sm:$0xff]
        %v8134 = vld [vmem:[#allocation6 + $0x1048] sm:$0xff]
        %v8135 = vld [vmem:[#allocation6 + $0x1050] sm:$0xff]
        %v8136 = vld [vmem:[#allocation6 + $0x1058] sm:$0xff]
        %v8137 = vld [vmem:[#allocation6 + $0x1060] sm:$0xff]
        %v8138 = vld [vmem:[#allocation6 + $0x1068] sm:$0xff]
        %v8139 = vld [vmem:[#allocation6 + $0x1070] sm:$0xff]
        %v8140 = vld [vmem:[#allocation6 + $0x1078] sm:$0xff]
        %v8141 = vld [vmem:[#allocation6 + $0x1080] sm:$0xff]
        %v8142 = vld [vmem:[#allocation6 + $0x1088] sm:$0xff]
        %v8143 = vld [vmem:[#allocation6 + $0x1090] sm:$0xff]
        %v8144 = vld [vmem:[#allocation6 + $0x1098] sm:$0xff]
        %v8145 = vld [vmem:[#allocation6 + $0x10a0] sm:$0xff]
        %v8146 = vld [vmem:[#allocation6 + $0x10a8] sm:$0xff]
        %v8147 = vld [vmem:[#allocation6 + $0x10b0] sm:$0xff]
        %v8148 = vld [vmem:[#allocation6 + $0x10b8] sm:$0xff]
        %s8149 = scalar_lea.vmem [#allocation4], 6
        %v8150 = vld [vmem:[%s8149] ss:$8 sm:$0x3]
        %v8152 = vlaneseq
        %v8153 = vshrl.u32 %v8152, 7
        %v8154 = vsub.s32 0, %v8153
        %v8155 = vrot.slane %v8150, %v8154
        %v8156 = vlaneseq
        %v8157 = vshrl.u32 %v8156, 7
        %v8158 = vsub.s32 1, %v8157
        %v8159 = vrot.slane %v8150, %v8158
        %8162 = vmatprep.subr.mxu0 %v8116
        %8163 = vmatpush1.msra.mxu0 %v8115
        %8164 = vmatprep.subr.mxu0 %v8114
        %8165 = vmatpush1.msra.mxu0 %v8113
        %8166 = vmatprep.subr.mxu0 %v8112
        %8167 = vmatpush1.msra.mxu0 %v8111
        %8168 = vmatprep.subr.mxu0 %v8110
        %8169 = vmatpush1.msra.mxu0 %v8109
        %8170 = vmatprep.subr.mxu0 %v8108
        %8171 = vmatpush1.msra.mxu0 %v8107
        %8172 = vmatprep.subr.mxu0 %v8106
        %8173 = vmatpush1.msra.mxu0 %v8105
        %8174 = vmatprep.subr.mxu0 %v8104
        %8175 = vmatpush1.msra.mxu0 %v8103
        %8176 = vmatprep.subr.mxu0 %v8102
        %8177 = vmatpush1.msra.mxu0 %v8101
        %8178 = vmatprep.subr.mxu0 %v8100
        %8179 = vmatpush1.msra.mxu0 %v8099
        %8180 = vmatprep.subr.mxu0 %v8098
        %8181 = vmatpush1.msra.mxu0 %v8097
        %8182 = vmatprep.subr.mxu0 %v8096
        %8183 = vmatpush1.msra.mxu0 %v8095
        %8184 = vmatprep.subr.mxu0 %v8094
        %8185 = vmatpush1.msra.mxu0 %v8093
        %8186 = vmatprep.subr.mxu0 %v8092
        %8187 = vmatpush1.msra.mxu0 %v8091
        %8188 = vmatprep.subr.mxu0 %v8090
        %8189 = vmatpush1.msra.mxu0 %v8089
        %8190 = vmatprep.subr.mxu0 %v8088
        %8191 = vmatpush1.msra.mxu0 %v8087
        %8192 = vmatprep.subr.mxu0 %v8086
        %8193 = vmatpush1.msra.mxu0 %v8085
        %8194 = vmatprep.subr.mxu0 %v8148
        %8195 = vmatpush2.msra.mxu0 %v8147
        %8196 = vmatprep.subr.mxu0 %v8146
        %8197 = vmatpush2.msra.mxu0 %v8145
        %8198 = vmatprep.subr.mxu0 %v8144
        %8199 = vmatpush2.msra.mxu0 %v8143
        %8200 = vmatprep.subr.mxu0 %v8142
        %8201 = vmatpush2.msra.mxu0 %v8141
        %8202 = vmatprep.subr.mxu0 %v8140
        %8203 = vmatpush2.msra.mxu0 %v8139
        %8204 = vmatprep.subr.mxu0 %v8138
        %8205 = vmatpush2.msra.mxu0 %v8137
        %8206 = vmatprep.subr.mxu0 %v8136
        %8207 = vmatpush2.msra.mxu0 %v8135
        %8208 = vmatprep.subr.mxu0 %v8134
        %8209 = vmatpush2.msra.mxu0 %v8133
        %8210 = vmatprep.subr.mxu0 %v8132
        %8211 = vmatpush2.msra.mxu0 %v8131
        %8212 = vmatprep.subr.mxu0 %v8130
        %8213 = vmatpush2.msra.mxu0 %v8129
        %8214 = vmatprep.subr.mxu0 %v8128
        %8215 = vmatpush2.msra.mxu0 %v8127
        %8216 = vmatprep.subr.mxu0 %v8126
        %8217 = vmatpush2.msra.mxu0 %v8125
        %8218 = vmatprep.subr.mxu0 %v8124
        %8219 = vmatpush2.msra.mxu0 %v8123
        %8220 = vmatprep.subr.mxu0 %v8122
        %8221 = vmatpush2.msra.mxu0 %v8121
        %8222 = vmatprep.subr.mxu0 %v8120
        %8223 = vmatpush2.msra.mxu0 %v8119
        %8224 = vmatprep.subr.mxu0 %v8118
        %8225 = vmatpush2.msra.mxu0 %v8117
        %8226 = vmatprep.mubr.f32.mxu0 %v8082
        %8227 = vmatmul.mubr.f32.gmra.mxu0 %v8081
        %v8228 = vpop.f32.mrf.mxu0
        %v8229 = vadd.f32 %v8155, %v8228
        %v8230 = vpop.f32.mrf.mxu0
        %v8231 = vadd.f32 %v8159, %v8230
        %8232 = vmatprep.mubr.f32.mxu0 %v8084
        %8233 = vmatmul.mubr.f32.gmra.mxu0 %v8083
        %v8234 = vpop.f32.mrf.mxu0
        %v8235 = vadd.f32 %v8155, %v8234
        %v8236 = vpop.f32.mrf.mxu0
        %v8237 = vadd.f32 %v8159, %v8236
        %8238 = vdwg.mxu0
        %v8239 = vmul.f32 %v323, %v8229
        %v8240 = vmul.f32 %v324, %v8231
        %v8241 = vmul.f32 %v325, %v8235
        %v8242 = vmul.f32 %v326, %v8237
        %8243 = vst [vmem:[%s322] sm:$0xff] %v8239
        %8244 = vst [vmem:[%s322 + $0x8] sm:$0xff] %v8240
        %8245 = vst [vmem:[%s322 + $0x10] sm:$0xff] %v8241
        %8246 = vst [vmem:[%s322 + $0x18] sm:$0xff] %v8242
        %p8247 = scmp.lt.s32.totalorder %s20, 1
        %s8248 = scalar_select %p8247, %s20, 1
        %s8249 = smul.addr %s8248, 4
        %s8250 = smul.addr %s8249, 8
        %s8251 = scalar_lea.vmem %s6, %s8250
        // Predicated region
        $region65: #{get_contextual_information_pallas.1} parent=43 // pred_check
          %p8252 = pneg %p169
        $region66: #{get_contextual_information_pallas.1} parent=43 // pred_check_branch
          %8254 = sbr.rel (%p8252) target = $region68
        $region67: #{get_contextual_information_pallas.1} parent=43 // pred_region
          _
        $region68: #{get_contextual_information_pallas.1} parent=43 // pred_fallthru
          _
      $region44: #{get_contextual_information_pallas.1} parent=5 // pred_fallthru
        _
      %p8255 = scmp.le.s32.totalorder 2, %s15
      // Predicated region
      $region69: #{get_contextual_information_pallas.1} parent=5 // pred_check
        %p8256 = pneg %p8255
      $region70: #{get_contextual_information_pallas.1} parent=5 // pred_check_branch
        %8258 = sbr.rel (%p8256) target = $region72
      $region71: #{get_contextual_information_pallas.1} parent=5 // pred_region
        %s8259 = ssub.s32 %s15, 2
        // Predicated region
        $region73: #{get_contextual_information_pallas.1} parent=71 // pred_check
          %p8260 = pneg %p175
        $region74: #{get_contextual_information_pallas.1} parent=71 // pred_check_branch
          %8262 = sbr.rel (%p8260) target = $region76
        $region75: #{get_contextual_information_pallas.1} parent=71 // pred_region
          %p8263 = scmp.lt.s32.totalorder %s21, 1
          %s8264 = scalar_select %p8263, %s21, 1
          %s8265 = smul.addr %s8264, 4
          %s8266 = smul.addr %s8265, 8
          %s8267 = scalar_lea.vmem %s6, %s8266
        $region76: #{get_contextual_information_pallas.1} parent=71 // pred_fallthru
          _
      $region72: #{get_contextual_information_pallas.1} parent=5 // pred_fallthru
        _
    $region6: #{get_contextual_information_pallas.1} parent=1 // loop_footer
      %s19 = sadd.s32 1, %s15
    $region7: #{get_contextual_information_pallas.1} parent=1 // loop_footer_branch
      %14 = sbr.rel target = $region3
    $region8: #{get_contextual_information_pallas.1} parent=1 // loop_exit
      _
    %8268 = vsyncpa [#allocation5], 1
    %s8269 = scalar_lea.sflag [#allocation5], 1
    %8270 = vsyncpa %s8269, 1
    %8271 = vsyncpa [#allocation7], 1
    %8272 = vsyncpa [#allocation10], 1

</llo_original>
